<compile_context>
chip_gen: v7x
topology: tpu7x:2x2x1
jax: 0.10.0
libtpu: 0.0.40
codegen_flags: <defaults>
</compile_context>

<pallas_src>
import jax
import jax.numpy as jnp
from jax import lax
from jax.experimental import pallas as pl
from jax.experimental.pallas import tpu as pltpu

# ---- model hyper-parameters (from the PyTorch module) -----------------------
HIDDEN_SIZE = 128
INPUT_SIZE = 28
NUM_CLASSES = 10
NUM_LAYERS = 2        # hard-coded as two explicit layers inside the kernel
SEQ_LEN = 28
BATCH = 8
OUT_PAD = 128         # FC output padded to one full lane tile


def _sigmoid(x):
    # sigmoid(x) == 0.5 * tanh(0.5 * x) + 0.5  -> one EUP op per gate
    return 0.5 * jnp.tanh(0.5 * x) + 0.5


def _gates_to_hc(gates, c, H):
    """PyTorch gate order i, f, g, o. gates: (B, 4H) f32."""
    i = _sigmoid(gates[:, 0 * H:1 * H])
    f = _sigmoid(gates[:, 1 * H:2 * H])
    g = jnp.tanh(gates[:, 2 * H:3 * H])
    o = _sigmoid(gates[:, 3 * H:4 * H])
    c_new = f * c + i * g
    h_new = o * jnp.tanh(c_new)
    return h_new, c_new


def rnn_kernel(xproj_ref,    # (S, B, 4H) f32  precomputed x @ W_ih0 + b0
               whh0_ref,     # (H, 4H)   bf16  layer-0 recurrent weight (T)
               w1_ref,       # (2H, 4H)  bf16  fused layer-1 [W_ih1; W_hh1] (T)
               b1_ref,       # (1, 4H)   f32   layer-1 bias (b_ih + b_hh)
               wfc_ref,      # (H, OUT_PAD) bf16  fc.weight^T, lane-padded
               bfc_ref,      # (1, OUT_PAD) f32   fc.bias, lane-padded
               out_ref):     # (B, OUT_PAD) f32
    S, B, G = xproj_ref.shape
    H = G // 4

    # Loop-invariant weight loads / broadcasts hoisted above the time loop.
    whh0 = whh0_ref[...]
    w1 = w1_ref[...]
    b1 = jnp.broadcast_to(b1_ref[...], (B, G))

    def step(t, carry):
        h0, c0, h1, c1 = carry
        # ---- layer 0: precomputed input projection + recurrent projection ----
        g0 = xproj_ref[t] + jnp.dot(h0.astype(jnp.bfloat16), whh0,
                                    preferred_element_type=jnp.float32)
        h0, c0 = _gates_to_hc(g0, c0, H)
        # ---- layer 1: single fused K=2H dot on [h0_new, h1_prev] ----
        hx = jnp.concatenate([h0, h1], axis=-1).astype(jnp.bfloat16)   # (B, 2H)
        g1 = jnp.dot(hx, w1, preferred_element_type=jnp.float32) + b1
        h1, c1 = _gates_to_hc(g1, c1, H)
        return (h0, c0, h1, c1)

    zeros = jnp.zeros((B, H), jnp.float32)      # h0 = c0 = 0, as in PyTorch
    _, _, h1, _ = lax.fori_loop(0, S, step, (zeros, zeros, zeros, zeros),
                                unroll=True)

    # final Linear layer on the last timestep's layer-1 hidden state
    out_ref[...] = (jnp.dot(h1.astype(jnp.bfloat16), wfc_ref[...],
                            preferred_element_type=jnp.float32)
                    + bfc_ref[...])


def _input_proj(x_bf, wih0, b0):
    """Hoisted layer-0 input projection for all timesteps: (S, B, 4H) f32."""
    x_tm = jnp.transpose(x_bf, (1, 0, 2))                 # (S, B, I)
    return jnp.einsum('sbi,ig->sbg', x_tm, wih0) + b0     # f32


def rnn_forward(x_bf, params):
    """x_bf: (batch, seq, input) float32 -> logits (batch, num_classes)."""
    wih0, whh0, b0, wih1, whh1, b1, wfc, bfc = params
    B, S, I = x_bf.shape
    H = HIDDEN_SIZE
    C = NUM_CLASSES

    # Precompute the layer-0 input projection once (one big matmul, off the
    # serial critical path).
    xproj = _input_proj(x_bf, wih0, b0)                                 # (S,B,4H)

    # bf16 weights for the in-loop dots; fuse layer-1 x/h weights along K.
    whh0_b = whh0.astype(jnp.bfloat16)                                  # (H, 4H)
    w1_b = jnp.concatenate([wih1, whh1], axis=0).astype(jnp.bfloat16)   # (2H,4H)

    # Lane-pad the FC so the single output store is lane-dense.
    wfc_pad = (jnp.zeros((H, OUT_PAD), jnp.float32)
               .at[:, :C].set(wfc).astype(jnp.bfloat16))
    bfc_pad = jnp.zeros((1, OUT_PAD), jnp.float32).at[:, :C].set(bfc)

    out_pad = pl.pallas_call(
        rnn_kernel,
        out_shape=jax.ShapeDtypeStruct((B, OUT_PAD), jnp.float32),
        # No grid: single invocation; every operand lives fully in VMEM
        # (total footprint < 1 MiB on all generations).
        in_specs=[pl.BlockSpec(memory_space=pltpu.MemorySpace.VMEM)] * 6,
        out_specs=pl.BlockSpec(memory_space=pltpu.MemorySpace.VMEM),
    )(xproj, whh0_b, w1_b, b1, wfc_pad, bfc_pad)

    return out_pad[:, :C]


def init_params(key):
    """Deterministic init, matching PyTorch LSTM/Linear shapes (transposed)."""
    H, I, C = HIDDEN_SIZE, INPUT_SIZE, NUM_CLASSES
    k = 1.0 / jnp.sqrt(jnp.float32(H))
    keys = jax.random.split(key, 10)
    u = lambda kk, shape, s: jax.random.uniform(kk, shape, jnp.float32, -s, s)
    wih0 = u(keys[0], (I, 4 * H), k)                              # W_ih_l0^T
    whh0 = u(keys[1], (H, 4 * H), k)                              # W_hh_l0^T
    b0 = u(keys[2], (1, 4 * H), k) + u(keys[3], (1, 4 * H), k)    # b_ih + b_hh
    wih1 = u(keys[4], (H, 4 * H), k)                              # W_ih_l1^T
    whh1 = u(keys[5], (H, 4 * H), k)                              # W_hh_l1^T
    b1 = u(keys[6], (1, 4 * H), k) + u(keys[7], (1, 4 * H), k)
    wfc = u(keys[8], (H, C), k)                                   # fc.weight^T
    bfc = u(keys[9], (1, C), k)
    return (wih0, whh0, b0, wih1, whh1, b1, wfc, bfc)


def rnn_reference_matched(x_bf, params):
    """Pure-JAX reference using the SAME precision choices as the kernel."""
    wih0, whh0, b0, wih1, whh1, b1, wfc, bfc = params
    B = x_bf.shape[0]
    H = HIDDEN_SIZE

    xproj = _input_proj(x_bf, wih0, b0)                      # identical precompute
    whh0_b = whh0.astype(jnp.bfloat16)
    w1_b = jnp.concatenate([wih1, whh1], axis=0).astype(jnp.bfloat16)

    def step(carry, xp_t):
        h0, c0, h1, c1 = carry
        g0 = xp_t + jnp.dot(h0.astype(jnp.bfloat16), whh0_b,
                            preferred_element_type=jnp.float32)
        h0, c0 = _gates_to_hc(g0, c0, H)
        hx = jnp.concatenate([h0, h1], axis=-1).astype(jnp.bfloat16)
        g1 = jnp.dot(hx, w1_b, preferred_element_type=jnp.float32) + b1
        h1, c1 = _gates_to_hc(g1, c1, H)
        return (h0, c0, h1, c1), None

    zeros = jnp.zeros((B, H), jnp.float32)
    (_, _, h1, _), _ = lax.scan(step, (zeros,) * 4, xproj)
    return (jnp.dot(h1.astype(jnp.bfloat16), wfc.astype(jnp.bfloat16),
                    preferred_element_type=jnp.float32) + bfc)


def rnn_reference_f32(x_bf, params):
    """Full-f32 reference (original module semantics) for a loose check."""
    wih0, whh0, b0, wih1, whh1, b1, wfc, bfc = params
    B = x_bf.shape[0]
    H = HIDDEN_SIZE

    def cell(x_in, h, c, wih, whh, b):
        g = x_in @ wih + h @ whh + b
        i = jax.nn.sigmoid(g[:, 0 * H:1 * H])
        f = jax.nn.sigmoid(g[:, 1 * H:2 * H])
        gg = jnp.tanh(g[:, 2 * H:3 * H])
        o = jax.nn.sigmoid(g[:, 3 * H:4 * H])
        c_new = f * c + i * gg
        return o * jnp.tanh(c_new), c_new

    def step(carry, x_t):
        h0, c0, h1, c1 = carry
        h0, c0 = cell(x_t, h0, c0, wih0, whh0, b0)
        h1, c1 = cell(h0, h1, c1, wih1, whh1, b1)
        return (h0, c0, h1, c1), None

    zeros = jnp.zeros((B, H), jnp.float32)
    (_, _, h1, _), _ = lax.scan(step, (zeros,) * 4,
                                jnp.transpose(x_bf, (1, 0, 2)))
    return h1 @ wfc + bfc


if __name__ == "__main__":
    key = jax.random.PRNGKey(0)
    k_x, k_p = jax.random.split(key)
    x = jax.random.normal(k_x, (BATCH, SEQ_LEN, INPUT_SIZE), jnp.float32)
    params = init_params(k_p)

    out = rnn_forward(x, params)
    out = jax.block_until_ready(out)
    assert out.shape == (BATCH, NUM_CLASSES)

    # Tight check vs. a reference that mirrors the kernel's bf16-dot precision.
    ref_matched = rnn_reference_matched(x, params)
    assert jnp.allclose(out, ref_matched, atol=2e-3, rtol=2e-3), \
        "mismatch vs matched-precision reference"

    # Loose check vs. the full-f32 module semantics (bf16 dots add small error).
    ref_f32 = rnn_reference_f32(x, params)
    assert jnp.allclose(out, ref_f32, atol=5e-2, rtol=5e-2), \
        "mismatch vs f32 reference"

    print("KERNEL_OK")
</pallas_src>

<mosaic_0001>
module attributes {stable_mosaic.version = 11 : i64} {
  func.func @rnn_kernel(%arg0: memref<28x8x512xf32, #tpu.memory_space<vmem>>, %arg1: memref<128x512xbf16, #tpu.memory_space<vmem>>, %arg2: memref<256x512xbf16, #tpu.memory_space<vmem>>, %arg3: memref<1x512xf32, #tpu.memory_space<vmem>>, %arg4: memref<128x128xbf16, #tpu.memory_space<vmem>>, %arg5: memref<1x128xf32, #tpu.memory_space<vmem>>, %arg6: memref<8x128xf32, #tpu.memory_space<vmem>>) attributes {dimension_semantics = [], scalar_prefetch = 0 : i64, scratch_operands = 0 : i64, tpu.core_type = #tpu.core_type<tc>} {
    %c0 = arith.constant 0 : index
    %c0_0 = arith.constant 0 : index
    %0 = vector.load %arg1[%c0, %c0_0] : memref<128x512xbf16, #tpu.memory_space<vmem>>, vector<128x512xbf16>
    %c0_1 = arith.constant 0 : index
    %c0_2 = arith.constant 0 : index
    %1 = vector.load %arg2[%c0_1, %c0_2] : memref<256x512xbf16, #tpu.memory_space<vmem>>, vector<256x512xbf16>
    %c0_3 = arith.constant 0 : index
    %c0_4 = arith.constant 0 : index
    %2 = vector.load %arg3[%c0_3, %c0_4] : memref<1x512xf32, #tpu.memory_space<vmem>>, vector<1x512xf32>
    %3 = vector.shape_cast %2 : vector<1x512xf32> to vector<1x512xf32>
    %4 = vector.broadcast %3 : vector<1x512xf32> to vector<8x512xf32>
    %cst = arith.constant 0.000000e+00 : f32
    %5 = vector.broadcast %cst : f32 to vector<8x128xf32>
    %c0_i32 = arith.constant 0 : i32
    %6 = arith.index_cast %c0_i32 : i32 to index
    %c0_5 = arith.constant 0 : index
    %c0_6 = arith.constant 0 : index
    %7 = vector.load %arg0[%6, %c0_5, %c0_6] : memref<28x8x512xf32, #tpu.memory_space<vmem>>, vector<1x8x512xf32>
    %8 = vector.shape_cast %7 : vector<1x8x512xf32> to vector<8x512xf32>
    %9 = arith.truncf %5 : vector<8x128xf32> to vector<8x128xbf16>
    %cst_7 = arith.constant dense<0.000000e+00> : vector<8x512xf32>
    %10 = tpu.matmul %9, %0, %cst_7 {dimension_numbers = #tpu.dot_dimension_numbers<[1], [0], [0], [1], [0, 0, 1, 1], [], []>} : vector<8x128xbf16>, vector<128x512xbf16>, vector<8x512xf32> -> vector<8x512xf32>
    %11 = arith.addf %8, %10 : vector<8x512xf32>
    %12 = vector.extract_strided_slice %11 {offsets = [0, 0], sizes = [8, 128], strides = [1, 1]} : vector<8x512xf32> to vector<8x128xf32>
    %cst_8 = arith.constant 5.000000e-01 : f32
    %13 = vector.broadcast %cst_8 : f32 to vector<8x128xf32>
    %14 = arith.mulf %13, %12 : vector<8x128xf32>
    %15 = math.tanh %14 : vector<8x128xf32>
    %cst_9 = arith.constant 5.000000e-01 : f32
    %16 = vector.broadcast %cst_9 : f32 to vector<8x128xf32>
    %17 = arith.mulf %16, %15 : vector<8x128xf32>
    %cst_10 = arith.constant 5.000000e-01 : f32
    %18 = vector.broadcast %cst_10 : f32 to vector<8x128xf32>
    %19 = arith.addf %17, %18 : vector<8x128xf32>
    %20 = vector.extract_strided_slice %11 {offsets = [0, 128], sizes = [8, 128], strides = [1, 1]} : vector<8x512xf32> to vector<8x128xf32>
    %cst_11 = arith.constant 5.000000e-01 : f32
    %21 = vector.broadcast %cst_11 : f32 to vector<8x128xf32>
    %22 = arith.mulf %21, %20 : vector<8x128xf32>
    %23 = math.tanh %22 : vector<8x128xf32>
    %cst_12 = arith.constant 5.000000e-01 : f32
    %24 = vector.broadcast %cst_12 : f32 to vector<8x128xf32>
    %25 = arith.mulf %24, %23 : vector<8x128xf32>
    %cst_13 = arith.constant 5.000000e-01 : f32
    %26 = vector.broadcast %cst_13 : f32 to vector<8x128xf32>
    %27 = arith.addf %25, %26 : vector<8x128xf32>
    %28 = vector.extract_strided_slice %11 {offsets = [0, 256], sizes = [8, 128], strides = [1, 1]} : vector<8x512xf32> to vector<8x128xf32>
    %29 = math.tanh %28 : vector<8x128xf32>
    %30 = vector.extract_strided_slice %11 {offsets = [0, 384], sizes = [8, 128], strides = [1, 1]} : vector<8x512xf32> to vector<8x128xf32>
    %cst_14 = arith.constant 5.000000e-01 : f32
    %31 = vector.broadcast %cst_14 : f32 to vector<8x128xf32>
    %32 = arith.mulf %31, %30 : vector<8x128xf32>
    %33 = math.tanh %32 : vector<8x128xf32>
    %cst_15 = arith.constant 5.000000e-01 : f32
    %34 = vector.broadcast %cst_15 : f32 to vector<8x128xf32>
    %35 = arith.mulf %34, %33 : vector<8x128xf32>
    %cst_16 = arith.constant 5.000000e-01 : f32
    %36 = vector.broadcast %cst_16 : f32 to vector<8x128xf32>
    %37 = arith.addf %35, %36 : vector<8x128xf32>
    %38 = arith.mulf %27, %5 : vector<8x128xf32>
    %39 = arith.mulf %19, %29 : vector<8x128xf32>
    %40 = arith.addf %38, %39 : vector<8x128xf32>
    %41 = math.tanh %40 : vector<8x128xf32>
    %42 = arith.mulf %37, %41 : vector<8x128xf32>
    %43 = tpu.concatenate %42, %5 in 1 : vector<8x128xf32>, vector<8x128xf32> -> vector<8x256xf32>
    %44 = arith.truncf %43 : vector<8x256xf32> to vector<8x256xbf16>
    %cst_17 = arith.constant dense<0.000000e+00> : vector<8x512xf32>
    %45 = tpu.matmul %44, %1, %cst_17 {dimension_numbers = #tpu.dot_dimension_numbers<[1], [0], [0], [1], [0, 0, 1, 1], [], []>} : vector<8x256xbf16>, vector<256x512xbf16>, vector<8x512xf32> -> vector<8x512xf32>
    %46 = arith.addf %45, %4 : vector<8x512xf32>
    %47 = vector.extract_strided_slice %46 {offsets = [0, 0], sizes = [8, 128], strides = [1, 1]} : vector<8x512xf32> to vector<8x128xf32>
    %cst_18 = arith.constant 5.000000e-01 : f32
    %48 = vector.broadcast %cst_18 : f32 to vector<8x128xf32>
    %49 = arith.mulf %48, %47 : vector<8x128xf32>
    %50 = math.tanh %49 : vector<8x128xf32>
    %cst_19 = arith.constant 5.000000e-01 : f32
    %51 = vector.broadcast %cst_19 : f32 to vector<8x128xf32>
    %52 = arith.mulf %51, %50 : vector<8x128xf32>
    %cst_20 = arith.constant 5.000000e-01 : f32
    %53 = vector.broadcast %cst_20 : f32 to vector<8x128xf32>
    %54 = arith.addf %52, %53 : vector<8x128xf32>
    %55 = vector.extract_strided_slice %46 {offsets = [0, 128], sizes = [8, 128], strides = [1, 1]} : vector<8x512xf32> to vector<8x128xf32>
    %cst_21 = arith.constant 5.000000e-01 : f32
    %56 = vector.broadcast %cst_21 : f32 to vector<8x128xf32>
    %57 = arith.mulf %56, %55 : vector<8x128xf32>
    %58 = math.tanh %57 : vector<8x128xf32>
    %cst_22 = arith.constant 5.000000e-01 : f32
    %59 = vector.broadcast %cst_22 : f32 to vector<8x128xf32>
    %60 = arith.mulf %59, %58 : vector<8x128xf32>
    %cst_23 = arith.constant 5.000000e-01 : f32
    %61 = vector.broadcast %cst_23 : f32 to vector<8x128xf32>
    %62 = arith.addf %60, %61 : vector<8x128xf32>
    %63 = vector.extract_strided_slice %46 {offsets = [0, 256], sizes = [8, 128], strides = [1, 1]} : vector<8x512xf32> to vector<8x128xf32>
    %64 = math.tanh %63 : vector<8x128xf32>
    %65 = vector.extract_strided_slice %46 {offsets = [0, 384], sizes = [8, 128], strides = [1, 1]} : vector<8x512xf32> to vector<8x128xf32>
    %cst_24 = arith.constant 5.000000e-01 : f32
    %66 = vector.broadcast %cst_24 : f32 to vector<8x128xf32>
    %67 = arith.mulf %66, %65 : vector<8x128xf32>
    %68 = math.tanh %67 : vector<8x128xf32>
    %cst_25 = arith.constant 5.000000e-01 : f32
    %69 = vector.broadcast %cst_25 : f32 to vector<8x128xf32>
    %70 = arith.mulf %69, %68 : vector<8x128xf32>
    %cst_26 = arith.constant 5.000000e-01 : f32
    %71 = vector.broadcast %cst_26 : f32 to vector<8x128xf32>
    %72 = arith.addf %70, %71 : vector<8x128xf32>
    %73 = arith.mulf %62, %5 : vector<8x128xf32>
    %74 = arith.mulf %54, %64 : vector<8x128xf32>
    %75 = arith.addf %73, %74 : vector<8x128xf32>
    %76 = math.tanh %75 : vector<8x128xf32>
    %77 = arith.mulf %72, %76 : vector<8x128xf32>
    %c1_i32 = arith.constant 1 : i32
    %78 = arith.index_cast %c1_i32 : i32 to index
    %c0_27 = arith.constant 0 : index
    %c0_28 = arith.constant 0 : index
    %79 = vector.load %arg0[%78, %c0_27, %c0_28] : memref<28x8x512xf32, #tpu.memory_space<vmem>>, vector<1x8x512xf32>
    %80 = vector.shape_cast %79 : vector<1x8x512xf32> to vector<8x512xf32>
    %81 = arith.truncf %42 : vector<8x128xf32> to vector<8x128xbf16>
    %cst_29 = arith.constant dense<0.000000e+00> : vector<8x512xf32>
    %82 = tpu.matmul %81, %0, %cst_29 {dimension_numbers = #tpu.dot_dimension_numbers<[1], [0], [0], [1], [0, 0, 1, 1], [], []>} : vector<8x128xbf16>, vector<128x512xbf16>, vector<8x512xf32> -> vector<8x512xf32>
    %83 = arith.addf %80, %82 : vector<8x512xf32>
    %84 = vector.extract_strided_slice %83 {offsets = [0, 0], sizes = [8, 128], strides = [1, 1]} : vector<8x512xf32> to vector<8x128xf32>
    %cst_30 = arith.constant 5.000000e-01 : f32
    %85 = vector.broadcast %cst_30 : f32 to vector<8x128xf32>
    %86 = arith.mulf %85, %84 : vector<8x128xf32>
    %87 = math.tanh %86 : vector<8x128xf32>
    %cst_31 = arith.constant 5.000000e-01 : f32
    %88 = vector.broadcast %cst_31 : f32 to vector<8x128xf32>
    %89 = arith.mulf %88, %87 : vector<8x128xf32>
    %cst_32 = arith.constant 5.000000e-01 : f32
    %90 = vector.broadcast %cst_32 : f32 to vector<8x128xf32>
    %91 = arith.addf %89, %90 : vector<8x128xf32>
    %92 = vector.extract_strided_slice %83 {offsets = [0, 128], sizes = [8, 128], strides = [1, 1]} : vector<8x512xf32> to vector<8x128xf32>
    %cst_33 = arith.constant 5.000000e-01 : f32
    %93 = vector.broadcast %cst_33 : f32 to vector<8x128xf32>
    %94 = arith.mulf %93, %92 : vector<8x128xf32>
    %95 = math.tanh %94 : vector<8x128xf32>
    %cst_34 = arith.constant 5.000000e-01 : f32
    %96 = vector.broadcast %cst_34 : f32 to vector<8x128xf32>
    %97 = arith.mulf %96, %95 : vector<8x128xf32>
    %cst_35 = arith.constant 5.000000e-01 : f32
    %98 = vector.broadcast %cst_35 : f32 to vector<8x128xf32>
    %99 = arith.addf %97, %98 : vector<8x128xf32>
    %100 = vector.extract_strided_slice %83 {offsets = [0, 256], sizes = [8, 128], strides = [1, 1]} : vector<8x512xf32> to vector<8x128xf32>
    %101 = math.tanh %100 : vector<8x128xf32>
    %102 = vector.extract_strided_slice %83 {offsets = [0, 384], sizes = [8, 128], strides = [1, 1]} : vector<8x512xf32> to vector<8x128xf32>
    %cst_36 = arith.constant 5.000000e-01 : f32
    %103 = vector.broadcast %cst_36 : f32 to vector<8x128xf32>
    %104 = arith.mulf %103, %102 : vector<8x128xf32>
    %105 = math.tanh %104 : vector<8x128xf32>
    %cst_37 = arith.constant 5.000000e-01 : f32
    %106 = vector.broadcast %cst_37 : f32 to vector<8x128xf32>
    %107 = arith.mulf %106, %105 : vector<8x128xf32>
    %cst_38 = arith.constant 5.000000e-01 : f32
    %108 = vector.broadcast %cst_38 : f32 to vector<8x128xf32>
    %109 = arith.addf %107, %108 : vector<8x128xf32>
    %110 = arith.mulf %99, %40 : vector<8x128xf32>
    %111 = arith.mulf %91, %101 : vector<8x128xf32>
    %112 = arith.addf %110, %111 : vector<8x128xf32>
    %113 = math.tanh %112 : vector<8x128xf32>
    %114 = arith.mulf %109, %113 : vector<8x128xf32>
    %115 = tpu.concatenate %114, %77 in 1 : vector<8x128xf32>, vector<8x128xf32> -> vector<8x256xf32>
    %116 = arith.truncf %115 : vector<8x256xf32> to vector<8x256xbf16>
    %cst_39 = arith.constant dense<0.000000e+00> : vector<8x512xf32>
    %117 = tpu.matmul %116, %1, %cst_39 {dimension_numbers = #tpu.dot_dimension_numbers<[1], [0], [0], [1], [0, 0, 1, 1], [], []>} : vector<8x256xbf16>, vector<256x512xbf16>, vector<8x512xf32> -> vector<8x512xf32>
    %118 = arith.addf %117, %4 : vector<8x512xf32>
    %119 = vector.extract_strided_slice %118 {offsets = [0, 0], sizes = [8, 128], strides = [1, 1]} : vector<8x512xf32> to vector<8x128xf32>
    %cst_40 = arith.constant 5.000000e-01 : f32
    %120 = vector.broadcast %cst_40 : f32 to vector<8x128xf32>
    %121 = arith.mulf %120, %119 : vector<8x128xf32>
    %122 = math.tanh %121 : vector<8x128xf32>
    %cst_41 = arith.constant 5.000000e-01 : f32
    %123 = vector.broadcast %cst_41 : f32 to vector<8x128xf32>
    %124 = arith.mulf %123, %122 : vector<8x128xf32>
    %cst_42 = arith.constant 5.000000e-01 : f32
    %125 = vector.broadcast %cst_42 : f32 to vector<8x128xf32>
    %126 = arith.addf %124, %125 : vector<8x128xf32>
    %127 = vector.extract_strided_slice %118 {offsets = [0, 128], sizes = [8, 128], strides = [1, 1]} : vector<8x512xf32> to vector<8x128xf32>
    %cst_43 = arith.constant 5.000000e-01 : f32
    %128 = vector.broadcast %cst_43 : f32 to vector<8x128xf32>
    %129 = arith.mulf %128, %127 : vector<8x128xf32>
    %130 = math.tanh %129 : vector<8x128xf32>
    %cst_44 = arith.constant 5.000000e-01 : f32
    %131 = vector.broadcast %cst_44 : f32 to vector<8x128xf32>
    %132 = arith.mulf %131, %130 : vector<8x128xf32>
    %cst_45 = arith.constant 5.000000e-01 : f32
    %133 = vector.broadcast %cst_45 : f32 to vector<8x128xf32>
    %134 = arith.addf %132, %133 : vector<8x128xf32>
    %135 = vector.extract_strided_slice %118 {offsets = [0, 256], sizes = [8, 128], strides = [1, 1]} : vector<8x512xf32> to vector<8x128xf32>
    %136 = math.tanh %135 : vector<8x128xf32>
    %137 = vector.extract_strided_slice %118 {offsets = [0, 384], sizes = [8, 128], strides = [1, 1]} : vector<8x512xf32> to vector<8x128xf32>
    %cst_46 = arith.constant 5.000000e-01 : f32
    %138 = vector.broadcast %cst_46 : f32 to vector<8x128xf32>
    %139 = arith.mulf %138, %137 : vector<8x128xf32>
    %140 = math.tanh %139 : vector<8x128xf32>
    %cst_47 = arith.constant 5.000000e-01 : f32
    %141 = vector.broadcast %cst_47 : f32 to vector<8x128xf32>
    %142 = arith.mulf %141, %140 : vector<8x128xf32>
    %cst_48 = arith.constant 5.000000e-01 : f32
    %143 = vector.broadcast %cst_48 : f32 to vector<8x128xf32>
    %144 = arith.addf %142, %143 : vector<8x128xf32>
    %145 = arith.mulf %134, %75 : vector<8x128xf32>
    %146 = arith.mulf %126, %136 : vector<8x128xf32>
    %147 = arith.addf %145, %146 : vector<8x128xf32>
    %148 = math.tanh %147 : vector<8x128xf32>
    %149 = arith.mulf %144, %148 : vector<8x128xf32>
    %c2_i32 = arith.constant 2 : i32
    %150 = arith.index_cast %c2_i32 : i32 to index
    %c0_49 = arith.constant 0 : index
    %c0_50 = arith.constant 0 : index
    %151 = vector.load %arg0[%150, %c0_49, %c0_50] : memref<28x8x512xf32, #tpu.memory_space<vmem>>, vector<1x8x512xf32>
    %152 = vector.shape_cast %151 : vector<1x8x512xf32> to vector<8x512xf32>
    %153 = arith.truncf %114 : vector<8x128xf32> to vector<8x128xbf16>
    %cst_51 = arith.constant dense<0.000000e+00> : vector<8x512xf32>
    %154 = tpu.matmul %153, %0, %cst_51 {dimension_numbers = #tpu.dot_dimension_numbers<[1], [0], [0], [1], [0, 0, 1, 1], [], []>} : vector<8x128xbf16>, vector<128x512xbf16>, vector<8x512xf32> -> vector<8x512xf32>
    %155 = arith.addf %152, %154 : vector<8x512xf32>
    %156 = vector.extract_strided_slice %155 {offsets = [0, 0], sizes = [8, 128], strides = [1, 1]} : vector<8x512xf32> to vector<8x128xf32>
    %cst_52 = arith.constant 5.000000e-01 : f32
    %157 = vector.broadcast %cst_52 : f32 to vector<8x128xf32>
    %158 = arith.mulf %157, %156 : vector<8x128xf32>
    %159 = math.tanh %158 : vector<8x128xf32>
    %cst_53 = arith.constant 5.000000e-01 : f32
    %160 = vector.broadcast %cst_53 : f32 to vector<8x128xf32>
    %161 = arith.mulf %160, %159 : vector<8x128xf32>
    %cst_54 = arith.constant 5.000000e-01 : f32
    %162 = vector.broadcast %cst_54 : f32 to vector<8x128xf32>
    %163 = arith.addf %161, %162 : vector<8x128xf32>
    %164 = vector.extract_strided_slice %155 {offsets = [0, 128], sizes = [8, 128], strides = [1, 1]} : vector<8x512xf32> to vector<8x128xf32>
    %cst_55 = arith.constant 5.000000e-01 : f32
    %165 = vector.broadcast %cst_55 : f32 to vector<8x128xf32>
    %166 = arith.mulf %165, %164 : vector<8x128xf32>
    %167 = math.tanh %166 : vector<8x128xf32>
    %cst_56 = arith.constant 5.000000e-01 : f32
    %168 = vector.broadcast %cst_56 : f32 to vector<8x128xf32>
    %169 = arith.mulf %168, %167 : vector<8x128xf32>
    %cst_57 = arith.constant 5.000000e-01 : f32
    %170 = vector.broadcast %cst_57 : f32 to vector<8x128xf32>
    %171 = arith.addf %169, %170 : vector<8x128xf32>
    %172 = vector.extract_strided_slice %155 {offsets = [0, 256], sizes = [8, 128], strides = [1, 1]} : vector<8x512xf32> to vector<8x128xf32>
    %173 = math.tanh %172 : vector<8x128xf32>
    %174 = vector.extract_strided_slice %155 {offsets = [0, 384], sizes = [8, 128], strides = [1, 1]} : vector<8x512xf32> to vector<8x128xf32>
    %cst_58 = arith.constant 5.000000e-01 : f32
    %175 = vector.broadcast %cst_58 : f32 to vector<8x128xf32>
    %176 = arith.mulf %175, %174 : vector<8x128xf32>
    %177 = math.tanh %176 : vector<8x128xf32>
    %cst_59 = arith.constant 5.000000e-01 : f32
    %178 = vector.broadcast %cst_59 : f32 to vector<8x128xf32>
    %179 = arith.mulf %178, %177 : vector<8x128xf32>
    %cst_60 = arith.constant 5.000000e-01 : f32
    %180 = vector.broadcast %cst_60 : f32 to vector<8x128xf32>
    %181 = arith.addf %179, %180 : vector<8x128xf32>
    %182 = arith.mulf %171, %112 : vector<8x128xf32>
    %183 = arith.mulf %163, %173 : vector<8x128xf32>
    %184 = arith.addf %182, %183 : vector<8x128xf32>
    %185 = math.tanh %184 : vector<8x128xf32>
    %186 = arith.mulf %181, %185 : vector<8x128xf32>
    %187 = tpu.concatenate %186, %149 in 1 : vector<8x128xf32>, vector<8x128xf32> -> vector<8x256xf32>
    %188 = arith.truncf %187 : vector<8x256xf32> to vector<8x256xbf16>
    %cst_61 = arith.constant dense<0.000000e+00> : vector<8x512xf32>
    %189 = tpu.matmul %188, %1, %cst_61 {dimension_numbers = #tpu.dot_dimension_numbers<[1], [0], [0], [1], [0, 0, 1, 1], [], []>} : vector<8x256xbf16>, vector<256x512xbf16>, vector<8x512xf32> -> vector<8x512xf32>
    %190 = arith.addf %189, %4 : vector<8x512xf32>
    %191 = vector.extract_strided_slice %190 {offsets = [0, 0], sizes = [8, 128], strides = [1, 1]} : vector<8x512xf32> to vector<8x128xf32>
    %cst_62 = arith.constant 5.000000e-01 : f32
    %192 = vector.broadcast %cst_62 : f32 to vector<8x128xf32>
    %193 = arith.mulf %192, %191 : vector<8x128xf32>
    %194 = math.tanh %193 : vector<8x128xf32>
    %cst_63 = arith.constant 5.000000e-01 : f32
    %195 = vector.broadcast %cst_63 : f32 to vector<8x128xf32>
    %196 = arith.mulf %195, %194 : vector<8x128xf32>
    %cst_64 = arith.constant 5.000000e-01 : f32
    %197 = vector.broadcast %cst_64 : f32 to vector<8x128xf32>
    %198 = arith.addf %196, %197 : vector<8x128xf32>
    %199 = vector.extract_strided_slice %190 {offsets = [0, 128], sizes = [8, 128], strides = [1, 1]} : vector<8x512xf32> to vector<8x128xf32>
    %cst_65 = arith.constant 5.000000e-01 : f32
    %200 = vector.broadcast %cst_65 : f32 to vector<8x128xf32>
    %201 = arith.mulf %200, %199 : vector<8x128xf32>
    %202 = math.tanh %201 : vector<8x128xf32>
    %cst_66 = arith.constant 5.000000e-01 : f32
    %203 = vector.broadcast %cst_66 : f32 to vector<8x128xf32>
    %204 = arith.mulf %203, %202 : vector<8x128xf32>
    %cst_67 = arith.constant 5.000000e-01 : f32
    %205 = vector.broadcast %cst_67 : f32 to vector<8x128xf32>
    %206 = arith.addf %204, %205 : vector<8x128xf32>
    %207 = vector.extract_strided_slice %190 {offsets = [0, 256], sizes = [8, 128], strides = [1, 1]} : vector<8x512xf32> to vector<8x128xf32>
    %208 = math.tanh %207 : vector<8x128xf32>
    %209 = vector.extract_strided_slice %190 {offsets = [0, 384], sizes = [8, 128], strides = [1, 1]} : vector<8x512xf32> to vector<8x128xf32>
    %cst_68 = arith.constant 5.000000e-01 : f32
    %210 = vector.broadcast %cst_68 : f32 to vector<8x128xf32>
    %211 = arith.mulf %210, %209 : vector<8x128xf32>
    %212 = math.tanh %211 : vector<8x128xf32>
    %cst_69 = arith.constant 5.000000e-01 : f32
    %213 = vector.broadcast %cst_69 : f32 to vector<8x128xf32>
    %214 = arith.mulf %213, %212 : vector<8x128xf32>
    %cst_70 = arith.constant 5.000000e-01 : f32
    %215 = vector.broadcast %cst_70 : f32 to vector<8x128xf32>
    %216 = arith.addf %214, %215 : vector<8x128xf32>
    %217 = arith.mulf %206, %147 : vector<8x128xf32>
    %218 = arith.mulf %198, %208 : vector<8x128xf32>
    %219 = arith.addf %217, %218 : vector<8x128xf32>
    %220 = math.tanh %219 : vector<8x128xf32>
    %221 = arith.mulf %216, %220 : vector<8x128xf32>
    %c3_i32 = arith.constant 3 : i32
    %222 = arith.index_cast %c3_i32 : i32 to index
    %c0_71 = arith.constant 0 : index
    %c0_72 = arith.constant 0 : index
    %223 = vector.load %arg0[%222, %c0_71, %c0_72] : memref<28x8x512xf32, #tpu.memory_space<vmem>>, vector<1x8x512xf32>
    %224 = vector.shape_cast %223 : vector<1x8x512xf32> to vector<8x512xf32>
    %225 = arith.truncf %186 : vector<8x128xf32> to vector<8x128xbf16>
    %cst_73 = arith.constant dense<0.000000e+00> : vector<8x512xf32>
    %226 = tpu.matmul %225, %0, %cst_73 {dimension_numbers = #tpu.dot_dimension_numbers<[1], [0], [0], [1], [0, 0, 1, 1], [], []>} : vector<8x128xbf16>, vector<128x512xbf16>, vector<8x512xf32> -> vector<8x512xf32>
    %227 = arith.addf %224, %226 : vector<8x512xf32>
    %228 = vector.extract_strided_slice %227 {offsets = [0, 0], sizes = [8, 128], strides = [1, 1]} : vector<8x512xf32> to vector<8x128xf32>
    %cst_74 = arith.constant 5.000000e-01 : f32
    %229 = vector.broadcast %cst_74 : f32 to vector<8x128xf32>
    %230 = arith.mulf %229, %228 : vector<8x128xf32>
    %231 = math.tanh %230 : vector<8x128xf32>
    %cst_75 = arith.constant 5.000000e-01 : f32
    %232 = vector.broadcast %cst_75 : f32 to vector<8x128xf32>
    %233 = arith.mulf %232, %231 : vector<8x128xf32>
    %cst_76 = arith.constant 5.000000e-01 : f32
    %234 = vector.broadcast %cst_76 : f32 to vector<8x128xf32>
    %235 = arith.addf %233, %234 : vector<8x128xf32>
    %236 = vector.extract_strided_slice %227 {offsets = [0, 128], sizes = [8, 128], strides = [1, 1]} : vector<8x512xf32> to vector<8x128xf32>
    %cst_77 = arith.constant 5.000000e-01 : f32
    %237 = vector.broadcast %cst_77 : f32 to vector<8x128xf32>
    %238 = arith.mulf %237, %236 : vector<8x128xf32>
    %239 = math.tanh %238 : vector<8x128xf32>
    %cst_78 = arith.constant 5.000000e-01 : f32
    %240 = vector.broadcast %cst_78 : f32 to vector<8x128xf32>
    %241 = arith.mulf %240, %239 : vector<8x128xf32>
    %cst_79 = arith.constant 5.000000e-01 : f32
    %242 = vector.broadcast %cst_79 : f32 to vector<8x128xf32>
    %243 = arith.addf %241, %242 : vector<8x128xf32>
    %244 = vector.extract_strided_slice %227 {offsets = [0, 256], sizes = [8, 128], strides = [1, 1]} : vector<8x512xf32> to vector<8x128xf32>
    %245 = math.tanh %244 : vector<8x128xf32>
    %246 = vector.extract_strided_slice %227 {offsets = [0, 384], sizes = [8, 128], strides = [1, 1]} : vector<8x512xf32> to vector<8x128xf32>
    %cst_80 = arith.constant 5.000000e-01 : f32
    %247 = vector.broadcast %cst_80 : f32 to vector<8x128xf32>
    %248 = arith.mulf %247, %246 : vector<8x128xf32>
    %249 = math.tanh %248 : vector<8x128xf32>
    %cst_81 = arith.constant 5.000000e-01 : f32
    %250 = vector.broadcast %cst_81 : f32 to vector<8x128xf32>
    %251 = arith.mulf %250, %249 : vector<8x128xf32>
    %cst_82 = arith.constant 5.000000e-01 : f32
    %252 = vector.broadcast %cst_82 : f32 to vector<8x128xf32>
    %253 = arith.addf %251, %252 : vector<8x128xf32>
    %254 = arith.mulf %243, %184 : vector<8x128xf32>
    %255 = arith.mulf %235, %245 : vector<8x128xf32>
    %256 = arith.addf %254, %255 : vector<8x128xf32>
    %257 = math.tanh %256 : vector<8x128xf32>
    %258 = arith.mulf %253, %257 : vector<8x128xf32>
    %259 = tpu.concatenate %258, %221 in 1 : vector<8x128xf32>, vector<8x128xf32> -> vector<8x256xf32>
    %260 = arith.truncf %259 : vector<8x256xf32> to vector<8x256xbf16>
    %cst_83 = arith.constant dense<0.000000e+00> : vector<8x512xf32>
    %261 = tpu.matmul %260, %1, %cst_83 {dimension_numbers = #tpu.dot_dimension_numbers<[1], [0], [0], [1], [0, 0, 1, 1], [], []>} : vector<8x256xbf16>, vector<256x512xbf16>, vector<8x512xf32> -> vector<8x512xf32>
    %262 = arith.addf %261, %4 : vector<8x512xf32>
    %263 = vector.extract_strided_slice %262 {offsets = [0, 0], sizes = [8, 128], strides = [1, 1]} : vector<8x512xf32> to vector<8x128xf32>
    %cst_84 = arith.constant 5.000000e-01 : f32
    %264 = vector.broadcast %cst_84 : f32 to vector<8x128xf32>
    %265 = arith.mulf %264, %263 : vector<8x128xf32>
    %266 = math.tanh %265 : vector<8x128xf32>
    %cst_85 = arith.constant 5.000000e-01 : f32
    %267 = vector.broadcast %cst_85 : f32 to vector<8x128xf32>
    %268 = arith.mulf %267, %266 : vector<8x128xf32>
    %cst_86 = arith.constant 5.000000e-01 : f32
    %269 = vector.broadcast %cst_86 : f32 to vector<8x128xf32>
    %270 = arith.addf %268, %269 : vector<8x128xf32>
    %271 = vector.extract_strided_slice %262 {offsets = [0, 128], sizes = [8, 128], strides = [1, 1]} : vector<8x512xf32> to vector<8x128xf32>
    %cst_87 = arith.constant 5.000000e-01 : f32
    %272 = vector.broadcast %cst_87 : f32 to vector<8x128xf32>
    %273 = arith.mulf %272, %271 : vector<8x128xf32>
    %274 = math.tanh %273 : vector<8x128xf32>
    %cst_88 = arith.constant 5.000000e-01 : f32
    %275 = vector.broadcast %cst_88 : f32 to vector<8x128xf32>
    %276 = arith.mulf %275, %274 : vector<8x128xf32>
    %cst_89 = arith.constant 5.000000e-01 : f32
    %277 = vector.broadcast %cst_89 : f32 to vector<8x128xf32>
    %278 = arith.addf %276, %277 : vector<8x128xf32>
    %279 = vector.extract_strided_slice %262 {offsets = [0, 256], sizes = [8, 128], strides = [1, 1]} : vector<8x512xf32> to vector<8x128xf32>
    %280 = math.tanh %279 : vector<8x128xf32>
    %281 = vector.extract_strided_slice %262 {offsets = [0, 384], sizes = [8, 128], strides = [1, 1]} : vector<8x512xf32> to vector<8x128xf32>
    %cst_90 = arith.constant 5.000000e-01 : f32
    %282 = vector.broadcast %cst_90 : f32 to vector<8x128xf32>
    %283 = arith.mulf %282, %281 : vector<8x128xf32>
    %284 = math.tanh %283 : vector<8x128xf32>
    %cst_91 = arith.constant 5.000000e-01 : f32
    %285 = vector.broadcast %cst_91 : f32 to vector<8x128xf32>
    %286 = arith.mulf %285, %284 : vector<8x128xf32>
    %cst_92 = arith.constant 5.000000e-01 : f32
    %287 = vector.broadcast %cst_92 : f32 to vector<8x128xf32>
    %288 = arith.addf %286, %287 : vector<8x128xf32>
    %289 = arith.mulf %278, %219 : vector<8x128xf32>
    %290 = arith.mulf %270, %280 : vector<8x128xf32>
    %291 = arith.addf %289, %290 : vector<8x128xf32>
    %292 = math.tanh %291 : vector<8x128xf32>
    %293 = arith.mulf %288, %292 : vector<8x128xf32>
    %c4_i32 = arith.constant 4 : i32
    %294 = arith.index_cast %c4_i32 : i32 to index
    %c0_93 = arith.constant 0 : index
    %c0_94 = arith.constant 0 : index
    %295 = vector.load %arg0[%294, %c0_93, %c0_94] : memref<28x8x512xf32, #tpu.memory_space<vmem>>, vector<1x8x512xf32>
    %296 = vector.shape_cast %295 : vector<1x8x512xf32> to vector<8x512xf32>
    %297 = arith.truncf %258 : vector<8x128xf32> to vector<8x128xbf16>
    %cst_95 = arith.constant dense<0.000000e+00> : vector<8x512xf32>
    %298 = tpu.matmul %297, %0, %cst_95 {dimension_numbers = #tpu.dot_dimension_numbers<[1], [0], [0], [1], [0, 0, 1, 1], [], []>} : vector<8x128xbf16>, vector<128x512xbf16>, vector<8x512xf32> -> vector<8x512xf32>
    %299 = arith.addf %296, %298 : vector<8x512xf32>
    %300 = vector.extract_strided_slice %299 {offsets = [0, 0], sizes = [8, 128], strides = [1, 1]} : vector<8x512xf32> to vector<8x128xf32>
    %cst_96 = arith.constant 5.000000e-01 : f32
    %301 = vector.broadcast %cst_96 : f32 to vector<8x128xf32>
    %302 = arith.mulf %301, %300 : vector<8x128xf32>
    %303 = math.tanh %302 : vector<8x128xf32>
    %cst_97 = arith.constant 5.000000e-01 : f32
    %304 = vector.broadcast %cst_97 : f32 to vector<8x128xf32>
    %305 = arith.mulf %304, %303 : vector<8x128xf32>
    %cst_98 = arith.constant 5.000000e-01 : f32
    %306 = vector.broadcast %cst_98 : f32 to vector<8x128xf32>
    %307 = arith.addf %305, %306 : vector<8x128xf32>
    %308 = vector.extract_strided_slice %299 {offsets = [0, 128], sizes = [8, 128], strides = [1, 1]} : vector<8x512xf32> to vector<8x128xf32>
    %cst_99 = arith.constant 5.000000e-01 : f32
    %309 = vector.broadcast %cst_99 : f32 to vector<8x128xf32>
    %310 = arith.mulf %309, %308 : vector<8x128xf32>
    %311 = math.tanh %310 : vector<8x128xf32>
    %cst_100 = arith.constant 5.000000e-01 : f32
    %312 = vector.broadcast %cst_100 : f32 to vector<8x128xf32>
    %313 = arith.mulf %312, %311 : vector<8x128xf32>
    %cst_101 = arith.constant 5.000000e-01 : f32
    %314 = vector.broadcast %cst_101 : f32 to vector<8x128xf32>
    %315 = arith.addf %313, %314 : vector<8x128xf32>
    %316 = vector.extract_strided_slice %299 {offsets = [0, 256], sizes = [8, 128], strides = [1, 1]} : vector<8x512xf32> to vector<8x128xf32>
    %317 = math.tanh %316 : vector<8x128xf32>
    %318 = vector.extract_strided_slice %299 {offsets = [0, 384], sizes = [8, 128], strides = [1, 1]} : vector<8x512xf32> to vector<8x128xf32>
    %cst_102 = arith.constant 5.000000e-01 : f32
    %319 = vector.broadcast %cst_102 : f32 to vector<8x128xf32>
    %320 = arith.mulf %319, %318 : vector<8x128xf32>
    %321 = math.tanh %320 : vector<8x128xf32>
    %cst_103 = arith.constant 5.000000e-01 : f32
    %322 = vector.broadcast %cst_103 : f32 to vector<8x128xf32>
    %323 = arith.mulf %322, %321 : vector<8x128xf32>
    %cst_104 = arith.constant 5.000000e-01 : f32
    %324 = vector.broadcast %cst_104 : f32 to vector<8x128xf32>
    %325 = arith.addf %323, %324 : vector<8x128xf32>
    %326 = arith.mulf %315, %256 : vector<8x128xf32>
    %327 = arith.mulf %307, %317 : vector<8x128xf32>
    %328 = arith.addf %326, %327 : vector<8x128xf32>
    %329 = math.tanh %328 : vector<8x128xf32>
    %330 = arith.mulf %325, %329 : vector<8x128xf32>
    %331 = tpu.concatenate %330, %293 in 1 : vector<8x128xf32>, vector<8x128xf32> -> vector<8x256xf32>
    %332 = arith.truncf %331 : vector<8x256xf32> to vector<8x256xbf16>
    %cst_105 = arith.constant dense<0.000000e+00> : vector<8x512xf32>
    %333 = tpu.matmul %332, %1, %cst_105 {dimension_numbers = #tpu.dot_dimension_numbers<[1], [0], [0], [1], [0, 0, 1, 1], [], []>} : vector<8x256xbf16>, vector<256x512xbf16>, vector<8x512xf32> -> vector<8x512xf32>
    %334 = arith.addf %333, %4 : vector<8x512xf32>
    %335 = vector.extract_strided_slice %334 {offsets = [0, 0], sizes = [8, 128], strides = [1, 1]} : vector<8x512xf32> to vector<8x128xf32>
    %cst_106 = arith.constant 5.000000e-01 : f32
    %336 = vector.broadcast %cst_106 : f32 to vector<8x128xf32>
    %337 = arith.mulf %336, %335 : vector<8x128xf32>
    %338 = math.tanh %337 : vector<8x128xf32>
    %cst_107 = arith.constant 5.000000e-01 : f32
    %339 = vector.broadcast %cst_107 : f32 to vector<8x128xf32>
    %340 = arith.mulf %339, %338 : vector<8x128xf32>
    %cst_108 = arith.constant 5.000000e-01 : f32
    %341 = vector.broadcast %cst_108 : f32 to vector<8x128xf32>
    %342 = arith.addf %340, %341 : vector<8x128xf32>
    %343 = vector.extract_strided_slice %334 {offsets = [0, 128], sizes = [8, 128], strides = [1, 1]} : vector<8x512xf32> to vector<8x128xf32>
    %cst_109 = arith.constant 5.000000e-01 : f32
    %344 = vector.broadcast %cst_109 : f32 to vector<8x128xf32>
    %345 = arith.mulf %344, %343 : vector<8x128xf32>
    %346 = math.tanh %345 : vector<8x128xf32>
    %cst_110 = arith.constant 5.000000e-01 : f32
    %347 = vector.broadcast %cst_110 : f32 to vector<8x128xf32>
    %348 = arith.mulf %347, %346 : vector<8x128xf32>
    %cst_111 = arith.constant 5.000000e-01 : f32
    %349 = vector.broadcast %cst_111 : f32 to vector<8x128xf32>
    %350 = arith.addf %348, %349 : vector<8x128xf32>
    %351 = vector.extract_strided_slice %334 {offsets = [0, 256], sizes = [8, 128], strides = [1, 1]} : vector<8x512xf32> to vector<8x128xf32>
    %352 = math.tanh %351 : vector<8x128xf32>
    %353 = vector.extract_strided_slice %334 {offsets = [0, 384], sizes = [8, 128], strides = [1, 1]} : vector<8x512xf32> to vector<8x128xf32>
    %cst_112 = arith.constant 5.000000e-01 : f32
    %354 = vector.broadcast %cst_112 : f32 to vector<8x128xf32>
    %355 = arith.mulf %354, %353 : vector<8x128xf32>
    %356 = math.tanh %355 : vector<8x128xf32>
    %cst_113 = arith.constant 5.000000e-01 : f32
    %357 = vector.broadcast %cst_113 : f32 to vector<8x128xf32>
    %358 = arith.mulf %357, %356 : vector<8x128xf32>
    %cst_114 = arith.constant 5.000000e-01 : f32
    %359 = vector.broadcast %cst_114 : f32 to vector<8x128xf32>
    %360 = arith.addf %358, %359 : vector<8x128xf32>
    %361 = arith.mulf %350, %291 : vector<8x128xf32>
    %362 = arith.mulf %342, %352 : vector<8x128xf32>
    %363 = arith.addf %361, %362 : vector<8x128xf32>
    %364 = math.tanh %363 : vector<8x128xf32>
    %365 = arith.mulf %360, %364 : vector<8x128xf32>
    %c5_i32 = arith.constant 5 : i32
    %366 = arith.index_cast %c5_i32 : i32 to index
    %c0_115 = arith.constant 0 : index
    %c0_116 = arith.constant 0 : index
    %367 = vector.load %arg0[%366, %c0_115, %c0_116] : memref<28x8x512xf32, #tpu.memory_space<vmem>>, vector<1x8x512xf32>
    %368 = vector.shape_cast %367 : vector<1x8x512xf32> to vector<8x512xf32>
    %369 = arith.truncf %330 : vector<8x128xf32> to vector<8x128xbf16>
    %cst_117 = arith.constant dense<0.000000e+00> : vector<8x512xf32>
    %370 = tpu.matmul %369, %0, %cst_117 {dimension_numbers = #tpu.dot_dimension_numbers<[1], [0], [0], [1], [0, 0, 1, 1], [], []>} : vector<8x128xbf16>, vector<128x512xbf16>, vector<8x512xf32> -> vector<8x512xf32>
    %371 = arith.addf %368, %370 : vector<8x512xf32>
    %372 = vector.extract_strided_slice %371 {offsets = [0, 0], sizes = [8, 128], strides = [1, 1]} : vector<8x512xf32> to vector<8x128xf32>
    %cst_118 = arith.constant 5.000000e-01 : f32
    %373 = vector.broadcast %cst_118 : f32 to vector<8x128xf32>
    %374 = arith.mulf %373, %372 : vector<8x128xf32>
    %375 = math.tanh %374 : vector<8x128xf32>
    %cst_119 = arith.constant 5.000000e-01 : f32
    %376 = vector.broadcast %cst_119 : f32 to vector<8x128xf32>
    %377 = arith.mulf %376, %375 : vector<8x128xf32>
    %cst_120 = arith.constant 5.000000e-01 : f32
    %378 = vector.broadcast %cst_120 : f32 to vector<8x128xf32>
    %379 = arith.addf %377, %378 : vector<8x128xf32>
    %380 = vector.extract_strided_slice %371 {offsets = [0, 128], sizes = [8, 128], strides = [1, 1]} : vector<8x512xf32> to vector<8x128xf32>
    %cst_121 = arith.constant 5.000000e-01 : f32
    %381 = vector.broadcast %cst_121 : f32 to vector<8x128xf32>
    %382 = arith.mulf %381, %380 : vector<8x128xf32>
    %383 = math.tanh %382 : vector<8x128xf32>
    %cst_122 = arith.constant 5.000000e-01 : f32
    %384 = vector.broadcast %cst_122 : f32 to vector<8x128xf32>
    %385 = arith.mulf %384, %383 : vector<8x128xf32>
    %cst_123 = arith.constant 5.000000e-01 : f32
    %386 = vector.broadcast %cst_123 : f32 to vector<8x128xf32>
    %387 = arith.addf %385, %386 : vector<8x128xf32>
    %388 = vector.extract_strided_slice %371 {offsets = [0, 256], sizes = [8, 128], strides = [1, 1]} : vector<8x512xf32> to vector<8x128xf32>
    %389 = math.tanh %388 : vector<8x128xf32>
    %390 = vector.extract_strided_slice %371 {offsets = [0, 384], sizes = [8, 128], strides = [1, 1]} : vector<8x512xf32> to vector<8x128xf32>
    %cst_124 = arith.constant 5.000000e-01 : f32
    %391 = vector.broadcast %cst_124 : f32 to vector<8x128xf32>
    %392 = arith.mulf %391, %390 : vector<8x128xf32>
    %393 = math.tanh %392 : vector<8x128xf32>
    %cst_125 = arith.constant 5.000000e-01 : f32
    %394 = vector.broadcast %cst_125 : f32 to vector<8x128xf32>
    %395 = arith.mulf %394, %393 : vector<8x128xf32>
    %cst_126 = arith.constant 5.000000e-01 : f32
    %396 = vector.broadcast %cst_126 : f32 to vector<8x128xf32>
    %397 = arith.addf %395, %396 : vector<8x128xf32>
    %398 = arith.mulf %387, %328 : vector<8x128xf32>
    %399 = arith.mulf %379, %389 : vector<8x128xf32>
    %400 = arith.addf %398, %399 : vector<8x128xf32>
    %401 = math.tanh %400 : vector<8x128xf32>
    %402 = arith.mulf %397, %401 : vector<8x128xf32>
    %403 = tpu.concatenate %402, %365 in 1 : vector<8x128xf32>, vector<8x128xf32> -> vector<8x256xf32>
    %404 = arith.truncf %403 : vector<8x256xf32> to vector<8x256xbf16>
    %cst_127 = arith.constant dense<0.000000e+00> : vector<8x512xf32>
    %405 = tpu.matmul %404, %1, %cst_127 {dimension_numbers = #tpu.dot_dimension_numbers<[1], [0], [0], [1], [0, 0, 1, 1], [], []>} : vector<8x256xbf16>, vector<256x512xbf16>, vector<8x512xf32> -> vector<8x512xf32>
    %406 = arith.addf %405, %4 : vector<8x512xf32>
    %407 = vector.extract_strided_slice %406 {offsets = [0, 0], sizes = [8, 128], strides = [1, 1]} : vector<8x512xf32> to vector<8x128xf32>
    %cst_128 = arith.constant 5.000000e-01 : f32
    %408 = vector.broadcast %cst_128 : f32 to vector<8x128xf32>
    %409 = arith.mulf %408, %407 : vector<8x128xf32>
    %410 = math.tanh %409 : vector<8x128xf32>
    %cst_129 = arith.constant 5.000000e-01 : f32
    %411 = vector.broadcast %cst_129 : f32 to vector<8x128xf32>
    %412 = arith.mulf %411, %410 : vector<8x128xf32>
    %cst_130 = arith.constant 5.000000e-01 : f32
    %413 = vector.broadcast %cst_130 : f32 to vector<8x128xf32>
    %414 = arith.addf %412, %413 : vector<8x128xf32>
    %415 = vector.extract_strided_slice %406 {offsets = [0, 128], sizes = [8, 128], strides = [1, 1]} : vector<8x512xf32> to vector<8x128xf32>
    %cst_131 = arith.constant 5.000000e-01 : f32
    %416 = vector.broadcast %cst_131 : f32 to vector<8x128xf32>
    %417 = arith.mulf %416, %415 : vector<8x128xf32>
    %418 = math.tanh %417 : vector<8x128xf32>
    %cst_132 = arith.constant 5.000000e-01 : f32
    %419 = vector.broadcast %cst_132 : f32 to vector<8x128xf32>
    %420 = arith.mulf %419, %418 : vector<8x128xf32>
    %cst_133 = arith.constant 5.000000e-01 : f32
    %421 = vector.broadcast %cst_133 : f32 to vector<8x128xf32>
    %422 = arith.addf %420, %421 : vector<8x128xf32>
    %423 = vector.extract_strided_slice %406 {offsets = [0, 256], sizes = [8, 128], strides = [1, 1]} : vector<8x512xf32> to vector<8x128xf32>
    %424 = math.tanh %423 : vector<8x128xf32>
    %425 = vector.extract_strided_slice %406 {offsets = [0, 384], sizes = [8, 128], strides = [1, 1]} : vector<8x512xf32> to vector<8x128xf32>
    %cst_134 = arith.constant 5.000000e-01 : f32
    %426 = vector.broadcast %cst_134 : f32 to vector<8x128xf32>
    %427 = arith.mulf %426, %425 : vector<8x128xf32>
    %428 = math.tanh %427 : vector<8x128xf32>
    %cst_135 = arith.constant 5.000000e-01 : f32
    %429 = vector.broadcast %cst_135 : f32 to vector<8x128xf32>
    %430 = arith.mulf %429, %428 : vector<8x128xf32>
    %cst_136 = arith.constant 5.000000e-01 : f32
    %431 = vector.broadcast %cst_136 : f32 to vector<8x128xf32>
    %432 = arith.addf %430, %431 : vector<8x128xf32>
    %433 = arith.mulf %422, %363 : vector<8x128xf32>
    %434 = arith.mulf %414, %424 : vector<8x128xf32>
    %435 = arith.addf %433, %434 : vector<8x128xf32>
    %436 = math.tanh %435 : vector<8x128xf32>
    %437 = arith.mulf %432, %436 : vector<8x128xf32>
    %c6_i32 = arith.constant 6 : i32
    %438 = arith.index_cast %c6_i32 : i32 to index
    %c0_137 = arith.constant 0 : index
    %c0_138 = arith.constant 0 : index
    %439 = vector.load %arg0[%438, %c0_137, %c0_138] : memref<28x8x512xf32, #tpu.memory_space<vmem>>, vector<1x8x512xf32>
    %440 = vector.shape_cast %439 : vector<1x8x512xf32> to vector<8x512xf32>
    %441 = arith.truncf %402 : vector<8x128xf32> to vector<8x128xbf16>
    %cst_139 = arith.constant dense<0.000000e+00> : vector<8x512xf32>
    %442 = tpu.matmul %441, %0, %cst_139 {dimension_numbers = #tpu.dot_dimension_numbers<[1], [0], [0], [1], [0, 0, 1, 1], [], []>} : vector<8x128xbf16>, vector<128x512xbf16>, vector<8x512xf32> -> vector<8x512xf32>
    %443 = arith.addf %440, %442 : vector<8x512xf32>
    %444 = vector.extract_strided_slice %443 {offsets = [0, 0], sizes = [8, 128], strides = [1, 1]} : vector<8x512xf32> to vector<8x128xf32>
    %cst_140 = arith.constant 5.000000e-01 : f32
    %445 = vector.broadcast %cst_140 : f32 to vector<8x128xf32>
    %446 = arith.mulf %445, %444 : vector<8x128xf32>
    %447 = math.tanh %446 : vector<8x128xf32>
    %cst_141 = arith.constant 5.000000e-01 : f32
    %448 = vector.broadcast %cst_141 : f32 to vector<8x128xf32>
    %449 = arith.mulf %448, %447 : vector<8x128xf32>
    %cst_142 = arith.constant 5.000000e-01 : f32
    %450 = vector.broadcast %cst_142 : f32 to vector<8x128xf32>
    %451 = arith.addf %449, %450 : vector<8x128xf32>
    %452 = vector.extract_strided_slice %443 {offsets = [0, 128], sizes = [8, 128], strides = [1, 1]} : vector<8x512xf32> to vector<8x128xf32>
    %cst_143 = arith.constant 5.000000e-01 : f32
    %453 = vector.broadcast %cst_143 : f32 to vector<8x128xf32>
    %454 = arith.mulf %453, %452 : vector<8x128xf32>
    %455 = math.tanh %454 : vector<8x128xf32>
    %cst_144 = arith.constant 5.000000e-01 : f32
    %456 = vector.broadcast %cst_144 : f32 to vector<8x128xf32>
    %457 = arith.mulf %456, %455 : vector<8x128xf32>
    %cst_145 = arith.constant 5.000000e-01 : f32
    %458 = vector.broadcast %cst_145 : f32 to vector<8x128xf32>
    %459 = arith.addf %457, %458 : vector<8x128xf32>
    %460 = vector.extract_strided_slice %443 {offsets = [0, 256], sizes = [8, 128], strides = [1, 1]} : vector<8x512xf32> to vector<8x128xf32>
    %461 = math.tanh %460 : vector<8x128xf32>
    %462 = vector.extract_strided_slice %443 {offsets = [0, 384], sizes = [8, 128], strides = [1, 1]} : vector<8x512xf32> to vector<8x128xf32>
    %cst_146 = arith.constant 5.000000e-01 : f32
    %463 = vector.broadcast %cst_146 : f32 to vector<8x128xf32>
    %464 = arith.mulf %463, %462 : vector<8x128xf32>
    %465 = math.tanh %464 : vector<8x128xf32>
    %cst_147 = arith.constant 5.000000e-01 : f32
    %466 = vector.broadcast %cst_147 : f32 to vector<8x128xf32>
    %467 = arith.mulf %466, %465 : vector<8x128xf32>
    %cst_148 = arith.constant 5.000000e-01 : f32
    %468 = vector.broadcast %cst_148 : f32 to vector<8x128xf32>
    %469 = arith.addf %467, %468 : vector<8x128xf32>
    %470 = arith.mulf %459, %400 : vector<8x128xf32>
    %471 = arith.mulf %451, %461 : vector<8x128xf32>
    %472 = arith.addf %470, %471 : vector<8x128xf32>
    %473 = math.tanh %472 : vector<8x128xf32>
    %474 = arith.mulf %469, %473 : vector<8x128xf32>
    %475 = tpu.concatenate %474, %437 in 1 : vector<8x128xf32>, vector<8x128xf32> -> vector<8x256xf32>
    %476 = arith.truncf %475 : vector<8x256xf32> to vector<8x256xbf16>
    %cst_149 = arith.constant dense<0.000000e+00> : vector<8x512xf32>
    %477 = tpu.matmul %476, %1, %cst_149 {dimension_numbers = #tpu.dot_dimension_numbers<[1], [0], [0], [1], [0, 0, 1, 1], [], []>} : vector<8x256xbf16>, vector<256x512xbf16>, vector<8x512xf32> -> vector<8x512xf32>
    %478 = arith.addf %477, %4 : vector<8x512xf32>
    %479 = vector.extract_strided_slice %478 {offsets = [0, 0], sizes = [8, 128], strides = [1, 1]} : vector<8x512xf32> to vector<8x128xf32>
    %cst_150 = arith.constant 5.000000e-01 : f32
    %480 = vector.broadcast %cst_150 : f32 to vector<8x128xf32>
    %481 = arith.mulf %480, %479 : vector<8x128xf32>
    %482 = math.tanh %481 : vector<8x128xf32>
    %cst_151 = arith.constant 5.000000e-01 : f32
    %483 = vector.broadcast %cst_151 : f32 to vector<8x128xf32>
    %484 = arith.mulf %483, %482 : vector<8x128xf32>
    %cst_152 = arith.constant 5.000000e-01 : f32
    %485 = vector.broadcast %cst_152 : f32 to vector<8x128xf32>
    %486 = arith.addf %484, %485 : vector<8x128xf32>
    %487 = vector.extract_strided_slice %478 {offsets = [0, 128], sizes = [8, 128], strides = [1, 1]} : vector<8x512xf32> to vector<8x128xf32>
    %cst_153 = arith.constant 5.000000e-01 : f32
    %488 = vector.broadcast %cst_153 : f32 to vector<8x128xf32>
    %489 = arith.mulf %488, %487 : vector<8x128xf32>
    %490 = math.tanh %489 : vector<8x128xf32>
    %cst_154 = arith.constant 5.000000e-01 : f32
    %491 = vector.broadcast %cst_154 : f32 to vector<8x128xf32>
    %492 = arith.mulf %491, %490 : vector<8x128xf32>
    %cst_155 = arith.constant 5.000000e-01 : f32
    %493 = vector.broadcast %cst_155 : f32 to vector<8x128xf32>
    %494 = arith.addf %492, %493 : vector<8x128xf32>
    %495 = vector.extract_strided_slice %478 {offsets = [0, 256], sizes = [8, 128], strides = [1, 1]} : vector<8x512xf32> to vector<8x128xf32>
    %496 = math.tanh %495 : vector<8x128xf32>
    %497 = vector.extract_strided_slice %478 {offsets = [0, 384], sizes = [8, 128], strides = [1, 1]} : vector<8x512xf32> to vector<8x128xf32>
    %cst_156 = arith.constant 5.000000e-01 : f32
    %498 = vector.broadcast %cst_156 : f32 to vector<8x128xf32>
    %499 = arith.mulf %498, %497 : vector<8x128xf32>
    %500 = math.tanh %499 : vector<8x128xf32>
    %cst_157 = arith.constant 5.000000e-01 : f32
    %501 = vector.broadcast %cst_157 : f32 to vector<8x128xf32>
    %502 = arith.mulf %501, %500 : vector<8x128xf32>
    %cst_158 = arith.constant 5.000000e-01 : f32
    %503 = vector.broadcast %cst_158 : f32 to vector<8x128xf32>
    %504 = arith.addf %502, %503 : vector<8x128xf32>
    %505 = arith.mulf %494, %435 : vector<8x128xf32>
    %506 = arith.mulf %486, %496 : vector<8x128xf32>
    %507 = arith.addf %505, %506 : vector<8x128xf32>
    %508 = math.tanh %507 : vector<8x128xf32>
    %509 = arith.mulf %504, %508 : vector<8x128xf32>
    %c7_i32 = arith.constant 7 : i32
    %510 = arith.index_cast %c7_i32 : i32 to index
    %c0_159 = arith.constant 0 : index
    %c0_160 = arith.constant 0 : index
    %511 = vector.load %arg0[%510, %c0_159, %c0_160] : memref<28x8x512xf32, #tpu.memory_space<vmem>>, vector<1x8x512xf32>
    %512 = vector.shape_cast %511 : vector<1x8x512xf32> to vector<8x512xf32>
    %513 = arith.truncf %474 : vector<8x128xf32> to vector<8x128xbf16>
    %cst_161 = arith.constant dense<0.000000e+00> : vector<8x512xf32>
    %514 = tpu.matmul %513, %0, %cst_161 {dimension_numbers = #tpu.dot_dimension_numbers<[1], [0], [0], [1], [0, 0, 1, 1], [], []>} : vector<8x128xbf16>, vector<128x512xbf16>, vector<8x512xf32> -> vector<8x512xf32>
    %515 = arith.addf %512, %514 : vector<8x512xf32>
    %516 = vector.extract_strided_slice %515 {offsets = [0, 0], sizes = [8, 128], strides = [1, 1]} : vector<8x512xf32> to vector<8x128xf32>
    %cst_162 = arith.constant 5.000000e-01 : f32
    %517 = vector.broadcast %cst_162 : f32 to vector<8x128xf32>
    %518 = arith.mulf %517, %516 : vector<8x128xf32>
    %519 = math.tanh %518 : vector<8x128xf32>
    %cst_163 = arith.constant 5.000000e-01 : f32
    %520 = vector.broadcast %cst_163 : f32 to vector<8x128xf32>
    %521 = arith.mulf %520, %519 : vector<8x128xf32>
    %cst_164 = arith.constant 5.000000e-01 : f32
    %522 = vector.broadcast %cst_164 : f32 to vector<8x128xf32>
    %523 = arith.addf %521, %522 : vector<8x128xf32>
    %524 = vector.extract_strided_slice %515 {offsets = [0, 128], sizes = [8, 128], strides = [1, 1]} : vector<8x512xf32> to vector<8x128xf32>
    %cst_165 = arith.constant 5.000000e-01 : f32
    %525 = vector.broadcast %cst_165 : f32 to vector<8x128xf32>
    %526 = arith.mulf %525, %524 : vector<8x128xf32>
    %527 = math.tanh %526 : vector<8x128xf32>
    %cst_166 = arith.constant 5.000000e-01 : f32
    %528 = vector.broadcast %cst_166 : f32 to vector<8x128xf32>
    %529 = arith.mulf %528, %527 : vector<8x128xf32>
    %cst_167 = arith.constant 5.000000e-01 : f32
    %530 = vector.broadcast %cst_167 : f32 to vector<8x128xf32>
    %531 = arith.addf %529, %530 : vector<8x128xf32>
    %532 = vector.extract_strided_slice %515 {offsets = [0, 256], sizes = [8, 128], strides = [1, 1]} : vector<8x512xf32> to vector<8x128xf32>
    %533 = math.tanh %532 : vector<8x128xf32>
    %534 = vector.extract_strided_slice %515 {offsets = [0, 384], sizes = [8, 128], strides = [1, 1]} : vector<8x512xf32> to vector<8x128xf32>
    %cst_168 = arith.constant 5.000000e-01 : f32
    %535 = vector.broadcast %cst_168 : f32 to vector<8x128xf32>
    %536 = arith.mulf %535, %534 : vector<8x128xf32>
    %537 = math.tanh %536 : vector<8x128xf32>
    %cst_169 = arith.constant 5.000000e-01 : f32
    %538 = vector.broadcast %cst_169 : f32 to vector<8x128xf32>
    %539 = arith.mulf %538, %537 : vector<8x128xf32>
    %cst_170 = arith.constant 5.000000e-01 : f32
    %540 = vector.broadcast %cst_170 : f32 to vector<8x128xf32>
    %541 = arith.addf %539, %540 : vector<8x128xf32>
    %542 = arith.mulf %531, %472 : vector<8x128xf32>
    %543 = arith.mulf %523, %533 : vector<8x128xf32>
    %544 = arith.addf %542, %543 : vector<8x128xf32>
    %545 = math.tanh %544 : vector<8x128xf32>
    %546 = arith.mulf %541, %545 : vector<8x128xf32>
    %547 = tpu.concatenate %546, %509 in 1 : vector<8x128xf32>, vector<8x128xf32> -> vector<8x256xf32>
    %548 = arith.truncf %547 : vector<8x256xf32> to vector<8x256xbf16>
    %cst_171 = arith.constant dense<0.000000e+00> : vector<8x512xf32>
    %549 = tpu.matmul %548, %1, %cst_171 {dimension_numbers = #tpu.dot_dimension_numbers<[1], [0], [0], [1], [0, 0, 1, 1], [], []>} : vector<8x256xbf16>, vector<256x512xbf16>, vector<8x512xf32> -> vector<8x512xf32>
    %550 = arith.addf %549, %4 : vector<8x512xf32>
    %551 = vector.extract_strided_slice %550 {offsets = [0, 0], sizes = [8, 128], strides = [1, 1]} : vector<8x512xf32> to vector<8x128xf32>
    %cst_172 = arith.constant 5.000000e-01 : f32
    %552 = vector.broadcast %cst_172 : f32 to vector<8x128xf32>
    %553 = arith.mulf %552, %551 : vector<8x128xf32>
    %554 = math.tanh %553 : vector<8x128xf32>
    %cst_173 = arith.constant 5.000000e-01 : f32
    %555 = vector.broadcast %cst_173 : f32 to vector<8x128xf32>
    %556 = arith.mulf %555, %554 : vector<8x128xf32>
    %cst_174 = arith.constant 5.000000e-01 : f32
    %557 = vector.broadcast %cst_174 : f32 to vector<8x128xf32>
    %558 = arith.addf %556, %557 : vector<8x128xf32>
    %559 = vector.extract_strided_slice %550 {offsets = [0, 128], sizes = [8, 128], strides = [1, 1]} : vector<8x512xf32> to vector<8x128xf32>
    %cst_175 = arith.constant 5.000000e-01 : f32
    %560 = vector.broadcast %cst_175 : f32 to vector<8x128xf32>
    %561 = arith.mulf %560, %559 : vector<8x128xf32>
    %562 = math.tanh %561 : vector<8x128xf32>
    %cst_176 = arith.constant 5.000000e-01 : f32
    %563 = vector.broadcast %cst_176 : f32 to vector<8x128xf32>
    %564 = arith.mulf %563, %562 : vector<8x128xf32>
    %cst_177 = arith.constant 5.000000e-01 : f32
    %565 = vector.broadcast %cst_177 : f32 to vector<8x128xf32>
    %566 = arith.addf %564, %565 : vector<8x128xf32>
    %567 = vector.extract_strided_slice %550 {offsets = [0, 256], sizes = [8, 128], strides = [1, 1]} : vector<8x512xf32> to vector<8x128xf32>
    %568 = math.tanh %567 : vector<8x128xf32>
    %569 = vector.extract_strided_slice %550 {offsets = [0, 384], sizes = [8, 128], strides = [1, 1]} : vector<8x512xf32> to vector<8x128xf32>
    %cst_178 = arith.constant 5.000000e-01 : f32
    %570 = vector.broadcast %cst_178 : f32 to vector<8x128xf32>
    %571 = arith.mulf %570, %569 : vector<8x128xf32>
    %572 = math.tanh %571 : vector<8x128xf32>
    %cst_179 = arith.constant 5.000000e-01 : f32
    %573 = vector.broadcast %cst_179 : f32 to vector<8x128xf32>
    %574 = arith.mulf %573, %572 : vector<8x128xf32>
    %cst_180 = arith.constant 5.000000e-01 : f32
    %575 = vector.broadcast %cst_180 : f32 to vector<8x128xf32>
    %576 = arith.addf %574, %575 : vector<8x128xf32>
    %577 = arith.mulf %566, %507 : vector<8x128xf32>
    %578 = arith.mulf %558, %568 : vector<8x128xf32>
    %579 = arith.addf %577, %578 : vector<8x128xf32>
    %580 = math.tanh %579 : vector<8x128xf32>
    %581 = arith.mulf %576, %580 : vector<8x128xf32>
    %c8_i32 = arith.constant 8 : i32
    %582 = arith.index_cast %c8_i32 : i32 to index
    %c0_181 = arith.constant 0 : index
    %c0_182 = arith.constant 0 : index
    %583 = vector.load %arg0[%582, %c0_181, %c0_182] : memref<28x8x512xf32, #tpu.memory_space<vmem>>, vector<1x8x512xf32>
    %584 = vector.shape_cast %583 : vector<1x8x512xf32> to vector<8x512xf32>
    %585 = arith.truncf %546 : vector<8x128xf32> to vector<8x128xbf16>
    %cst_183 = arith.constant dense<0.000000e+00> : vector<8x512xf32>
    %586 = tpu.matmul %585, %0, %cst_183 {dimension_numbers = #tpu.dot_dimension_numbers<[1], [0], [0], [1], [0, 0, 1, 1], [], []>} : vector<8x128xbf16>, vector<128x512xbf16>, vector<8x512xf32> -> vector<8x512xf32>
    %587 = arith.addf %584, %586 : vector<8x512xf32>
    %588 = vector.extract_strided_slice %587 {offsets = [0, 0], sizes = [8, 128], strides = [1, 1]} : vector<8x512xf32> to vector<8x128xf32>
    %cst_184 = arith.constant 5.000000e-01 : f32
    %589 = vector.broadcast %cst_184 : f32 to vector<8x128xf32>
    %590 = arith.mulf %589, %588 : vector<8x128xf32>
    %591 = math.tanh %590 : vector<8x128xf32>
    %cst_185 = arith.constant 5.000000e-01 : f32
    %592 = vector.broadcast %cst_185 : f32 to vector<8x128xf32>
    %593 = arith.mulf %592, %591 : vector<8x128xf32>
    %cst_186 = arith.constant 5.000000e-01 : f32
    %594 = vector.broadcast %cst_186 : f32 to vector<8x128xf32>
    %595 = arith.addf %593, %594 : vector<8x128xf32>
    %596 = vector.extract_strided_slice %587 {offsets = [0, 128], sizes = [8, 128], strides = [1, 1]} : vector<8x512xf32> to vector<8x128xf32>
    %cst_187 = arith.constant 5.000000e-01 : f32
    %597 = vector.broadcast %cst_187 : f32 to vector<8x128xf32>
    %598 = arith.mulf %597, %596 : vector<8x128xf32>
    %599 = math.tanh %598 : vector<8x128xf32>
    %cst_188 = arith.constant 5.000000e-01 : f32
    %600 = vector.broadcast %cst_188 : f32 to vector<8x128xf32>
    %601 = arith.mulf %600, %599 : vector<8x128xf32>
    %cst_189 = arith.constant 5.000000e-01 : f32
    %602 = vector.broadcast %cst_189 : f32 to vector<8x128xf32>
    %603 = arith.addf %601, %602 : vector<8x128xf32>
    %604 = vector.extract_strided_slice %587 {offsets = [0, 256], sizes = [8, 128], strides = [1, 1]} : vector<8x512xf32> to vector<8x128xf32>
    %605 = math.tanh %604 : vector<8x128xf32>
    %606 = vector.extract_strided_slice %587 {offsets = [0, 384], sizes = [8, 128], strides = [1, 1]} : vector<8x512xf32> to vector<8x128xf32>
    %cst_190 = arith.constant 5.000000e-01 : f32
    %607 = vector.broadcast %cst_190 : f32 to vector<8x128xf32>
    %608 = arith.mulf %607, %606 : vector<8x128xf32>
    %609 = math.tanh %608 : vector<8x128xf32>
    %cst_191 = arith.constant 5.000000e-01 : f32
    %610 = vector.broadcast %cst_191 : f32 to vector<8x128xf32>
    %611 = arith.mulf %610, %609 : vector<8x128xf32>
    %cst_192 = arith.constant 5.000000e-01 : f32
    %612 = vector.broadcast %cst_192 : f32 to vector<8x128xf32>
    %613 = arith.addf %611, %612 : vector<8x128xf32>
    %614 = arith.mulf %603, %544 : vector<8x128xf32>
    %615 = arith.mulf %595, %605 : vector<8x128xf32>
    %616 = arith.addf %614, %615 : vector<8x128xf32>
    %617 = math.tanh %616 : vector<8x128xf32>
    %618 = arith.mulf %613, %617 : vector<8x128xf32>
    %619 = tpu.concatenate %618, %581 in 1 : vector<8x128xf32>, vector<8x128xf32> -> vector<8x256xf32>
    %620 = arith.truncf %619 : vector<8x256xf32> to vector<8x256xbf16>
    %cst_193 = arith.constant dense<0.000000e+00> : vector<8x512xf32>
    %621 = tpu.matmul %620, %1, %cst_193 {dimension_numbers = #tpu.dot_dimension_numbers<[1], [0], [0], [1], [0, 0, 1, 1], [], []>} : vector<8x256xbf16>, vector<256x512xbf16>, vector<8x512xf32> -> vector<8x512xf32>
    %622 = arith.addf %621, %4 : vector<8x512xf32>
    %623 = vector.extract_strided_slice %622 {offsets = [0, 0], sizes = [8, 128], strides = [1, 1]} : vector<8x512xf32> to vector<8x128xf32>
    %cst_194 = arith.constant 5.000000e-01 : f32
    %624 = vector.broadcast %cst_194 : f32 to vector<8x128xf32>
    %625 = arith.mulf %624, %623 : vector<8x128xf32>
    %626 = math.tanh %625 : vector<8x128xf32>
    %cst_195 = arith.constant 5.000000e-01 : f32
    %627 = vector.broadcast %cst_195 : f32 to vector<8x128xf32>
    %628 = arith.mulf %627, %626 : vector<8x128xf32>
    %cst_196 = arith.constant 5.000000e-01 : f32
    %629 = vector.broadcast %cst_196 : f32 to vector<8x128xf32>
    %630 = arith.addf %628, %629 : vector<8x128xf32>
    %631 = vector.extract_strided_slice %622 {offsets = [0, 128], sizes = [8, 128], strides = [1, 1]} : vector<8x512xf32> to vector<8x128xf32>
    %cst_197 = arith.constant 5.000000e-01 : f32
    %632 = vector.broadcast %cst_197 : f32 to vector<8x128xf32>
    %633 = arith.mulf %632, %631 : vector<8x128xf32>
    %634 = math.tanh %633 : vector<8x128xf32>
    %cst_198 = arith.constant 5.000000e-01 : f32
    %635 = vector.broadcast %cst_198 : f32 to vector<8x128xf32>
    %636 = arith.mulf %635, %634 : vector<8x128xf32>
    %cst_199 = arith.constant 5.000000e-01 : f32
    %637 = vector.broadcast %cst_199 : f32 to vector<8x128xf32>
    %638 = arith.addf %636, %637 : vector<8x128xf32>
    %639 = vector.extract_strided_slice %622 {offsets = [0, 256], sizes = [8, 128], strides = [1, 1]} : vector<8x512xf32> to vector<8x128xf32>
    %640 = math.tanh %639 : vector<8x128xf32>
    %641 = vector.extract_strided_slice %622 {offsets = [0, 384], sizes = [8, 128], strides = [1, 1]} : vector<8x512xf32> to vector<8x128xf32>
    %cst_200 = arith.constant 5.000000e-01 : f32
    %642 = vector.broadcast %cst_200 : f32 to vector<8x128xf32>
    %643 = arith.mulf %642, %641 : vector<8x128xf32>
    %644 = math.tanh %643 : vector<8x128xf32>
    %cst_201 = arith.constant 5.000000e-01 : f32
    %645 = vector.broadcast %cst_201 : f32 to vector<8x128xf32>
    %646 = arith.mulf %645, %644 : vector<8x128xf32>
    %cst_202 = arith.constant 5.000000e-01 : f32
    %647 = vector.broadcast %cst_202 : f32 to vector<8x128xf32>
    %648 = arith.addf %646, %647 : vector<8x128xf32>
    %649 = arith.mulf %638, %579 : vector<8x128xf32>
    %650 = arith.mulf %630, %640 : vector<8x128xf32>
    %651 = arith.addf %649, %650 : vector<8x128xf32>
    %652 = math.tanh %651 : vector<8x128xf32>
    %653 = arith.mulf %648, %652 : vector<8x128xf32>
    %c9_i32 = arith.constant 9 : i32
    %654 = arith.index_cast %c9_i32 : i32 to index
    %c0_203 = arith.constant 0 : index
    %c0_204 = arith.constant 0 : index
    %655 = vector.load %arg0[%654, %c0_203, %c0_204] : memref<28x8x512xf32, #tpu.memory_space<vmem>>, vector<1x8x512xf32>
    %656 = vector.shape_cast %655 : vector<1x8x512xf32> to vector<8x512xf32>
    %657 = arith.truncf %618 : vector<8x128xf32> to vector<8x128xbf16>
    %cst_205 = arith.constant dense<0.000000e+00> : vector<8x512xf32>
    %658 = tpu.matmul %657, %0, %cst_205 {dimension_numbers = #tpu.dot_dimension_numbers<[1], [0], [0], [1], [0, 0, 1, 1], [], []>} : vector<8x128xbf16>, vector<128x512xbf16>, vector<8x512xf32> -> vector<8x512xf32>
    %659 = arith.addf %656, %658 : vector<8x512xf32>
    %660 = vector.extract_strided_slice %659 {offsets = [0, 0], sizes = [8, 128], strides = [1, 1]} : vector<8x512xf32> to vector<8x128xf32>
    %cst_206 = arith.constant 5.000000e-01 : f32
    %661 = vector.broadcast %cst_206 : f32 to vector<8x128xf32>
    %662 = arith.mulf %661, %660 : vector<8x128xf32>
    %663 = math.tanh %662 : vector<8x128xf32>
    %cst_207 = arith.constant 5.000000e-01 : f32
    %664 = vector.broadcast %cst_207 : f32 to vector<8x128xf32>
    %665 = arith.mulf %664, %663 : vector<8x128xf32>
    %cst_208 = arith.constant 5.000000e-01 : f32
    %666 = vector.broadcast %cst_208 : f32 to vector<8x128xf32>
    %667 = arith.addf %665, %666 : vector<8x128xf32>
    %668 = vector.extract_strided_slice %659 {offsets = [0, 128], sizes = [8, 128], strides = [1, 1]} : vector<8x512xf32> to vector<8x128xf32>
    %cst_209 = arith.constant 5.000000e-01 : f32
    %669 = vector.broadcast %cst_209 : f32 to vector<8x128xf32>
    %670 = arith.mulf %669, %668 : vector<8x128xf32>
    %671 = math.tanh %670 : vector<8x128xf32>
    %cst_210 = arith.constant 5.000000e-01 : f32
    %672 = vector.broadcast %cst_210 : f32 to vector<8x128xf32>
    %673 = arith.mulf %672, %671 : vector<8x128xf32>
    %cst_211 = arith.constant 5.000000e-01 : f32
    %674 = vector.broadcast %cst_211 : f32 to vector<8x128xf32>
    %675 = arith.addf %673, %674 : vector<8x128xf32>
    %676 = vector.extract_strided_slice %659 {offsets = [0, 256], sizes = [8, 128], strides = [1, 1]} : vector<8x512xf32> to vector<8x128xf32>
    %677 = math.tanh %676 : vector<8x128xf32>
    %678 = vector.extract_strided_slice %659 {offsets = [0, 384], sizes = [8, 128], strides = [1, 1]} : vector<8x512xf32> to vector<8x128xf32>
    %cst_212 = arith.constant 5.000000e-01 : f32
    %679 = vector.broadcast %cst_212 : f32 to vector<8x128xf32>
    %680 = arith.mulf %679, %678 : vector<8x128xf32>
    %681 = math.tanh %680 : vector<8x128xf32>
    %cst_213 = arith.constant 5.000000e-01 : f32
    %682 = vector.broadcast %cst_213 : f32 to vector<8x128xf32>
    %683 = arith.mulf %682, %681 : vector<8x128xf32>
    %cst_214 = arith.constant 5.000000e-01 : f32
    %684 = vector.broadcast %cst_214 : f32 to vector<8x128xf32>
    %685 = arith.addf %683, %684 : vector<8x128xf32>
    %686 = arith.mulf %675, %616 : vector<8x128xf32>
    %687 = arith.mulf %667, %677 : vector<8x128xf32>
    %688 = arith.addf %686, %687 : vector<8x128xf32>
    %689 = math.tanh %688 : vector<8x128xf32>
    %690 = arith.mulf %685, %689 : vector<8x128xf32>
    %691 = tpu.concatenate %690, %653 in 1 : vector<8x128xf32>, vector<8x128xf32> -> vector<8x256xf32>
    %692 = arith.truncf %691 : vector<8x256xf32> to vector<8x256xbf16>
    %cst_215 = arith.constant dense<0.000000e+00> : vector<8x512xf32>
    %693 = tpu.matmul %692, %1, %cst_215 {dimension_numbers = #tpu.dot_dimension_numbers<[1], [0], [0], [1], [0, 0, 1, 1], [], []>} : vector<8x256xbf16>, vector<256x512xbf16>, vector<8x512xf32> -> vector<8x512xf32>
    %694 = arith.addf %693, %4 : vector<8x512xf32>
    %695 = vector.extract_strided_slice %694 {offsets = [0, 0], sizes = [8, 128], strides = [1, 1]} : vector<8x512xf32> to vector<8x128xf32>
    %cst_216 = arith.constant 5.000000e-01 : f32
    %696 = vector.broadcast %cst_216 : f32 to vector<8x128xf32>
    %697 = arith.mulf %696, %695 : vector<8x128xf32>
    %698 = math.tanh %697 : vector<8x128xf32>
    %cst_217 = arith.constant 5.000000e-01 : f32
    %699 = vector.broadcast %cst_217 : f32 to vector<8x128xf32>
    %700 = arith.mulf %699, %698 : vector<8x128xf32>
    %cst_218 = arith.constant 5.000000e-01 : f32
    %701 = vector.broadcast %cst_218 : f32 to vector<8x128xf32>
    %702 = arith.addf %700, %701 : vector<8x128xf32>
    %703 = vector.extract_strided_slice %694 {offsets = [0, 128], sizes = [8, 128], strides = [1, 1]} : vector<8x512xf32> to vector<8x128xf32>
    %cst_219 = arith.constant 5.000000e-01 : f32
    %704 = vector.broadcast %cst_219 : f32 to vector<8x128xf32>
    %705 = arith.mulf %704, %703 : vector<8x128xf32>
    %706 = math.tanh %705 : vector<8x128xf32>
    %cst_220 = arith.constant 5.000000e-01 : f32
    %707 = vector.broadcast %cst_220 : f32 to vector<8x128xf32>
    %708 = arith.mulf %707, %706 : vector<8x128xf32>
    %cst_221 = arith.constant 5.000000e-01 : f32
    %709 = vector.broadcast %cst_221 : f32 to vector<8x128xf32>
    %710 = arith.addf %708, %709 : vector<8x128xf32>
    %711 = vector.extract_strided_slice %694 {offsets = [0, 256], sizes = [8, 128], strides = [1, 1]} : vector<8x512xf32> to vector<8x128xf32>
    %712 = math.tanh %711 : vector<8x128xf32>
    %713 = vector.extract_strided_slice %694 {offsets = [0, 384], sizes = [8, 128], strides = [1, 1]} : vector<8x512xf32> to vector<8x128xf32>
    %cst_222 = arith.constant 5.000000e-01 : f32
    %714 = vector.broadcast %cst_222 : f32 to vector<8x128xf32>
    %715 = arith.mulf %714, %713 : vector<8x128xf32>
    %716 = math.tanh %715 : vector<8x128xf32>
    %cst_223 = arith.constant 5.000000e-01 : f32
    %717 = vector.broadcast %cst_223 : f32 to vector<8x128xf32>
    %718 = arith.mulf %717, %716 : vector<8x128xf32>
    %cst_224 = arith.constant 5.000000e-01 : f32
    %719 = vector.broadcast %cst_224 : f32 to vector<8x128xf32>
    %720 = arith.addf %718, %719 : vector<8x128xf32>
    %721 = arith.mulf %710, %651 : vector<8x128xf32>
    %722 = arith.mulf %702, %712 : vector<8x128xf32>
    %723 = arith.addf %721, %722 : vector<8x128xf32>
    %724 = math.tanh %723 : vector<8x128xf32>
    %725 = arith.mulf %720, %724 : vector<8x128xf32>
    %c10_i32 = arith.constant 10 : i32
    %726 = arith.index_cast %c10_i32 : i32 to index
    %c0_225 = arith.constant 0 : index
    %c0_226 = arith.constant 0 : index
    %727 = vector.load %arg0[%726, %c0_225, %c0_226] : memref<28x8x512xf32, #tpu.memory_space<vmem>>, vector<1x8x512xf32>
    %728 = vector.shape_cast %727 : vector<1x8x512xf32> to vector<8x512xf32>
    %729 = arith.truncf %690 : vector<8x128xf32> to vector<8x128xbf16>
    %cst_227 = arith.constant dense<0.000000e+00> : vector<8x512xf32>
    %730 = tpu.matmul %729, %0, %cst_227 {dimension_numbers = #tpu.dot_dimension_numbers<[1], [0], [0], [1], [0, 0, 1, 1], [], []>} : vector<8x128xbf16>, vector<128x512xbf16>, vector<8x512xf32> -> vector<8x512xf32>
    %731 = arith.addf %728, %730 : vector<8x512xf32>
    %732 = vector.extract_strided_slice %731 {offsets = [0, 0], sizes = [8, 128], strides = [1, 1]} : vector<8x512xf32> to vector<8x128xf32>
    %cst_228 = arith.constant 5.000000e-01 : f32
    %733 = vector.broadcast %cst_228 : f32 to vector<8x128xf32>
    %734 = arith.mulf %733, %732 : vector<8x128xf32>
    %735 = math.tanh %734 : vector<8x128xf32>
    %cst_229 = arith.constant 5.000000e-01 : f32
    %736 = vector.broadcast %cst_229 : f32 to vector<8x128xf32>
    %737 = arith.mulf %736, %735 : vector<8x128xf32>
    %cst_230 = arith.constant 5.000000e-01 : f32
    %738 = vector.broadcast %cst_230 : f32 to vector<8x128xf32>
    %739 = arith.addf %737, %738 : vector<8x128xf32>
    %740 = vector.extract_strided_slice %731 {offsets = [0, 128], sizes = [8, 128], strides = [1, 1]} : vector<8x512xf32> to vector<8x128xf32>
    %cst_231 = arith.constant 5.000000e-01 : f32
    %741 = vector.broadcast %cst_231 : f32 to vector<8x128xf32>
    %742 = arith.mulf %741, %740 : vector<8x128xf32>
    %743 = math.tanh %742 : vector<8x128xf32>
    %cst_232 = arith.constant 5.000000e-01 : f32
    %744 = vector.broadcast %cst_232 : f32 to vector<8x128xf32>
    %745 = arith.mulf %744, %743 : vector<8x128xf32>
    %cst_233 = arith.constant 5.000000e-01 : f32
    %746 = vector.broadcast %cst_233 : f32 to vector<8x128xf32>
    %747 = arith.addf %745, %746 : vector<8x128xf32>
    %748 = vector.extract_strided_slice %731 {offsets = [0, 256], sizes = [8, 128], strides = [1, 1]} : vector<8x512xf32> to vector<8x128xf32>
    %749 = math.tanh %748 : vector<8x128xf32>
    %750 = vector.extract_strided_slice %731 {offsets = [0, 384], sizes = [8, 128], strides = [1, 1]} : vector<8x512xf32> to vector<8x128xf32>
    %cst_234 = arith.constant 5.000000e-01 : f32
    %751 = vector.broadcast %cst_234 : f32 to vector<8x128xf32>
    %752 = arith.mulf %751, %750 : vector<8x128xf32>
    %753 = math.tanh %752 : vector<8x128xf32>
    %cst_235 = arith.constant 5.000000e-01 : f32
    %754 = vector.broadcast %cst_235 : f32 to vector<8x128xf32>
    %755 = arith.mulf %754, %753 : vector<8x128xf32>
    %cst_236 = arith.constant 5.000000e-01 : f32
    %756 = vector.broadcast %cst_236 : f32 to vector<8x128xf32>
    %757 = arith.addf %755, %756 : vector<8x128xf32>
    %758 = arith.mulf %747, %688 : vector<8x128xf32>
    %759 = arith.mulf %739, %749 : vector<8x128xf32>
    %760 = arith.addf %758, %759 : vector<8x128xf32>
    %761 = math.tanh %760 : vector<8x128xf32>
    %762 = arith.mulf %757, %761 : vector<8x128xf32>
    %763 = tpu.concatenate %762, %725 in 1 : vector<8x128xf32>, vector<8x128xf32> -> vector<8x256xf32>
    %764 = arith.truncf %763 : vector<8x256xf32> to vector<8x256xbf16>
    %cst_237 = arith.constant dense<0.000000e+00> : vector<8x512xf32>
    %765 = tpu.matmul %764, %1, %cst_237 {dimension_numbers = #tpu.dot_dimension_numbers<[1], [0], [0], [1], [0, 0, 1, 1], [], []>} : vector<8x256xbf16>, vector<256x512xbf16>, vector<8x512xf32> -> vector<8x512xf32>
    %766 = arith.addf %765, %4 : vector<8x512xf32>
    %767 = vector.extract_strided_slice %766 {offsets = [0, 0], sizes = [8, 128], strides = [1, 1]} : vector<8x512xf32> to vector<8x128xf32>
    %cst_238 = arith.constant 5.000000e-01 : f32
    %768 = vector.broadcast %cst_238 : f32 to vector<8x128xf32>
    %769 = arith.mulf %768, %767 : vector<8x128xf32>
    %770 = math.tanh %769 : vector<8x128xf32>
    %cst_239 = arith.constant 5.000000e-01 : f32
    %771 = vector.broadcast %cst_239 : f32 to vector<8x128xf32>
    %772 = arith.mulf %771, %770 : vector<8x128xf32>
    %cst_240 = arith.constant 5.000000e-01 : f32
    %773 = vector.broadcast %cst_240 : f32 to vector<8x128xf32>
    %774 = arith.addf %772, %773 : vector<8x128xf32>
    %775 = vector.extract_strided_slice %766 {offsets = [0, 128], sizes = [8, 128], strides = [1, 1]} : vector<8x512xf32> to vector<8x128xf32>
    %cst_241 = arith.constant 5.000000e-01 : f32
    %776 = vector.broadcast %cst_241 : f32 to vector<8x128xf32>
    %777 = arith.mulf %776, %775 : vector<8x128xf32>
    %778 = math.tanh %777 : vector<8x128xf32>
    %cst_242 = arith.constant 5.000000e-01 : f32
    %779 = vector.broadcast %cst_242 : f32 to vector<8x128xf32>
    %780 = arith.mulf %779, %778 : vector<8x128xf32>
    %cst_243 = arith.constant 5.000000e-01 : f32
    %781 = vector.broadcast %cst_243 : f32 to vector<8x128xf32>
    %782 = arith.addf %780, %781 : vector<8x128xf32>
    %783 = vector.extract_strided_slice %766 {offsets = [0, 256], sizes = [8, 128], strides = [1, 1]} : vector<8x512xf32> to vector<8x128xf32>
    %784 = math.tanh %783 : vector<8x128xf32>
    %785 = vector.extract_strided_slice %766 {offsets = [0, 384], sizes = [8, 128], strides = [1, 1]} : vector<8x512xf32> to vector<8x128xf32>
    %cst_244 = arith.constant 5.000000e-01 : f32
    %786 = vector.broadcast %cst_244 : f32 to vector<8x128xf32>
    %787 = arith.mulf %786, %785 : vector<8x128xf32>
    %788 = math.tanh %787 : vector<8x128xf32>
    %cst_245 = arith.constant 5.000000e-01 : f32
    %789 = vector.broadcast %cst_245 : f32 to vector<8x128xf32>
    %790 = arith.mulf %789, %788 : vector<8x128xf32>
    %cst_246 = arith.constant 5.000000e-01 : f32
    %791 = vector.broadcast %cst_246 : f32 to vector<8x128xf32>
    %792 = arith.addf %790, %791 : vector<8x128xf32>
    %793 = arith.mulf %782, %723 : vector<8x128xf32>
    %794 = arith.mulf %774, %784 : vector<8x128xf32>
    %795 = arith.addf %793, %794 : vector<8x128xf32>
    %796 = math.tanh %795 : vector<8x128xf32>
    %797 = arith.mulf %792, %796 : vector<8x128xf32>
    %c11_i32 = arith.constant 11 : i32
    %798 = arith.index_cast %c11_i32 : i32 to index
    %c0_247 = arith.constant 0 : index
    %c0_248 = arith.constant 0 : index
    %799 = vector.load %arg0[%798, %c0_247, %c0_248] : memref<28x8x512xf32, #tpu.memory_space<vmem>>, vector<1x8x512xf32>
    %800 = vector.shape_cast %799 : vector<1x8x512xf32> to vector<8x512xf32>
    %801 = arith.truncf %762 : vector<8x128xf32> to vector<8x128xbf16>
    %cst_249 = arith.constant dense<0.000000e+00> : vector<8x512xf32>
    %802 = tpu.matmul %801, %0, %cst_249 {dimension_numbers = #tpu.dot_dimension_numbers<[1], [0], [0], [1], [0, 0, 1, 1], [], []>} : vector<8x128xbf16>, vector<128x512xbf16>, vector<8x512xf32> -> vector<8x512xf32>
    %803 = arith.addf %800, %802 : vector<8x512xf32>
    %804 = vector.extract_strided_slice %803 {offsets = [0, 0], sizes = [8, 128], strides = [1, 1]} : vector<8x512xf32> to vector<8x128xf32>
    %cst_250 = arith.constant 5.000000e-01 : f32
    %805 = vector.broadcast %cst_250 : f32 to vector<8x128xf32>
    %806 = arith.mulf %805, %804 : vector<8x128xf32>
    %807 = math.tanh %806 : vector<8x128xf32>
    %cst_251 = arith.constant 5.000000e-01 : f32
    %808 = vector.broadcast %cst_251 : f32 to vector<8x128xf32>
    %809 = arith.mulf %808, %807 : vector<8x128xf32>
    %cst_252 = arith.constant 5.000000e-01 : f32
    %810 = vector.broadcast %cst_252 : f32 to vector<8x128xf32>
    %811 = arith.addf %809, %810 : vector<8x128xf32>
    %812 = vector.extract_strided_slice %803 {offsets = [0, 128], sizes = [8, 128], strides = [1, 1]} : vector<8x512xf32> to vector<8x128xf32>
    %cst_253 = arith.constant 5.000000e-01 : f32
    %813 = vector.broadcast %cst_253 : f32 to vector<8x128xf32>
    %814 = arith.mulf %813, %812 : vector<8x128xf32>
    %815 = math.tanh %814 : vector<8x128xf32>
    %cst_254 = arith.constant 5.000000e-01 : f32
    %816 = vector.broadcast %cst_254 : f32 to vector<8x128xf32>
    %817 = arith.mulf %816, %815 : vector<8x128xf32>
    %cst_255 = arith.constant 5.000000e-01 : f32
    %818 = vector.broadcast %cst_255 : f32 to vector<8x128xf32>
    %819 = arith.addf %817, %818 : vector<8x128xf32>
    %820 = vector.extract_strided_slice %803 {offsets = [0, 256], sizes = [8, 128], strides = [1, 1]} : vector<8x512xf32> to vector<8x128xf32>
    %821 = math.tanh %820 : vector<8x128xf32>
    %822 = vector.extract_strided_slice %803 {offsets = [0, 384], sizes = [8, 128], strides = [1, 1]} : vector<8x512xf32> to vector<8x128xf32>
    %cst_256 = arith.constant 5.000000e-01 : f32
    %823 = vector.broadcast %cst_256 : f32 to vector<8x128xf32>
    %824 = arith.mulf %823, %822 : vector<8x128xf32>
    %825 = math.tanh %824 : vector<8x128xf32>
    %cst_257 = arith.constant 5.000000e-01 : f32
    %826 = vector.broadcast %cst_257 : f32 to vector<8x128xf32>
    %827 = arith.mulf %826, %825 : vector<8x128xf32>
    %cst_258 = arith.constant 5.000000e-01 : f32
    %828 = vector.broadcast %cst_258 : f32 to vector<8x128xf32>
    %829 = arith.addf %827, %828 : vector<8x128xf32>
    %830 = arith.mulf %819, %760 : vector<8x128xf32>
    %831 = arith.mulf %811, %821 : vector<8x128xf32>
    %832 = arith.addf %830, %831 : vector<8x128xf32>
    %833 = math.tanh %832 : vector<8x128xf32>
    %834 = arith.mulf %829, %833 : vector<8x128xf32>
    %835 = tpu.concatenate %834, %797 in 1 : vector<8x128xf32>, vector<8x128xf32> -> vector<8x256xf32>
    %836 = arith.truncf %835 : vector<8x256xf32> to vector<8x256xbf16>
    %cst_259 = arith.constant dense<0.000000e+00> : vector<8x512xf32>
    %837 = tpu.matmul %836, %1, %cst_259 {dimension_numbers = #tpu.dot_dimension_numbers<[1], [0], [0], [1], [0, 0, 1, 1], [], []>} : vector<8x256xbf16>, vector<256x512xbf16>, vector<8x512xf32> -> vector<8x512xf32>
    %838 = arith.addf %837, %4 : vector<8x512xf32>
    %839 = vector.extract_strided_slice %838 {offsets = [0, 0], sizes = [8, 128], strides = [1, 1]} : vector<8x512xf32> to vector<8x128xf32>
    %cst_260 = arith.constant 5.000000e-01 : f32
    %840 = vector.broadcast %cst_260 : f32 to vector<8x128xf32>
    %841 = arith.mulf %840, %839 : vector<8x128xf32>
    %842 = math.tanh %841 : vector<8x128xf32>
    %cst_261 = arith.constant 5.000000e-01 : f32
    %843 = vector.broadcast %cst_261 : f32 to vector<8x128xf32>
    %844 = arith.mulf %843, %842 : vector<8x128xf32>
    %cst_262 = arith.constant 5.000000e-01 : f32
    %845 = vector.broadcast %cst_262 : f32 to vector<8x128xf32>
    %846 = arith.addf %844, %845 : vector<8x128xf32>
    %847 = vector.extract_strided_slice %838 {offsets = [0, 128], sizes = [8, 128], strides = [1, 1]} : vector<8x512xf32> to vector<8x128xf32>
    %cst_263 = arith.constant 5.000000e-01 : f32
    %848 = vector.broadcast %cst_263 : f32 to vector<8x128xf32>
    %849 = arith.mulf %848, %847 : vector<8x128xf32>
    %850 = math.tanh %849 : vector<8x128xf32>
    %cst_264 = arith.constant 5.000000e-01 : f32
    %851 = vector.broadcast %cst_264 : f32 to vector<8x128xf32>
    %852 = arith.mulf %851, %850 : vector<8x128xf32>
    %cst_265 = arith.constant 5.000000e-01 : f32
    %853 = vector.broadcast %cst_265 : f32 to vector<8x128xf32>
    %854 = arith.addf %852, %853 : vector<8x128xf32>
    %855 = vector.extract_strided_slice %838 {offsets = [0, 256], sizes = [8, 128], strides = [1, 1]} : vector<8x512xf32> to vector<8x128xf32>
    %856 = math.tanh %855 : vector<8x128xf32>
    %857 = vector.extract_strided_slice %838 {offsets = [0, 384], sizes = [8, 128], strides = [1, 1]} : vector<8x512xf32> to vector<8x128xf32>
    %cst_266 = arith.constant 5.000000e-01 : f32
    %858 = vector.broadcast %cst_266 : f32 to vector<8x128xf32>
    %859 = arith.mulf %858, %857 : vector<8x128xf32>
    %860 = math.tanh %859 : vector<8x128xf32>
    %cst_267 = arith.constant 5.000000e-01 : f32
    %861 = vector.broadcast %cst_267 : f32 to vector<8x128xf32>
    %862 = arith.mulf %861, %860 : vector<8x128xf32>
    %cst_268 = arith.constant 5.000000e-01 : f32
    %863 = vector.broadcast %cst_268 : f32 to vector<8x128xf32>
    %864 = arith.addf %862, %863 : vector<8x128xf32>
    %865 = arith.mulf %854, %795 : vector<8x128xf32>
    %866 = arith.mulf %846, %856 : vector<8x128xf32>
    %867 = arith.addf %865, %866 : vector<8x128xf32>
    %868 = math.tanh %867 : vector<8x128xf32>
    %869 = arith.mulf %864, %868 : vector<8x128xf32>
    %c12_i32 = arith.constant 12 : i32
    %870 = arith.index_cast %c12_i32 : i32 to index
    %c0_269 = arith.constant 0 : index
    %c0_270 = arith.constant 0 : index
    %871 = vector.load %arg0[%870, %c0_269, %c0_270] : memref<28x8x512xf32, #tpu.memory_space<vmem>>, vector<1x8x512xf32>
    %872 = vector.shape_cast %871 : vector<1x8x512xf32> to vector<8x512xf32>
    %873 = arith.truncf %834 : vector<8x128xf32> to vector<8x128xbf16>
    %cst_271 = arith.constant dense<0.000000e+00> : vector<8x512xf32>
    %874 = tpu.matmul %873, %0, %cst_271 {dimension_numbers = #tpu.dot_dimension_numbers<[1], [0], [0], [1], [0, 0, 1, 1], [], []>} : vector<8x128xbf16>, vector<128x512xbf16>, vector<8x512xf32> -> vector<8x512xf32>
    %875 = arith.addf %872, %874 : vector<8x512xf32>
    %876 = vector.extract_strided_slice %875 {offsets = [0, 0], sizes = [8, 128], strides = [1, 1]} : vector<8x512xf32> to vector<8x128xf32>
    %cst_272 = arith.constant 5.000000e-01 : f32
    %877 = vector.broadcast %cst_272 : f32 to vector<8x128xf32>
    %878 = arith.mulf %877, %876 : vector<8x128xf32>
    %879 = math.tanh %878 : vector<8x128xf32>
    %cst_273 = arith.constant 5.000000e-01 : f32
    %880 = vector.broadcast %cst_273 : f32 to vector<8x128xf32>
    %881 = arith.mulf %880, %879 : vector<8x128xf32>
    %cst_274 = arith.constant 5.000000e-01 : f32
    %882 = vector.broadcast %cst_274 : f32 to vector<8x128xf32>
    %883 = arith.addf %881, %882 : vector<8x128xf32>
    %884 = vector.extract_strided_slice %875 {offsets = [0, 128], sizes = [8, 128], strides = [1, 1]} : vector<8x512xf32> to vector<8x128xf32>
    %cst_275 = arith.constant 5.000000e-01 : f32
    %885 = vector.broadcast %cst_275 : f32 to vector<8x128xf32>
    %886 = arith.mulf %885, %884 : vector<8x128xf32>
    %887 = math.tanh %886 : vector<8x128xf32>
    %cst_276 = arith.constant 5.000000e-01 : f32
    %888 = vector.broadcast %cst_276 : f32 to vector<8x128xf32>
    %889 = arith.mulf %888, %887 : vector<8x128xf32>
    %cst_277 = arith.constant 5.000000e-01 : f32
    %890 = vector.broadcast %cst_277 : f32 to vector<8x128xf32>
    %891 = arith.addf %889, %890 : vector<8x128xf32>
    %892 = vector.extract_strided_slice %875 {offsets = [0, 256], sizes = [8, 128], strides = [1, 1]} : vector<8x512xf32> to vector<8x128xf32>
    %893 = math.tanh %892 : vector<8x128xf32>
    %894 = vector.extract_strided_slice %875 {offsets = [0, 384], sizes = [8, 128], strides = [1, 1]} : vector<8x512xf32> to vector<8x128xf32>
    %cst_278 = arith.constant 5.000000e-01 : f32
    %895 = vector.broadcast %cst_278 : f32 to vector<8x128xf32>
    %896 = arith.mulf %895, %894 : vector<8x128xf32>
    %897 = math.tanh %896 : vector<8x128xf32>
    %cst_279 = arith.constant 5.000000e-01 : f32
    %898 = vector.broadcast %cst_279 : f32 to vector<8x128xf32>
    %899 = arith.mulf %898, %897 : vector<8x128xf32>
    %cst_280 = arith.constant 5.000000e-01 : f32
    %900 = vector.broadcast %cst_280 : f32 to vector<8x128xf32>
    %901 = arith.addf %899, %900 : vector<8x128xf32>
    %902 = arith.mulf %891, %832 : vector<8x128xf32>
    %903 = arith.mulf %883, %893 : vector<8x128xf32>
    %904 = arith.addf %902, %903 : vector<8x128xf32>
    %905 = math.tanh %904 : vector<8x128xf32>
    %906 = arith.mulf %901, %905 : vector<8x128xf32>
    %907 = tpu.concatenate %906, %869 in 1 : vector<8x128xf32>, vector<8x128xf32> -> vector<8x256xf32>
    %908 = arith.truncf %907 : vector<8x256xf32> to vector<8x256xbf16>
    %cst_281 = arith.constant dense<0.000000e+00> : vector<8x512xf32>
    %909 = tpu.matmul %908, %1, %cst_281 {dimension_numbers = #tpu.dot_dimension_numbers<[1], [0], [0], [1], [0, 0, 1, 1], [], []>} : vector<8x256xbf16>, vector<256x512xbf16>, vector<8x512xf32> -> vector<8x512xf32>
    %910 = arith.addf %909, %4 : vector<8x512xf32>
    %911 = vector.extract_strided_slice %910 {offsets = [0, 0], sizes = [8, 128], strides = [1, 1]} : vector<8x512xf32> to vector<8x128xf32>
    %cst_282 = arith.constant 5.000000e-01 : f32
    %912 = vector.broadcast %cst_282 : f32 to vector<8x128xf32>
    %913 = arith.mulf %912, %911 : vector<8x128xf32>
    %914 = math.tanh %913 : vector<8x128xf32>
    %cst_283 = arith.constant 5.000000e-01 : f32
    %915 = vector.broadcast %cst_283 : f32 to vector<8x128xf32>
    %916 = arith.mulf %915, %914 : vector<8x128xf32>
    %cst_284 = arith.constant 5.000000e-01 : f32
    %917 = vector.broadcast %cst_284 : f32 to vector<8x128xf32>
    %918 = arith.addf %916, %917 : vector<8x128xf32>
    %919 = vector.extract_strided_slice %910 {offsets = [0, 128], sizes = [8, 128], strides = [1, 1]} : vector<8x512xf32> to vector<8x128xf32>
    %cst_285 = arith.constant 5.000000e-01 : f32
    %920 = vector.broadcast %cst_285 : f32 to vector<8x128xf32>
    %921 = arith.mulf %920, %919 : vector<8x128xf32>
    %922 = math.tanh %921 : vector<8x128xf32>
    %cst_286 = arith.constant 5.000000e-01 : f32
    %923 = vector.broadcast %cst_286 : f32 to vector<8x128xf32>
    %924 = arith.mulf %923, %922 : vector<8x128xf32>
    %cst_287 = arith.constant 5.000000e-01 : f32
    %925 = vector.broadcast %cst_287 : f32 to vector<8x128xf32>
    %926 = arith.addf %924, %925 : vector<8x128xf32>
    %927 = vector.extract_strided_slice %910 {offsets = [0, 256], sizes = [8, 128], strides = [1, 1]} : vector<8x512xf32> to vector<8x128xf32>
    %928 = math.tanh %927 : vector<8x128xf32>
    %929 = vector.extract_strided_slice %910 {offsets = [0, 384], sizes = [8, 128], strides = [1, 1]} : vector<8x512xf32> to vector<8x128xf32>
    %cst_288 = arith.constant 5.000000e-01 : f32
    %930 = vector.broadcast %cst_288 : f32 to vector<8x128xf32>
    %931 = arith.mulf %930, %929 : vector<8x128xf32>
    %932 = math.tanh %931 : vector<8x128xf32>
    %cst_289 = arith.constant 5.000000e-01 : f32
    %933 = vector.broadcast %cst_289 : f32 to vector<8x128xf32>
    %934 = arith.mulf %933, %932 : vector<8x128xf32>
    %cst_290 = arith.constant 5.000000e-01 : f32
    %935 = vector.broadcast %cst_290 : f32 to vector<8x128xf32>
    %936 = arith.addf %934, %935 : vector<8x128xf32>
    %937 = arith.mulf %926, %867 : vector<8x128xf32>
    %938 = arith.mulf %918, %928 : vector<8x128xf32>
    %939 = arith.addf %937, %938 : vector<8x128xf32>
    %940 = math.tanh %939 : vector<8x128xf32>
    %941 = arith.mulf %936, %940 : vector<8x128xf32>
    %c13_i32 = arith.constant 13 : i32
    %942 = arith.index_cast %c13_i32 : i32 to index
    %c0_291 = arith.constant 0 : index
    %c0_292 = arith.constant 0 : index
    %943 = vector.load %arg0[%942, %c0_291, %c0_292] : memref<28x8x512xf32, #tpu.memory_space<vmem>>, vector<1x8x512xf32>
    %944 = vector.shape_cast %943 : vector<1x8x512xf32> to vector<8x512xf32>
    %945 = arith.truncf %906 : vector<8x128xf32> to vector<8x128xbf16>
    %cst_293 = arith.constant dense<0.000000e+00> : vector<8x512xf32>
    %946 = tpu.matmul %945, %0, %cst_293 {dimension_numbers = #tpu.dot_dimension_numbers<[1], [0], [0], [1], [0, 0, 1, 1], [], []>} : vector<8x128xbf16>, vector<128x512xbf16>, vector<8x512xf32> -> vector<8x512xf32>
    %947 = arith.addf %944, %946 : vector<8x512xf32>
    %948 = vector.extract_strided_slice %947 {offsets = [0, 0], sizes = [8, 128], strides = [1, 1]} : vector<8x512xf32> to vector<8x128xf32>
    %cst_294 = arith.constant 5.000000e-01 : f32
    %949 = vector.broadcast %cst_294 : f32 to vector<8x128xf32>
    %950 = arith.mulf %949, %948 : vector<8x128xf32>
    %951 = math.tanh %950 : vector<8x128xf32>
    %cst_295 = arith.constant 5.000000e-01 : f32
    %952 = vector.broadcast %cst_295 : f32 to vector<8x128xf32>
    %953 = arith.mulf %952, %951 : vector<8x128xf32>
    %cst_296 = arith.constant 5.000000e-01 : f32
    %954 = vector.broadcast %cst_296 : f32 to vector<8x128xf32>
    %955 = arith.addf %953, %954 : vector<8x128xf32>
    %956 = vector.extract_strided_slice %947 {offsets = [0, 128], sizes = [8, 128], strides = [1, 1]} : vector<8x512xf32> to vector<8x128xf32>
    %cst_297 = arith.constant 5.000000e-01 : f32
    %957 = vector.broadcast %cst_297 : f32 to vector<8x128xf32>
    %958 = arith.mulf %957, %956 : vector<8x128xf32>
    %959 = math.tanh %958 : vector<8x128xf32>
    %cst_298 = arith.constant 5.000000e-01 : f32
    %960 = vector.broadcast %cst_298 : f32 to vector<8x128xf32>
    %961 = arith.mulf %960, %959 : vector<8x128xf32>
    %cst_299 = arith.constant 5.000000e-01 : f32
    %962 = vector.broadcast %cst_299 : f32 to vector<8x128xf32>
    %963 = arith.addf %961, %962 : vector<8x128xf32>
    %964 = vector.extract_strided_slice %947 {offsets = [0, 256], sizes = [8, 128], strides = [1, 1]} : vector<8x512xf32> to vector<8x128xf32>
    %965 = math.tanh %964 : vector<8x128xf32>
    %966 = vector.extract_strided_slice %947 {offsets = [0, 384], sizes = [8, 128], strides = [1, 1]} : vector<8x512xf32> to vector<8x128xf32>
    %cst_300 = arith.constant 5.000000e-01 : f32
    %967 = vector.broadcast %cst_300 : f32 to vector<8x128xf32>
    %968 = arith.mulf %967, %966 : vector<8x128xf32>
    %969 = math.tanh %968 : vector<8x128xf32>
    %cst_301 = arith.constant 5.000000e-01 : f32
    %970 = vector.broadcast %cst_301 : f32 to vector<8x128xf32>
    %971 = arith.mulf %970, %969 : vector<8x128xf32>
    %cst_302 = arith.constant 5.000000e-01 : f32
    %972 = vector.broadcast %cst_302 : f32 to vector<8x128xf32>
    %973 = arith.addf %971, %972 : vector<8x128xf32>
    %974 = arith.mulf %963, %904 : vector<8x128xf32>
    %975 = arith.mulf %955, %965 : vector<8x128xf32>
    %976 = arith.addf %974, %975 : vector<8x128xf32>
    %977 = math.tanh %976 : vector<8x128xf32>
    %978 = arith.mulf %973, %977 : vector<8x128xf32>
    %979 = tpu.concatenate %978, %941 in 1 : vector<8x128xf32>, vector<8x128xf32> -> vector<8x256xf32>
    %980 = arith.truncf %979 : vector<8x256xf32> to vector<8x256xbf16>
    %cst_303 = arith.constant dense<0.000000e+00> : vector<8x512xf32>
    %981 = tpu.matmul %980, %1, %cst_303 {dimension_numbers = #tpu.dot_dimension_numbers<[1], [0], [0], [1], [0, 0, 1, 1], [], []>} : vector<8x256xbf16>, vector<256x512xbf16>, vector<8x512xf32> -> vector<8x512xf32>
    %982 = arith.addf %981, %4 : vector<8x512xf32>
    %983 = vector.extract_strided_slice %982 {offsets = [0, 0], sizes = [8, 128], strides = [1, 1]} : vector<8x512xf32> to vector<8x128xf32>
    %cst_304 = arith.constant 5.000000e-01 : f32
    %984 = vector.broadcast %cst_304 : f32 to vector<8x128xf32>
    %985 = arith.mulf %984, %983 : vector<8x128xf32>
    %986 = math.tanh %985 : vector<8x128xf32>
    %cst_305 = arith.constant 5.000000e-01 : f32
    %987 = vector.broadcast %cst_305 : f32 to vector<8x128xf32>
    %988 = arith.mulf %987, %986 : vector<8x128xf32>
    %cst_306 = arith.constant 5.000000e-01 : f32
    %989 = vector.broadcast %cst_306 : f32 to vector<8x128xf32>
    %990 = arith.addf %988, %989 : vector<8x128xf32>
    %991 = vector.extract_strided_slice %982 {offsets = [0, 128], sizes = [8, 128], strides = [1, 1]} : vector<8x512xf32> to vector<8x128xf32>
    %cst_307 = arith.constant 5.000000e-01 : f32
    %992 = vector.broadcast %cst_307 : f32 to vector<8x128xf32>
    %993 = arith.mulf %992, %991 : vector<8x128xf32>
    %994 = math.tanh %993 : vector<8x128xf32>
    %cst_308 = arith.constant 5.000000e-01 : f32
    %995 = vector.broadcast %cst_308 : f32 to vector<8x128xf32>
    %996 = arith.mulf %995, %994 : vector<8x128xf32>
    %cst_309 = arith.constant 5.000000e-01 : f32
    %997 = vector.broadcast %cst_309 : f32 to vector<8x128xf32>
    %998 = arith.addf %996, %997 : vector<8x128xf32>
    %999 = vector.extract_strided_slice %982 {offsets = [0, 256], sizes = [8, 128], strides = [1, 1]} : vector<8x512xf32> to vector<8x128xf32>
    %1000 = math.tanh %999 : vector<8x128xf32>
    %1001 = vector.extract_strided_slice %982 {offsets = [0, 384], sizes = [8, 128], strides = [1, 1]} : vector<8x512xf32> to vector<8x128xf32>
    %cst_310 = arith.constant 5.000000e-01 : f32
    %1002 = vector.broadcast %cst_310 : f32 to vector<8x128xf32>
    %1003 = arith.mulf %1002, %1001 : vector<8x128xf32>
    %1004 = math.tanh %1003 : vector<8x128xf32>
    %cst_311 = arith.constant 5.000000e-01 : f32
    %1005 = vector.broadcast %cst_311 : f32 to vector<8x128xf32>
    %1006 = arith.mulf %1005, %1004 : vector<8x128xf32>
    %cst_312 = arith.constant 5.000000e-01 : f32
    %1007 = vector.broadcast %cst_312 : f32 to vector<8x128xf32>
    %1008 = arith.addf %1006, %1007 : vector<8x128xf32>
    %1009 = arith.mulf %998, %939 : vector<8x128xf32>
    %1010 = arith.mulf %990, %1000 : vector<8x128xf32>
    %1011 = arith.addf %1009, %1010 : vector<8x128xf32>
    %1012 = math.tanh %1011 : vector<8x128xf32>
    %1013 = arith.mulf %1008, %1012 : vector<8x128xf32>
    %c14_i32 = arith.constant 14 : i32
    %1014 = arith.index_cast %c14_i32 : i32 to index
    %c0_313 = arith.constant 0 : index
    %c0_314 = arith.constant 0 : index
    %1015 = vector.load %arg0[%1014, %c0_313, %c0_314] : memref<28x8x512xf32, #tpu.memory_space<vmem>>, vector<1x8x512xf32>
    %1016 = vector.shape_cast %1015 : vector<1x8x512xf32> to vector<8x512xf32>
    %1017 = arith.truncf %978 : vector<8x128xf32> to vector<8x128xbf16>
    %cst_315 = arith.constant dense<0.000000e+00> : vector<8x512xf32>
    %1018 = tpu.matmul %1017, %0, %cst_315 {dimension_numbers = #tpu.dot_dimension_numbers<[1], [0], [0], [1], [0, 0, 1, 1], [], []>} : vector<8x128xbf16>, vector<128x512xbf16>, vector<8x512xf32> -> vector<8x512xf32>
    %1019 = arith.addf %1016, %1018 : vector<8x512xf32>
    %1020 = vector.extract_strided_slice %1019 {offsets = [0, 0], sizes = [8, 128], strides = [1, 1]} : vector<8x512xf32> to vector<8x128xf32>
    %cst_316 = arith.constant 5.000000e-01 : f32
    %1021 = vector.broadcast %cst_316 : f32 to vector<8x128xf32>
    %1022 = arith.mulf %1021, %1020 : vector<8x128xf32>
    %1023 = math.tanh %1022 : vector<8x128xf32>
    %cst_317 = arith.constant 5.000000e-01 : f32
    %1024 = vector.broadcast %cst_317 : f32 to vector<8x128xf32>
    %1025 = arith.mulf %1024, %1023 : vector<8x128xf32>
    %cst_318 = arith.constant 5.000000e-01 : f32
    %1026 = vector.broadcast %cst_318 : f32 to vector<8x128xf32>
    %1027 = arith.addf %1025, %1026 : vector<8x128xf32>
    %1028 = vector.extract_strided_slice %1019 {offsets = [0, 128], sizes = [8, 128], strides = [1, 1]} : vector<8x512xf32> to vector<8x128xf32>
    %cst_319 = arith.constant 5.000000e-01 : f32
    %1029 = vector.broadcast %cst_319 : f32 to vector<8x128xf32>
    %1030 = arith.mulf %1029, %1028 : vector<8x128xf32>
    %1031 = math.tanh %1030 : vector<8x128xf32>
    %cst_320 = arith.constant 5.000000e-01 : f32
    %1032 = vector.broadcast %cst_320 : f32 to vector<8x128xf32>
    %1033 = arith.mulf %1032, %1031 : vector<8x128xf32>
    %cst_321 = arith.constant 5.000000e-01 : f32
    %1034 = vector.broadcast %cst_321 : f32 to vector<8x128xf32>
    %1035 = arith.addf %1033, %1034 : vector<8x128xf32>
    %1036 = vector.extract_strided_slice %1019 {offsets = [0, 256], sizes = [8, 128], strides = [1, 1]} : vector<8x512xf32> to vector<8x128xf32>
    %1037 = math.tanh %1036 : vector<8x128xf32>
    %1038 = vector.extract_strided_slice %1019 {offsets = [0, 384], sizes = [8, 128], strides = [1, 1]} : vector<8x512xf32> to vector<8x128xf32>
    %cst_322 = arith.constant 5.000000e-01 : f32
    %1039 = vector.broadcast %cst_322 : f32 to vector<8x128xf32>
    %1040 = arith.mulf %1039, %1038 : vector<8x128xf32>
    %1041 = math.tanh %1040 : vector<8x128xf32>
    %cst_323 = arith.constant 5.000000e-01 : f32
    %1042 = vector.broadcast %cst_323 : f32 to vector<8x128xf32>
    %1043 = arith.mulf %1042, %1041 : vector<8x128xf32>
    %cst_324 = arith.constant 5.000000e-01 : f32
    %1044 = vector.broadcast %cst_324 : f32 to vector<8x128xf32>
    %1045 = arith.addf %1043, %1044 : vector<8x128xf32>
    %1046 = arith.mulf %1035, %976 : vector<8x128xf32>
    %1047 = arith.mulf %1027, %1037 : vector<8x128xf32>
    %1048 = arith.addf %1046, %1047 : vector<8x128xf32>
    %1049 = math.tanh %1048 : vector<8x128xf32>
    %1050 = arith.mulf %1045, %1049 : vector<8x128xf32>
    %1051 = tpu.concatenate %1050, %1013 in 1 : vector<8x128xf32>, vector<8x128xf32> -> vector<8x256xf32>
    %1052 = arith.truncf %1051 : vector<8x256xf32> to vector<8x256xbf16>
    %cst_325 = arith.constant dense<0.000000e+00> : vector<8x512xf32>
    %1053 = tpu.matmul %1052, %1, %cst_325 {dimension_numbers = #tpu.dot_dimension_numbers<[1], [0], [0], [1], [0, 0, 1, 1], [], []>} : vector<8x256xbf16>, vector<256x512xbf16>, vector<8x512xf32> -> vector<8x512xf32>
    %1054 = arith.addf %1053, %4 : vector<8x512xf32>
    %1055 = vector.extract_strided_slice %1054 {offsets = [0, 0], sizes = [8, 128], strides = [1, 1]} : vector<8x512xf32> to vector<8x128xf32>
    %cst_326 = arith.constant 5.000000e-01 : f32
    %1056 = vector.broadcast %cst_326 : f32 to vector<8x128xf32>
    %1057 = arith.mulf %1056, %1055 : vector<8x128xf32>
    %1058 = math.tanh %1057 : vector<8x128xf32>
    %cst_327 = arith.constant 5.000000e-01 : f32
    %1059 = vector.broadcast %cst_327 : f32 to vector<8x128xf32>
    %1060 = arith.mulf %1059, %1058 : vector<8x128xf32>
    %cst_328 = arith.constant 5.000000e-01 : f32
    %1061 = vector.broadcast %cst_328 : f32 to vector<8x128xf32>
    %1062 = arith.addf %1060, %1061 : vector<8x128xf32>
    %1063 = vector.extract_strided_slice %1054 {offsets = [0, 128], sizes = [8, 128], strides = [1, 1]} : vector<8x512xf32> to vector<8x128xf32>
    %cst_329 = arith.constant 5.000000e-01 : f32
    %1064 = vector.broadcast %cst_329 : f32 to vector<8x128xf32>
    %1065 = arith.mulf %1064, %1063 : vector<8x128xf32>
    %1066 = math.tanh %1065 : vector<8x128xf32>
    %cst_330 = arith.constant 5.000000e-01 : f32
    %1067 = vector.broadcast %cst_330 : f32 to vector<8x128xf32>
    %1068 = arith.mulf %1067, %1066 : vector<8x128xf32>
    %cst_331 = arith.constant 5.000000e-01 : f32
    %1069 = vector.broadcast %cst_331 : f32 to vector<8x128xf32>
    %1070 = arith.addf %1068, %1069 : vector<8x128xf32>
    %1071 = vector.extract_strided_slice %1054 {offsets = [0, 256], sizes = [8, 128], strides = [1, 1]} : vector<8x512xf32> to vector<8x128xf32>
    %1072 = math.tanh %1071 : vector<8x128xf32>
    %1073 = vector.extract_strided_slice %1054 {offsets = [0, 384], sizes = [8, 128], strides = [1, 1]} : vector<8x512xf32> to vector<8x128xf32>
    %cst_332 = arith.constant 5.000000e-01 : f32
    %1074 = vector.broadcast %cst_332 : f32 to vector<8x128xf32>
    %1075 = arith.mulf %1074, %1073 : vector<8x128xf32>
    %1076 = math.tanh %1075 : vector<8x128xf32>
    %cst_333 = arith.constant 5.000000e-01 : f32
    %1077 = vector.broadcast %cst_333 : f32 to vector<8x128xf32>
    %1078 = arith.mulf %1077, %1076 : vector<8x128xf32>
    %cst_334 = arith.constant 5.000000e-01 : f32
    %1079 = vector.broadcast %cst_334 : f32 to vector<8x128xf32>
    %1080 = arith.addf %1078, %1079 : vector<8x128xf32>
    %1081 = arith.mulf %1070, %1011 : vector<8x128xf32>
    %1082 = arith.mulf %1062, %1072 : vector<8x128xf32>
    %1083 = arith.addf %1081, %1082 : vector<8x128xf32>
    %1084 = math.tanh %1083 : vector<8x128xf32>
    %1085 = arith.mulf %1080, %1084 : vector<8x128xf32>
    %c15_i32 = arith.constant 15 : i32
    %1086 = arith.index_cast %c15_i32 : i32 to index
    %c0_335 = arith.constant 0 : index
    %c0_336 = arith.constant 0 : index
    %1087 = vector.load %arg0[%1086, %c0_335, %c0_336] : memref<28x8x512xf32, #tpu.memory_space<vmem>>, vector<1x8x512xf32>
    %1088 = vector.shape_cast %1087 : vector<1x8x512xf32> to vector<8x512xf32>
    %1089 = arith.truncf %1050 : vector<8x128xf32> to vector<8x128xbf16>
    %cst_337 = arith.constant dense<0.000000e+00> : vector<8x512xf32>
    %1090 = tpu.matmul %1089, %0, %cst_337 {dimension_numbers = #tpu.dot_dimension_numbers<[1], [0], [0], [1], [0, 0, 1, 1], [], []>} : vector<8x128xbf16>, vector<128x512xbf16>, vector<8x512xf32> -> vector<8x512xf32>
    %1091 = arith.addf %1088, %1090 : vector<8x512xf32>
    %1092 = vector.extract_strided_slice %1091 {offsets = [0, 0], sizes = [8, 128], strides = [1, 1]} : vector<8x512xf32> to vector<8x128xf32>
    %cst_338 = arith.constant 5.000000e-01 : f32
    %1093 = vector.broadcast %cst_338 : f32 to vector<8x128xf32>
    %1094 = arith.mulf %1093, %1092 : vector<8x128xf32>
    %1095 = math.tanh %1094 : vector<8x128xf32>
    %cst_339 = arith.constant 5.000000e-01 : f32
    %1096 = vector.broadcast %cst_339 : f32 to vector<8x128xf32>
    %1097 = arith.mulf %1096, %1095 : vector<8x128xf32>
    %cst_340 = arith.constant 5.000000e-01 : f32
    %1098 = vector.broadcast %cst_340 : f32 to vector<8x128xf32>
    %1099 = arith.addf %1097, %1098 : vector<8x128xf32>
    %1100 = vector.extract_strided_slice %1091 {offsets = [0, 128], sizes = [8, 128], strides = [1, 1]} : vector<8x512xf32> to vector<8x128xf32>
    %cst_341 = arith.constant 5.000000e-01 : f32
    %1101 = vector.broadcast %cst_341 : f32 to vector<8x128xf32>
    %1102 = arith.mulf %1101, %1100 : vector<8x128xf32>
    %1103 = math.tanh %1102 : vector<8x128xf32>
    %cst_342 = arith.constant 5.000000e-01 : f32
    %1104 = vector.broadcast %cst_342 : f32 to vector<8x128xf32>
    %1105 = arith.mulf %1104, %1103 : vector<8x128xf32>
    %cst_343 = arith.constant 5.000000e-01 : f32
    %1106 = vector.broadcast %cst_343 : f32 to vector<8x128xf32>
    %1107 = arith.addf %1105, %1106 : vector<8x128xf32>
    %1108 = vector.extract_strided_slice %1091 {offsets = [0, 256], sizes = [8, 128], strides = [1, 1]} : vector<8x512xf32> to vector<8x128xf32>
    %1109 = math.tanh %1108 : vector<8x128xf32>
    %1110 = vector.extract_strided_slice %1091 {offsets = [0, 384], sizes = [8, 128], strides = [1, 1]} : vector<8x512xf32> to vector<8x128xf32>
    %cst_344 = arith.constant 5.000000e-01 : f32
    %1111 = vector.broadcast %cst_344 : f32 to vector<8x128xf32>
    %1112 = arith.mulf %1111, %1110 : vector<8x128xf32>
    %1113 = math.tanh %1112 : vector<8x128xf32>
    %cst_345 = arith.constant 5.000000e-01 : f32
    %1114 = vector.broadcast %cst_345 : f32 to vector<8x128xf32>
    %1115 = arith.mulf %1114, %1113 : vector<8x128xf32>
    %cst_346 = arith.constant 5.000000e-01 : f32
    %1116 = vector.broadcast %cst_346 : f32 to vector<8x128xf32>
    %1117 = arith.addf %1115, %1116 : vector<8x128xf32>
    %1118 = arith.mulf %1107, %1048 : vector<8x128xf32>
    %1119 = arith.mulf %1099, %1109 : vector<8x128xf32>
    %1120 = arith.addf %1118, %1119 : vector<8x128xf32>
    %1121 = math.tanh %1120 : vector<8x128xf32>
    %1122 = arith.mulf %1117, %1121 : vector<8x128xf32>
    %1123 = tpu.concatenate %1122, %1085 in 1 : vector<8x128xf32>, vector<8x128xf32> -> vector<8x256xf32>
    %1124 = arith.truncf %1123 : vector<8x256xf32> to vector<8x256xbf16>
    %cst_347 = arith.constant dense<0.000000e+00> : vector<8x512xf32>
    %1125 = tpu.matmul %1124, %1, %cst_347 {dimension_numbers = #tpu.dot_dimension_numbers<[1], [0], [0], [1], [0, 0, 1, 1], [], []>} : vector<8x256xbf16>, vector<256x512xbf16>, vector<8x512xf32> -> vector<8x512xf32>
    %1126 = arith.addf %1125, %4 : vector<8x512xf32>
    %1127 = vector.extract_strided_slice %1126 {offsets = [0, 0], sizes = [8, 128], strides = [1, 1]} : vector<8x512xf32> to vector<8x128xf32>
    %cst_348 = arith.constant 5.000000e-01 : f32
    %1128 = vector.broadcast %cst_348 : f32 to vector<8x128xf32>
    %1129 = arith.mulf %1128, %1127 : vector<8x128xf32>
    %1130 = math.tanh %1129 : vector<8x128xf32>
    %cst_349 = arith.constant 5.000000e-01 : f32
    %1131 = vector.broadcast %cst_349 : f32 to vector<8x128xf32>
    %1132 = arith.mulf %1131, %1130 : vector<8x128xf32>
    %cst_350 = arith.constant 5.000000e-01 : f32
    %1133 = vector.broadcast %cst_350 : f32 to vector<8x128xf32>
    %1134 = arith.addf %1132, %1133 : vector<8x128xf32>
    %1135 = vector.extract_strided_slice %1126 {offsets = [0, 128], sizes = [8, 128], strides = [1, 1]} : vector<8x512xf32> to vector<8x128xf32>
    %cst_351 = arith.constant 5.000000e-01 : f32
    %1136 = vector.broadcast %cst_351 : f32 to vector<8x128xf32>
    %1137 = arith.mulf %1136, %1135 : vector<8x128xf32>
    %1138 = math.tanh %1137 : vector<8x128xf32>
    %cst_352 = arith.constant 5.000000e-01 : f32
    %1139 = vector.broadcast %cst_352 : f32 to vector<8x128xf32>
    %1140 = arith.mulf %1139, %1138 : vector<8x128xf32>
    %cst_353 = arith.constant 5.000000e-01 : f32
    %1141 = vector.broadcast %cst_353 : f32 to vector<8x128xf32>
    %1142 = arith.addf %1140, %1141 : vector<8x128xf32>
    %1143 = vector.extract_strided_slice %1126 {offsets = [0, 256], sizes = [8, 128], strides = [1, 1]} : vector<8x512xf32> to vector<8x128xf32>
    %1144 = math.tanh %1143 : vector<8x128xf32>
    %1145 = vector.extract_strided_slice %1126 {offsets = [0, 384], sizes = [8, 128], strides = [1, 1]} : vector<8x512xf32> to vector<8x128xf32>
    %cst_354 = arith.constant 5.000000e-01 : f32
    %1146 = vector.broadcast %cst_354 : f32 to vector<8x128xf32>
    %1147 = arith.mulf %1146, %1145 : vector<8x128xf32>
    %1148 = math.tanh %1147 : vector<8x128xf32>
    %cst_355 = arith.constant 5.000000e-01 : f32
    %1149 = vector.broadcast %cst_355 : f32 to vector<8x128xf32>
    %1150 = arith.mulf %1149, %1148 : vector<8x128xf32>
    %cst_356 = arith.constant 5.000000e-01 : f32
    %1151 = vector.broadcast %cst_356 : f32 to vector<8x128xf32>
    %1152 = arith.addf %1150, %1151 : vector<8x128xf32>
    %1153 = arith.mulf %1142, %1083 : vector<8x128xf32>
    %1154 = arith.mulf %1134, %1144 : vector<8x128xf32>
    %1155 = arith.addf %1153, %1154 : vector<8x128xf32>
    %1156 = math.tanh %1155 : vector<8x128xf32>
    %1157 = arith.mulf %1152, %1156 : vector<8x128xf32>
    %c16_i32 = arith.constant 16 : i32
    %1158 = arith.index_cast %c16_i32 : i32 to index
    %c0_357 = arith.constant 0 : index
    %c0_358 = arith.constant 0 : index
    %1159 = vector.load %arg0[%1158, %c0_357, %c0_358] : memref<28x8x512xf32, #tpu.memory_space<vmem>>, vector<1x8x512xf32>
    %1160 = vector.shape_cast %1159 : vector<1x8x512xf32> to vector<8x512xf32>
    %1161 = arith.truncf %1122 : vector<8x128xf32> to vector<8x128xbf16>
    %cst_359 = arith.constant dense<0.000000e+00> : vector<8x512xf32>
    %1162 = tpu.matmul %1161, %0, %cst_359 {dimension_numbers = #tpu.dot_dimension_numbers<[1], [0], [0], [1], [0, 0, 1, 1], [], []>} : vector<8x128xbf16>, vector<128x512xbf16>, vector<8x512xf32> -> vector<8x512xf32>
    %1163 = arith.addf %1160, %1162 : vector<8x512xf32>
    %1164 = vector.extract_strided_slice %1163 {offsets = [0, 0], sizes = [8, 128], strides = [1, 1]} : vector<8x512xf32> to vector<8x128xf32>
    %cst_360 = arith.constant 5.000000e-01 : f32
    %1165 = vector.broadcast %cst_360 : f32 to vector<8x128xf32>
    %1166 = arith.mulf %1165, %1164 : vector<8x128xf32>
    %1167 = math.tanh %1166 : vector<8x128xf32>
    %cst_361 = arith.constant 5.000000e-01 : f32
    %1168 = vector.broadcast %cst_361 : f32 to vector<8x128xf32>
    %1169 = arith.mulf %1168, %1167 : vector<8x128xf32>
    %cst_362 = arith.constant 5.000000e-01 : f32
    %1170 = vector.broadcast %cst_362 : f32 to vector<8x128xf32>
    %1171 = arith.addf %1169, %1170 : vector<8x128xf32>
    %1172 = vector.extract_strided_slice %1163 {offsets = [0, 128], sizes = [8, 128], strides = [1, 1]} : vector<8x512xf32> to vector<8x128xf32>
    %cst_363 = arith.constant 5.000000e-01 : f32
    %1173 = vector.broadcast %cst_363 : f32 to vector<8x128xf32>
    %1174 = arith.mulf %1173, %1172 : vector<8x128xf32>
    %1175 = math.tanh %1174 : vector<8x128xf32>
    %cst_364 = arith.constant 5.000000e-01 : f32
    %1176 = vector.broadcast %cst_364 : f32 to vector<8x128xf32>
    %1177 = arith.mulf %1176, %1175 : vector<8x128xf32>
    %cst_365 = arith.constant 5.000000e-01 : f32
    %1178 = vector.broadcast %cst_365 : f32 to vector<8x128xf32>
    %1179 = arith.addf %1177, %1178 : vector<8x128xf32>
    %1180 = vector.extract_strided_slice %1163 {offsets = [0, 256], sizes = [8, 128], strides = [1, 1]} : vector<8x512xf32> to vector<8x128xf32>
    %1181 = math.tanh %1180 : vector<8x128xf32>
    %1182 = vector.extract_strided_slice %1163 {offsets = [0, 384], sizes = [8, 128], strides = [1, 1]} : vector<8x512xf32> to vector<8x128xf32>
    %cst_366 = arith.constant 5.000000e-01 : f32
    %1183 = vector.broadcast %cst_366 : f32 to vector<8x128xf32>
    %1184 = arith.mulf %1183, %1182 : vector<8x128xf32>
    %1185 = math.tanh %1184 : vector<8x128xf32>
    %cst_367 = arith.constant 5.000000e-01 : f32
    %1186 = vector.broadcast %cst_367 : f32 to vector<8x128xf32>
    %1187 = arith.mulf %1186, %1185 : vector<8x128xf32>
    %cst_368 = arith.constant 5.000000e-01 : f32
    %1188 = vector.broadcast %cst_368 : f32 to vector<8x128xf32>
    %1189 = arith.addf %1187, %1188 : vector<8x128xf32>
    %1190 = arith.mulf %1179, %1120 : vector<8x128xf32>
    %1191 = arith.mulf %1171, %1181 : vector<8x128xf32>
    %1192 = arith.addf %1190, %1191 : vector<8x128xf32>
    %1193 = math.tanh %1192 : vector<8x128xf32>
    %1194 = arith.mulf %1189, %1193 : vector<8x128xf32>
    %1195 = tpu.concatenate %1194, %1157 in 1 : vector<8x128xf32>, vector<8x128xf32> -> vector<8x256xf32>
    %1196 = arith.truncf %1195 : vector<8x256xf32> to vector<8x256xbf16>
    %cst_369 = arith.constant dense<0.000000e+00> : vector<8x512xf32>
    %1197 = tpu.matmul %1196, %1, %cst_369 {dimension_numbers = #tpu.dot_dimension_numbers<[1], [0], [0], [1], [0, 0, 1, 1], [], []>} : vector<8x256xbf16>, vector<256x512xbf16>, vector<8x512xf32> -> vector<8x512xf32>
    %1198 = arith.addf %1197, %4 : vector<8x512xf32>
    %1199 = vector.extract_strided_slice %1198 {offsets = [0, 0], sizes = [8, 128], strides = [1, 1]} : vector<8x512xf32> to vector<8x128xf32>
    %cst_370 = arith.constant 5.000000e-01 : f32
    %1200 = vector.broadcast %cst_370 : f32 to vector<8x128xf32>
    %1201 = arith.mulf %1200, %1199 : vector<8x128xf32>
    %1202 = math.tanh %1201 : vector<8x128xf32>
    %cst_371 = arith.constant 5.000000e-01 : f32
    %1203 = vector.broadcast %cst_371 : f32 to vector<8x128xf32>
    %1204 = arith.mulf %1203, %1202 : vector<8x128xf32>
    %cst_372 = arith.constant 5.000000e-01 : f32
    %1205 = vector.broadcast %cst_372 : f32 to vector<8x128xf32>
    %1206 = arith.addf %1204, %1205 : vector<8x128xf32>
    %1207 = vector.extract_strided_slice %1198 {offsets = [0, 128], sizes = [8, 128], strides = [1, 1]} : vector<8x512xf32> to vector<8x128xf32>
    %cst_373 = arith.constant 5.000000e-01 : f32
    %1208 = vector.broadcast %cst_373 : f32 to vector<8x128xf32>
    %1209 = arith.mulf %1208, %1207 : vector<8x128xf32>
    %1210 = math.tanh %1209 : vector<8x128xf32>
    %cst_374 = arith.constant 5.000000e-01 : f32
    %1211 = vector.broadcast %cst_374 : f32 to vector<8x128xf32>
    %1212 = arith.mulf %1211, %1210 : vector<8x128xf32>
    %cst_375 = arith.constant 5.000000e-01 : f32
    %1213 = vector.broadcast %cst_375 : f32 to vector<8x128xf32>
    %1214 = arith.addf %1212, %1213 : vector<8x128xf32>
    %1215 = vector.extract_strided_slice %1198 {offsets = [0, 256], sizes = [8, 128], strides = [1, 1]} : vector<8x512xf32> to vector<8x128xf32>
    %1216 = math.tanh %1215 : vector<8x128xf32>
    %1217 = vector.extract_strided_slice %1198 {offsets = [0, 384], sizes = [8, 128], strides = [1, 1]} : vector<8x512xf32> to vector<8x128xf32>
    %cst_376 = arith.constant 5.000000e-01 : f32
    %1218 = vector.broadcast %cst_376 : f32 to vector<8x128xf32>
    %1219 = arith.mulf %1218, %1217 : vector<8x128xf32>
    %1220 = math.tanh %1219 : vector<8x128xf32>
    %cst_377 = arith.constant 5.000000e-01 : f32
    %1221 = vector.broadcast %cst_377 : f32 to vector<8x128xf32>
    %1222 = arith.mulf %1221, %1220 : vector<8x128xf32>
    %cst_378 = arith.constant 5.000000e-01 : f32
    %1223 = vector.broadcast %cst_378 : f32 to vector<8x128xf32>
    %1224 = arith.addf %1222, %1223 : vector<8x128xf32>
    %1225 = arith.mulf %1214, %1155 : vector<8x128xf32>
    %1226 = arith.mulf %1206, %1216 : vector<8x128xf32>
    %1227 = arith.addf %1225, %1226 : vector<8x128xf32>
    %1228 = math.tanh %1227 : vector<8x128xf32>
    %1229 = arith.mulf %1224, %1228 : vector<8x128xf32>
    %c17_i32 = arith.constant 17 : i32
    %1230 = arith.index_cast %c17_i32 : i32 to index
    %c0_379 = arith.constant 0 : index
    %c0_380 = arith.constant 0 : index
    %1231 = vector.load %arg0[%1230, %c0_379, %c0_380] : memref<28x8x512xf32, #tpu.memory_space<vmem>>, vector<1x8x512xf32>
    %1232 = vector.shape_cast %1231 : vector<1x8x512xf32> to vector<8x512xf32>
    %1233 = arith.truncf %1194 : vector<8x128xf32> to vector<8x128xbf16>
    %cst_381 = arith.constant dense<0.000000e+00> : vector<8x512xf32>
    %1234 = tpu.matmul %1233, %0, %cst_381 {dimension_numbers = #tpu.dot_dimension_numbers<[1], [0], [0], [1], [0, 0, 1, 1], [], []>} : vector<8x128xbf16>, vector<128x512xbf16>, vector<8x512xf32> -> vector<8x512xf32>
    %1235 = arith.addf %1232, %1234 : vector<8x512xf32>
    %1236 = vector.extract_strided_slice %1235 {offsets = [0, 0], sizes = [8, 128], strides = [1, 1]} : vector<8x512xf32> to vector<8x128xf32>
    %cst_382 = arith.constant 5.000000e-01 : f32
    %1237 = vector.broadcast %cst_382 : f32 to vector<8x128xf32>
    %1238 = arith.mulf %1237, %1236 : vector<8x128xf32>
    %1239 = math.tanh %1238 : vector<8x128xf32>
    %cst_383 = arith.constant 5.000000e-01 : f32
    %1240 = vector.broadcast %cst_383 : f32 to vector<8x128xf32>
    %1241 = arith.mulf %1240, %1239 : vector<8x128xf32>
    %cst_384 = arith.constant 5.000000e-01 : f32
    %1242 = vector.broadcast %cst_384 : f32 to vector<8x128xf32>
    %1243 = arith.addf %1241, %1242 : vector<8x128xf32>
    %1244 = vector.extract_strided_slice %1235 {offsets = [0, 128], sizes = [8, 128], strides = [1, 1]} : vector<8x512xf32> to vector<8x128xf32>
    %cst_385 = arith.constant 5.000000e-01 : f32
    %1245 = vector.broadcast %cst_385 : f32 to vector<8x128xf32>
    %1246 = arith.mulf %1245, %1244 : vector<8x128xf32>
    %1247 = math.tanh %1246 : vector<8x128xf32>
    %cst_386 = arith.constant 5.000000e-01 : f32
    %1248 = vector.broadcast %cst_386 : f32 to vector<8x128xf32>
    %1249 = arith.mulf %1248, %1247 : vector<8x128xf32>
    %cst_387 = arith.constant 5.000000e-01 : f32
    %1250 = vector.broadcast %cst_387 : f32 to vector<8x128xf32>
    %1251 = arith.addf %1249, %1250 : vector<8x128xf32>
    %1252 = vector.extract_strided_slice %1235 {offsets = [0, 256], sizes = [8, 128], strides = [1, 1]} : vector<8x512xf32> to vector<8x128xf32>
    %1253 = math.tanh %1252 : vector<8x128xf32>
    %1254 = vector.extract_strided_slice %1235 {offsets = [0, 384], sizes = [8, 128], strides = [1, 1]} : vector<8x512xf32> to vector<8x128xf32>
    %cst_388 = arith.constant 5.000000e-01 : f32
    %1255 = vector.broadcast %cst_388 : f32 to vector<8x128xf32>
    %1256 = arith.mulf %1255, %1254 : vector<8x128xf32>
    %1257 = math.tanh %1256 : vector<8x128xf32>
    %cst_389 = arith.constant 5.000000e-01 : f32
    %1258 = vector.broadcast %cst_389 : f32 to vector<8x128xf32>
    %1259 = arith.mulf %1258, %1257 : vector<8x128xf32>
    %cst_390 = arith.constant 5.000000e-01 : f32
    %1260 = vector.broadcast %cst_390 : f32 to vector<8x128xf32>
    %1261 = arith.addf %1259, %1260 : vector<8x128xf32>
    %1262 = arith.mulf %1251, %1192 : vector<8x128xf32>
    %1263 = arith.mulf %1243, %1253 : vector<8x128xf32>
    %1264 = arith.addf %1262, %1263 : vector<8x128xf32>
    %1265 = math.tanh %1264 : vector<8x128xf32>
    %1266 = arith.mulf %1261, %1265 : vector<8x128xf32>
    %1267 = tpu.concatenate %1266, %1229 in 1 : vector<8x128xf32>, vector<8x128xf32> -> vector<8x256xf32>
    %1268 = arith.truncf %1267 : vector<8x256xf32> to vector<8x256xbf16>
    %cst_391 = arith.constant dense<0.000000e+00> : vector<8x512xf32>
    %1269 = tpu.matmul %1268, %1, %cst_391 {dimension_numbers = #tpu.dot_dimension_numbers<[1], [0], [0], [1], [0, 0, 1, 1], [], []>} : vector<8x256xbf16>, vector<256x512xbf16>, vector<8x512xf32> -> vector<8x512xf32>
    %1270 = arith.addf %1269, %4 : vector<8x512xf32>
    %1271 = vector.extract_strided_slice %1270 {offsets = [0, 0], sizes = [8, 128], strides = [1, 1]} : vector<8x512xf32> to vector<8x128xf32>
    %cst_392 = arith.constant 5.000000e-01 : f32
    %1272 = vector.broadcast %cst_392 : f32 to vector<8x128xf32>
    %1273 = arith.mulf %1272, %1271 : vector<8x128xf32>
    %1274 = math.tanh %1273 : vector<8x128xf32>
    %cst_393 = arith.constant 5.000000e-01 : f32
    %1275 = vector.broadcast %cst_393 : f32 to vector<8x128xf32>
    %1276 = arith.mulf %1275, %1274 : vector<8x128xf32>
    %cst_394 = arith.constant 5.000000e-01 : f32
    %1277 = vector.broadcast %cst_394 : f32 to vector<8x128xf32>
    %1278 = arith.addf %1276, %1277 : vector<8x128xf32>
    %1279 = vector.extract_strided_slice %1270 {offsets = [0, 128], sizes = [8, 128], strides = [1, 1]} : vector<8x512xf32> to vector<8x128xf32>
    %cst_395 = arith.constant 5.000000e-01 : f32
    %1280 = vector.broadcast %cst_395 : f32 to vector<8x128xf32>
    %1281 = arith.mulf %1280, %1279 : vector<8x128xf32>
    %1282 = math.tanh %1281 : vector<8x128xf32>
    %cst_396 = arith.constant 5.000000e-01 : f32
    %1283 = vector.broadcast %cst_396 : f32 to vector<8x128xf32>
    %1284 = arith.mulf %1283, %1282 : vector<8x128xf32>
    %cst_397 = arith.constant 5.000000e-01 : f32
    %1285 = vector.broadcast %cst_397 : f32 to vector<8x128xf32>
    %1286 = arith.addf %1284, %1285 : vector<8x128xf32>
    %1287 = vector.extract_strided_slice %1270 {offsets = [0, 256], sizes = [8, 128], strides = [1, 1]} : vector<8x512xf32> to vector<8x128xf32>
    %1288 = math.tanh %1287 : vector<8x128xf32>
    %1289 = vector.extract_strided_slice %1270 {offsets = [0, 384], sizes = [8, 128], strides = [1, 1]} : vector<8x512xf32> to vector<8x128xf32>
    %cst_398 = arith.constant 5.000000e-01 : f32
    %1290 = vector.broadcast %cst_398 : f32 to vector<8x128xf32>
    %1291 = arith.mulf %1290, %1289 : vector<8x128xf32>
    %1292 = math.tanh %1291 : vector<8x128xf32>
    %cst_399 = arith.constant 5.000000e-01 : f32
    %1293 = vector.broadcast %cst_399 : f32 to vector<8x128xf32>
    %1294 = arith.mulf %1293, %1292 : vector<8x128xf32>
    %cst_400 = arith.constant 5.000000e-01 : f32
    %1295 = vector.broadcast %cst_400 : f32 to vector<8x128xf32>
    %1296 = arith.addf %1294, %1295 : vector<8x128xf32>
    %1297 = arith.mulf %1286, %1227 : vector<8x128xf32>
    %1298 = arith.mulf %1278, %1288 : vector<8x128xf32>
    %1299 = arith.addf %1297, %1298 : vector<8x128xf32>
    %1300 = math.tanh %1299 : vector<8x128xf32>
    %1301 = arith.mulf %1296, %1300 : vector<8x128xf32>
    %c18_i32 = arith.constant 18 : i32
    %1302 = arith.index_cast %c18_i32 : i32 to index
    %c0_401 = arith.constant 0 : index
    %c0_402 = arith.constant 0 : index
    %1303 = vector.load %arg0[%1302, %c0_401, %c0_402] : memref<28x8x512xf32, #tpu.memory_space<vmem>>, vector<1x8x512xf32>
    %1304 = vector.shape_cast %1303 : vector<1x8x512xf32> to vector<8x512xf32>
    %1305 = arith.truncf %1266 : vector<8x128xf32> to vector<8x128xbf16>
    %cst_403 = arith.constant dense<0.000000e+00> : vector<8x512xf32>
    %1306 = tpu.matmul %1305, %0, %cst_403 {dimension_numbers = #tpu.dot_dimension_numbers<[1], [0], [0], [1], [0, 0, 1, 1], [], []>} : vector<8x128xbf16>, vector<128x512xbf16>, vector<8x512xf32> -> vector<8x512xf32>
    %1307 = arith.addf %1304, %1306 : vector<8x512xf32>
    %1308 = vector.extract_strided_slice %1307 {offsets = [0, 0], sizes = [8, 128], strides = [1, 1]} : vector<8x512xf32> to vector<8x128xf32>
    %cst_404 = arith.constant 5.000000e-01 : f32
    %1309 = vector.broadcast %cst_404 : f32 to vector<8x128xf32>
    %1310 = arith.mulf %1309, %1308 : vector<8x128xf32>
    %1311 = math.tanh %1310 : vector<8x128xf32>
    %cst_405 = arith.constant 5.000000e-01 : f32
    %1312 = vector.broadcast %cst_405 : f32 to vector<8x128xf32>
    %1313 = arith.mulf %1312, %1311 : vector<8x128xf32>
    %cst_406 = arith.constant 5.000000e-01 : f32
    %1314 = vector.broadcast %cst_406 : f32 to vector<8x128xf32>
    %1315 = arith.addf %1313, %1314 : vector<8x128xf32>
    %1316 = vector.extract_strided_slice %1307 {offsets = [0, 128], sizes = [8, 128], strides = [1, 1]} : vector<8x512xf32> to vector<8x128xf32>
    %cst_407 = arith.constant 5.000000e-01 : f32
    %1317 = vector.broadcast %cst_407 : f32 to vector<8x128xf32>
    %1318 = arith.mulf %1317, %1316 : vector<8x128xf32>
    %1319 = math.tanh %1318 : vector<8x128xf32>
    %cst_408 = arith.constant 5.000000e-01 : f32
    %1320 = vector.broadcast %cst_408 : f32 to vector<8x128xf32>
    %1321 = arith.mulf %1320, %1319 : vector<8x128xf32>
    %cst_409 = arith.constant 5.000000e-01 : f32
    %1322 = vector.broadcast %cst_409 : f32 to vector<8x128xf32>
    %1323 = arith.addf %1321, %1322 : vector<8x128xf32>
    %1324 = vector.extract_strided_slice %1307 {offsets = [0, 256], sizes = [8, 128], strides = [1, 1]} : vector<8x512xf32> to vector<8x128xf32>
    %1325 = math.tanh %1324 : vector<8x128xf32>
    %1326 = vector.extract_strided_slice %1307 {offsets = [0, 384], sizes = [8, 128], strides = [1, 1]} : vector<8x512xf32> to vector<8x128xf32>
    %cst_410 = arith.constant 5.000000e-01 : f32
    %1327 = vector.broadcast %cst_410 : f32 to vector<8x128xf32>
    %1328 = arith.mulf %1327, %1326 : vector<8x128xf32>
    %1329 = math.tanh %1328 : vector<8x128xf32>
    %cst_411 = arith.constant 5.000000e-01 : f32
    %1330 = vector.broadcast %cst_411 : f32 to vector<8x128xf32>
    %1331 = arith.mulf %1330, %1329 : vector<8x128xf32>
    %cst_412 = arith.constant 5.000000e-01 : f32
    %1332 = vector.broadcast %cst_412 : f32 to vector<8x128xf32>
    %1333 = arith.addf %1331, %1332 : vector<8x128xf32>
    %1334 = arith.mulf %1323, %1264 : vector<8x128xf32>
    %1335 = arith.mulf %1315, %1325 : vector<8x128xf32>
    %1336 = arith.addf %1334, %1335 : vector<8x128xf32>
    %1337 = math.tanh %1336 : vector<8x128xf32>
    %1338 = arith.mulf %1333, %1337 : vector<8x128xf32>
    %1339 = tpu.concatenate %1338, %1301 in 1 : vector<8x128xf32>, vector<8x128xf32> -> vector<8x256xf32>
    %1340 = arith.truncf %1339 : vector<8x256xf32> to vector<8x256xbf16>
    %cst_413 = arith.constant dense<0.000000e+00> : vector<8x512xf32>
    %1341 = tpu.matmul %1340, %1, %cst_413 {dimension_numbers = #tpu.dot_dimension_numbers<[1], [0], [0], [1], [0, 0, 1, 1], [], []>} : vector<8x256xbf16>, vector<256x512xbf16>, vector<8x512xf32> -> vector<8x512xf32>
    %1342 = arith.addf %1341, %4 : vector<8x512xf32>
    %1343 = vector.extract_strided_slice %1342 {offsets = [0, 0], sizes = [8, 128], strides = [1, 1]} : vector<8x512xf32> to vector<8x128xf32>
    %cst_414 = arith.constant 5.000000e-01 : f32
    %1344 = vector.broadcast %cst_414 : f32 to vector<8x128xf32>
    %1345 = arith.mulf %1344, %1343 : vector<8x128xf32>
    %1346 = math.tanh %1345 : vector<8x128xf32>
    %cst_415 = arith.constant 5.000000e-01 : f32
    %1347 = vector.broadcast %cst_415 : f32 to vector<8x128xf32>
    %1348 = arith.mulf %1347, %1346 : vector<8x128xf32>
    %cst_416 = arith.constant 5.000000e-01 : f32
    %1349 = vector.broadcast %cst_416 : f32 to vector<8x128xf32>
    %1350 = arith.addf %1348, %1349 : vector<8x128xf32>
    %1351 = vector.extract_strided_slice %1342 {offsets = [0, 128], sizes = [8, 128], strides = [1, 1]} : vector<8x512xf32> to vector<8x128xf32>
    %cst_417 = arith.constant 5.000000e-01 : f32
    %1352 = vector.broadcast %cst_417 : f32 to vector<8x128xf32>
    %1353 = arith.mulf %1352, %1351 : vector<8x128xf32>
    %1354 = math.tanh %1353 : vector<8x128xf32>
    %cst_418 = arith.constant 5.000000e-01 : f32
    %1355 = vector.broadcast %cst_418 : f32 to vector<8x128xf32>
    %1356 = arith.mulf %1355, %1354 : vector<8x128xf32>
    %cst_419 = arith.constant 5.000000e-01 : f32
    %1357 = vector.broadcast %cst_419 : f32 to vector<8x128xf32>
    %1358 = arith.addf %1356, %1357 : vector<8x128xf32>
    %1359 = vector.extract_strided_slice %1342 {offsets = [0, 256], sizes = [8, 128], strides = [1, 1]} : vector<8x512xf32> to vector<8x128xf32>
    %1360 = math.tanh %1359 : vector<8x128xf32>
    %1361 = vector.extract_strided_slice %1342 {offsets = [0, 384], sizes = [8, 128], strides = [1, 1]} : vector<8x512xf32> to vector<8x128xf32>
    %cst_420 = arith.constant 5.000000e-01 : f32
    %1362 = vector.broadcast %cst_420 : f32 to vector<8x128xf32>
    %1363 = arith.mulf %1362, %1361 : vector<8x128xf32>
    %1364 = math.tanh %1363 : vector<8x128xf32>
    %cst_421 = arith.constant 5.000000e-01 : f32
    %1365 = vector.broadcast %cst_421 : f32 to vector<8x128xf32>
    %1366 = arith.mulf %1365, %1364 : vector<8x128xf32>
    %cst_422 = arith.constant 5.000000e-01 : f32
    %1367 = vector.broadcast %cst_422 : f32 to vector<8x128xf32>
    %1368 = arith.addf %1366, %1367 : vector<8x128xf32>
    %1369 = arith.mulf %1358, %1299 : vector<8x128xf32>
    %1370 = arith.mulf %1350, %1360 : vector<8x128xf32>
    %1371 = arith.addf %1369, %1370 : vector<8x128xf32>
    %1372 = math.tanh %1371 : vector<8x128xf32>
    %1373 = arith.mulf %1368, %1372 : vector<8x128xf32>
    %c19_i32 = arith.constant 19 : i32
    %1374 = arith.index_cast %c19_i32 : i32 to index
    %c0_423 = arith.constant 0 : index
    %c0_424 = arith.constant 0 : index
    %1375 = vector.load %arg0[%1374, %c0_423, %c0_424] : memref<28x8x512xf32, #tpu.memory_space<vmem>>, vector<1x8x512xf32>
    %1376 = vector.shape_cast %1375 : vector<1x8x512xf32> to vector<8x512xf32>
    %1377 = arith.truncf %1338 : vector<8x128xf32> to vector<8x128xbf16>
    %cst_425 = arith.constant dense<0.000000e+00> : vector<8x512xf32>
    %1378 = tpu.matmul %1377, %0, %cst_425 {dimension_numbers = #tpu.dot_dimension_numbers<[1], [0], [0], [1], [0, 0, 1, 1], [], []>} : vector<8x128xbf16>, vector<128x512xbf16>, vector<8x512xf32> -> vector<8x512xf32>
    %1379 = arith.addf %1376, %1378 : vector<8x512xf32>
    %1380 = vector.extract_strided_slice %1379 {offsets = [0, 0], sizes = [8, 128], strides = [1, 1]} : vector<8x512xf32> to vector<8x128xf32>
    %cst_426 = arith.constant 5.000000e-01 : f32
    %1381 = vector.broadcast %cst_426 : f32 to vector<8x128xf32>
    %1382 = arith.mulf %1381, %1380 : vector<8x128xf32>
    %1383 = math.tanh %1382 : vector<8x128xf32>
    %cst_427 = arith.constant 5.000000e-01 : f32
    %1384 = vector.broadcast %cst_427 : f32 to vector<8x128xf32>
    %1385 = arith.mulf %1384, %1383 : vector<8x128xf32>
    %cst_428 = arith.constant 5.000000e-01 : f32
    %1386 = vector.broadcast %cst_428 : f32 to vector<8x128xf32>
    %1387 = arith.addf %1385, %1386 : vector<8x128xf32>
    %1388 = vector.extract_strided_slice %1379 {offsets = [0, 128], sizes = [8, 128], strides = [1, 1]} : vector<8x512xf32> to vector<8x128xf32>
    %cst_429 = arith.constant 5.000000e-01 : f32
    %1389 = vector.broadcast %cst_429 : f32 to vector<8x128xf32>
    %1390 = arith.mulf %1389, %1388 : vector<8x128xf32>
    %1391 = math.tanh %1390 : vector<8x128xf32>
    %cst_430 = arith.constant 5.000000e-01 : f32
    %1392 = vector.broadcast %cst_430 : f32 to vector<8x128xf32>
    %1393 = arith.mulf %1392, %1391 : vector<8x128xf32>
    %cst_431 = arith.constant 5.000000e-01 : f32
    %1394 = vector.broadcast %cst_431 : f32 to vector<8x128xf32>
    %1395 = arith.addf %1393, %1394 : vector<8x128xf32>
    %1396 = vector.extract_strided_slice %1379 {offsets = [0, 256], sizes = [8, 128], strides = [1, 1]} : vector<8x512xf32> to vector<8x128xf32>
    %1397 = math.tanh %1396 : vector<8x128xf32>
    %1398 = vector.extract_strided_slice %1379 {offsets = [0, 384], sizes = [8, 128], strides = [1, 1]} : vector<8x512xf32> to vector<8x128xf32>
    %cst_432 = arith.constant 5.000000e-01 : f32
    %1399 = vector.broadcast %cst_432 : f32 to vector<8x128xf32>
    %1400 = arith.mulf %1399, %1398 : vector<8x128xf32>
    %1401 = math.tanh %1400 : vector<8x128xf32>
    %cst_433 = arith.constant 5.000000e-01 : f32
    %1402 = vector.broadcast %cst_433 : f32 to vector<8x128xf32>
    %1403 = arith.mulf %1402, %1401 : vector<8x128xf32>
    %cst_434 = arith.constant 5.000000e-01 : f32
    %1404 = vector.broadcast %cst_434 : f32 to vector<8x128xf32>
    %1405 = arith.addf %1403, %1404 : vector<8x128xf32>
    %1406 = arith.mulf %1395, %1336 : vector<8x128xf32>
    %1407 = arith.mulf %1387, %1397 : vector<8x128xf32>
    %1408 = arith.addf %1406, %1407 : vector<8x128xf32>
    %1409 = math.tanh %1408 : vector<8x128xf32>
    %1410 = arith.mulf %1405, %1409 : vector<8x128xf32>
    %1411 = tpu.concatenate %1410, %1373 in 1 : vector<8x128xf32>, vector<8x128xf32> -> vector<8x256xf32>
    %1412 = arith.truncf %1411 : vector<8x256xf32> to vector<8x256xbf16>
    %cst_435 = arith.constant dense<0.000000e+00> : vector<8x512xf32>
    %1413 = tpu.matmul %1412, %1, %cst_435 {dimension_numbers = #tpu.dot_dimension_numbers<[1], [0], [0], [1], [0, 0, 1, 1], [], []>} : vector<8x256xbf16>, vector<256x512xbf16>, vector<8x512xf32> -> vector<8x512xf32>
    %1414 = arith.addf %1413, %4 : vector<8x512xf32>
    %1415 = vector.extract_strided_slice %1414 {offsets = [0, 0], sizes = [8, 128], strides = [1, 1]} : vector<8x512xf32> to vector<8x128xf32>
    %cst_436 = arith.constant 5.000000e-01 : f32
    %1416 = vector.broadcast %cst_436 : f32 to vector<8x128xf32>
    %1417 = arith.mulf %1416, %1415 : vector<8x128xf32>
    %1418 = math.tanh %1417 : vector<8x128xf32>
    %cst_437 = arith.constant 5.000000e-01 : f32
    %1419 = vector.broadcast %cst_437 : f32 to vector<8x128xf32>
    %1420 = arith.mulf %1419, %1418 : vector<8x128xf32>
    %cst_438 = arith.constant 5.000000e-01 : f32
    %1421 = vector.broadcast %cst_438 : f32 to vector<8x128xf32>
    %1422 = arith.addf %1420, %1421 : vector<8x128xf32>
    %1423 = vector.extract_strided_slice %1414 {offsets = [0, 128], sizes = [8, 128], strides = [1, 1]} : vector<8x512xf32> to vector<8x128xf32>
    %cst_439 = arith.constant 5.000000e-01 : f32
    %1424 = vector.broadcast %cst_439 : f32 to vector<8x128xf32>
    %1425 = arith.mulf %1424, %1423 : vector<8x128xf32>
    %1426 = math.tanh %1425 : vector<8x128xf32>
    %cst_440 = arith.constant 5.000000e-01 : f32
    %1427 = vector.broadcast %cst_440 : f32 to vector<8x128xf32>
    %1428 = arith.mulf %1427, %1426 : vector<8x128xf32>
    %cst_441 = arith.constant 5.000000e-01 : f32
    %1429 = vector.broadcast %cst_441 : f32 to vector<8x128xf32>
    %1430 = arith.addf %1428, %1429 : vector<8x128xf32>
    %1431 = vector.extract_strided_slice %1414 {offsets = [0, 256], sizes = [8, 128], strides = [1, 1]} : vector<8x512xf32> to vector<8x128xf32>
    %1432 = math.tanh %1431 : vector<8x128xf32>
    %1433 = vector.extract_strided_slice %1414 {offsets = [0, 384], sizes = [8, 128], strides = [1, 1]} : vector<8x512xf32> to vector<8x128xf32>
    %cst_442 = arith.constant 5.000000e-01 : f32
    %1434 = vector.broadcast %cst_442 : f32 to vector<8x128xf32>
    %1435 = arith.mulf %1434, %1433 : vector<8x128xf32>
    %1436 = math.tanh %1435 : vector<8x128xf32>
    %cst_443 = arith.constant 5.000000e-01 : f32
    %1437 = vector.broadcast %cst_443 : f32 to vector<8x128xf32>
    %1438 = arith.mulf %1437, %1436 : vector<8x128xf32>
    %cst_444 = arith.constant 5.000000e-01 : f32
    %1439 = vector.broadcast %cst_444 : f32 to vector<8x128xf32>
    %1440 = arith.addf %1438, %1439 : vector<8x128xf32>
    %1441 = arith.mulf %1430, %1371 : vector<8x128xf32>
    %1442 = arith.mulf %1422, %1432 : vector<8x128xf32>
    %1443 = arith.addf %1441, %1442 : vector<8x128xf32>
    %1444 = math.tanh %1443 : vector<8x128xf32>
    %1445 = arith.mulf %1440, %1444 : vector<8x128xf32>
    %c20_i32 = arith.constant 20 : i32
    %1446 = arith.index_cast %c20_i32 : i32 to index
    %c0_445 = arith.constant 0 : index
    %c0_446 = arith.constant 0 : index
    %1447 = vector.load %arg0[%1446, %c0_445, %c0_446] : memref<28x8x512xf32, #tpu.memory_space<vmem>>, vector<1x8x512xf32>
    %1448 = vector.shape_cast %1447 : vector<1x8x512xf32> to vector<8x512xf32>
    %1449 = arith.truncf %1410 : vector<8x128xf32> to vector<8x128xbf16>
    %cst_447 = arith.constant dense<0.000000e+00> : vector<8x512xf32>
    %1450 = tpu.matmul %1449, %0, %cst_447 {dimension_numbers = #tpu.dot_dimension_numbers<[1], [0], [0], [1], [0, 0, 1, 1], [], []>} : vector<8x128xbf16>, vector<128x512xbf16>, vector<8x512xf32> -> vector<8x512xf32>
    %1451 = arith.addf %1448, %1450 : vector<8x512xf32>
    %1452 = vector.extract_strided_slice %1451 {offsets = [0, 0], sizes = [8, 128], strides = [1, 1]} : vector<8x512xf32> to vector<8x128xf32>
    %cst_448 = arith.constant 5.000000e-01 : f32
    %1453 = vector.broadcast %cst_448 : f32 to vector<8x128xf32>
    %1454 = arith.mulf %1453, %1452 : vector<8x128xf32>
    %1455 = math.tanh %1454 : vector<8x128xf32>
    %cst_449 = arith.constant 5.000000e-01 : f32
    %1456 = vector.broadcast %cst_449 : f32 to vector<8x128xf32>
    %1457 = arith.mulf %1456, %1455 : vector<8x128xf32>
    %cst_450 = arith.constant 5.000000e-01 : f32
    %1458 = vector.broadcast %cst_450 : f32 to vector<8x128xf32>
    %1459 = arith.addf %1457, %1458 : vector<8x128xf32>
    %1460 = vector.extract_strided_slice %1451 {offsets = [0, 128], sizes = [8, 128], strides = [1, 1]} : vector<8x512xf32> to vector<8x128xf32>
    %cst_451 = arith.constant 5.000000e-01 : f32
    %1461 = vector.broadcast %cst_451 : f32 to vector<8x128xf32>
    %1462 = arith.mulf %1461, %1460 : vector<8x128xf32>
    %1463 = math.tanh %1462 : vector<8x128xf32>
    %cst_452 = arith.constant 5.000000e-01 : f32
    %1464 = vector.broadcast %cst_452 : f32 to vector<8x128xf32>
    %1465 = arith.mulf %1464, %1463 : vector<8x128xf32>
    %cst_453 = arith.constant 5.000000e-01 : f32
    %1466 = vector.broadcast %cst_453 : f32 to vector<8x128xf32>
    %1467 = arith.addf %1465, %1466 : vector<8x128xf32>
    %1468 = vector.extract_strided_slice %1451 {offsets = [0, 256], sizes = [8, 128], strides = [1, 1]} : vector<8x512xf32> to vector<8x128xf32>
    %1469 = math.tanh %1468 : vector<8x128xf32>
    %1470 = vector.extract_strided_slice %1451 {offsets = [0, 384], sizes = [8, 128], strides = [1, 1]} : vector<8x512xf32> to vector<8x128xf32>
    %cst_454 = arith.constant 5.000000e-01 : f32
    %1471 = vector.broadcast %cst_454 : f32 to vector<8x128xf32>
    %1472 = arith.mulf %1471, %1470 : vector<8x128xf32>
    %1473 = math.tanh %1472 : vector<8x128xf32>
    %cst_455 = arith.constant 5.000000e-01 : f32
    %1474 = vector.broadcast %cst_455 : f32 to vector<8x128xf32>
    %1475 = arith.mulf %1474, %1473 : vector<8x128xf32>
    %cst_456 = arith.constant 5.000000e-01 : f32
    %1476 = vector.broadcast %cst_456 : f32 to vector<8x128xf32>
    %1477 = arith.addf %1475, %1476 : vector<8x128xf32>
    %1478 = arith.mulf %1467, %1408 : vector<8x128xf32>
    %1479 = arith.mulf %1459, %1469 : vector<8x128xf32>
    %1480 = arith.addf %1478, %1479 : vector<8x128xf32>
    %1481 = math.tanh %1480 : vector<8x128xf32>
    %1482 = arith.mulf %1477, %1481 : vector<8x128xf32>
    %1483 = tpu.concatenate %1482, %1445 in 1 : vector<8x128xf32>, vector<8x128xf32> -> vector<8x256xf32>
    %1484 = arith.truncf %1483 : vector<8x256xf32> to vector<8x256xbf16>
    %cst_457 = arith.constant dense<0.000000e+00> : vector<8x512xf32>
    %1485 = tpu.matmul %1484, %1, %cst_457 {dimension_numbers = #tpu.dot_dimension_numbers<[1], [0], [0], [1], [0, 0, 1, 1], [], []>} : vector<8x256xbf16>, vector<256x512xbf16>, vector<8x512xf32> -> vector<8x512xf32>
    %1486 = arith.addf %1485, %4 : vector<8x512xf32>
    %1487 = vector.extract_strided_slice %1486 {offsets = [0, 0], sizes = [8, 128], strides = [1, 1]} : vector<8x512xf32> to vector<8x128xf32>
    %cst_458 = arith.constant 5.000000e-01 : f32
    %1488 = vector.broadcast %cst_458 : f32 to vector<8x128xf32>
    %1489 = arith.mulf %1488, %1487 : vector<8x128xf32>
    %1490 = math.tanh %1489 : vector<8x128xf32>
    %cst_459 = arith.constant 5.000000e-01 : f32
    %1491 = vector.broadcast %cst_459 : f32 to vector<8x128xf32>
    %1492 = arith.mulf %1491, %1490 : vector<8x128xf32>
    %cst_460 = arith.constant 5.000000e-01 : f32
    %1493 = vector.broadcast %cst_460 : f32 to vector<8x128xf32>
    %1494 = arith.addf %1492, %1493 : vector<8x128xf32>
    %1495 = vector.extract_strided_slice %1486 {offsets = [0, 128], sizes = [8, 128], strides = [1, 1]} : vector<8x512xf32> to vector<8x128xf32>
    %cst_461 = arith.constant 5.000000e-01 : f32
    %1496 = vector.broadcast %cst_461 : f32 to vector<8x128xf32>
    %1497 = arith.mulf %1496, %1495 : vector<8x128xf32>
    %1498 = math.tanh %1497 : vector<8x128xf32>
    %cst_462 = arith.constant 5.000000e-01 : f32
    %1499 = vector.broadcast %cst_462 : f32 to vector<8x128xf32>
    %1500 = arith.mulf %1499, %1498 : vector<8x128xf32>
    %cst_463 = arith.constant 5.000000e-01 : f32
    %1501 = vector.broadcast %cst_463 : f32 to vector<8x128xf32>
    %1502 = arith.addf %1500, %1501 : vector<8x128xf32>
    %1503 = vector.extract_strided_slice %1486 {offsets = [0, 256], sizes = [8, 128], strides = [1, 1]} : vector<8x512xf32> to vector<8x128xf32>
    %1504 = math.tanh %1503 : vector<8x128xf32>
    %1505 = vector.extract_strided_slice %1486 {offsets = [0, 384], sizes = [8, 128], strides = [1, 1]} : vector<8x512xf32> to vector<8x128xf32>
    %cst_464 = arith.constant 5.000000e-01 : f32
    %1506 = vector.broadcast %cst_464 : f32 to vector<8x128xf32>
    %1507 = arith.mulf %1506, %1505 : vector<8x128xf32>
    %1508 = math.tanh %1507 : vector<8x128xf32>
    %cst_465 = arith.constant 5.000000e-01 : f32
    %1509 = vector.broadcast %cst_465 : f32 to vector<8x128xf32>
    %1510 = arith.mulf %1509, %1508 : vector<8x128xf32>
    %cst_466 = arith.constant 5.000000e-01 : f32
    %1511 = vector.broadcast %cst_466 : f32 to vector<8x128xf32>
    %1512 = arith.addf %1510, %1511 : vector<8x128xf32>
    %1513 = arith.mulf %1502, %1443 : vector<8x128xf32>
    %1514 = arith.mulf %1494, %1504 : vector<8x128xf32>
    %1515 = arith.addf %1513, %1514 : vector<8x128xf32>
    %1516 = math.tanh %1515 : vector<8x128xf32>
    %1517 = arith.mulf %1512, %1516 : vector<8x128xf32>
    %c21_i32 = arith.constant 21 : i32
    %1518 = arith.index_cast %c21_i32 : i32 to index
    %c0_467 = arith.constant 0 : index
    %c0_468 = arith.constant 0 : index
    %1519 = vector.load %arg0[%1518, %c0_467, %c0_468] : memref<28x8x512xf32, #tpu.memory_space<vmem>>, vector<1x8x512xf32>
    %1520 = vector.shape_cast %1519 : vector<1x8x512xf32> to vector<8x512xf32>
    %1521 = arith.truncf %1482 : vector<8x128xf32> to vector<8x128xbf16>
    %cst_469 = arith.constant dense<0.000000e+00> : vector<8x512xf32>
    %1522 = tpu.matmul %1521, %0, %cst_469 {dimension_numbers = #tpu.dot_dimension_numbers<[1], [0], [0], [1], [0, 0, 1, 1], [], []>} : vector<8x128xbf16>, vector<128x512xbf16>, vector<8x512xf32> -> vector<8x512xf32>
    %1523 = arith.addf %1520, %1522 : vector<8x512xf32>
    %1524 = vector.extract_strided_slice %1523 {offsets = [0, 0], sizes = [8, 128], strides = [1, 1]} : vector<8x512xf32> to vector<8x128xf32>
    %cst_470 = arith.constant 5.000000e-01 : f32
    %1525 = vector.broadcast %cst_470 : f32 to vector<8x128xf32>
    %1526 = arith.mulf %1525, %1524 : vector<8x128xf32>
    %1527 = math.tanh %1526 : vector<8x128xf32>
    %cst_471 = arith.constant 5.000000e-01 : f32
    %1528 = vector.broadcast %cst_471 : f32 to vector<8x128xf32>
    %1529 = arith.mulf %1528, %1527 : vector<8x128xf32>
    %cst_472 = arith.constant 5.000000e-01 : f32
    %1530 = vector.broadcast %cst_472 : f32 to vector<8x128xf32>
    %1531 = arith.addf %1529, %1530 : vector<8x128xf32>
    %1532 = vector.extract_strided_slice %1523 {offsets = [0, 128], sizes = [8, 128], strides = [1, 1]} : vector<8x512xf32> to vector<8x128xf32>
    %cst_473 = arith.constant 5.000000e-01 : f32
    %1533 = vector.broadcast %cst_473 : f32 to vector<8x128xf32>
    %1534 = arith.mulf %1533, %1532 : vector<8x128xf32>
    %1535 = math.tanh %1534 : vector<8x128xf32>
    %cst_474 = arith.constant 5.000000e-01 : f32
    %1536 = vector.broadcast %cst_474 : f32 to vector<8x128xf32>
    %1537 = arith.mulf %1536, %1535 : vector<8x128xf32>
    %cst_475 = arith.constant 5.000000e-01 : f32
    %1538 = vector.broadcast %cst_475 : f32 to vector<8x128xf32>
    %1539 = arith.addf %1537, %1538 : vector<8x128xf32>
    %1540 = vector.extract_strided_slice %1523 {offsets = [0, 256], sizes = [8, 128], strides = [1, 1]} : vector<8x512xf32> to vector<8x128xf32>
    %1541 = math.tanh %1540 : vector<8x128xf32>
    %1542 = vector.extract_strided_slice %1523 {offsets = [0, 384], sizes = [8, 128], strides = [1, 1]} : vector<8x512xf32> to vector<8x128xf32>
    %cst_476 = arith.constant 5.000000e-01 : f32
    %1543 = vector.broadcast %cst_476 : f32 to vector<8x128xf32>
    %1544 = arith.mulf %1543, %1542 : vector<8x128xf32>
    %1545 = math.tanh %1544 : vector<8x128xf32>
    %cst_477 = arith.constant 5.000000e-01 : f32
    %1546 = vector.broadcast %cst_477 : f32 to vector<8x128xf32>
    %1547 = arith.mulf %1546, %1545 : vector<8x128xf32>
    %cst_478 = arith.constant 5.000000e-01 : f32
    %1548 = vector.broadcast %cst_478 : f32 to vector<8x128xf32>
    %1549 = arith.addf %1547, %1548 : vector<8x128xf32>
    %1550 = arith.mulf %1539, %1480 : vector<8x128xf32>
    %1551 = arith.mulf %1531, %1541 : vector<8x128xf32>
    %1552 = arith.addf %1550, %1551 : vector<8x128xf32>
    %1553 = math.tanh %1552 : vector<8x128xf32>
    %1554 = arith.mulf %1549, %1553 : vector<8x128xf32>
    %1555 = tpu.concatenate %1554, %1517 in 1 : vector<8x128xf32>, vector<8x128xf32> -> vector<8x256xf32>
    %1556 = arith.truncf %1555 : vector<8x256xf32> to vector<8x256xbf16>
    %cst_479 = arith.constant dense<0.000000e+00> : vector<8x512xf32>
    %1557 = tpu.matmul %1556, %1, %cst_479 {dimension_numbers = #tpu.dot_dimension_numbers<[1], [0], [0], [1], [0, 0, 1, 1], [], []>} : vector<8x256xbf16>, vector<256x512xbf16>, vector<8x512xf32> -> vector<8x512xf32>
    %1558 = arith.addf %1557, %4 : vector<8x512xf32>
    %1559 = vector.extract_strided_slice %1558 {offsets = [0, 0], sizes = [8, 128], strides = [1, 1]} : vector<8x512xf32> to vector<8x128xf32>
    %cst_480 = arith.constant 5.000000e-01 : f32
    %1560 = vector.broadcast %cst_480 : f32 to vector<8x128xf32>
    %1561 = arith.mulf %1560, %1559 : vector<8x128xf32>
    %1562 = math.tanh %1561 : vector<8x128xf32>
    %cst_481 = arith.constant 5.000000e-01 : f32
    %1563 = vector.broadcast %cst_481 : f32 to vector<8x128xf32>
    %1564 = arith.mulf %1563, %1562 : vector<8x128xf32>
    %cst_482 = arith.constant 5.000000e-01 : f32
    %1565 = vector.broadcast %cst_482 : f32 to vector<8x128xf32>
    %1566 = arith.addf %1564, %1565 : vector<8x128xf32>
    %1567 = vector.extract_strided_slice %1558 {offsets = [0, 128], sizes = [8, 128], strides = [1, 1]} : vector<8x512xf32> to vector<8x128xf32>
    %cst_483 = arith.constant 5.000000e-01 : f32
    %1568 = vector.broadcast %cst_483 : f32 to vector<8x128xf32>
    %1569 = arith.mulf %1568, %1567 : vector<8x128xf32>
    %1570 = math.tanh %1569 : vector<8x128xf32>
    %cst_484 = arith.constant 5.000000e-01 : f32
    %1571 = vector.broadcast %cst_484 : f32 to vector<8x128xf32>
    %1572 = arith.mulf %1571, %1570 : vector<8x128xf32>
    %cst_485 = arith.constant 5.000000e-01 : f32
    %1573 = vector.broadcast %cst_485 : f32 to vector<8x128xf32>
    %1574 = arith.addf %1572, %1573 : vector<8x128xf32>
    %1575 = vector.extract_strided_slice %1558 {offsets = [0, 256], sizes = [8, 128], strides = [1, 1]} : vector<8x512xf32> to vector<8x128xf32>
    %1576 = math.tanh %1575 : vector<8x128xf32>
    %1577 = vector.extract_strided_slice %1558 {offsets = [0, 384], sizes = [8, 128], strides = [1, 1]} : vector<8x512xf32> to vector<8x128xf32>
    %cst_486 = arith.constant 5.000000e-01 : f32
    %1578 = vector.broadcast %cst_486 : f32 to vector<8x128xf32>
    %1579 = arith.mulf %1578, %1577 : vector<8x128xf32>
    %1580 = math.tanh %1579 : vector<8x128xf32>
    %cst_487 = arith.constant 5.000000e-01 : f32
    %1581 = vector.broadcast %cst_487 : f32 to vector<8x128xf32>
    %1582 = arith.mulf %1581, %1580 : vector<8x128xf32>
    %cst_488 = arith.constant 5.000000e-01 : f32
    %1583 = vector.broadcast %cst_488 : f32 to vector<8x128xf32>
    %1584 = arith.addf %1582, %1583 : vector<8x128xf32>
    %1585 = arith.mulf %1574, %1515 : vector<8x128xf32>
    %1586 = arith.mulf %1566, %1576 : vector<8x128xf32>
    %1587 = arith.addf %1585, %1586 : vector<8x128xf32>
    %1588 = math.tanh %1587 : vector<8x128xf32>
    %1589 = arith.mulf %1584, %1588 : vector<8x128xf32>
    %c22_i32 = arith.constant 22 : i32
    %1590 = arith.index_cast %c22_i32 : i32 to index
    %c0_489 = arith.constant 0 : index
    %c0_490 = arith.constant 0 : index
    %1591 = vector.load %arg0[%1590, %c0_489, %c0_490] : memref<28x8x512xf32, #tpu.memory_space<vmem>>, vector<1x8x512xf32>
    %1592 = vector.shape_cast %1591 : vector<1x8x512xf32> to vector<8x512xf32>
    %1593 = arith.truncf %1554 : vector<8x128xf32> to vector<8x128xbf16>
    %cst_491 = arith.constant dense<0.000000e+00> : vector<8x512xf32>
    %1594 = tpu.matmul %1593, %0, %cst_491 {dimension_numbers = #tpu.dot_dimension_numbers<[1], [0], [0], [1], [0, 0, 1, 1], [], []>} : vector<8x128xbf16>, vector<128x512xbf16>, vector<8x512xf32> -> vector<8x512xf32>
    %1595 = arith.addf %1592, %1594 : vector<8x512xf32>
    %1596 = vector.extract_strided_slice %1595 {offsets = [0, 0], sizes = [8, 128], strides = [1, 1]} : vector<8x512xf32> to vector<8x128xf32>
    %cst_492 = arith.constant 5.000000e-01 : f32
    %1597 = vector.broadcast %cst_492 : f32 to vector<8x128xf32>
    %1598 = arith.mulf %1597, %1596 : vector<8x128xf32>
    %1599 = math.tanh %1598 : vector<8x128xf32>
    %cst_493 = arith.constant 5.000000e-01 : f32
    %1600 = vector.broadcast %cst_493 : f32 to vector<8x128xf32>
    %1601 = arith.mulf %1600, %1599 : vector<8x128xf32>
    %cst_494 = arith.constant 5.000000e-01 : f32
    %1602 = vector.broadcast %cst_494 : f32 to vector<8x128xf32>
    %1603 = arith.addf %1601, %1602 : vector<8x128xf32>
    %1604 = vector.extract_strided_slice %1595 {offsets = [0, 128], sizes = [8, 128], strides = [1, 1]} : vector<8x512xf32> to vector<8x128xf32>
    %cst_495 = arith.constant 5.000000e-01 : f32
    %1605 = vector.broadcast %cst_495 : f32 to vector<8x128xf32>
    %1606 = arith.mulf %1605, %1604 : vector<8x128xf32>
    %1607 = math.tanh %1606 : vector<8x128xf32>
    %cst_496 = arith.constant 5.000000e-01 : f32
    %1608 = vector.broadcast %cst_496 : f32 to vector<8x128xf32>
    %1609 = arith.mulf %1608, %1607 : vector<8x128xf32>
    %cst_497 = arith.constant 5.000000e-01 : f32
    %1610 = vector.broadcast %cst_497 : f32 to vector<8x128xf32>
    %1611 = arith.addf %1609, %1610 : vector<8x128xf32>
    %1612 = vector.extract_strided_slice %1595 {offsets = [0, 256], sizes = [8, 128], strides = [1, 1]} : vector<8x512xf32> to vector<8x128xf32>
    %1613 = math.tanh %1612 : vector<8x128xf32>
    %1614 = vector.extract_strided_slice %1595 {offsets = [0, 384], sizes = [8, 128], strides = [1, 1]} : vector<8x512xf32> to vector<8x128xf32>
    %cst_498 = arith.constant 5.000000e-01 : f32
    %1615 = vector.broadcast %cst_498 : f32 to vector<8x128xf32>
    %1616 = arith.mulf %1615, %1614 : vector<8x128xf32>
    %1617 = math.tanh %1616 : vector<8x128xf32>
    %cst_499 = arith.constant 5.000000e-01 : f32
    %1618 = vector.broadcast %cst_499 : f32 to vector<8x128xf32>
    %1619 = arith.mulf %1618, %1617 : vector<8x128xf32>
    %cst_500 = arith.constant 5.000000e-01 : f32
    %1620 = vector.broadcast %cst_500 : f32 to vector<8x128xf32>
    %1621 = arith.addf %1619, %1620 : vector<8x128xf32>
    %1622 = arith.mulf %1611, %1552 : vector<8x128xf32>
    %1623 = arith.mulf %1603, %1613 : vector<8x128xf32>
    %1624 = arith.addf %1622, %1623 : vector<8x128xf32>
    %1625 = math.tanh %1624 : vector<8x128xf32>
    %1626 = arith.mulf %1621, %1625 : vector<8x128xf32>
    %1627 = tpu.concatenate %1626, %1589 in 1 : vector<8x128xf32>, vector<8x128xf32> -> vector<8x256xf32>
    %1628 = arith.truncf %1627 : vector<8x256xf32> to vector<8x256xbf16>
    %cst_501 = arith.constant dense<0.000000e+00> : vector<8x512xf32>
    %1629 = tpu.matmul %1628, %1, %cst_501 {dimension_numbers = #tpu.dot_dimension_numbers<[1], [0], [0], [1], [0, 0, 1, 1], [], []>} : vector<8x256xbf16>, vector<256x512xbf16>, vector<8x512xf32> -> vector<8x512xf32>
    %1630 = arith.addf %1629, %4 : vector<8x512xf32>
    %1631 = vector.extract_strided_slice %1630 {offsets = [0, 0], sizes = [8, 128], strides = [1, 1]} : vector<8x512xf32> to vector<8x128xf32>
    %cst_502 = arith.constant 5.000000e-01 : f32
    %1632 = vector.broadcast %cst_502 : f32 to vector<8x128xf32>
    %1633 = arith.mulf %1632, %1631 : vector<8x128xf32>
    %1634 = math.tanh %1633 : vector<8x128xf32>
    %cst_503 = arith.constant 5.000000e-01 : f32
    %1635 = vector.broadcast %cst_503 : f32 to vector<8x128xf32>
    %1636 = arith.mulf %1635, %1634 : vector<8x128xf32>
    %cst_504 = arith.constant 5.000000e-01 : f32
    %1637 = vector.broadcast %cst_504 : f32 to vector<8x128xf32>
    %1638 = arith.addf %1636, %1637 : vector<8x128xf32>
    %1639 = vector.extract_strided_slice %1630 {offsets = [0, 128], sizes = [8, 128], strides = [1, 1]} : vector<8x512xf32> to vector<8x128xf32>
    %cst_505 = arith.constant 5.000000e-01 : f32
    %1640 = vector.broadcast %cst_505 : f32 to vector<8x128xf32>
    %1641 = arith.mulf %1640, %1639 : vector<8x128xf32>
    %1642 = math.tanh %1641 : vector<8x128xf32>
    %cst_506 = arith.constant 5.000000e-01 : f32
    %1643 = vector.broadcast %cst_506 : f32 to vector<8x128xf32>
    %1644 = arith.mulf %1643, %1642 : vector<8x128xf32>
    %cst_507 = arith.constant 5.000000e-01 : f32
    %1645 = vector.broadcast %cst_507 : f32 to vector<8x128xf32>
    %1646 = arith.addf %1644, %1645 : vector<8x128xf32>
    %1647 = vector.extract_strided_slice %1630 {offsets = [0, 256], sizes = [8, 128], strides = [1, 1]} : vector<8x512xf32> to vector<8x128xf32>
    %1648 = math.tanh %1647 : vector<8x128xf32>
    %1649 = vector.extract_strided_slice %1630 {offsets = [0, 384], sizes = [8, 128], strides = [1, 1]} : vector<8x512xf32> to vector<8x128xf32>
    %cst_508 = arith.constant 5.000000e-01 : f32
    %1650 = vector.broadcast %cst_508 : f32 to vector<8x128xf32>
    %1651 = arith.mulf %1650, %1649 : vector<8x128xf32>
    %1652 = math.tanh %1651 : vector<8x128xf32>
    %cst_509 = arith.constant 5.000000e-01 : f32
    %1653 = vector.broadcast %cst_509 : f32 to vector<8x128xf32>
    %1654 = arith.mulf %1653, %1652 : vector<8x128xf32>
    %cst_510 = arith.constant 5.000000e-01 : f32
    %1655 = vector.broadcast %cst_510 : f32 to vector<8x128xf32>
    %1656 = arith.addf %1654, %1655 : vector<8x128xf32>
    %1657 = arith.mulf %1646, %1587 : vector<8x128xf32>
    %1658 = arith.mulf %1638, %1648 : vector<8x128xf32>
    %1659 = arith.addf %1657, %1658 : vector<8x128xf32>
    %1660 = math.tanh %1659 : vector<8x128xf32>
    %1661 = arith.mulf %1656, %1660 : vector<8x128xf32>
    %c23_i32 = arith.constant 23 : i32
    %1662 = arith.index_cast %c23_i32 : i32 to index
    %c0_511 = arith.constant 0 : index
    %c0_512 = arith.constant 0 : index
    %1663 = vector.load %arg0[%1662, %c0_511, %c0_512] : memref<28x8x512xf32, #tpu.memory_space<vmem>>, vector<1x8x512xf32>
    %1664 = vector.shape_cast %1663 : vector<1x8x512xf32> to vector<8x512xf32>
    %1665 = arith.truncf %1626 : vector<8x128xf32> to vector<8x128xbf16>
    %cst_513 = arith.constant dense<0.000000e+00> : vector<8x512xf32>
    %1666 = tpu.matmul %1665, %0, %cst_513 {dimension_numbers = #tpu.dot_dimension_numbers<[1], [0], [0], [1], [0, 0, 1, 1], [], []>} : vector<8x128xbf16>, vector<128x512xbf16>, vector<8x512xf32> -> vector<8x512xf32>
    %1667 = arith.addf %1664, %1666 : vector<8x512xf32>
    %1668 = vector.extract_strided_slice %1667 {offsets = [0, 0], sizes = [8, 128], strides = [1, 1]} : vector<8x512xf32> to vector<8x128xf32>
    %cst_514 = arith.constant 5.000000e-01 : f32
    %1669 = vector.broadcast %cst_514 : f32 to vector<8x128xf32>
    %1670 = arith.mulf %1669, %1668 : vector<8x128xf32>
    %1671 = math.tanh %1670 : vector<8x128xf32>
    %cst_515 = arith.constant 5.000000e-01 : f32
    %1672 = vector.broadcast %cst_515 : f32 to vector<8x128xf32>
    %1673 = arith.mulf %1672, %1671 : vector<8x128xf32>
    %cst_516 = arith.constant 5.000000e-01 : f32
    %1674 = vector.broadcast %cst_516 : f32 to vector<8x128xf32>
    %1675 = arith.addf %1673, %1674 : vector<8x128xf32>
    %1676 = vector.extract_strided_slice %1667 {offsets = [0, 128], sizes = [8, 128], strides = [1, 1]} : vector<8x512xf32> to vector<8x128xf32>
    %cst_517 = arith.constant 5.000000e-01 : f32
    %1677 = vector.broadcast %cst_517 : f32 to vector<8x128xf32>
    %1678 = arith.mulf %1677, %1676 : vector<8x128xf32>
    %1679 = math.tanh %1678 : vector<8x128xf32>
    %cst_518 = arith.constant 5.000000e-01 : f32
    %1680 = vector.broadcast %cst_518 : f32 to vector<8x128xf32>
    %1681 = arith.mulf %1680, %1679 : vector<8x128xf32>
    %cst_519 = arith.constant 5.000000e-01 : f32
    %1682 = vector.broadcast %cst_519 : f32 to vector<8x128xf32>
    %1683 = arith.addf %1681, %1682 : vector<8x128xf32>
    %1684 = vector.extract_strided_slice %1667 {offsets = [0, 256], sizes = [8, 128], strides = [1, 1]} : vector<8x512xf32> to vector<8x128xf32>
    %1685 = math.tanh %1684 : vector<8x128xf32>
    %1686 = vector.extract_strided_slice %1667 {offsets = [0, 384], sizes = [8, 128], strides = [1, 1]} : vector<8x512xf32> to vector<8x128xf32>
    %cst_520 = arith.constant 5.000000e-01 : f32
    %1687 = vector.broadcast %cst_520 : f32 to vector<8x128xf32>
    %1688 = arith.mulf %1687, %1686 : vector<8x128xf32>
    %1689 = math.tanh %1688 : vector<8x128xf32>
    %cst_521 = arith.constant 5.000000e-01 : f32
    %1690 = vector.broadcast %cst_521 : f32 to vector<8x128xf32>
    %1691 = arith.mulf %1690, %1689 : vector<8x128xf32>
    %cst_522 = arith.constant 5.000000e-01 : f32
    %1692 = vector.broadcast %cst_522 : f32 to vector<8x128xf32>
    %1693 = arith.addf %1691, %1692 : vector<8x128xf32>
    %1694 = arith.mulf %1683, %1624 : vector<8x128xf32>
    %1695 = arith.mulf %1675, %1685 : vector<8x128xf32>
    %1696 = arith.addf %1694, %1695 : vector<8x128xf32>
    %1697 = math.tanh %1696 : vector<8x128xf32>
    %1698 = arith.mulf %1693, %1697 : vector<8x128xf32>
    %1699 = tpu.concatenate %1698, %1661 in 1 : vector<8x128xf32>, vector<8x128xf32> -> vector<8x256xf32>
    %1700 = arith.truncf %1699 : vector<8x256xf32> to vector<8x256xbf16>
    %cst_523 = arith.constant dense<0.000000e+00> : vector<8x512xf32>
    %1701 = tpu.matmul %1700, %1, %cst_523 {dimension_numbers = #tpu.dot_dimension_numbers<[1], [0], [0], [1], [0, 0, 1, 1], [], []>} : vector<8x256xbf16>, vector<256x512xbf16>, vector<8x512xf32> -> vector<8x512xf32>
    %1702 = arith.addf %1701, %4 : vector<8x512xf32>
    %1703 = vector.extract_strided_slice %1702 {offsets = [0, 0], sizes = [8, 128], strides = [1, 1]} : vector<8x512xf32> to vector<8x128xf32>
    %cst_524 = arith.constant 5.000000e-01 : f32
    %1704 = vector.broadcast %cst_524 : f32 to vector<8x128xf32>
    %1705 = arith.mulf %1704, %1703 : vector<8x128xf32>
    %1706 = math.tanh %1705 : vector<8x128xf32>
    %cst_525 = arith.constant 5.000000e-01 : f32
    %1707 = vector.broadcast %cst_525 : f32 to vector<8x128xf32>
    %1708 = arith.mulf %1707, %1706 : vector<8x128xf32>
    %cst_526 = arith.constant 5.000000e-01 : f32
    %1709 = vector.broadcast %cst_526 : f32 to vector<8x128xf32>
    %1710 = arith.addf %1708, %1709 : vector<8x128xf32>
    %1711 = vector.extract_strided_slice %1702 {offsets = [0, 128], sizes = [8, 128], strides = [1, 1]} : vector<8x512xf32> to vector<8x128xf32>
    %cst_527 = arith.constant 5.000000e-01 : f32
    %1712 = vector.broadcast %cst_527 : f32 to vector<8x128xf32>
    %1713 = arith.mulf %1712, %1711 : vector<8x128xf32>
    %1714 = math.tanh %1713 : vector<8x128xf32>
    %cst_528 = arith.constant 5.000000e-01 : f32
    %1715 = vector.broadcast %cst_528 : f32 to vector<8x128xf32>
    %1716 = arith.mulf %1715, %1714 : vector<8x128xf32>
    %cst_529 = arith.constant 5.000000e-01 : f32
    %1717 = vector.broadcast %cst_529 : f32 to vector<8x128xf32>
    %1718 = arith.addf %1716, %1717 : vector<8x128xf32>
    %1719 = vector.extract_strided_slice %1702 {offsets = [0, 256], sizes = [8, 128], strides = [1, 1]} : vector<8x512xf32> to vector<8x128xf32>
    %1720 = math.tanh %1719 : vector<8x128xf32>
    %1721 = vector.extract_strided_slice %1702 {offsets = [0, 384], sizes = [8, 128], strides = [1, 1]} : vector<8x512xf32> to vector<8x128xf32>
    %cst_530 = arith.constant 5.000000e-01 : f32
    %1722 = vector.broadcast %cst_530 : f32 to vector<8x128xf32>
    %1723 = arith.mulf %1722, %1721 : vector<8x128xf32>
    %1724 = math.tanh %1723 : vector<8x128xf32>
    %cst_531 = arith.constant 5.000000e-01 : f32
    %1725 = vector.broadcast %cst_531 : f32 to vector<8x128xf32>
    %1726 = arith.mulf %1725, %1724 : vector<8x128xf32>
    %cst_532 = arith.constant 5.000000e-01 : f32
    %1727 = vector.broadcast %cst_532 : f32 to vector<8x128xf32>
    %1728 = arith.addf %1726, %1727 : vector<8x128xf32>
    %1729 = arith.mulf %1718, %1659 : vector<8x128xf32>
    %1730 = arith.mulf %1710, %1720 : vector<8x128xf32>
    %1731 = arith.addf %1729, %1730 : vector<8x128xf32>
    %1732 = math.tanh %1731 : vector<8x128xf32>
    %1733 = arith.mulf %1728, %1732 : vector<8x128xf32>
    %c24_i32 = arith.constant 24 : i32
    %1734 = arith.index_cast %c24_i32 : i32 to index
    %c0_533 = arith.constant 0 : index
    %c0_534 = arith.constant 0 : index
    %1735 = vector.load %arg0[%1734, %c0_533, %c0_534] : memref<28x8x512xf32, #tpu.memory_space<vmem>>, vector<1x8x512xf32>
    %1736 = vector.shape_cast %1735 : vector<1x8x512xf32> to vector<8x512xf32>
    %1737 = arith.truncf %1698 : vector<8x128xf32> to vector<8x128xbf16>
    %cst_535 = arith.constant dense<0.000000e+00> : vector<8x512xf32>
    %1738 = tpu.matmul %1737, %0, %cst_535 {dimension_numbers = #tpu.dot_dimension_numbers<[1], [0], [0], [1], [0, 0, 1, 1], [], []>} : vector<8x128xbf16>, vector<128x512xbf16>, vector<8x512xf32> -> vector<8x512xf32>
    %1739 = arith.addf %1736, %1738 : vector<8x512xf32>
    %1740 = vector.extract_strided_slice %1739 {offsets = [0, 0], sizes = [8, 128], strides = [1, 1]} : vector<8x512xf32> to vector<8x128xf32>
    %cst_536 = arith.constant 5.000000e-01 : f32
    %1741 = vector.broadcast %cst_536 : f32 to vector<8x128xf32>
    %1742 = arith.mulf %1741, %1740 : vector<8x128xf32>
    %1743 = math.tanh %1742 : vector<8x128xf32>
    %cst_537 = arith.constant 5.000000e-01 : f32
    %1744 = vector.broadcast %cst_537 : f32 to vector<8x128xf32>
    %1745 = arith.mulf %1744, %1743 : vector<8x128xf32>
    %cst_538 = arith.constant 5.000000e-01 : f32
    %1746 = vector.broadcast %cst_538 : f32 to vector<8x128xf32>
    %1747 = arith.addf %1745, %1746 : vector<8x128xf32>
    %1748 = vector.extract_strided_slice %1739 {offsets = [0, 128], sizes = [8, 128], strides = [1, 1]} : vector<8x512xf32> to vector<8x128xf32>
    %cst_539 = arith.constant 5.000000e-01 : f32
    %1749 = vector.broadcast %cst_539 : f32 to vector<8x128xf32>
    %1750 = arith.mulf %1749, %1748 : vector<8x128xf32>
    %1751 = math.tanh %1750 : vector<8x128xf32>
    %cst_540 = arith.constant 5.000000e-01 : f32
    %1752 = vector.broadcast %cst_540 : f32 to vector<8x128xf32>
    %1753 = arith.mulf %1752, %1751 : vector<8x128xf32>
    %cst_541 = arith.constant 5.000000e-01 : f32
    %1754 = vector.broadcast %cst_541 : f32 to vector<8x128xf32>
    %1755 = arith.addf %1753, %1754 : vector<8x128xf32>
    %1756 = vector.extract_strided_slice %1739 {offsets = [0, 256], sizes = [8, 128], strides = [1, 1]} : vector<8x512xf32> to vector<8x128xf32>
    %1757 = math.tanh %1756 : vector<8x128xf32>
    %1758 = vector.extract_strided_slice %1739 {offsets = [0, 384], sizes = [8, 128], strides = [1, 1]} : vector<8x512xf32> to vector<8x128xf32>
    %cst_542 = arith.constant 5.000000e-01 : f32
    %1759 = vector.broadcast %cst_542 : f32 to vector<8x128xf32>
    %1760 = arith.mulf %1759, %1758 : vector<8x128xf32>
    %1761 = math.tanh %1760 : vector<8x128xf32>
    %cst_543 = arith.constant 5.000000e-01 : f32
    %1762 = vector.broadcast %cst_543 : f32 to vector<8x128xf32>
    %1763 = arith.mulf %1762, %1761 : vector<8x128xf32>
    %cst_544 = arith.constant 5.000000e-01 : f32
    %1764 = vector.broadcast %cst_544 : f32 to vector<8x128xf32>
    %1765 = arith.addf %1763, %1764 : vector<8x128xf32>
    %1766 = arith.mulf %1755, %1696 : vector<8x128xf32>
    %1767 = arith.mulf %1747, %1757 : vector<8x128xf32>
    %1768 = arith.addf %1766, %1767 : vector<8x128xf32>
    %1769 = math.tanh %1768 : vector<8x128xf32>
    %1770 = arith.mulf %1765, %1769 : vector<8x128xf32>
    %1771 = tpu.concatenate %1770, %1733 in 1 : vector<8x128xf32>, vector<8x128xf32> -> vector<8x256xf32>
    %1772 = arith.truncf %1771 : vector<8x256xf32> to vector<8x256xbf16>
    %cst_545 = arith.constant dense<0.000000e+00> : vector<8x512xf32>
    %1773 = tpu.matmul %1772, %1, %cst_545 {dimension_numbers = #tpu.dot_dimension_numbers<[1], [0], [0], [1], [0, 0, 1, 1], [], []>} : vector<8x256xbf16>, vector<256x512xbf16>, vector<8x512xf32> -> vector<8x512xf32>
    %1774 = arith.addf %1773, %4 : vector<8x512xf32>
    %1775 = vector.extract_strided_slice %1774 {offsets = [0, 0], sizes = [8, 128], strides = [1, 1]} : vector<8x512xf32> to vector<8x128xf32>
    %cst_546 = arith.constant 5.000000e-01 : f32
    %1776 = vector.broadcast %cst_546 : f32 to vector<8x128xf32>
    %1777 = arith.mulf %1776, %1775 : vector<8x128xf32>
    %1778 = math.tanh %1777 : vector<8x128xf32>
    %cst_547 = arith.constant 5.000000e-01 : f32
    %1779 = vector.broadcast %cst_547 : f32 to vector<8x128xf32>
    %1780 = arith.mulf %1779, %1778 : vector<8x128xf32>
    %cst_548 = arith.constant 5.000000e-01 : f32
    %1781 = vector.broadcast %cst_548 : f32 to vector<8x128xf32>
    %1782 = arith.addf %1780, %1781 : vector<8x128xf32>
    %1783 = vector.extract_strided_slice %1774 {offsets = [0, 128], sizes = [8, 128], strides = [1, 1]} : vector<8x512xf32> to vector<8x128xf32>
    %cst_549 = arith.constant 5.000000e-01 : f32
    %1784 = vector.broadcast %cst_549 : f32 to vector<8x128xf32>
    %1785 = arith.mulf %1784, %1783 : vector<8x128xf32>
    %1786 = math.tanh %1785 : vector<8x128xf32>
    %cst_550 = arith.constant 5.000000e-01 : f32
    %1787 = vector.broadcast %cst_550 : f32 to vector<8x128xf32>
    %1788 = arith.mulf %1787, %1786 : vector<8x128xf32>
    %cst_551 = arith.constant 5.000000e-01 : f32
    %1789 = vector.broadcast %cst_551 : f32 to vector<8x128xf32>
    %1790 = arith.addf %1788, %1789 : vector<8x128xf32>
    %1791 = vector.extract_strided_slice %1774 {offsets = [0, 256], sizes = [8, 128], strides = [1, 1]} : vector<8x512xf32> to vector<8x128xf32>
    %1792 = math.tanh %1791 : vector<8x128xf32>
    %1793 = vector.extract_strided_slice %1774 {offsets = [0, 384], sizes = [8, 128], strides = [1, 1]} : vector<8x512xf32> to vector<8x128xf32>
    %cst_552 = arith.constant 5.000000e-01 : f32
    %1794 = vector.broadcast %cst_552 : f32 to vector<8x128xf32>
    %1795 = arith.mulf %1794, %1793 : vector<8x128xf32>
    %1796 = math.tanh %1795 : vector<8x128xf32>
    %cst_553 = arith.constant 5.000000e-01 : f32
    %1797 = vector.broadcast %cst_553 : f32 to vector<8x128xf32>
    %1798 = arith.mulf %1797, %1796 : vector<8x128xf32>
    %cst_554 = arith.constant 5.000000e-01 : f32
    %1799 = vector.broadcast %cst_554 : f32 to vector<8x128xf32>
    %1800 = arith.addf %1798, %1799 : vector<8x128xf32>
    %1801 = arith.mulf %1790, %1731 : vector<8x128xf32>
    %1802 = arith.mulf %1782, %1792 : vector<8x128xf32>
    %1803 = arith.addf %1801, %1802 : vector<8x128xf32>
    %1804 = math.tanh %1803 : vector<8x128xf32>
    %1805 = arith.mulf %1800, %1804 : vector<8x128xf32>
    %c25_i32 = arith.constant 25 : i32
    %1806 = arith.index_cast %c25_i32 : i32 to index
    %c0_555 = arith.constant 0 : index
    %c0_556 = arith.constant 0 : index
    %1807 = vector.load %arg0[%1806, %c0_555, %c0_556] : memref<28x8x512xf32, #tpu.memory_space<vmem>>, vector<1x8x512xf32>
    %1808 = vector.shape_cast %1807 : vector<1x8x512xf32> to vector<8x512xf32>
    %1809 = arith.truncf %1770 : vector<8x128xf32> to vector<8x128xbf16>
    %cst_557 = arith.constant dense<0.000000e+00> : vector<8x512xf32>
    %1810 = tpu.matmul %1809, %0, %cst_557 {dimension_numbers = #tpu.dot_dimension_numbers<[1], [0], [0], [1], [0, 0, 1, 1], [], []>} : vector<8x128xbf16>, vector<128x512xbf16>, vector<8x512xf32> -> vector<8x512xf32>
    %1811 = arith.addf %1808, %1810 : vector<8x512xf32>
    %1812 = vector.extract_strided_slice %1811 {offsets = [0, 0], sizes = [8, 128], strides = [1, 1]} : vector<8x512xf32> to vector<8x128xf32>
    %cst_558 = arith.constant 5.000000e-01 : f32
    %1813 = vector.broadcast %cst_558 : f32 to vector<8x128xf32>
    %1814 = arith.mulf %1813, %1812 : vector<8x128xf32>
    %1815 = math.tanh %1814 : vector<8x128xf32>
    %cst_559 = arith.constant 5.000000e-01 : f32
    %1816 = vector.broadcast %cst_559 : f32 to vector<8x128xf32>
    %1817 = arith.mulf %1816, %1815 : vector<8x128xf32>
    %cst_560 = arith.constant 5.000000e-01 : f32
    %1818 = vector.broadcast %cst_560 : f32 to vector<8x128xf32>
    %1819 = arith.addf %1817, %1818 : vector<8x128xf32>
    %1820 = vector.extract_strided_slice %1811 {offsets = [0, 128], sizes = [8, 128], strides = [1, 1]} : vector<8x512xf32> to vector<8x128xf32>
    %cst_561 = arith.constant 5.000000e-01 : f32
    %1821 = vector.broadcast %cst_561 : f32 to vector<8x128xf32>
    %1822 = arith.mulf %1821, %1820 : vector<8x128xf32>
    %1823 = math.tanh %1822 : vector<8x128xf32>
    %cst_562 = arith.constant 5.000000e-01 : f32
    %1824 = vector.broadcast %cst_562 : f32 to vector<8x128xf32>
    %1825 = arith.mulf %1824, %1823 : vector<8x128xf32>
    %cst_563 = arith.constant 5.000000e-01 : f32
    %1826 = vector.broadcast %cst_563 : f32 to vector<8x128xf32>
    %1827 = arith.addf %1825, %1826 : vector<8x128xf32>
    %1828 = vector.extract_strided_slice %1811 {offsets = [0, 256], sizes = [8, 128], strides = [1, 1]} : vector<8x512xf32> to vector<8x128xf32>
    %1829 = math.tanh %1828 : vector<8x128xf32>
    %1830 = vector.extract_strided_slice %1811 {offsets = [0, 384], sizes = [8, 128], strides = [1, 1]} : vector<8x512xf32> to vector<8x128xf32>
    %cst_564 = arith.constant 5.000000e-01 : f32
    %1831 = vector.broadcast %cst_564 : f32 to vector<8x128xf32>
    %1832 = arith.mulf %1831, %1830 : vector<8x128xf32>
    %1833 = math.tanh %1832 : vector<8x128xf32>
    %cst_565 = arith.constant 5.000000e-01 : f32
    %1834 = vector.broadcast %cst_565 : f32 to vector<8x128xf32>
    %1835 = arith.mulf %1834, %1833 : vector<8x128xf32>
    %cst_566 = arith.constant 5.000000e-01 : f32
    %1836 = vector.broadcast %cst_566 : f32 to vector<8x128xf32>
    %1837 = arith.addf %1835, %1836 : vector<8x128xf32>
    %1838 = arith.mulf %1827, %1768 : vector<8x128xf32>
    %1839 = arith.mulf %1819, %1829 : vector<8x128xf32>
    %1840 = arith.addf %1838, %1839 : vector<8x128xf32>
    %1841 = math.tanh %1840 : vector<8x128xf32>
    %1842 = arith.mulf %1837, %1841 : vector<8x128xf32>
    %1843 = tpu.concatenate %1842, %1805 in 1 : vector<8x128xf32>, vector<8x128xf32> -> vector<8x256xf32>
    %1844 = arith.truncf %1843 : vector<8x256xf32> to vector<8x256xbf16>
    %cst_567 = arith.constant dense<0.000000e+00> : vector<8x512xf32>
    %1845 = tpu.matmul %1844, %1, %cst_567 {dimension_numbers = #tpu.dot_dimension_numbers<[1], [0], [0], [1], [0, 0, 1, 1], [], []>} : vector<8x256xbf16>, vector<256x512xbf16>, vector<8x512xf32> -> vector<8x512xf32>
    %1846 = arith.addf %1845, %4 : vector<8x512xf32>
    %1847 = vector.extract_strided_slice %1846 {offsets = [0, 0], sizes = [8, 128], strides = [1, 1]} : vector<8x512xf32> to vector<8x128xf32>
    %cst_568 = arith.constant 5.000000e-01 : f32
    %1848 = vector.broadcast %cst_568 : f32 to vector<8x128xf32>
    %1849 = arith.mulf %1848, %1847 : vector<8x128xf32>
    %1850 = math.tanh %1849 : vector<8x128xf32>
    %cst_569 = arith.constant 5.000000e-01 : f32
    %1851 = vector.broadcast %cst_569 : f32 to vector<8x128xf32>
    %1852 = arith.mulf %1851, %1850 : vector<8x128xf32>
    %cst_570 = arith.constant 5.000000e-01 : f32
    %1853 = vector.broadcast %cst_570 : f32 to vector<8x128xf32>
    %1854 = arith.addf %1852, %1853 : vector<8x128xf32>
    %1855 = vector.extract_strided_slice %1846 {offsets = [0, 128], sizes = [8, 128], strides = [1, 1]} : vector<8x512xf32> to vector<8x128xf32>
    %cst_571 = arith.constant 5.000000e-01 : f32
    %1856 = vector.broadcast %cst_571 : f32 to vector<8x128xf32>
    %1857 = arith.mulf %1856, %1855 : vector<8x128xf32>
    %1858 = math.tanh %1857 : vector<8x128xf32>
    %cst_572 = arith.constant 5.000000e-01 : f32
    %1859 = vector.broadcast %cst_572 : f32 to vector<8x128xf32>
    %1860 = arith.mulf %1859, %1858 : vector<8x128xf32>
    %cst_573 = arith.constant 5.000000e-01 : f32
    %1861 = vector.broadcast %cst_573 : f32 to vector<8x128xf32>
    %1862 = arith.addf %1860, %1861 : vector<8x128xf32>
    %1863 = vector.extract_strided_slice %1846 {offsets = [0, 256], sizes = [8, 128], strides = [1, 1]} : vector<8x512xf32> to vector<8x128xf32>
    %1864 = math.tanh %1863 : vector<8x128xf32>
    %1865 = vector.extract_strided_slice %1846 {offsets = [0, 384], sizes = [8, 128], strides = [1, 1]} : vector<8x512xf32> to vector<8x128xf32>
    %cst_574 = arith.constant 5.000000e-01 : f32
    %1866 = vector.broadcast %cst_574 : f32 to vector<8x128xf32>
    %1867 = arith.mulf %1866, %1865 : vector<8x128xf32>
    %1868 = math.tanh %1867 : vector<8x128xf32>
    %cst_575 = arith.constant 5.000000e-01 : f32
    %1869 = vector.broadcast %cst_575 : f32 to vector<8x128xf32>
    %1870 = arith.mulf %1869, %1868 : vector<8x128xf32>
    %cst_576 = arith.constant 5.000000e-01 : f32
    %1871 = vector.broadcast %cst_576 : f32 to vector<8x128xf32>
    %1872 = arith.addf %1870, %1871 : vector<8x128xf32>
    %1873 = arith.mulf %1862, %1803 : vector<8x128xf32>
    %1874 = arith.mulf %1854, %1864 : vector<8x128xf32>
    %1875 = arith.addf %1873, %1874 : vector<8x128xf32>
    %1876 = math.tanh %1875 : vector<8x128xf32>
    %1877 = arith.mulf %1872, %1876 : vector<8x128xf32>
    %c26_i32 = arith.constant 26 : i32
    %1878 = arith.index_cast %c26_i32 : i32 to index
    %c0_577 = arith.constant 0 : index
    %c0_578 = arith.constant 0 : index
    %1879 = vector.load %arg0[%1878, %c0_577, %c0_578] : memref<28x8x512xf32, #tpu.memory_space<vmem>>, vector<1x8x512xf32>
    %1880 = vector.shape_cast %1879 : vector<1x8x512xf32> to vector<8x512xf32>
    %1881 = arith.truncf %1842 : vector<8x128xf32> to vector<8x128xbf16>
    %cst_579 = arith.constant dense<0.000000e+00> : vector<8x512xf32>
    %1882 = tpu.matmul %1881, %0, %cst_579 {dimension_numbers = #tpu.dot_dimension_numbers<[1], [0], [0], [1], [0, 0, 1, 1], [], []>} : vector<8x128xbf16>, vector<128x512xbf16>, vector<8x512xf32> -> vector<8x512xf32>
    %1883 = arith.addf %1880, %1882 : vector<8x512xf32>
    %1884 = vector.extract_strided_slice %1883 {offsets = [0, 0], sizes = [8, 128], strides = [1, 1]} : vector<8x512xf32> to vector<8x128xf32>
    %cst_580 = arith.constant 5.000000e-01 : f32
    %1885 = vector.broadcast %cst_580 : f32 to vector<8x128xf32>
    %1886 = arith.mulf %1885, %1884 : vector<8x128xf32>
    %1887 = math.tanh %1886 : vector<8x128xf32>
    %cst_581 = arith.constant 5.000000e-01 : f32
    %1888 = vector.broadcast %cst_581 : f32 to vector<8x128xf32>
    %1889 = arith.mulf %1888, %1887 : vector<8x128xf32>
    %cst_582 = arith.constant 5.000000e-01 : f32
    %1890 = vector.broadcast %cst_582 : f32 to vector<8x128xf32>
    %1891 = arith.addf %1889, %1890 : vector<8x128xf32>
    %1892 = vector.extract_strided_slice %1883 {offsets = [0, 128], sizes = [8, 128], strides = [1, 1]} : vector<8x512xf32> to vector<8x128xf32>
    %cst_583 = arith.constant 5.000000e-01 : f32
    %1893 = vector.broadcast %cst_583 : f32 to vector<8x128xf32>
    %1894 = arith.mulf %1893, %1892 : vector<8x128xf32>
    %1895 = math.tanh %1894 : vector<8x128xf32>
    %cst_584 = arith.constant 5.000000e-01 : f32
    %1896 = vector.broadcast %cst_584 : f32 to vector<8x128xf32>
    %1897 = arith.mulf %1896, %1895 : vector<8x128xf32>
    %cst_585 = arith.constant 5.000000e-01 : f32
    %1898 = vector.broadcast %cst_585 : f32 to vector<8x128xf32>
    %1899 = arith.addf %1897, %1898 : vector<8x128xf32>
    %1900 = vector.extract_strided_slice %1883 {offsets = [0, 256], sizes = [8, 128], strides = [1, 1]} : vector<8x512xf32> to vector<8x128xf32>
    %1901 = math.tanh %1900 : vector<8x128xf32>
    %1902 = vector.extract_strided_slice %1883 {offsets = [0, 384], sizes = [8, 128], strides = [1, 1]} : vector<8x512xf32> to vector<8x128xf32>
    %cst_586 = arith.constant 5.000000e-01 : f32
    %1903 = vector.broadcast %cst_586 : f32 to vector<8x128xf32>
    %1904 = arith.mulf %1903, %1902 : vector<8x128xf32>
    %1905 = math.tanh %1904 : vector<8x128xf32>
    %cst_587 = arith.constant 5.000000e-01 : f32
    %1906 = vector.broadcast %cst_587 : f32 to vector<8x128xf32>
    %1907 = arith.mulf %1906, %1905 : vector<8x128xf32>
    %cst_588 = arith.constant 5.000000e-01 : f32
    %1908 = vector.broadcast %cst_588 : f32 to vector<8x128xf32>
    %1909 = arith.addf %1907, %1908 : vector<8x128xf32>
    %1910 = arith.mulf %1899, %1840 : vector<8x128xf32>
    %1911 = arith.mulf %1891, %1901 : vector<8x128xf32>
    %1912 = arith.addf %1910, %1911 : vector<8x128xf32>
    %1913 = math.tanh %1912 : vector<8x128xf32>
    %1914 = arith.mulf %1909, %1913 : vector<8x128xf32>
    %1915 = tpu.concatenate %1914, %1877 in 1 : vector<8x128xf32>, vector<8x128xf32> -> vector<8x256xf32>
    %1916 = arith.truncf %1915 : vector<8x256xf32> to vector<8x256xbf16>
    %cst_589 = arith.constant dense<0.000000e+00> : vector<8x512xf32>
    %1917 = tpu.matmul %1916, %1, %cst_589 {dimension_numbers = #tpu.dot_dimension_numbers<[1], [0], [0], [1], [0, 0, 1, 1], [], []>} : vector<8x256xbf16>, vector<256x512xbf16>, vector<8x512xf32> -> vector<8x512xf32>
    %1918 = arith.addf %1917, %4 : vector<8x512xf32>
    %1919 = vector.extract_strided_slice %1918 {offsets = [0, 0], sizes = [8, 128], strides = [1, 1]} : vector<8x512xf32> to vector<8x128xf32>
    %cst_590 = arith.constant 5.000000e-01 : f32
    %1920 = vector.broadcast %cst_590 : f32 to vector<8x128xf32>
    %1921 = arith.mulf %1920, %1919 : vector<8x128xf32>
    %1922 = math.tanh %1921 : vector<8x128xf32>
    %cst_591 = arith.constant 5.000000e-01 : f32
    %1923 = vector.broadcast %cst_591 : f32 to vector<8x128xf32>
    %1924 = arith.mulf %1923, %1922 : vector<8x128xf32>
    %cst_592 = arith.constant 5.000000e-01 : f32
    %1925 = vector.broadcast %cst_592 : f32 to vector<8x128xf32>
    %1926 = arith.addf %1924, %1925 : vector<8x128xf32>
    %1927 = vector.extract_strided_slice %1918 {offsets = [0, 128], sizes = [8, 128], strides = [1, 1]} : vector<8x512xf32> to vector<8x128xf32>
    %cst_593 = arith.constant 5.000000e-01 : f32
    %1928 = vector.broadcast %cst_593 : f32 to vector<8x128xf32>
    %1929 = arith.mulf %1928, %1927 : vector<8x128xf32>
    %1930 = math.tanh %1929 : vector<8x128xf32>
    %cst_594 = arith.constant 5.000000e-01 : f32
    %1931 = vector.broadcast %cst_594 : f32 to vector<8x128xf32>
    %1932 = arith.mulf %1931, %1930 : vector<8x128xf32>
    %cst_595 = arith.constant 5.000000e-01 : f32
    %1933 = vector.broadcast %cst_595 : f32 to vector<8x128xf32>
    %1934 = arith.addf %1932, %1933 : vector<8x128xf32>
    %1935 = vector.extract_strided_slice %1918 {offsets = [0, 256], sizes = [8, 128], strides = [1, 1]} : vector<8x512xf32> to vector<8x128xf32>
    %1936 = math.tanh %1935 : vector<8x128xf32>
    %1937 = vector.extract_strided_slice %1918 {offsets = [0, 384], sizes = [8, 128], strides = [1, 1]} : vector<8x512xf32> to vector<8x128xf32>
    %cst_596 = arith.constant 5.000000e-01 : f32
    %1938 = vector.broadcast %cst_596 : f32 to vector<8x128xf32>
    %1939 = arith.mulf %1938, %1937 : vector<8x128xf32>
    %1940 = math.tanh %1939 : vector<8x128xf32>
    %cst_597 = arith.constant 5.000000e-01 : f32
    %1941 = vector.broadcast %cst_597 : f32 to vector<8x128xf32>
    %1942 = arith.mulf %1941, %1940 : vector<8x128xf32>
    %cst_598 = arith.constant 5.000000e-01 : f32
    %1943 = vector.broadcast %cst_598 : f32 to vector<8x128xf32>
    %1944 = arith.addf %1942, %1943 : vector<8x128xf32>
    %1945 = arith.mulf %1934, %1875 : vector<8x128xf32>
    %1946 = arith.mulf %1926, %1936 : vector<8x128xf32>
    %1947 = arith.addf %1945, %1946 : vector<8x128xf32>
    %1948 = math.tanh %1947 : vector<8x128xf32>
    %1949 = arith.mulf %1944, %1948 : vector<8x128xf32>
    %c27_i32 = arith.constant 27 : i32
    %1950 = arith.index_cast %c27_i32 : i32 to index
    %c0_599 = arith.constant 0 : index
    %c0_600 = arith.constant 0 : index
    %1951 = vector.load %arg0[%1950, %c0_599, %c0_600] : memref<28x8x512xf32, #tpu.memory_space<vmem>>, vector<1x8x512xf32>
    %1952 = vector.shape_cast %1951 : vector<1x8x512xf32> to vector<8x512xf32>
    %1953 = arith.truncf %1914 : vector<8x128xf32> to vector<8x128xbf16>
    %cst_601 = arith.constant dense<0.000000e+00> : vector<8x512xf32>
    %1954 = tpu.matmul %1953, %0, %cst_601 {dimension_numbers = #tpu.dot_dimension_numbers<[1], [0], [0], [1], [0, 0, 1, 1], [], []>} : vector<8x128xbf16>, vector<128x512xbf16>, vector<8x512xf32> -> vector<8x512xf32>
    %1955 = arith.addf %1952, %1954 : vector<8x512xf32>
    %1956 = vector.extract_strided_slice %1955 {offsets = [0, 0], sizes = [8, 128], strides = [1, 1]} : vector<8x512xf32> to vector<8x128xf32>
    %cst_602 = arith.constant 5.000000e-01 : f32
    %1957 = vector.broadcast %cst_602 : f32 to vector<8x128xf32>
    %1958 = arith.mulf %1957, %1956 : vector<8x128xf32>
    %1959 = math.tanh %1958 : vector<8x128xf32>
    %cst_603 = arith.constant 5.000000e-01 : f32
    %1960 = vector.broadcast %cst_603 : f32 to vector<8x128xf32>
    %1961 = arith.mulf %1960, %1959 : vector<8x128xf32>
    %cst_604 = arith.constant 5.000000e-01 : f32
    %1962 = vector.broadcast %cst_604 : f32 to vector<8x128xf32>
    %1963 = arith.addf %1961, %1962 : vector<8x128xf32>
    %1964 = vector.extract_strided_slice %1955 {offsets = [0, 128], sizes = [8, 128], strides = [1, 1]} : vector<8x512xf32> to vector<8x128xf32>
    %cst_605 = arith.constant 5.000000e-01 : f32
    %1965 = vector.broadcast %cst_605 : f32 to vector<8x128xf32>
    %1966 = arith.mulf %1965, %1964 : vector<8x128xf32>
    %1967 = math.tanh %1966 : vector<8x128xf32>
    %cst_606 = arith.constant 5.000000e-01 : f32
    %1968 = vector.broadcast %cst_606 : f32 to vector<8x128xf32>
    %1969 = arith.mulf %1968, %1967 : vector<8x128xf32>
    %cst_607 = arith.constant 5.000000e-01 : f32
    %1970 = vector.broadcast %cst_607 : f32 to vector<8x128xf32>
    %1971 = arith.addf %1969, %1970 : vector<8x128xf32>
    %1972 = vector.extract_strided_slice %1955 {offsets = [0, 256], sizes = [8, 128], strides = [1, 1]} : vector<8x512xf32> to vector<8x128xf32>
    %1973 = math.tanh %1972 : vector<8x128xf32>
    %1974 = vector.extract_strided_slice %1955 {offsets = [0, 384], sizes = [8, 128], strides = [1, 1]} : vector<8x512xf32> to vector<8x128xf32>
    %cst_608 = arith.constant 5.000000e-01 : f32
    %1975 = vector.broadcast %cst_608 : f32 to vector<8x128xf32>
    %1976 = arith.mulf %1975, %1974 : vector<8x128xf32>
    %1977 = math.tanh %1976 : vector<8x128xf32>
    %cst_609 = arith.constant 5.000000e-01 : f32
    %1978 = vector.broadcast %cst_609 : f32 to vector<8x128xf32>
    %1979 = arith.mulf %1978, %1977 : vector<8x128xf32>
    %cst_610 = arith.constant 5.000000e-01 : f32
    %1980 = vector.broadcast %cst_610 : f32 to vector<8x128xf32>
    %1981 = arith.addf %1979, %1980 : vector<8x128xf32>
    %1982 = arith.mulf %1971, %1912 : vector<8x128xf32>
    %1983 = arith.mulf %1963, %1973 : vector<8x128xf32>
    %1984 = arith.addf %1982, %1983 : vector<8x128xf32>
    %1985 = math.tanh %1984 : vector<8x128xf32>
    %1986 = arith.mulf %1981, %1985 : vector<8x128xf32>
    %1987 = tpu.concatenate %1986, %1949 in 1 : vector<8x128xf32>, vector<8x128xf32> -> vector<8x256xf32>
    %1988 = arith.truncf %1987 : vector<8x256xf32> to vector<8x256xbf16>
    %cst_611 = arith.constant dense<0.000000e+00> : vector<8x512xf32>
    %1989 = tpu.matmul %1988, %1, %cst_611 {dimension_numbers = #tpu.dot_dimension_numbers<[1], [0], [0], [1], [0, 0, 1, 1], [], []>} : vector<8x256xbf16>, vector<256x512xbf16>, vector<8x512xf32> -> vector<8x512xf32>
    %1990 = arith.addf %1989, %4 : vector<8x512xf32>
    %1991 = vector.extract_strided_slice %1990 {offsets = [0, 0], sizes = [8, 128], strides = [1, 1]} : vector<8x512xf32> to vector<8x128xf32>
    %cst_612 = arith.constant 5.000000e-01 : f32
    %1992 = vector.broadcast %cst_612 : f32 to vector<8x128xf32>
    %1993 = arith.mulf %1992, %1991 : vector<8x128xf32>
    %1994 = math.tanh %1993 : vector<8x128xf32>
    %cst_613 = arith.constant 5.000000e-01 : f32
    %1995 = vector.broadcast %cst_613 : f32 to vector<8x128xf32>
    %1996 = arith.mulf %1995, %1994 : vector<8x128xf32>
    %cst_614 = arith.constant 5.000000e-01 : f32
    %1997 = vector.broadcast %cst_614 : f32 to vector<8x128xf32>
    %1998 = arith.addf %1996, %1997 : vector<8x128xf32>
    %1999 = vector.extract_strided_slice %1990 {offsets = [0, 128], sizes = [8, 128], strides = [1, 1]} : vector<8x512xf32> to vector<8x128xf32>
    %cst_615 = arith.constant 5.000000e-01 : f32
    %2000 = vector.broadcast %cst_615 : f32 to vector<8x128xf32>
    %2001 = arith.mulf %2000, %1999 : vector<8x128xf32>
    %2002 = math.tanh %2001 : vector<8x128xf32>
    %cst_616 = arith.constant 5.000000e-01 : f32
    %2003 = vector.broadcast %cst_616 : f32 to vector<8x128xf32>
    %2004 = arith.mulf %2003, %2002 : vector<8x128xf32>
    %cst_617 = arith.constant 5.000000e-01 : f32
    %2005 = vector.broadcast %cst_617 : f32 to vector<8x128xf32>
    %2006 = arith.addf %2004, %2005 : vector<8x128xf32>
    %2007 = vector.extract_strided_slice %1990 {offsets = [0, 256], sizes = [8, 128], strides = [1, 1]} : vector<8x512xf32> to vector<8x128xf32>
    %2008 = math.tanh %2007 : vector<8x128xf32>
    %2009 = vector.extract_strided_slice %1990 {offsets = [0, 384], sizes = [8, 128], strides = [1, 1]} : vector<8x512xf32> to vector<8x128xf32>
    %cst_618 = arith.constant 5.000000e-01 : f32
    %2010 = vector.broadcast %cst_618 : f32 to vector<8x128xf32>
    %2011 = arith.mulf %2010, %2009 : vector<8x128xf32>
    %2012 = math.tanh %2011 : vector<8x128xf32>
    %cst_619 = arith.constant 5.000000e-01 : f32
    %2013 = vector.broadcast %cst_619 : f32 to vector<8x128xf32>
    %2014 = arith.mulf %2013, %2012 : vector<8x128xf32>
    %cst_620 = arith.constant 5.000000e-01 : f32
    %2015 = vector.broadcast %cst_620 : f32 to vector<8x128xf32>
    %2016 = arith.addf %2014, %2015 : vector<8x128xf32>
    %2017 = arith.mulf %2006, %1947 : vector<8x128xf32>
    %2018 = arith.mulf %1998, %2008 : vector<8x128xf32>
    %2019 = arith.addf %2017, %2018 : vector<8x128xf32>
    %2020 = math.tanh %2019 : vector<8x128xf32>
    %2021 = arith.mulf %2016, %2020 : vector<8x128xf32>
    %c28_i32 = arith.constant 28 : i32
    %2022 = arith.truncf %2021 : vector<8x128xf32> to vector<8x128xbf16>
    %c0_621 = arith.constant 0 : index
    %c0_622 = arith.constant 0 : index
    %2023 = vector.load %arg4[%c0_621, %c0_622] : memref<128x128xbf16, #tpu.memory_space<vmem>>, vector<128x128xbf16>
    %cst_623 = arith.constant dense<0.000000e+00> : vector<8x128xf32>
    %2024 = tpu.matmul %2022, %2023, %cst_623 {dimension_numbers = #tpu.dot_dimension_numbers<[1], [0], [0], [1], [0, 0, 1, 1], [], []>} : vector<8x128xbf16>, vector<128x128xbf16>, vector<8x128xf32> -> vector<8x128xf32>
    %c0_624 = arith.constant 0 : index
    %c0_625 = arith.constant 0 : index
    %2025 = vector.load %arg5[%c0_624, %c0_625] : memref<1x128xf32, #tpu.memory_space<vmem>>, vector<1x128xf32>
    %2026 = vector.broadcast %2025 : vector<1x128xf32> to vector<8x128xf32>
    %2027 = arith.addf %2024, %2026 : vector<8x128xf32>
    %c0_626 = arith.constant 0 : index
    %c0_627 = arith.constant 0 : index
    %2028 = vector.load %arg6[%c0_626, %c0_627] : memref<8x128xf32, #tpu.memory_space<vmem>>, vector<8x128xf32>
    tpu.vector_store %arg6[%c0_626, %c0_627], %2027 {strides = array<i32>} : memref<8x128xf32, #tpu.memory_space<vmem>>, vector<8x128xf32>,
    return
  }
}

</mosaic_0001>

<llo_original>
// kernel: tpu_custom_call.1
$region0: #{tpu_custom_call.1}
  #allocation0 [shape = 'u32[]', space=smem, size = 0x4, offset = 0x4, fixed_abs, tag = 'smem constant byte address 0x4 - core index']
  #allocation1 [shape = 'u32[144,128]{1,0:T(1,128)}', space=vmem, size = 0x12000, scoped, tag = 'internal scratch']
  %s0 = inlined_call_operand.hbm [shape: f32[28,8,512], index: 0, kind: input, shape index: {}]
  %s1 = inlined_call_operand.hbm [shape: bf16[128,512], index: 1, kind: input, shape index: {}]
  %s2 = inlined_call_operand.hbm [shape: bf16[256,512], index: 2, kind: input, shape index: {}]
  %s3 = inlined_call_operand.vmem [shape: f32[1,512], index: 3, kind: input, shape index: {}]
  %s4 = inlined_call_operand.hbm [shape: bf16[128,128], index: 4, kind: input, shape index: {}]
  %s5 = inlined_call_operand.vmem [shape: f32[1,128], index: 5, kind: input, shape index: {}]
  %s6 = inlined_call_operand.hbm [shape: f32[8,128], index: 6, kind: output, shape index: {}]
  %s7 = sld [smem:[#allocation0]]
  $region50: #{tpu_custom_call.1} parent=0
    _
  %s9 = ssub.s32 1, %s7
  %s10 = scalar_select 0, %s9, %s7
  $region1: #{tpu_custom_call.1} parent=0
    #allocation2 [shape = 'u8[458752]{0}', space=vmem, size = 0x70000, scoped, tag = 'input window, operand 0, single buffered']
    #allocation3 [shape = 's32[1]{0}', space=sflag, size = 0x4, scoped, tag = 'scoped memory for tpu_custom_call.1']
    #allocation4 [shape = 's32[1]{0}', space=sflag, size = 0x4, scoped, tag = 'scoped memory for tpu_custom_call.1']
    #allocation5 [shape = 'u8[131072]{0}', space=vmem, size = 0x20000, scoped, tag = 'input window, operand 1, single buffered']
    #allocation6 [shape = 's32[1]{0}', space=sflag, size = 0x4, scoped, tag = 'scoped memory for tpu_custom_call.1']
    #allocation7 [shape = 'u8[262144]{0}', space=vmem, size = 0x40000, scoped, tag = 'input window, operand 2, single buffered']
    #allocation8 [shape = 'u8[32768]{0}', space=vmem, size = 0x8000, scoped, tag = 'input window, operand 4, single buffered']
    #allocation9 [shape = 's32[1]{0}', space=sflag, size = 0x4, scoped, tag = 'scoped memory for tpu_custom_call.1']
    #allocation10 [shape = 'u8[4096]{0}', space=vmem, size = 0x1000, scoped, tag = 'output window, operand 0, single buffered']
    %11 = vsyncpa [#allocation3], 0
    %12 = vsyncpa [#allocation6], 0
    %13 = vsyncpa [#allocation9], 0
    %14 = vsyncpa [#allocation4], 0
    // Predicated region
    $region2: #{tpu_custom_call.1} parent=1 // pred_check
      _
    $region3: #{tpu_custom_call.1} parent=1 // pred_check_branch
      %16 = sbr.rel (0) target = $region5
    $region4: #{tpu_custom_call.1} parent=1 // pred_region
      %s18 = ssub.s32 14336, 14336
      %19 = vsyncadd [#allocation3], %s18
      %s20 = sshll.u32 [#allocation2], 4
      %s21 = int_to_ptr.vmem [resolvable:$true] %s20
      %26 = dma.hbm_to_vmem [thread:$0]  %s0, 14336, %s21, [#allocation3], 512, 512, 32
    $region5: #{tpu_custom_call.1} parent=1 // pred_fallthru
      _
    // Predicated region
    $region6: #{tpu_custom_call.1} parent=1 // pred_check
      _
    $region7: #{tpu_custom_call.1} parent=1 // pred_check_branch
      %28 = sbr.rel (0) target = $region9
    $region8: #{tpu_custom_call.1} parent=1 // pred_region
      %s30 = ssub.s32 4096, 4096
      %31 = vsyncadd [#allocation6], %s30
      %s32 = sshll.u32 [#allocation5], 4
      %s33 = int_to_ptr.vmem [resolvable:$true] %s32
      %38 = dma.hbm_to_vmem [thread:$0]  %s1, 4096, %s33, [#allocation6], 256, 256, 16
    $region9: #{tpu_custom_call.1} parent=1 // pred_fallthru
      _
    // Predicated region
    $region10: #{tpu_custom_call.1} parent=1 // pred_check
      _
    $region11: #{tpu_custom_call.1} parent=1 // pred_check_branch
      %40 = sbr.rel (0) target = $region13
    $region12: #{tpu_custom_call.1} parent=1 // pred_region
      %s42 = ssub.s32 8192, 8192
      %43 = vsyncadd [#allocation6], %s42
      %s44 = sshll.u32 [#allocation7], 4
      %s45 = int_to_ptr.vmem [resolvable:$true] %s44
      %50 = dma.hbm_to_vmem [thread:$0]  %s2, 8192, %s45, [#allocation6], 256, 256, 16
    $region13: #{tpu_custom_call.1} parent=1 // pred_fallthru
      _
    // Predicated region
    $region14: #{tpu_custom_call.1} parent=1 // pred_check
      _
    $region15: #{tpu_custom_call.1} parent=1 // pred_check_branch
      %52 = sbr.rel (0) target = $region17
    $region16: #{tpu_custom_call.1} parent=1 // pred_region
      _
    $region17: #{tpu_custom_call.1} parent=1 // pred_fallthru
      _
    // Predicated region
    $region18: #{tpu_custom_call.1} parent=1 // pred_check
      _
    $region19: #{tpu_custom_call.1} parent=1 // pred_check_branch
      %54 = sbr.rel (0) target = $region21
    $region20: #{tpu_custom_call.1} parent=1 // pred_region
      %s56 = ssub.s32 1024, 1024
      %57 = vsyncadd [#allocation9], %s56
      %s58 = sshll.u32 [#allocation8], 4
      %s59 = int_to_ptr.vmem [resolvable:$true] %s58
      %64 = dma.hbm_to_vmem [thread:$0]  %s4, 1024, %s59, [#allocation9], 64, 64, 4
    $region21: #{tpu_custom_call.1} parent=1 // pred_fallthru
      _
    // Predicated region
    $region22: #{tpu_custom_call.1} parent=1 // pred_check
      _
    $region23: #{tpu_custom_call.1} parent=1 // pred_check_branch
      %66 = sbr.rel (0) target = $region25
    $region24: #{tpu_custom_call.1} parent=1 // pred_region
      _
    $region25: #{tpu_custom_call.1} parent=1 // pred_fallthru
      _
    // Predicated region
    $region26: #{tpu_custom_call.1} parent=1 // pred_check
      _
    $region27: #{tpu_custom_call.1} parent=1 // pred_check_branch
      %68 = sbr.rel (0) target = $region29
    $region28: #{tpu_custom_call.1} parent=1 // pred_region
      %69 = dma.done [#allocation3], 14336
    $region29: #{tpu_custom_call.1} parent=1 // pred_fallthru
      _
    // Predicated region
    $region30: #{tpu_custom_call.1} parent=1 // pred_check
      _
    $region31: #{tpu_custom_call.1} parent=1 // pred_check_branch
      %71 = sbr.rel (0) target = $region33
    $region32: #{tpu_custom_call.1} parent=1 // pred_region
      %72 = dma.done [#allocation6], 4096
    $region33: #{tpu_custom_call.1} parent=1 // pred_fallthru
      _
    // Predicated region
    $region34: #{tpu_custom_call.1} parent=1 // pred_check
      _
    $region35: #{tpu_custom_call.1} parent=1 // pred_check_branch
      %74 = sbr.rel (0) target = $region37
    $region36: #{tpu_custom_call.1} parent=1 // pred_region
      %75 = dma.done [#allocation6], 8192
    $region37: #{tpu_custom_call.1} parent=1 // pred_fallthru
      _
    // Predicated region
    $region38: #{tpu_custom_call.1} parent=1 // pred_check
      _
    $region39: #{tpu_custom_call.1} parent=1 // pred_check_branch
      %77 = sbr.rel (0) target = $region41
    $region40: #{tpu_custom_call.1} parent=1 // pred_region
      %78 = dma.done [#allocation9], 1024
    $region41: #{tpu_custom_call.1} parent=1 // pred_fallthru
      _
    %v80 = vld [vmem:[#allocation5] sm:$0xff]
    %v81 = vld [vmem:[#allocation5 + $0x8] sm:$0xff]
    %v82 = vld [vmem:[#allocation5 + $0x10] sm:$0xff]
    %v83 = vld [vmem:[#allocation5 + $0x18] sm:$0xff]
    %v84 = vld [vmem:[#allocation5 + $0x20] sm:$0xff]
    %v85 = vld [vmem:[#allocation5 + $0x28] sm:$0xff]
    %v86 = vld [vmem:[#allocation5 + $0x30] sm:$0xff]
    %v87 = vld [vmem:[#allocation5 + $0x38] sm:$0xff]
    %v88 = vld [vmem:[#allocation5 + $0x40] sm:$0xff]
    %v89 = vld [vmem:[#allocation5 + $0x48] sm:$0xff]
    %v90 = vld [vmem:[#allocation5 + $0x50] sm:$0xff]
    %v91 = vld [vmem:[#allocation5 + $0x58] sm:$0xff]
    %v92 = vld [vmem:[#allocation5 + $0x60] sm:$0xff]
    %v93 = vld [vmem:[#allocation5 + $0x68] sm:$0xff]
    %v94 = vld [vmem:[#allocation5 + $0x70] sm:$0xff]
    %v95 = vld [vmem:[#allocation5 + $0x78] sm:$0xff]
    %v96 = vld [vmem:[#allocation5 + $0x80] sm:$0xff]
    %v97 = vld [vmem:[#allocation5 + $0x88] sm:$0xff]
    %v98 = vld [vmem:[#allocation5 + $0x90] sm:$0xff]
    %v99 = vld [vmem:[#allocation5 + $0x98] sm:$0xff]
    %v100 = vld [vmem:[#allocation5 + $0xa0] sm:$0xff]
    %v101 = vld [vmem:[#allocation5 + $0xa8] sm:$0xff]
    %v102 = vld [vmem:[#allocation5 + $0xb0] sm:$0xff]
    %v103 = vld [vmem:[#allocation5 + $0xb8] sm:$0xff]
    %v104 = vld [vmem:[#allocation5 + $0xc0] sm:$0xff]
    %v105 = vld [vmem:[#allocation5 + $0xc8] sm:$0xff]
    %v106 = vld [vmem:[#allocation5 + $0xd0] sm:$0xff]
    %v107 = vld [vmem:[#allocation5 + $0xd8] sm:$0xff]
    %v108 = vld [vmem:[#allocation5 + $0xe0] sm:$0xff]
    %v109 = vld [vmem:[#allocation5 + $0xe8] sm:$0xff]
    %v110 = vld [vmem:[#allocation5 + $0xf0] sm:$0xff]
    %v111 = vld [vmem:[#allocation5 + $0xf8] sm:$0xff]
    %v112 = vld [vmem:[#allocation7] sm:$0xff]
    %v113 = vld [vmem:[#allocation7 + $0x8] sm:$0xff]
    %v114 = vld [vmem:[#allocation7 + $0x10] sm:$0xff]
    %v115 = vld [vmem:[#allocation7 + $0x18] sm:$0xff]
    %v116 = vld [vmem:[#allocation7 + $0x20] sm:$0xff]
    %v117 = vld [vmem:[#allocation7 + $0x28] sm:$0xff]
    %v118 = vld [vmem:[#allocation7 + $0x30] sm:$0xff]
    %v119 = vld [vmem:[#allocation7 + $0x38] sm:$0xff]
    %v120 = vld [vmem:[#allocation7 + $0x40] sm:$0xff]
    %v121 = vld [vmem:[#allocation7 + $0x48] sm:$0xff]
    %v122 = vld [vmem:[#allocation7 + $0x50] sm:$0xff]
    %v123 = vld [vmem:[#allocation7 + $0x58] sm:$0xff]
    %v124 = vld [vmem:[#allocation7 + $0x60] sm:$0xff]
    %v125 = vld [vmem:[#allocation7 + $0x68] sm:$0xff]
    %v126 = vld [vmem:[#allocation7 + $0x70] sm:$0xff]
    %v127 = vld [vmem:[#allocation7 + $0x78] sm:$0xff]
    %v128 = vld [vmem:[#allocation7 + $0x80] sm:$0xff]
    %v129 = vld [vmem:[#allocation7 + $0x88] sm:$0xff]
    %v130 = vld [vmem:[#allocation7 + $0x90] sm:$0xff]
    %v131 = vld [vmem:[#allocation7 + $0x98] sm:$0xff]
    %v132 = vld [vmem:[#allocation7 + $0xa0] sm:$0xff]
    %v133 = vld [vmem:[#allocation7 + $0xa8] sm:$0xff]
    %v134 = vld [vmem:[#allocation7 + $0xb0] sm:$0xff]
    %v135 = vld [vmem:[#allocation7 + $0xb8] sm:$0xff]
    %v136 = vld [vmem:[#allocation7 + $0xc0] sm:$0xff]
    %v137 = vld [vmem:[#allocation7 + $0xc8] sm:$0xff]
    %v138 = vld [vmem:[#allocation7 + $0xd0] sm:$0xff]
    %v139 = vld [vmem:[#allocation7 + $0xd8] sm:$0xff]
    %v140 = vld [vmem:[#allocation7 + $0xe0] sm:$0xff]
    %v141 = vld [vmem:[#allocation7 + $0xe8] sm:$0xff]
    %v142 = vld [vmem:[#allocation7 + $0xf0] sm:$0xff]
    %v143 = vld [vmem:[#allocation7 + $0xf8] sm:$0xff]
    %v144 = vld [vmem:[#allocation7 + $0x100] sm:$0xff]
    %v145 = vld [vmem:[#allocation7 + $0x108] sm:$0xff]
    %v146 = vld [vmem:[#allocation7 + $0x110] sm:$0xff]
    %v147 = vld [vmem:[#allocation7 + $0x118] sm:$0xff]
    %v148 = vld [vmem:[#allocation7 + $0x120] sm:$0xff]
    %v149 = vld [vmem:[#allocation7 + $0x128] sm:$0xff]
    %v150 = vld [vmem:[#allocation7 + $0x130] sm:$0xff]
    %v151 = vld [vmem:[#allocation7 + $0x138] sm:$0xff]
    %v152 = vld [vmem:[#allocation7 + $0x140] sm:$0xff]
    %v153 = vld [vmem:[#allocation7 + $0x148] sm:$0xff]
    %v154 = vld [vmem:[#allocation7 + $0x150] sm:$0xff]
    %v155 = vld [vmem:[#allocation7 + $0x158] sm:$0xff]
    %v156 = vld [vmem:[#allocation7 + $0x160] sm:$0xff]
    %v157 = vld [vmem:[#allocation7 + $0x168] sm:$0xff]
    %v158 = vld [vmem:[#allocation7 + $0x170] sm:$0xff]
    %v159 = vld [vmem:[#allocation7 + $0x178] sm:$0xff]
    %v160 = vld [vmem:[#allocation7 + $0x180] sm:$0xff]
    %v161 = vld [vmem:[#allocation7 + $0x188] sm:$0xff]
    %v162 = vld [vmem:[#allocation7 + $0x190] sm:$0xff]
    %v163 = vld [vmem:[#allocation7 + $0x198] sm:$0xff]
    %v164 = vld [vmem:[#allocation7 + $0x1a0] sm:$0xff]
    %v165 = vld [vmem:[#allocation7 + $0x1a8] sm:$0xff]
    %v166 = vld [vmem:[#allocation7 + $0x1b0] sm:$0xff]
    %v167 = vld [vmem:[#allocation7 + $0x1b8] sm:$0xff]
    %v168 = vld [vmem:[#allocation7 + $0x1c0] sm:$0xff]
    %v169 = vld [vmem:[#allocation7 + $0x1c8] sm:$0xff]
    %v170 = vld [vmem:[#allocation7 + $0x1d0] sm:$0xff]
    %v171 = vld [vmem:[#allocation7 + $0x1d8] sm:$0xff]
    %v172 = vld [vmem:[#allocation7 + $0x1e0] sm:$0xff]
    %v173 = vld [vmem:[#allocation7 + $0x1e8] sm:$0xff]
    %v174 = vld [vmem:[#allocation7 + $0x1f0] sm:$0xff]
    %v175 = vld [vmem:[#allocation7 + $0x1f8] sm:$0xff]
    %v176 = vld [vmem:[%s3] sm:$0xf]
    %v178 = vlaneseq
    %v179 = vshrl.u32 %v178, 7
    %v180 = vsub.s32 0, %v179
    %v181 = vrot.slane %v176, %v180
    %v182 = vlaneseq
    %v183 = vshrl.u32 %v182, 7
    %v184 = vsub.s32 1, %v183
    %v185 = vrot.slane %v176, %v184
    %v186 = vlaneseq
    %v187 = vshrl.u32 %v186, 7
    %v188 = vsub.s32 2, %v187
    %v189 = vrot.slane %v176, %v188
    %v190 = vlaneseq
    %v191 = vshrl.u32 %v190, 7
    %v192 = vsub.s32 3, %v191
    %v193 = vrot.slane %v176, %v192
    %v198 = vld [vmem:[#allocation2] sm:$0xff]
    %v199 = vld [vmem:[#allocation2 + $0x8] sm:$0xff]
    %v200 = vld [vmem:[#allocation2 + $0x10] sm:$0xff]
    %v201 = vld [vmem:[#allocation2 + $0x18] sm:$0xff]
    %v234 = vunpack.c.l.b16 %v80
    %v235 = vunpack.c.h.b16 %v80
    %v236 = vunpack.c.l.b16 %v81
    %v237 = vunpack.c.h.b16 %v81
    %v238 = vunpack.c.l.b16 %v82
    %v239 = vunpack.c.h.b16 %v82
    %v240 = vunpack.c.l.b16 %v83
    %v241 = vunpack.c.h.b16 %v83
    %v242 = vunpack.c.l.b16 %v84
    %v243 = vunpack.c.h.b16 %v84
    %v244 = vunpack.c.l.b16 %v85
    %v245 = vunpack.c.h.b16 %v85
    %v246 = vunpack.c.l.b16 %v86
    %v247 = vunpack.c.h.b16 %v86
    %v248 = vunpack.c.l.b16 %v87
    %v249 = vunpack.c.h.b16 %v87
    %v250 = vunpack.c.l.b16 %v88
    %v251 = vunpack.c.h.b16 %v88
    %v252 = vunpack.c.l.b16 %v89
    %v253 = vunpack.c.h.b16 %v89
    %v254 = vunpack.c.l.b16 %v90
    %v255 = vunpack.c.h.b16 %v90
    %v256 = vunpack.c.l.b16 %v91
    %v257 = vunpack.c.h.b16 %v91
    %v258 = vunpack.c.l.b16 %v92
    %v259 = vunpack.c.h.b16 %v92
    %v260 = vunpack.c.l.b16 %v93
    %v261 = vunpack.c.h.b16 %v93
    %v262 = vunpack.c.l.b16 %v94
    %v263 = vunpack.c.h.b16 %v94
    %v264 = vunpack.c.l.b16 %v95
    %v265 = vunpack.c.h.b16 %v95
    %v266 = vunpack.c.l.b16 %v96
    %v267 = vunpack.c.h.b16 %v96
    %v268 = vunpack.c.l.b16 %v97
    %v269 = vunpack.c.h.b16 %v97
    %v270 = vunpack.c.l.b16 %v98
    %v271 = vunpack.c.h.b16 %v98
    %v272 = vunpack.c.l.b16 %v99
    %v273 = vunpack.c.h.b16 %v99
    %v274 = vunpack.c.l.b16 %v100
    %v275 = vunpack.c.h.b16 %v100
    %v276 = vunpack.c.l.b16 %v101
    %v277 = vunpack.c.h.b16 %v101
    %v278 = vunpack.c.l.b16 %v102
    %v279 = vunpack.c.h.b16 %v102
    %v280 = vunpack.c.l.b16 %v103
    %v281 = vunpack.c.h.b16 %v103
    %v282 = vunpack.c.l.b16 %v104
    %v283 = vunpack.c.h.b16 %v104
    %v284 = vunpack.c.l.b16 %v105
    %v285 = vunpack.c.h.b16 %v105
    %v286 = vunpack.c.l.b16 %v106
    %v287 = vunpack.c.h.b16 %v106
    %v288 = vunpack.c.l.b16 %v107
    %v289 = vunpack.c.h.b16 %v107
    %v290 = vunpack.c.l.b16 %v108
    %v291 = vunpack.c.h.b16 %v108
    %v292 = vunpack.c.l.b16 %v109
    %v293 = vunpack.c.h.b16 %v109
    %v294 = vunpack.c.l.b16 %v110
    %v295 = vunpack.c.h.b16 %v110
    %v296 = vunpack.c.l.b16 %v111
    %v297 = vunpack.c.h.b16 %v111
    %v298 = vpack.c.b16 %v238, %v234
    %v299 = vpack.c.b16 %v239, %v235
    %v300 = vpack.c.b16 %v240, %v236
    %v301 = vpack.c.b16 %v241, %v237
    %v302 = vpack.c.b16 %v246, %v242
    %v303 = vpack.c.b16 %v247, %v243
    %v304 = vpack.c.b16 %v248, %v244
    %v305 = vpack.c.b16 %v249, %v245
    %v306 = vpack.c.b16 %v254, %v250
    %v307 = vpack.c.b16 %v255, %v251
    %v308 = vpack.c.b16 %v256, %v252
    %v309 = vpack.c.b16 %v257, %v253
    %v310 = vpack.c.b16 %v262, %v258
    %v311 = vpack.c.b16 %v263, %v259
    %v312 = vpack.c.b16 %v264, %v260
    %v313 = vpack.c.b16 %v265, %v261
    %v314 = vpack.c.b16 %v270, %v266
    %v315 = vpack.c.b16 %v271, %v267
    %v316 = vpack.c.b16 %v272, %v268
    %v317 = vpack.c.b16 %v273, %v269
    %v318 = vpack.c.b16 %v278, %v274
    %v319 = vpack.c.b16 %v279, %v275
    %v320 = vpack.c.b16 %v280, %v276
    %v321 = vpack.c.b16 %v281, %v277
    %v322 = vpack.c.b16 %v286, %v282
    %v323 = vpack.c.b16 %v287, %v283
    %v324 = vpack.c.b16 %v288, %v284
    %v325 = vpack.c.b16 %v289, %v285
    %v326 = vpack.c.b16 %v294, %v290
    %v327 = vpack.c.b16 %v295, %v291
    %v328 = vpack.c.b16 %v296, %v292
    %v329 = vpack.c.b16 %v297, %v293
    %362 = vmatprep.subr.bf16.mxu0 %v299
    %363 = vmatpush1.bf16.msra.mxu0 %v298
    %364 = vmatprep.subr.bf16.mxu0 %v303
    %365 = vmatpush1.bf16.msra.mxu0 %v302
    %366 = vmatprep.subr.bf16.mxu0 %v307
    %367 = vmatpush1.bf16.msra.mxu0 %v306
    %368 = vmatprep.subr.bf16.mxu0 %v311
    %369 = vmatpush1.bf16.msra.mxu0 %v310
    %370 = vmatprep.subr.bf16.mxu0 %v315
    %371 = vmatpush1.bf16.msra.mxu0 %v314
    %372 = vmatprep.subr.bf16.mxu0 %v319
    %373 = vmatpush1.bf16.msra.mxu0 %v318
    %374 = vmatprep.subr.bf16.mxu0 %v323
    %375 = vmatpush1.bf16.msra.mxu0 %v322
    %376 = vmatprep.subr.bf16.mxu0 %v327
    %377 = vmatpush1.bf16.msra.mxu0 %v326
    %378 = vmatprep.subr.bf16.mxu0 0
    %379 = vmatpush1.bf16.msra.mxu0 0
    %380 = vmatprep.subr.bf16.mxu0 0
    %381 = vmatpush1.bf16.msra.mxu0 0
    %382 = vmatprep.subr.bf16.mxu0 0
    %383 = vmatpush1.bf16.msra.mxu0 0
    %384 = vmatprep.subr.bf16.mxu0 0
    %385 = vmatpush1.bf16.msra.mxu0 0
    %386 = vmatprep.subr.bf16.mxu0 0
    %387 = vmatpush1.bf16.msra.mxu0 0
    %388 = vmatprep.subr.bf16.mxu0 0
    %389 = vmatpush1.bf16.msra.mxu0 0
    %390 = vmatprep.subr.bf16.mxu0 0
    %391 = vmatpush1.bf16.msra.mxu0 0
    %392 = vmatprep.subr.bf16.mxu0 0
    %393 = vmatpush1.bf16.msra.mxu0 0
    %394 = vmatprep.mubr.bf16.mxu0 0
    %395 = vmatmul.mubr.bf16.gmra.mrb[0].mxu0 0
    %v396 = vpop.f32.mrb[0].mxu0
    %v397 = vadd.f32 0.0, %v396
    %v398 = vpop.f32.mrb[0].mxu0
    %v399 = vadd.f32 0.0, %v398
    %v400 = vpop.f32.mrb[0].mxu0
    %v401 = vpop.f32.mrb[0].mxu0
    %402 = vdwg.mxu0
    %403 = vmatprep.subr.bf16.mxu0 %v301
    %404 = vmatpush1.bf16.msra.mxu0 %v300
    %405 = vmatprep.subr.bf16.mxu0 %v305
    %406 = vmatpush1.bf16.msra.mxu0 %v304
    %407 = vmatprep.subr.bf16.mxu0 %v309
    %408 = vmatpush1.bf16.msra.mxu0 %v308
    %409 = vmatprep.subr.bf16.mxu0 %v313
    %410 = vmatpush1.bf16.msra.mxu0 %v312
    %411 = vmatprep.subr.bf16.mxu0 %v317
    %412 = vmatpush1.bf16.msra.mxu0 %v316
    %413 = vmatprep.subr.bf16.mxu0 %v321
    %414 = vmatpush1.bf16.msra.mxu0 %v320
    %415 = vmatprep.subr.bf16.mxu0 %v325
    %416 = vmatpush1.bf16.msra.mxu0 %v324
    %417 = vmatprep.subr.bf16.mxu0 %v329
    %418 = vmatpush1.bf16.msra.mxu0 %v328
    %419 = vmatprep.subr.bf16.mxu0 0
    %420 = vmatpush1.bf16.msra.mxu0 0
    %421 = vmatprep.subr.bf16.mxu0 0
    %422 = vmatpush1.bf16.msra.mxu0 0
    %423 = vmatprep.subr.bf16.mxu0 0
    %424 = vmatpush1.bf16.msra.mxu0 0
    %425 = vmatprep.subr.bf16.mxu0 0
    %426 = vmatpush1.bf16.msra.mxu0 0
    %427 = vmatprep.subr.bf16.mxu0 0
    %428 = vmatpush1.bf16.msra.mxu0 0
    %429 = vmatprep.subr.bf16.mxu0 0
    %430 = vmatpush1.bf16.msra.mxu0 0
    %431 = vmatprep.subr.bf16.mxu0 0
    %432 = vmatpush1.bf16.msra.mxu0 0
    %433 = vmatprep.subr.bf16.mxu0 0
    %434 = vmatpush1.bf16.msra.mxu0 0
    %435 = vmatprep.mubr.bf16.mxu0 0
    %436 = vmatmul.mubr.bf16.gmra.mrb[0].mxu0 0
    %v437 = vpop.f32.mrb[0].mxu0
    %v438 = vadd.f32 0.0, %v437
    %v439 = vpop.f32.mrb[0].mxu0
    %v440 = vadd.f32 0.0, %v439
    %v441 = vpop.f32.mrb[0].mxu0
    %v442 = vpop.f32.mrb[0].mxu0
    %443 = vdwg.mxu0
    %v444 = vadd.f32 %v198, %v397
    %v445 = vadd.f32 %v199, %v399
    %v446 = vadd.f32 %v200, %v438
    %v447 = vadd.f32 %v201, %v440
    %v448 = vmul.f32 %v444, 0.5
    %v449 = vtanh.pop %v448
    %v450 = vmul.f32 %v449, 0.5
    %v451 = vadd.f32 %v450, 0.5
    %v452 = vmul.f32 %v445, 0.5
    %v453 = vtanh.pop %v452
    %v454 = vmul.f32 %v453, 0.5
    %v455 = vadd.f32 %v454, 0.5
    %v456 = vtanh.pop %v446
    %v457 = vmul.f32 %v447, 0.5
    %v458 = vtanh.pop %v457
    %v459 = vmul.f32 %v458, 0.5
    %v460 = vadd.f32 %v459, 0.5
    %v461 = vmul.f32 %v455, 0.0
    %v462 = vmul.f32 %v451, %v456
    %v463 = vadd.f32 %v461, %v462
    %v464 = vtanh.pop %v463
    %v465 = vmul.f32 %v460, %v464
    %v466 = vpack.c.bf16 %v465, %v465
    %v467 = vpack.c.bf16 0.0, 0.0
    %v532 = vunpack.c.l.b16 %v112
    %v533 = vunpack.c.h.b16 %v112
    %v534 = vunpack.c.l.b16 %v113
    %v535 = vunpack.c.h.b16 %v113
    %v536 = vunpack.c.l.b16 %v114
    %v537 = vunpack.c.h.b16 %v114
    %v538 = vunpack.c.l.b16 %v115
    %v539 = vunpack.c.h.b16 %v115
    %v540 = vunpack.c.l.b16 %v116
    %v541 = vunpack.c.h.b16 %v116
    %v542 = vunpack.c.l.b16 %v117
    %v543 = vunpack.c.h.b16 %v117
    %v544 = vunpack.c.l.b16 %v118
    %v545 = vunpack.c.h.b16 %v118
    %v546 = vunpack.c.l.b16 %v119
    %v547 = vunpack.c.h.b16 %v119
    %v548 = vunpack.c.l.b16 %v120
    %v549 = vunpack.c.h.b16 %v120
    %v550 = vunpack.c.l.b16 %v121
    %v551 = vunpack.c.h.b16 %v121
    %v552 = vunpack.c.l.b16 %v122
    %v553 = vunpack.c.h.b16 %v122
    %v554 = vunpack.c.l.b16 %v123
    %v555 = vunpack.c.h.b16 %v123
    %v556 = vunpack.c.l.b16 %v124
    %v557 = vunpack.c.h.b16 %v124
    %v558 = vunpack.c.l.b16 %v125
    %v559 = vunpack.c.h.b16 %v125
    %v560 = vunpack.c.l.b16 %v126
    %v561 = vunpack.c.h.b16 %v126
    %v562 = vunpack.c.l.b16 %v127
    %v563 = vunpack.c.h.b16 %v127
    %v564 = vunpack.c.l.b16 %v128
    %v565 = vunpack.c.h.b16 %v128
    %v566 = vunpack.c.l.b16 %v129
    %v567 = vunpack.c.h.b16 %v129
    %v568 = vunpack.c.l.b16 %v130
    %v569 = vunpack.c.h.b16 %v130
    %v570 = vunpack.c.l.b16 %v131
    %v571 = vunpack.c.h.b16 %v131
    %v572 = vunpack.c.l.b16 %v132
    %v573 = vunpack.c.h.b16 %v132
    %v574 = vunpack.c.l.b16 %v133
    %v575 = vunpack.c.h.b16 %v133
    %v576 = vunpack.c.l.b16 %v134
    %v577 = vunpack.c.h.b16 %v134
    %v578 = vunpack.c.l.b16 %v135
    %v579 = vunpack.c.h.b16 %v135
    %v580 = vunpack.c.l.b16 %v136
    %v581 = vunpack.c.h.b16 %v136
    %v582 = vunpack.c.l.b16 %v137
    %v583 = vunpack.c.h.b16 %v137
    %v584 = vunpack.c.l.b16 %v138
    %v585 = vunpack.c.h.b16 %v138
    %v586 = vunpack.c.l.b16 %v139
    %v587 = vunpack.c.h.b16 %v139
    %v588 = vunpack.c.l.b16 %v140
    %v589 = vunpack.c.h.b16 %v140
    %v590 = vunpack.c.l.b16 %v141
    %v591 = vunpack.c.h.b16 %v141
    %v592 = vunpack.c.l.b16 %v142
    %v593 = vunpack.c.h.b16 %v142
    %v594 = vunpack.c.l.b16 %v143
    %v595 = vunpack.c.h.b16 %v143
    %v596 = vunpack.c.l.b16 %v144
    %v597 = vunpack.c.h.b16 %v144
    %v598 = vunpack.c.l.b16 %v145
    %v599 = vunpack.c.h.b16 %v145
    %v600 = vunpack.c.l.b16 %v146
    %v601 = vunpack.c.h.b16 %v146
    %v602 = vunpack.c.l.b16 %v147
    %v603 = vunpack.c.h.b16 %v147
    %v604 = vunpack.c.l.b16 %v148
    %v605 = vunpack.c.h.b16 %v148
    %v606 = vunpack.c.l.b16 %v149
    %v607 = vunpack.c.h.b16 %v149
    %v608 = vunpack.c.l.b16 %v150
    %v609 = vunpack.c.h.b16 %v150
    %v610 = vunpack.c.l.b16 %v151
    %v611 = vunpack.c.h.b16 %v151
    %v612 = vunpack.c.l.b16 %v152
    %v613 = vunpack.c.h.b16 %v152
    %v614 = vunpack.c.l.b16 %v153
    %v615 = vunpack.c.h.b16 %v153
    %v616 = vunpack.c.l.b16 %v154
    %v617 = vunpack.c.h.b16 %v154
    %v618 = vunpack.c.l.b16 %v155
    %v619 = vunpack.c.h.b16 %v155
    %v620 = vunpack.c.l.b16 %v156
    %v621 = vunpack.c.h.b16 %v156
    %v622 = vunpack.c.l.b16 %v157
    %v623 = vunpack.c.h.b16 %v157
    %v624 = vunpack.c.l.b16 %v158
    %v625 = vunpack.c.h.b16 %v158
    %v626 = vunpack.c.l.b16 %v159
    %v627 = vunpack.c.h.b16 %v159
    %v628 = vunpack.c.l.b16 %v160
    %v629 = vunpack.c.h.b16 %v160
    %v630 = vunpack.c.l.b16 %v161
    %v631 = vunpack.c.h.b16 %v161
    %v632 = vunpack.c.l.b16 %v162
    %v633 = vunpack.c.h.b16 %v162
    %v634 = vunpack.c.l.b16 %v163
    %v635 = vunpack.c.h.b16 %v163
    %v636 = vunpack.c.l.b16 %v164
    %v637 = vunpack.c.h.b16 %v164
    %v638 = vunpack.c.l.b16 %v165
    %v639 = vunpack.c.h.b16 %v165
    %v640 = vunpack.c.l.b16 %v166
    %v641 = vunpack.c.h.b16 %v166
    %v642 = vunpack.c.l.b16 %v167
    %v643 = vunpack.c.h.b16 %v167
    %v644 = vunpack.c.l.b16 %v168
    %v645 = vunpack.c.h.b16 %v168
    %v646 = vunpack.c.l.b16 %v169
    %v647 = vunpack.c.h.b16 %v169
    %v648 = vunpack.c.l.b16 %v170
    %v649 = vunpack.c.h.b16 %v170
    %v650 = vunpack.c.l.b16 %v171
    %v651 = vunpack.c.h.b16 %v171
    %v652 = vunpack.c.l.b16 %v172
    %v653 = vunpack.c.h.b16 %v172
    %v654 = vunpack.c.l.b16 %v173
    %v655 = vunpack.c.h.b16 %v173
    %v656 = vunpack.c.l.b16 %v174
    %v657 = vunpack.c.h.b16 %v174
    %v658 = vunpack.c.l.b16 %v175
    %v659 = vunpack.c.h.b16 %v175
    %v660 = vpack.c.b16 %v536, %v532
    %v661 = vpack.c.b16 %v537, %v533
    %v662 = vpack.c.b16 %v538, %v534
    %v663 = vpack.c.b16 %v539, %v535
    %v664 = vpack.c.b16 %v544, %v540
    %v665 = vpack.c.b16 %v545, %v541
    %v666 = vpack.c.b16 %v546, %v542
    %v667 = vpack.c.b16 %v547, %v543
    %v668 = vpack.c.b16 %v552, %v548
    %v669 = vpack.c.b16 %v553, %v549
    %v670 = vpack.c.b16 %v554, %v550
    %v671 = vpack.c.b16 %v555, %v551
    %v672 = vpack.c.b16 %v560, %v556
    %v673 = vpack.c.b16 %v561, %v557
    %v674 = vpack.c.b16 %v562, %v558
    %v675 = vpack.c.b16 %v563, %v559
    %v676 = vpack.c.b16 %v568, %v564
    %v677 = vpack.c.b16 %v569, %v565
    %v678 = vpack.c.b16 %v570, %v566
    %v679 = vpack.c.b16 %v571, %v567
    %v680 = vpack.c.b16 %v576, %v572
    %v681 = vpack.c.b16 %v577, %v573
    %v682 = vpack.c.b16 %v578, %v574
    %v683 = vpack.c.b16 %v579, %v575
    %v684 = vpack.c.b16 %v584, %v580
    %v685 = vpack.c.b16 %v585, %v581
    %v686 = vpack.c.b16 %v586, %v582
    %v687 = vpack.c.b16 %v587, %v583
    %v688 = vpack.c.b16 %v592, %v588
    %v689 = vpack.c.b16 %v593, %v589
    %v690 = vpack.c.b16 %v594, %v590
    %v691 = vpack.c.b16 %v595, %v591
    %v692 = vpack.c.b16 %v600, %v596
    %v693 = vpack.c.b16 %v601, %v597
    %v694 = vpack.c.b16 %v602, %v598
    %v695 = vpack.c.b16 %v603, %v599
    %v696 = vpack.c.b16 %v608, %v604
    %v697 = vpack.c.b16 %v609, %v605
    %v698 = vpack.c.b16 %v610, %v606
    %v699 = vpack.c.b16 %v611, %v607
    %v700 = vpack.c.b16 %v616, %v612
    %v701 = vpack.c.b16 %v617, %v613
    %v702 = vpack.c.b16 %v618, %v614
    %v703 = vpack.c.b16 %v619, %v615
    %v704 = vpack.c.b16 %v624, %v620
    %v705 = vpack.c.b16 %v625, %v621
    %v706 = vpack.c.b16 %v626, %v622
    %v707 = vpack.c.b16 %v627, %v623
    %v708 = vpack.c.b16 %v632, %v628
    %v709 = vpack.c.b16 %v633, %v629
    %v710 = vpack.c.b16 %v634, %v630
    %v711 = vpack.c.b16 %v635, %v631
    %v712 = vpack.c.b16 %v640, %v636
    %v713 = vpack.c.b16 %v641, %v637
    %v714 = vpack.c.b16 %v642, %v638
    %v715 = vpack.c.b16 %v643, %v639
    %v716 = vpack.c.b16 %v648, %v644
    %v717 = vpack.c.b16 %v649, %v645
    %v718 = vpack.c.b16 %v650, %v646
    %v719 = vpack.c.b16 %v651, %v647
    %v720 = vpack.c.b16 %v656, %v652
    %v721 = vpack.c.b16 %v657, %v653
    %v722 = vpack.c.b16 %v658, %v654
    %v723 = vpack.c.b16 %v659, %v655
    %788 = vmatprep.subr.bf16.mxu0 %v661
    %789 = vmatpush1.bf16.msra.mxu0 %v660
    %790 = vmatprep.subr.bf16.mxu0 %v665
    %791 = vmatpush1.bf16.msra.mxu0 %v664
    %792 = vmatprep.subr.bf16.mxu0 %v669
    %793 = vmatpush1.bf16.msra.mxu0 %v668
    %794 = vmatprep.subr.bf16.mxu0 %v673
    %795 = vmatpush1.bf16.msra.mxu0 %v672
    %796 = vmatprep.subr.bf16.mxu0 %v677
    %797 = vmatpush1.bf16.msra.mxu0 %v676
    %798 = vmatprep.subr.bf16.mxu0 %v681
    %799 = vmatpush1.bf16.msra.mxu0 %v680
    %800 = vmatprep.subr.bf16.mxu0 %v685
    %801 = vmatpush1.bf16.msra.mxu0 %v684
    %802 = vmatprep.subr.bf16.mxu0 %v689
    %803 = vmatpush1.bf16.msra.mxu0 %v688
    %804 = vmatprep.subr.bf16.mxu0 %v693
    %805 = vmatpush1.bf16.msra.mxu0 %v692
    %806 = vmatprep.subr.bf16.mxu0 %v697
    %807 = vmatpush1.bf16.msra.mxu0 %v696
    %808 = vmatprep.subr.bf16.mxu0 %v701
    %809 = vmatpush1.bf16.msra.mxu0 %v700
    %810 = vmatprep.subr.bf16.mxu0 %v705
    %811 = vmatpush1.bf16.msra.mxu0 %v704
    %812 = vmatprep.subr.bf16.mxu0 %v709
    %813 = vmatpush1.bf16.msra.mxu0 %v708
    %814 = vmatprep.subr.bf16.mxu0 %v713
    %815 = vmatpush1.bf16.msra.mxu0 %v712
    %816 = vmatprep.subr.bf16.mxu0 %v717
    %817 = vmatpush1.bf16.msra.mxu0 %v716
    %818 = vmatprep.subr.bf16.mxu0 %v721
    %819 = vmatpush1.bf16.msra.mxu0 %v720
    %820 = vmatprep.mubr.bf16.mxu0 %v467
    %821 = vmatmul.mubr.bf16.gmra.mrb[0].mxu0 %v466
    %v822 = vpop.f32.mrb[0].mxu0
    %v823 = vadd.f32 %v181, %v822
    %v824 = vpop.f32.mrb[0].mxu0
    %v825 = vadd.f32 %v185, %v824
    %v826 = vpop.f32.mrb[0].mxu0
    %v827 = vpop.f32.mrb[0].mxu0
    %828 = vdwg.mxu0
    %829 = vmatprep.subr.bf16.mxu0 %v663
    %830 = vmatpush1.bf16.msra.mxu0 %v662
    %831 = vmatprep.subr.bf16.mxu0 %v667
    %832 = vmatpush1.bf16.msra.mxu0 %v666
    %833 = vmatprep.subr.bf16.mxu0 %v671
    %834 = vmatpush1.bf16.msra.mxu0 %v670
    %835 = vmatprep.subr.bf16.mxu0 %v675
    %836 = vmatpush1.bf16.msra.mxu0 %v674
    %837 = vmatprep.subr.bf16.mxu0 %v679
    %838 = vmatpush1.bf16.msra.mxu0 %v678
    %839 = vmatprep.subr.bf16.mxu0 %v683
    %840 = vmatpush1.bf16.msra.mxu0 %v682
    %841 = vmatprep.subr.bf16.mxu0 %v687
    %842 = vmatpush1.bf16.msra.mxu0 %v686
    %843 = vmatprep.subr.bf16.mxu0 %v691
    %844 = vmatpush1.bf16.msra.mxu0 %v690
    %845 = vmatprep.subr.bf16.mxu0 %v695
    %846 = vmatpush1.bf16.msra.mxu0 %v694
    %847 = vmatprep.subr.bf16.mxu0 %v699
    %848 = vmatpush1.bf16.msra.mxu0 %v698
    %849 = vmatprep.subr.bf16.mxu0 %v703
    %850 = vmatpush1.bf16.msra.mxu0 %v702
    %851 = vmatprep.subr.bf16.mxu0 %v707
    %852 = vmatpush1.bf16.msra.mxu0 %v706
    %853 = vmatprep.subr.bf16.mxu0 %v711
    %854 = vmatpush1.bf16.msra.mxu0 %v710
    %855 = vmatprep.subr.bf16.mxu0 %v715
    %856 = vmatpush1.bf16.msra.mxu0 %v714
    %857 = vmatprep.subr.bf16.mxu0 %v719
    %858 = vmatpush1.bf16.msra.mxu0 %v718
    %859 = vmatprep.subr.bf16.mxu0 %v723
    %860 = vmatpush1.bf16.msra.mxu0 %v722
    %861 = vmatprep.mubr.bf16.mxu0 %v467
    %862 = vmatmul.mubr.bf16.gmra.mrb[0].mxu0 %v466
    %v863 = vpop.f32.mrb[0].mxu0
    %v864 = vadd.f32 %v189, %v863
    %v865 = vpop.f32.mrb[0].mxu0
    %v866 = vadd.f32 %v193, %v865
    %v867 = vpop.f32.mrb[0].mxu0
    %v868 = vpop.f32.mrb[0].mxu0
    %869 = vdwg.mxu0
    %v870 = vmul.f32 %v823, 0.5
    %v871 = vtanh.pop %v870
    %v872 = vmul.f32 %v871, 0.5
    %v873 = vadd.f32 %v872, 0.5
    %v874 = vmul.f32 %v825, 0.5
    %v875 = vtanh.pop %v874
    %v876 = vmul.f32 %v875, 0.5
    %v877 = vadd.f32 %v876, 0.5
    %v878 = vtanh.pop %v864
    %v879 = vmul.f32 %v866, 0.5
    %v880 = vtanh.pop %v879
    %v881 = vmul.f32 %v880, 0.5
    %v882 = vadd.f32 %v881, 0.5
    %v883 = vmul.f32 %v877, 0.0
    %v884 = vmul.f32 %v873, %v878
    %v885 = vadd.f32 %v883, %v884
    %v886 = vtanh.pop %v885
    %v887 = vmul.f32 %v882, %v886
    %s888 = scalar_lea.vmem [#allocation2], 32
    %v889 = vld [vmem:[%s888] sm:$0xff]
    %v890 = vld [vmem:[%s888 + $0x8] sm:$0xff]
    %v891 = vld [vmem:[%s888 + $0x10] sm:$0xff]
    %v892 = vld [vmem:[%s888 + $0x18] sm:$0xff]
    %893 = vmatprep.subr.bf16.mxu0 %v299
    %894 = vmatpush1.bf16.msra.mxu0 %v298
    %895 = vmatprep.subr.bf16.mxu0 %v303
    %896 = vmatpush1.bf16.msra.mxu0 %v302
    %897 = vmatprep.subr.bf16.mxu0 %v307
    %898 = vmatpush1.bf16.msra.mxu0 %v306
    %899 = vmatprep.subr.bf16.mxu0 %v311
    %900 = vmatpush1.bf16.msra.mxu0 %v310
    %901 = vmatprep.subr.bf16.mxu0 %v315
    %902 = vmatpush1.bf16.msra.mxu0 %v314
    %903 = vmatprep.subr.bf16.mxu0 %v319
    %904 = vmatpush1.bf16.msra.mxu0 %v318
    %905 = vmatprep.subr.bf16.mxu0 %v323
    %906 = vmatpush1.bf16.msra.mxu0 %v322
    %907 = vmatprep.subr.bf16.mxu0 %v327
    %908 = vmatpush1.bf16.msra.mxu0 %v326
    %909 = vmatprep.subr.bf16.mxu0 0
    %910 = vmatpush1.bf16.msra.mxu0 0
    %911 = vmatprep.subr.bf16.mxu0 0
    %912 = vmatpush1.bf16.msra.mxu0 0
    %913 = vmatprep.subr.bf16.mxu0 0
    %914 = vmatpush1.bf16.msra.mxu0 0
    %915 = vmatprep.subr.bf16.mxu0 0
    %916 = vmatpush1.bf16.msra.mxu0 0
    %917 = vmatprep.subr.bf16.mxu0 0
    %918 = vmatpush1.bf16.msra.mxu0 0
    %919 = vmatprep.subr.bf16.mxu0 0
    %920 = vmatpush1.bf16.msra.mxu0 0
    %921 = vmatprep.subr.bf16.mxu0 0
    %922 = vmatpush1.bf16.msra.mxu0 0
    %923 = vmatprep.subr.bf16.mxu0 0
    %924 = vmatpush1.bf16.msra.mxu0 0
    %925 = vmatprep.mubr.bf16.mxu0 0
    %926 = vmatmul.mubr.bf16.gmra.mrb[0].mxu0 %v466
    %v927 = vpop.f32.mrb[0].mxu0
    %v928 = vadd.f32 0.0, %v927
    %v929 = vpop.f32.mrb[0].mxu0
    %v930 = vadd.f32 0.0, %v929
    %v931 = vpop.f32.mrb[0].mxu0
    %v932 = vpop.f32.mrb[0].mxu0
    %933 = vdwg.mxu0
    %934 = vmatprep.subr.bf16.mxu0 %v301
    %935 = vmatpush1.bf16.msra.mxu0 %v300
    %936 = vmatprep.subr.bf16.mxu0 %v305
    %937 = vmatpush1.bf16.msra.mxu0 %v304
    %938 = vmatprep.subr.bf16.mxu0 %v309
    %939 = vmatpush1.bf16.msra.mxu0 %v308
    %940 = vmatprep.subr.bf16.mxu0 %v313
    %941 = vmatpush1.bf16.msra.mxu0 %v312
    %942 = vmatprep.subr.bf16.mxu0 %v317
    %943 = vmatpush1.bf16.msra.mxu0 %v316
    %944 = vmatprep.subr.bf16.mxu0 %v321
    %945 = vmatpush1.bf16.msra.mxu0 %v320
    %946 = vmatprep.subr.bf16.mxu0 %v325
    %947 = vmatpush1.bf16.msra.mxu0 %v324
    %948 = vmatprep.subr.bf16.mxu0 %v329
    %949 = vmatpush1.bf16.msra.mxu0 %v328
    %950 = vmatprep.subr.bf16.mxu0 0
    %951 = vmatpush1.bf16.msra.mxu0 0
    %952 = vmatprep.subr.bf16.mxu0 0
    %953 = vmatpush1.bf16.msra.mxu0 0
    %954 = vmatprep.subr.bf16.mxu0 0
    %955 = vmatpush1.bf16.msra.mxu0 0
    %956 = vmatprep.subr.bf16.mxu0 0
    %957 = vmatpush1.bf16.msra.mxu0 0
    %958 = vmatprep.subr.bf16.mxu0 0
    %959 = vmatpush1.bf16.msra.mxu0 0
    %960 = vmatprep.subr.bf16.mxu0 0
    %961 = vmatpush1.bf16.msra.mxu0 0
    %962 = vmatprep.subr.bf16.mxu0 0
    %963 = vmatpush1.bf16.msra.mxu0 0
    %964 = vmatprep.subr.bf16.mxu0 0
    %965 = vmatpush1.bf16.msra.mxu0 0
    %966 = vmatprep.mubr.bf16.mxu0 0
    %967 = vmatmul.mubr.bf16.gmra.mrb[0].mxu0 %v466
    %v968 = vpop.f32.mrb[0].mxu0
    %v969 = vadd.f32 0.0, %v968
    %v970 = vpop.f32.mrb[0].mxu0
    %v971 = vadd.f32 0.0, %v970
    %v972 = vpop.f32.mrb[0].mxu0
    %v973 = vpop.f32.mrb[0].mxu0
    %974 = vdwg.mxu0
    %v975 = vadd.f32 %v889, %v928
    %v976 = vadd.f32 %v890, %v930
    %v977 = vadd.f32 %v891, %v969
    %v978 = vadd.f32 %v892, %v971
    %v979 = vmul.f32 %v975, 0.5
    %v980 = vtanh.pop %v979
    %v981 = vmul.f32 %v980, 0.5
    %v982 = vadd.f32 %v981, 0.5
    %v983 = vmul.f32 %v976, 0.5
    %v984 = vtanh.pop %v983
    %v985 = vmul.f32 %v984, 0.5
    %v986 = vadd.f32 %v985, 0.5
    %v987 = vtanh.pop %v977
    %v988 = vmul.f32 %v978, 0.5
    %v989 = vtanh.pop %v988
    %v990 = vmul.f32 %v989, 0.5
    %v991 = vadd.f32 %v990, 0.5
    %v992 = vmul.f32 %v986, %v463
    %v993 = vmul.f32 %v982, %v987
    %v994 = vadd.f32 %v992, %v993
    %v995 = vtanh.pop %v994
    %v996 = vmul.f32 %v991, %v995
    %v997 = vpack.c.bf16 %v996, %v996
    %v998 = vpack.c.bf16 %v887, %v887
    %999 = vmatprep.subr.bf16.mxu0 %v661
    %1000 = vmatpush1.bf16.msra.mxu0 %v660
    %1001 = vmatprep.subr.bf16.mxu0 %v665
    %1002 = vmatpush1.bf16.msra.mxu0 %v664
    %1003 = vmatprep.subr.bf16.mxu0 %v669
    %1004 = vmatpush1.bf16.msra.mxu0 %v668
    %1005 = vmatprep.subr.bf16.mxu0 %v673
    %1006 = vmatpush1.bf16.msra.mxu0 %v672
    %1007 = vmatprep.subr.bf16.mxu0 %v677
    %1008 = vmatpush1.bf16.msra.mxu0 %v676
    %1009 = vmatprep.subr.bf16.mxu0 %v681
    %1010 = vmatpush1.bf16.msra.mxu0 %v680
    %1011 = vmatprep.subr.bf16.mxu0 %v685
    %1012 = vmatpush1.bf16.msra.mxu0 %v684
    %1013 = vmatprep.subr.bf16.mxu0 %v689
    %1014 = vmatpush1.bf16.msra.mxu0 %v688
    %1015 = vmatprep.subr.bf16.mxu0 %v693
    %1016 = vmatpush1.bf16.msra.mxu0 %v692
    %1017 = vmatprep.subr.bf16.mxu0 %v697
    %1018 = vmatpush1.bf16.msra.mxu0 %v696
    %1019 = vmatprep.subr.bf16.mxu0 %v701
    %1020 = vmatpush1.bf16.msra.mxu0 %v700
    %1021 = vmatprep.subr.bf16.mxu0 %v705
    %1022 = vmatpush1.bf16.msra.mxu0 %v704
    %1023 = vmatprep.subr.bf16.mxu0 %v709
    %1024 = vmatpush1.bf16.msra.mxu0 %v708
    %1025 = vmatprep.subr.bf16.mxu0 %v713
    %1026 = vmatpush1.bf16.msra.mxu0 %v712
    %1027 = vmatprep.subr.bf16.mxu0 %v717
    %1028 = vmatpush1.bf16.msra.mxu0 %v716
    %1029 = vmatprep.subr.bf16.mxu0 %v721
    %1030 = vmatpush1.bf16.msra.mxu0 %v720
    %1031 = vmatprep.mubr.bf16.mxu0 %v998
    %1032 = vmatmul.mubr.bf16.gmra.mrb[0].mxu0 %v997
    %v1033 = vpop.f32.mrb[0].mxu0
    %v1034 = vadd.f32 %v181, %v1033
    %v1035 = vpop.f32.mrb[0].mxu0
    %v1036 = vadd.f32 %v185, %v1035
    %v1037 = vpop.f32.mrb[0].mxu0
    %v1038 = vpop.f32.mrb[0].mxu0
    %1039 = vdwg.mxu0
    %1040 = vmatprep.subr.bf16.mxu0 %v663
    %1041 = vmatpush1.bf16.msra.mxu0 %v662
    %1042 = vmatprep.subr.bf16.mxu0 %v667
    %1043 = vmatpush1.bf16.msra.mxu0 %v666
    %1044 = vmatprep.subr.bf16.mxu0 %v671
    %1045 = vmatpush1.bf16.msra.mxu0 %v670
    %1046 = vmatprep.subr.bf16.mxu0 %v675
    %1047 = vmatpush1.bf16.msra.mxu0 %v674
    %1048 = vmatprep.subr.bf16.mxu0 %v679
    %1049 = vmatpush1.bf16.msra.mxu0 %v678
    %1050 = vmatprep.subr.bf16.mxu0 %v683
    %1051 = vmatpush1.bf16.msra.mxu0 %v682
    %1052 = vmatprep.subr.bf16.mxu0 %v687
    %1053 = vmatpush1.bf16.msra.mxu0 %v686
    %1054 = vmatprep.subr.bf16.mxu0 %v691
    %1055 = vmatpush1.bf16.msra.mxu0 %v690
    %1056 = vmatprep.subr.bf16.mxu0 %v695
    %1057 = vmatpush1.bf16.msra.mxu0 %v694
    %1058 = vmatprep.subr.bf16.mxu0 %v699
    %1059 = vmatpush1.bf16.msra.mxu0 %v698
    %1060 = vmatprep.subr.bf16.mxu0 %v703
    %1061 = vmatpush1.bf16.msra.mxu0 %v702
    %1062 = vmatprep.subr.bf16.mxu0 %v707
    %1063 = vmatpush1.bf16.msra.mxu0 %v706
    %1064 = vmatprep.subr.bf16.mxu0 %v711
    %1065 = vmatpush1.bf16.msra.mxu0 %v710
    %1066 = vmatprep.subr.bf16.mxu0 %v715
    %1067 = vmatpush1.bf16.msra.mxu0 %v714
    %1068 = vmatprep.subr.bf16.mxu0 %v719
    %1069 = vmatpush1.bf16.msra.mxu0 %v718
    %1070 = vmatprep.subr.bf16.mxu0 %v723
    %1071 = vmatpush1.bf16.msra.mxu0 %v722
    %1072 = vmatprep.mubr.bf16.mxu0 %v998
    %1073 = vmatmul.mubr.bf16.gmra.mrb[0].mxu0 %v997
    %v1074 = vpop.f32.mrb[0].mxu0
    %v1075 = vadd.f32 %v189, %v1074
    %v1076 = vpop.f32.mrb[0].mxu0
    %v1077 = vadd.f32 %v193, %v1076
    %v1078 = vpop.f32.mrb[0].mxu0
    %v1079 = vpop.f32.mrb[0].mxu0
    %1080 = vdwg.mxu0
    %v1081 = vmul.f32 %v1034, 0.5
    %v1082 = vtanh.pop %v1081
    %v1083 = vmul.f32 %v1082, 0.5
    %v1084 = vadd.f32 %v1083, 0.5
    %v1085 = vmul.f32 %v1036, 0.5
    %v1086 = vtanh.pop %v1085
    %v1087 = vmul.f32 %v1086, 0.5
    %v1088 = vadd.f32 %v1087, 0.5
    %v1089 = vtanh.pop %v1075
    %v1090 = vmul.f32 %v1077, 0.5
    %v1091 = vtanh.pop %v1090
    %v1092 = vmul.f32 %v1091, 0.5
    %v1093 = vadd.f32 %v1092, 0.5
    %v1094 = vmul.f32 %v1088, %v885
    %v1095 = vmul.f32 %v1084, %v1089
    %v1096 = vadd.f32 %v1094, %v1095
    %v1097 = vtanh.pop %v1096
    %v1098 = vmul.f32 %v1093, %v1097
    %s1099 = scalar_lea.vmem [#allocation2], 64
    %v1100 = vld [vmem:[%s1099] sm:$0xff]
    %v1101 = vld [vmem:[%s1099 + $0x8] sm:$0xff]
    %v1102 = vld [vmem:[%s1099 + $0x10] sm:$0xff]
    %v1103 = vld [vmem:[%s1099 + $0x18] sm:$0xff]
    %1104 = vmatprep.subr.bf16.mxu0 %v299
    %1105 = vmatpush1.bf16.msra.mxu0 %v298
    %1106 = vmatprep.subr.bf16.mxu0 %v303
    %1107 = vmatpush1.bf16.msra.mxu0 %v302
    %1108 = vmatprep.subr.bf16.mxu0 %v307
    %1109 = vmatpush1.bf16.msra.mxu0 %v306
    %1110 = vmatprep.subr.bf16.mxu0 %v311
    %1111 = vmatpush1.bf16.msra.mxu0 %v310
    %1112 = vmatprep.subr.bf16.mxu0 %v315
    %1113 = vmatpush1.bf16.msra.mxu0 %v314
    %1114 = vmatprep.subr.bf16.mxu0 %v319
    %1115 = vmatpush1.bf16.msra.mxu0 %v318
    %1116 = vmatprep.subr.bf16.mxu0 %v323
    %1117 = vmatpush1.bf16.msra.mxu0 %v322
    %1118 = vmatprep.subr.bf16.mxu0 %v327
    %1119 = vmatpush1.bf16.msra.mxu0 %v326
    %1120 = vmatprep.subr.bf16.mxu0 0
    %1121 = vmatpush1.bf16.msra.mxu0 0
    %1122 = vmatprep.subr.bf16.mxu0 0
    %1123 = vmatpush1.bf16.msra.mxu0 0
    %1124 = vmatprep.subr.bf16.mxu0 0
    %1125 = vmatpush1.bf16.msra.mxu0 0
    %1126 = vmatprep.subr.bf16.mxu0 0
    %1127 = vmatpush1.bf16.msra.mxu0 0
    %1128 = vmatprep.subr.bf16.mxu0 0
    %1129 = vmatpush1.bf16.msra.mxu0 0
    %1130 = vmatprep.subr.bf16.mxu0 0
    %1131 = vmatpush1.bf16.msra.mxu0 0
    %1132 = vmatprep.subr.bf16.mxu0 0
    %1133 = vmatpush1.bf16.msra.mxu0 0
    %1134 = vmatprep.subr.bf16.mxu0 0
    %1135 = vmatpush1.bf16.msra.mxu0 0
    %1136 = vmatprep.mubr.bf16.mxu0 0
    %1137 = vmatmul.mubr.bf16.gmra.mrb[0].mxu0 %v997
    %v1138 = vpop.f32.mrb[0].mxu0
    %v1139 = vadd.f32 0.0, %v1138
    %v1140 = vpop.f32.mrb[0].mxu0
    %v1141 = vadd.f32 0.0, %v1140
    %v1142 = vpop.f32.mrb[0].mxu0
    %v1143 = vpop.f32.mrb[0].mxu0
    %1144 = vdwg.mxu0
    %1145 = vmatprep.subr.bf16.mxu0 %v301
    %1146 = vmatpush1.bf16.msra.mxu0 %v300
    %1147 = vmatprep.subr.bf16.mxu0 %v305
    %1148 = vmatpush1.bf16.msra.mxu0 %v304
    %1149 = vmatprep.subr.bf16.mxu0 %v309
    %1150 = vmatpush1.bf16.msra.mxu0 %v308
    %1151 = vmatprep.subr.bf16.mxu0 %v313
    %1152 = vmatpush1.bf16.msra.mxu0 %v312
    %1153 = vmatprep.subr.bf16.mxu0 %v317
    %1154 = vmatpush1.bf16.msra.mxu0 %v316
    %1155 = vmatprep.subr.bf16.mxu0 %v321
    %1156 = vmatpush1.bf16.msra.mxu0 %v320
    %1157 = vmatprep.subr.bf16.mxu0 %v325
    %1158 = vmatpush1.bf16.msra.mxu0 %v324
    %1159 = vmatprep.subr.bf16.mxu0 %v329
    %1160 = vmatpush1.bf16.msra.mxu0 %v328
    %1161 = vmatprep.subr.bf16.mxu0 0
    %1162 = vmatpush1.bf16.msra.mxu0 0
    %1163 = vmatprep.subr.bf16.mxu0 0
    %1164 = vmatpush1.bf16.msra.mxu0 0
    %1165 = vmatprep.subr.bf16.mxu0 0
    %1166 = vmatpush1.bf16.msra.mxu0 0
    %1167 = vmatprep.subr.bf16.mxu0 0
    %1168 = vmatpush1.bf16.msra.mxu0 0
    %1169 = vmatprep.subr.bf16.mxu0 0
    %1170 = vmatpush1.bf16.msra.mxu0 0
    %1171 = vmatprep.subr.bf16.mxu0 0
    %1172 = vmatpush1.bf16.msra.mxu0 0
    %1173 = vmatprep.subr.bf16.mxu0 0
    %1174 = vmatpush1.bf16.msra.mxu0 0
    %1175 = vmatprep.subr.bf16.mxu0 0
    %1176 = vmatpush1.bf16.msra.mxu0 0
    %1177 = vmatprep.mubr.bf16.mxu0 0
    %1178 = vmatmul.mubr.bf16.gmra.mrb[0].mxu0 %v997
    %v1179 = vpop.f32.mrb[0].mxu0
    %v1180 = vadd.f32 0.0, %v1179
    %v1181 = vpop.f32.mrb[0].mxu0
    %v1182 = vadd.f32 0.0, %v1181
    %v1183 = vpop.f32.mrb[0].mxu0
    %v1184 = vpop.f32.mrb[0].mxu0
    %1185 = vdwg.mxu0
    %v1186 = vadd.f32 %v1100, %v1139
    %v1187 = vadd.f32 %v1101, %v1141
    %v1188 = vadd.f32 %v1102, %v1180
    %v1189 = vadd.f32 %v1103, %v1182
    %v1190 = vmul.f32 %v1186, 0.5
    %v1191 = vtanh.pop %v1190
    %v1192 = vmul.f32 %v1191, 0.5
    %v1193 = vadd.f32 %v1192, 0.5
    %v1194 = vmul.f32 %v1187, 0.5
    %v1195 = vtanh.pop %v1194
    %v1196 = vmul.f32 %v1195, 0.5
    %v1197 = vadd.f32 %v1196, 0.5
    %v1198 = vtanh.pop %v1188
    %v1199 = vmul.f32 %v1189, 0.5
    %v1200 = vtanh.pop %v1199
    %v1201 = vmul.f32 %v1200, 0.5
    %v1202 = vadd.f32 %v1201, 0.5
    %v1203 = vmul.f32 %v1197, %v994
    %v1204 = vmul.f32 %v1193, %v1198
    %v1205 = vadd.f32 %v1203, %v1204
    %v1206 = vtanh.pop %v1205
    %v1207 = vmul.f32 %v1202, %v1206
    %v1208 = vpack.c.bf16 %v1207, %v1207
    %v1209 = vpack.c.bf16 %v1098, %v1098
    %1210 = vmatprep.subr.bf16.mxu0 %v661
    %1211 = vmatpush1.bf16.msra.mxu0 %v660
    %1212 = vmatprep.subr.bf16.mxu0 %v665
    %1213 = vmatpush1.bf16.msra.mxu0 %v664
    %1214 = vmatprep.subr.bf16.mxu0 %v669
    %1215 = vmatpush1.bf16.msra.mxu0 %v668
    %1216 = vmatprep.subr.bf16.mxu0 %v673
    %1217 = vmatpush1.bf16.msra.mxu0 %v672
    %1218 = vmatprep.subr.bf16.mxu0 %v677
    %1219 = vmatpush1.bf16.msra.mxu0 %v676
    %1220 = vmatprep.subr.bf16.mxu0 %v681
    %1221 = vmatpush1.bf16.msra.mxu0 %v680
    %1222 = vmatprep.subr.bf16.mxu0 %v685
    %1223 = vmatpush1.bf16.msra.mxu0 %v684
    %1224 = vmatprep.subr.bf16.mxu0 %v689
    %1225 = vmatpush1.bf16.msra.mxu0 %v688
    %1226 = vmatprep.subr.bf16.mxu0 %v693
    %1227 = vmatpush1.bf16.msra.mxu0 %v692
    %1228 = vmatprep.subr.bf16.mxu0 %v697
    %1229 = vmatpush1.bf16.msra.mxu0 %v696
    %1230 = vmatprep.subr.bf16.mxu0 %v701
    %1231 = vmatpush1.bf16.msra.mxu0 %v700
    %1232 = vmatprep.subr.bf16.mxu0 %v705
    %1233 = vmatpush1.bf16.msra.mxu0 %v704
    %1234 = vmatprep.subr.bf16.mxu0 %v709
    %1235 = vmatpush1.bf16.msra.mxu0 %v708
    %1236 = vmatprep.subr.bf16.mxu0 %v713
    %1237 = vmatpush1.bf16.msra.mxu0 %v712
    %1238 = vmatprep.subr.bf16.mxu0 %v717
    %1239 = vmatpush1.bf16.msra.mxu0 %v716
    %1240 = vmatprep.subr.bf16.mxu0 %v721
    %1241 = vmatpush1.bf16.msra.mxu0 %v720
    %1242 = vmatprep.mubr.bf16.mxu0 %v1209
    %1243 = vmatmul.mubr.bf16.gmra.mrb[0].mxu0 %v1208
    %v1244 = vpop.f32.mrb[0].mxu0
    %v1245 = vadd.f32 %v181, %v1244
    %v1246 = vpop.f32.mrb[0].mxu0
    %v1247 = vadd.f32 %v185, %v1246
    %v1248 = vpop.f32.mrb[0].mxu0
    %v1249 = vpop.f32.mrb[0].mxu0
    %1250 = vdwg.mxu0
    %1251 = vmatprep.subr.bf16.mxu0 %v663
    %1252 = vmatpush1.bf16.msra.mxu0 %v662
    %1253 = vmatprep.subr.bf16.mxu0 %v667
    %1254 = vmatpush1.bf16.msra.mxu0 %v666
    %1255 = vmatprep.subr.bf16.mxu0 %v671
    %1256 = vmatpush1.bf16.msra.mxu0 %v670
    %1257 = vmatprep.subr.bf16.mxu0 %v675
    %1258 = vmatpush1.bf16.msra.mxu0 %v674
    %1259 = vmatprep.subr.bf16.mxu0 %v679
    %1260 = vmatpush1.bf16.msra.mxu0 %v678
    %1261 = vmatprep.subr.bf16.mxu0 %v683
    %1262 = vmatpush1.bf16.msra.mxu0 %v682
    %1263 = vmatprep.subr.bf16.mxu0 %v687
    %1264 = vmatpush1.bf16.msra.mxu0 %v686
    %1265 = vmatprep.subr.bf16.mxu0 %v691
    %1266 = vmatpush1.bf16.msra.mxu0 %v690
    %1267 = vmatprep.subr.bf16.mxu0 %v695
    %1268 = vmatpush1.bf16.msra.mxu0 %v694
    %1269 = vmatprep.subr.bf16.mxu0 %v699
    %1270 = vmatpush1.bf16.msra.mxu0 %v698
    %1271 = vmatprep.subr.bf16.mxu0 %v703
    %1272 = vmatpush1.bf16.msra.mxu0 %v702
    %1273 = vmatprep.subr.bf16.mxu0 %v707
    %1274 = vmatpush1.bf16.msra.mxu0 %v706
    %1275 = vmatprep.subr.bf16.mxu0 %v711
    %1276 = vmatpush1.bf16.msra.mxu0 %v710
    %1277 = vmatprep.subr.bf16.mxu0 %v715
    %1278 = vmatpush1.bf16.msra.mxu0 %v714
    %1279 = vmatprep.subr.bf16.mxu0 %v719
    %1280 = vmatpush1.bf16.msra.mxu0 %v718
    %1281 = vmatprep.subr.bf16.mxu0 %v723
    %1282 = vmatpush1.bf16.msra.mxu0 %v722
    %1283 = vmatprep.mubr.bf16.mxu0 %v1209
    %1284 = vmatmul.mubr.bf16.gmra.mrb[0].mxu0 %v1208
    %v1285 = vpop.f32.mrb[0].mxu0
    %v1286 = vadd.f32 %v189, %v1285
    %v1287 = vpop.f32.mrb[0].mxu0
    %v1288 = vadd.f32 %v193, %v1287
    %v1289 = vpop.f32.mrb[0].mxu0
    %v1290 = vpop.f32.mrb[0].mxu0
    %1291 = vdwg.mxu0
    %v1292 = vmul.f32 %v1245, 0.5
    %v1293 = vtanh.pop %v1292
    %v1294 = vmul.f32 %v1293, 0.5
    %v1295 = vadd.f32 %v1294, 0.5
    %v1296 = vmul.f32 %v1247, 0.5
    %v1297 = vtanh.pop %v1296
    %v1298 = vmul.f32 %v1297, 0.5
    %v1299 = vadd.f32 %v1298, 0.5
    %v1300 = vtanh.pop %v1286
    %v1301 = vmul.f32 %v1288, 0.5
    %v1302 = vtanh.pop %v1301
    %v1303 = vmul.f32 %v1302, 0.5
    %v1304 = vadd.f32 %v1303, 0.5
    %v1305 = vmul.f32 %v1299, %v1096
    %v1306 = vmul.f32 %v1295, %v1300
    %v1307 = vadd.f32 %v1305, %v1306
    %v1308 = vtanh.pop %v1307
    %v1309 = vmul.f32 %v1304, %v1308
    %s1310 = scalar_lea.vmem [#allocation2], 96
    %v1311 = vld [vmem:[%s1310] sm:$0xff]
    %v1312 = vld [vmem:[%s1310 + $0x8] sm:$0xff]
    %v1313 = vld [vmem:[%s1310 + $0x10] sm:$0xff]
    %v1314 = vld [vmem:[%s1310 + $0x18] sm:$0xff]
    %1315 = vmatprep.subr.bf16.mxu0 %v299
    %1316 = vmatpush1.bf16.msra.mxu0 %v298
    %1317 = vmatprep.subr.bf16.mxu0 %v303
    %1318 = vmatpush1.bf16.msra.mxu0 %v302
    %1319 = vmatprep.subr.bf16.mxu0 %v307
    %1320 = vmatpush1.bf16.msra.mxu0 %v306
    %1321 = vmatprep.subr.bf16.mxu0 %v311
    %1322 = vmatpush1.bf16.msra.mxu0 %v310
    %1323 = vmatprep.subr.bf16.mxu0 %v315
    %1324 = vmatpush1.bf16.msra.mxu0 %v314
    %1325 = vmatprep.subr.bf16.mxu0 %v319
    %1326 = vmatpush1.bf16.msra.mxu0 %v318
    %1327 = vmatprep.subr.bf16.mxu0 %v323
    %1328 = vmatpush1.bf16.msra.mxu0 %v322
    %1329 = vmatprep.subr.bf16.mxu0 %v327
    %1330 = vmatpush1.bf16.msra.mxu0 %v326
    %1331 = vmatprep.subr.bf16.mxu0 0
    %1332 = vmatpush1.bf16.msra.mxu0 0
    %1333 = vmatprep.subr.bf16.mxu0 0
    %1334 = vmatpush1.bf16.msra.mxu0 0
    %1335 = vmatprep.subr.bf16.mxu0 0
    %1336 = vmatpush1.bf16.msra.mxu0 0
    %1337 = vmatprep.subr.bf16.mxu0 0
    %1338 = vmatpush1.bf16.msra.mxu0 0
    %1339 = vmatprep.subr.bf16.mxu0 0
    %1340 = vmatpush1.bf16.msra.mxu0 0
    %1341 = vmatprep.subr.bf16.mxu0 0
    %1342 = vmatpush1.bf16.msra.mxu0 0
    %1343 = vmatprep.subr.bf16.mxu0 0
    %1344 = vmatpush1.bf16.msra.mxu0 0
    %1345 = vmatprep.subr.bf16.mxu0 0
    %1346 = vmatpush1.bf16.msra.mxu0 0
    %1347 = vmatprep.mubr.bf16.mxu0 0
    %1348 = vmatmul.mubr.bf16.gmra.mrb[0].mxu0 %v1208
    %v1349 = vpop.f32.mrb[0].mxu0
    %v1350 = vadd.f32 0.0, %v1349
    %v1351 = vpop.f32.mrb[0].mxu0
    %v1352 = vadd.f32 0.0, %v1351
    %v1353 = vpop.f32.mrb[0].mxu0
    %v1354 = vpop.f32.mrb[0].mxu0
    %1355 = vdwg.mxu0
    %1356 = vmatprep.subr.bf16.mxu0 %v301
    %1357 = vmatpush1.bf16.msra.mxu0 %v300
    %1358 = vmatprep.subr.bf16.mxu0 %v305
    %1359 = vmatpush1.bf16.msra.mxu0 %v304
    %1360 = vmatprep.subr.bf16.mxu0 %v309
    %1361 = vmatpush1.bf16.msra.mxu0 %v308
    %1362 = vmatprep.subr.bf16.mxu0 %v313
    %1363 = vmatpush1.bf16.msra.mxu0 %v312
    %1364 = vmatprep.subr.bf16.mxu0 %v317
    %1365 = vmatpush1.bf16.msra.mxu0 %v316
    %1366 = vmatprep.subr.bf16.mxu0 %v321
    %1367 = vmatpush1.bf16.msra.mxu0 %v320
    %1368 = vmatprep.subr.bf16.mxu0 %v325
    %1369 = vmatpush1.bf16.msra.mxu0 %v324
    %1370 = vmatprep.subr.bf16.mxu0 %v329
    %1371 = vmatpush1.bf16.msra.mxu0 %v328
    %1372 = vmatprep.subr.bf16.mxu0 0
    %1373 = vmatpush1.bf16.msra.mxu0 0
    %1374 = vmatprep.subr.bf16.mxu0 0
    %1375 = vmatpush1.bf16.msra.mxu0 0
    %1376 = vmatprep.subr.bf16.mxu0 0
    %1377 = vmatpush1.bf16.msra.mxu0 0
    %1378 = vmatprep.subr.bf16.mxu0 0
    %1379 = vmatpush1.bf16.msra.mxu0 0
    %1380 = vmatprep.subr.bf16.mxu0 0
    %1381 = vmatpush1.bf16.msra.mxu0 0
    %1382 = vmatprep.subr.bf16.mxu0 0
    %1383 = vmatpush1.bf16.msra.mxu0 0
    %1384 = vmatprep.subr.bf16.mxu0 0
    %1385 = vmatpush1.bf16.msra.mxu0 0
    %1386 = vmatprep.subr.bf16.mxu0 0
    %1387 = vmatpush1.bf16.msra.mxu0 0
    %1388 = vmatprep.mubr.bf16.mxu0 0
    %1389 = vmatmul.mubr.bf16.gmra.mrb[0].mxu0 %v1208
    %v1390 = vpop.f32.mrb[0].mxu0
    %v1391 = vadd.f32 0.0, %v1390
    %v1392 = vpop.f32.mrb[0].mxu0
    %v1393 = vadd.f32 0.0, %v1392
    %v1394 = vpop.f32.mrb[0].mxu0
    %v1395 = vpop.f32.mrb[0].mxu0
    %1396 = vdwg.mxu0
    %v1397 = vadd.f32 %v1311, %v1350
    %v1398 = vadd.f32 %v1312, %v1352
    %v1399 = vadd.f32 %v1313, %v1391
    %v1400 = vadd.f32 %v1314, %v1393
    %v1401 = vmul.f32 %v1397, 0.5
    %v1402 = vtanh.pop %v1401
    %v1403 = vmul.f32 %v1402, 0.5
    %v1404 = vadd.f32 %v1403, 0.5
    %v1405 = vmul.f32 %v1398, 0.5
    %v1406 = vtanh.pop %v1405
    %v1407 = vmul.f32 %v1406, 0.5
    %v1408 = vadd.f32 %v1407, 0.5
    %v1409 = vtanh.pop %v1399
    %v1410 = vmul.f32 %v1400, 0.5
    %v1411 = vtanh.pop %v1410
    %v1412 = vmul.f32 %v1411, 0.5
    %v1413 = vadd.f32 %v1412, 0.5
    %v1414 = vmul.f32 %v1408, %v1205
    %v1415 = vmul.f32 %v1404, %v1409
    %v1416 = vadd.f32 %v1414, %v1415
    %v1417 = vtanh.pop %v1416
    %v1418 = vmul.f32 %v1413, %v1417
    %v1419 = vpack.c.bf16 %v1418, %v1418
    %v1420 = vpack.c.bf16 %v1309, %v1309
    %1421 = vmatprep.subr.bf16.mxu0 %v661
    %1422 = vmatpush1.bf16.msra.mxu0 %v660
    %1423 = vmatprep.subr.bf16.mxu0 %v665
    %1424 = vmatpush1.bf16.msra.mxu0 %v664
    %1425 = vmatprep.subr.bf16.mxu0 %v669
    %1426 = vmatpush1.bf16.msra.mxu0 %v668
    %1427 = vmatprep.subr.bf16.mxu0 %v673
    %1428 = vmatpush1.bf16.msra.mxu0 %v672
    %1429 = vmatprep.subr.bf16.mxu0 %v677
    %1430 = vmatpush1.bf16.msra.mxu0 %v676
    %1431 = vmatprep.subr.bf16.mxu0 %v681
    %1432 = vmatpush1.bf16.msra.mxu0 %v680
    %1433 = vmatprep.subr.bf16.mxu0 %v685
    %1434 = vmatpush1.bf16.msra.mxu0 %v684
    %1435 = vmatprep.subr.bf16.mxu0 %v689
    %1436 = vmatpush1.bf16.msra.mxu0 %v688
    %1437 = vmatprep.subr.bf16.mxu0 %v693
    %1438 = vmatpush1.bf16.msra.mxu0 %v692
    %1439 = vmatprep.subr.bf16.mxu0 %v697
    %1440 = vmatpush1.bf16.msra.mxu0 %v696
    %1441 = vmatprep.subr.bf16.mxu0 %v701
    %1442 = vmatpush1.bf16.msra.mxu0 %v700
    %1443 = vmatprep.subr.bf16.mxu0 %v705
    %1444 = vmatpush1.bf16.msra.mxu0 %v704
    %1445 = vmatprep.subr.bf16.mxu0 %v709
    %1446 = vmatpush1.bf16.msra.mxu0 %v708
    %1447 = vmatprep.subr.bf16.mxu0 %v713
    %1448 = vmatpush1.bf16.msra.mxu0 %v712
    %1449 = vmatprep.subr.bf16.mxu0 %v717
    %1450 = vmatpush1.bf16.msra.mxu0 %v716
    %1451 = vmatprep.subr.bf16.mxu0 %v721
    %1452 = vmatpush1.bf16.msra.mxu0 %v720
    %1453 = vmatprep.mubr.bf16.mxu0 %v1420
    %1454 = vmatmul.mubr.bf16.gmra.mrb[0].mxu0 %v1419
    %v1455 = vpop.f32.mrb[0].mxu0
    %v1456 = vadd.f32 %v181, %v1455
    %v1457 = vpop.f32.mrb[0].mxu0
    %v1458 = vadd.f32 %v185, %v1457
    %v1459 = vpop.f32.mrb[0].mxu0
    %v1460 = vpop.f32.mrb[0].mxu0
    %1461 = vdwg.mxu0
    %1462 = vmatprep.subr.bf16.mxu0 %v663
    %1463 = vmatpush1.bf16.msra.mxu0 %v662
    %1464 = vmatprep.subr.bf16.mxu0 %v667
    %1465 = vmatpush1.bf16.msra.mxu0 %v666
    %1466 = vmatprep.subr.bf16.mxu0 %v671
    %1467 = vmatpush1.bf16.msra.mxu0 %v670
    %1468 = vmatprep.subr.bf16.mxu0 %v675
    %1469 = vmatpush1.bf16.msra.mxu0 %v674
    %1470 = vmatprep.subr.bf16.mxu0 %v679
    %1471 = vmatpush1.bf16.msra.mxu0 %v678
    %1472 = vmatprep.subr.bf16.mxu0 %v683
    %1473 = vmatpush1.bf16.msra.mxu0 %v682
    %1474 = vmatprep.subr.bf16.mxu0 %v687
    %1475 = vmatpush1.bf16.msra.mxu0 %v686
    %1476 = vmatprep.subr.bf16.mxu0 %v691
    %1477 = vmatpush1.bf16.msra.mxu0 %v690
    %1478 = vmatprep.subr.bf16.mxu0 %v695
    %1479 = vmatpush1.bf16.msra.mxu0 %v694
    %1480 = vmatprep.subr.bf16.mxu0 %v699
    %1481 = vmatpush1.bf16.msra.mxu0 %v698
    %1482 = vmatprep.subr.bf16.mxu0 %v703
    %1483 = vmatpush1.bf16.msra.mxu0 %v702
    %1484 = vmatprep.subr.bf16.mxu0 %v707
    %1485 = vmatpush1.bf16.msra.mxu0 %v706
    %1486 = vmatprep.subr.bf16.mxu0 %v711
    %1487 = vmatpush1.bf16.msra.mxu0 %v710
    %1488 = vmatprep.subr.bf16.mxu0 %v715
    %1489 = vmatpush1.bf16.msra.mxu0 %v714
    %1490 = vmatprep.subr.bf16.mxu0 %v719
    %1491 = vmatpush1.bf16.msra.mxu0 %v718
    %1492 = vmatprep.subr.bf16.mxu0 %v723
    %1493 = vmatpush1.bf16.msra.mxu0 %v722
    %1494 = vmatprep.mubr.bf16.mxu0 %v1420
    %1495 = vmatmul.mubr.bf16.gmra.mrb[0].mxu0 %v1419
    %v1496 = vpop.f32.mrb[0].mxu0
    %v1497 = vadd.f32 %v189, %v1496
    %v1498 = vpop.f32.mrb[0].mxu0
    %v1499 = vadd.f32 %v193, %v1498
    %v1500 = vpop.f32.mrb[0].mxu0
    %v1501 = vpop.f32.mrb[0].mxu0
    %1502 = vdwg.mxu0
    %v1503 = vmul.f32 %v1456, 0.5
    %v1504 = vtanh.pop %v1503
    %v1505 = vmul.f32 %v1504, 0.5
    %v1506 = vadd.f32 %v1505, 0.5
    %v1507 = vmul.f32 %v1458, 0.5
    %v1508 = vtanh.pop %v1507
    %v1509 = vmul.f32 %v1508, 0.5
    %v1510 = vadd.f32 %v1509, 0.5
    %v1511 = vtanh.pop %v1497
    %v1512 = vmul.f32 %v1499, 0.5
    %v1513 = vtanh.pop %v1512
    %v1514 = vmul.f32 %v1513, 0.5
    %v1515 = vadd.f32 %v1514, 0.5
    %v1516 = vmul.f32 %v1510, %v1307
    %v1517 = vmul.f32 %v1506, %v1511
    %v1518 = vadd.f32 %v1516, %v1517
    %v1519 = vtanh.pop %v1518
    %v1520 = vmul.f32 %v1515, %v1519
    %s1521 = scalar_lea.vmem [#allocation2], 128
    %v1522 = vld [vmem:[%s1521] sm:$0xff]
    %v1523 = vld [vmem:[%s1521 + $0x8] sm:$0xff]
    %v1524 = vld [vmem:[%s1521 + $0x10] sm:$0xff]
    %v1525 = vld [vmem:[%s1521 + $0x18] sm:$0xff]
    %1526 = vmatprep.subr.bf16.mxu0 %v299
    %1527 = vmatpush1.bf16.msra.mxu0 %v298
    %1528 = vmatprep.subr.bf16.mxu0 %v303
    %1529 = vmatpush1.bf16.msra.mxu0 %v302
    %1530 = vmatprep.subr.bf16.mxu0 %v307
    %1531 = vmatpush1.bf16.msra.mxu0 %v306
    %1532 = vmatprep.subr.bf16.mxu0 %v311
    %1533 = vmatpush1.bf16.msra.mxu0 %v310
    %1534 = vmatprep.subr.bf16.mxu0 %v315
    %1535 = vmatpush1.bf16.msra.mxu0 %v314
    %1536 = vmatprep.subr.bf16.mxu0 %v319
    %1537 = vmatpush1.bf16.msra.mxu0 %v318
    %1538 = vmatprep.subr.bf16.mxu0 %v323
    %1539 = vmatpush1.bf16.msra.mxu0 %v322
    %1540 = vmatprep.subr.bf16.mxu0 %v327
    %1541 = vmatpush1.bf16.msra.mxu0 %v326
    %1542 = vmatprep.subr.bf16.mxu0 0
    %1543 = vmatpush1.bf16.msra.mxu0 0
    %1544 = vmatprep.subr.bf16.mxu0 0
    %1545 = vmatpush1.bf16.msra.mxu0 0
    %1546 = vmatprep.subr.bf16.mxu0 0
    %1547 = vmatpush1.bf16.msra.mxu0 0
    %1548 = vmatprep.subr.bf16.mxu0 0
    %1549 = vmatpush1.bf16.msra.mxu0 0
    %1550 = vmatprep.subr.bf16.mxu0 0
    %1551 = vmatpush1.bf16.msra.mxu0 0
    %1552 = vmatprep.subr.bf16.mxu0 0
    %1553 = vmatpush1.bf16.msra.mxu0 0
    %1554 = vmatprep.subr.bf16.mxu0 0
    %1555 = vmatpush1.bf16.msra.mxu0 0
    %1556 = vmatprep.subr.bf16.mxu0 0
    %1557 = vmatpush1.bf16.msra.mxu0 0
    %1558 = vmatprep.mubr.bf16.mxu0 0
    %1559 = vmatmul.mubr.bf16.gmra.mrb[0].mxu0 %v1419
    %v1560 = vpop.f32.mrb[0].mxu0
    %v1561 = vadd.f32 0.0, %v1560
    %v1562 = vpop.f32.mrb[0].mxu0
    %v1563 = vadd.f32 0.0, %v1562
    %v1564 = vpop.f32.mrb[0].mxu0
    %v1565 = vpop.f32.mrb[0].mxu0
    %1566 = vdwg.mxu0
    %1567 = vmatprep.subr.bf16.mxu0 %v301
    %1568 = vmatpush1.bf16.msra.mxu0 %v300
    %1569 = vmatprep.subr.bf16.mxu0 %v305
    %1570 = vmatpush1.bf16.msra.mxu0 %v304
    %1571 = vmatprep.subr.bf16.mxu0 %v309
    %1572 = vmatpush1.bf16.msra.mxu0 %v308
    %1573 = vmatprep.subr.bf16.mxu0 %v313
    %1574 = vmatpush1.bf16.msra.mxu0 %v312
    %1575 = vmatprep.subr.bf16.mxu0 %v317
    %1576 = vmatpush1.bf16.msra.mxu0 %v316
    %1577 = vmatprep.subr.bf16.mxu0 %v321
    %1578 = vmatpush1.bf16.msra.mxu0 %v320
    %1579 = vmatprep.subr.bf16.mxu0 %v325
    %1580 = vmatpush1.bf16.msra.mxu0 %v324
    %1581 = vmatprep.subr.bf16.mxu0 %v329
    %1582 = vmatpush1.bf16.msra.mxu0 %v328
    %1583 = vmatprep.subr.bf16.mxu0 0
    %1584 = vmatpush1.bf16.msra.mxu0 0
    %1585 = vmatprep.subr.bf16.mxu0 0
    %1586 = vmatpush1.bf16.msra.mxu0 0
    %1587 = vmatprep.subr.bf16.mxu0 0
    %1588 = vmatpush1.bf16.msra.mxu0 0
    %1589 = vmatprep.subr.bf16.mxu0 0
    %1590 = vmatpush1.bf16.msra.mxu0 0
    %1591 = vmatprep.subr.bf16.mxu0 0
    %1592 = vmatpush1.bf16.msra.mxu0 0
    %1593 = vmatprep.subr.bf16.mxu0 0
    %1594 = vmatpush1.bf16.msra.mxu0 0
    %1595 = vmatprep.subr.bf16.mxu0 0
    %1596 = vmatpush1.bf16.msra.mxu0 0
    %1597 = vmatprep.subr.bf16.mxu0 0
    %1598 = vmatpush1.bf16.msra.mxu0 0
    %1599 = vmatprep.mubr.bf16.mxu0 0
    %1600 = vmatmul.mubr.bf16.gmra.mrb[0].mxu0 %v1419
    %v1601 = vpop.f32.mrb[0].mxu0
    %v1602 = vadd.f32 0.0, %v1601
    %v1603 = vpop.f32.mrb[0].mxu0
    %v1604 = vadd.f32 0.0, %v1603
    %v1605 = vpop.f32.mrb[0].mxu0
    %v1606 = vpop.f32.mrb[0].mxu0
    %1607 = vdwg.mxu0
    %v1608 = vadd.f32 %v1522, %v1561
    %v1609 = vadd.f32 %v1523, %v1563
    %v1610 = vadd.f32 %v1524, %v1602
    %v1611 = vadd.f32 %v1525, %v1604
    %v1612 = vmul.f32 %v1608, 0.5
    %v1613 = vtanh.pop %v1612
    %v1614 = vmul.f32 %v1613, 0.5
    %v1615 = vadd.f32 %v1614, 0.5
    %v1616 = vmul.f32 %v1609, 0.5
    %v1617 = vtanh.pop %v1616
    %v1618 = vmul.f32 %v1617, 0.5
    %v1619 = vadd.f32 %v1618, 0.5
    %v1620 = vtanh.pop %v1610
    %v1621 = vmul.f32 %v1611, 0.5
    %v1622 = vtanh.pop %v1621
    %v1623 = vmul.f32 %v1622, 0.5
    %v1624 = vadd.f32 %v1623, 0.5
    %v1625 = vmul.f32 %v1619, %v1416
    %v1626 = vmul.f32 %v1615, %v1620
    %v1627 = vadd.f32 %v1625, %v1626
    %v1628 = vtanh.pop %v1627
    %v1629 = vmul.f32 %v1624, %v1628
    %v1630 = vpack.c.bf16 %v1629, %v1629
    %v1631 = vpack.c.bf16 %v1520, %v1520
    %1632 = vmatprep.subr.bf16.mxu0 %v661
    %1633 = vmatpush1.bf16.msra.mxu0 %v660
    %1634 = vmatprep.subr.bf16.mxu0 %v665
    %1635 = vmatpush1.bf16.msra.mxu0 %v664
    %1636 = vmatprep.subr.bf16.mxu0 %v669
    %1637 = vmatpush1.bf16.msra.mxu0 %v668
    %1638 = vmatprep.subr.bf16.mxu0 %v673
    %1639 = vmatpush1.bf16.msra.mxu0 %v672
    %1640 = vmatprep.subr.bf16.mxu0 %v677
    %1641 = vmatpush1.bf16.msra.mxu0 %v676
    %1642 = vmatprep.subr.bf16.mxu0 %v681
    %1643 = vmatpush1.bf16.msra.mxu0 %v680
    %1644 = vmatprep.subr.bf16.mxu0 %v685
    %1645 = vmatpush1.bf16.msra.mxu0 %v684
    %1646 = vmatprep.subr.bf16.mxu0 %v689
    %1647 = vmatpush1.bf16.msra.mxu0 %v688
    %1648 = vmatprep.subr.bf16.mxu0 %v693
    %1649 = vmatpush1.bf16.msra.mxu0 %v692
    %1650 = vmatprep.subr.bf16.mxu0 %v697
    %1651 = vmatpush1.bf16.msra.mxu0 %v696
    %1652 = vmatprep.subr.bf16.mxu0 %v701
    %1653 = vmatpush1.bf16.msra.mxu0 %v700
    %1654 = vmatprep.subr.bf16.mxu0 %v705
    %1655 = vmatpush1.bf16.msra.mxu0 %v704
    %1656 = vmatprep.subr.bf16.mxu0 %v709
    %1657 = vmatpush1.bf16.msra.mxu0 %v708
    %1658 = vmatprep.subr.bf16.mxu0 %v713
    %1659 = vmatpush1.bf16.msra.mxu0 %v712
    %1660 = vmatprep.subr.bf16.mxu0 %v717
    %1661 = vmatpush1.bf16.msra.mxu0 %v716
    %1662 = vmatprep.subr.bf16.mxu0 %v721
    %1663 = vmatpush1.bf16.msra.mxu0 %v720
    %1664 = vmatprep.mubr.bf16.mxu0 %v1631
    %1665 = vmatmul.mubr.bf16.gmra.mrb[0].mxu0 %v1630
    %v1666 = vpop.f32.mrb[0].mxu0
    %v1667 = vadd.f32 %v181, %v1666
    %v1668 = vpop.f32.mrb[0].mxu0
    %v1669 = vadd.f32 %v185, %v1668
    %v1670 = vpop.f32.mrb[0].mxu0
    %v1671 = vpop.f32.mrb[0].mxu0
    %1672 = vdwg.mxu0
    %1673 = vmatprep.subr.bf16.mxu0 %v663
    %1674 = vmatpush1.bf16.msra.mxu0 %v662
    %1675 = vmatprep.subr.bf16.mxu0 %v667
    %1676 = vmatpush1.bf16.msra.mxu0 %v666
    %1677 = vmatprep.subr.bf16.mxu0 %v671
    %1678 = vmatpush1.bf16.msra.mxu0 %v670
    %1679 = vmatprep.subr.bf16.mxu0 %v675
    %1680 = vmatpush1.bf16.msra.mxu0 %v674
    %1681 = vmatprep.subr.bf16.mxu0 %v679
    %1682 = vmatpush1.bf16.msra.mxu0 %v678
    %1683 = vmatprep.subr.bf16.mxu0 %v683
    %1684 = vmatpush1.bf16.msra.mxu0 %v682
    %1685 = vmatprep.subr.bf16.mxu0 %v687
    %1686 = vmatpush1.bf16.msra.mxu0 %v686
    %1687 = vmatprep.subr.bf16.mxu0 %v691
    %1688 = vmatpush1.bf16.msra.mxu0 %v690
    %1689 = vmatprep.subr.bf16.mxu0 %v695
    %1690 = vmatpush1.bf16.msra.mxu0 %v694
    %1691 = vmatprep.subr.bf16.mxu0 %v699
    %1692 = vmatpush1.bf16.msra.mxu0 %v698
    %1693 = vmatprep.subr.bf16.mxu0 %v703
    %1694 = vmatpush1.bf16.msra.mxu0 %v702
    %1695 = vmatprep.subr.bf16.mxu0 %v707
    %1696 = vmatpush1.bf16.msra.mxu0 %v706
    %1697 = vmatprep.subr.bf16.mxu0 %v711
    %1698 = vmatpush1.bf16.msra.mxu0 %v710
    %1699 = vmatprep.subr.bf16.mxu0 %v715
    %1700 = vmatpush1.bf16.msra.mxu0 %v714
    %1701 = vmatprep.subr.bf16.mxu0 %v719
    %1702 = vmatpush1.bf16.msra.mxu0 %v718
    %1703 = vmatprep.subr.bf16.mxu0 %v723
    %1704 = vmatpush1.bf16.msra.mxu0 %v722
    %1705 = vmatprep.mubr.bf16.mxu0 %v1631
    %1706 = vmatmul.mubr.bf16.gmra.mrb[0].mxu0 %v1630
    %v1707 = vpop.f32.mrb[0].mxu0
    %v1708 = vadd.f32 %v189, %v1707
    %v1709 = vpop.f32.mrb[0].mxu0
    %v1710 = vadd.f32 %v193, %v1709
    %v1711 = vpop.f32.mrb[0].mxu0
    %v1712 = vpop.f32.mrb[0].mxu0
    %1713 = vdwg.mxu0
    %v1714 = vmul.f32 %v1667, 0.5
    %v1715 = vtanh.pop %v1714
    %v1716 = vmul.f32 %v1715, 0.5
    %v1717 = vadd.f32 %v1716, 0.5
    %v1718 = vmul.f32 %v1669, 0.5
    %v1719 = vtanh.pop %v1718
    %v1720 = vmul.f32 %v1719, 0.5
    %v1721 = vadd.f32 %v1720, 0.5
    %v1722 = vtanh.pop %v1708
    %v1723 = vmul.f32 %v1710, 0.5
    %v1724 = vtanh.pop %v1723
    %v1725 = vmul.f32 %v1724, 0.5
    %v1726 = vadd.f32 %v1725, 0.5
    %v1727 = vmul.f32 %v1721, %v1518
    %v1728 = vmul.f32 %v1717, %v1722
    %v1729 = vadd.f32 %v1727, %v1728
    %v1730 = vtanh.pop %v1729
    %v1731 = vmul.f32 %v1726, %v1730
    %s1732 = scalar_lea.vmem [#allocation2], 160
    %v1733 = vld [vmem:[%s1732] sm:$0xff]
    %v1734 = vld [vmem:[%s1732 + $0x8] sm:$0xff]
    %v1735 = vld [vmem:[%s1732 + $0x10] sm:$0xff]
    %v1736 = vld [vmem:[%s1732 + $0x18] sm:$0xff]
    %1737 = vmatprep.subr.bf16.mxu0 %v299
    %1738 = vmatpush1.bf16.msra.mxu0 %v298
    %1739 = vmatprep.subr.bf16.mxu0 %v303
    %1740 = vmatpush1.bf16.msra.mxu0 %v302
    %1741 = vmatprep.subr.bf16.mxu0 %v307
    %1742 = vmatpush1.bf16.msra.mxu0 %v306
    %1743 = vmatprep.subr.bf16.mxu0 %v311
    %1744 = vmatpush1.bf16.msra.mxu0 %v310
    %1745 = vmatprep.subr.bf16.mxu0 %v315
    %1746 = vmatpush1.bf16.msra.mxu0 %v314
    %1747 = vmatprep.subr.bf16.mxu0 %v319
    %1748 = vmatpush1.bf16.msra.mxu0 %v318
    %1749 = vmatprep.subr.bf16.mxu0 %v323
    %1750 = vmatpush1.bf16.msra.mxu0 %v322
    %1751 = vmatprep.subr.bf16.mxu0 %v327
    %1752 = vmatpush1.bf16.msra.mxu0 %v326
    %1753 = vmatprep.subr.bf16.mxu0 0
    %1754 = vmatpush1.bf16.msra.mxu0 0
    %1755 = vmatprep.subr.bf16.mxu0 0
    %1756 = vmatpush1.bf16.msra.mxu0 0
    %1757 = vmatprep.subr.bf16.mxu0 0
    %1758 = vmatpush1.bf16.msra.mxu0 0
    %1759 = vmatprep.subr.bf16.mxu0 0
    %1760 = vmatpush1.bf16.msra.mxu0 0
    %1761 = vmatprep.subr.bf16.mxu0 0
    %1762 = vmatpush1.bf16.msra.mxu0 0
    %1763 = vmatprep.subr.bf16.mxu0 0
    %1764 = vmatpush1.bf16.msra.mxu0 0
    %1765 = vmatprep.subr.bf16.mxu0 0
    %1766 = vmatpush1.bf16.msra.mxu0 0
    %1767 = vmatprep.subr.bf16.mxu0 0
    %1768 = vmatpush1.bf16.msra.mxu0 0
    %1769 = vmatprep.mubr.bf16.mxu0 0
    %1770 = vmatmul.mubr.bf16.gmra.mrb[0].mxu0 %v1630
    %v1771 = vpop.f32.mrb[0].mxu0
    %v1772 = vadd.f32 0.0, %v1771
    %v1773 = vpop.f32.mrb[0].mxu0
    %v1774 = vadd.f32 0.0, %v1773
    %v1775 = vpop.f32.mrb[0].mxu0
    %v1776 = vpop.f32.mrb[0].mxu0
    %1777 = vdwg.mxu0
    %1778 = vmatprep.subr.bf16.mxu0 %v301
    %1779 = vmatpush1.bf16.msra.mxu0 %v300
    %1780 = vmatprep.subr.bf16.mxu0 %v305
    %1781 = vmatpush1.bf16.msra.mxu0 %v304
    %1782 = vmatprep.subr.bf16.mxu0 %v309
    %1783 = vmatpush1.bf16.msra.mxu0 %v308
    %1784 = vmatprep.subr.bf16.mxu0 %v313
    %1785 = vmatpush1.bf16.msra.mxu0 %v312
    %1786 = vmatprep.subr.bf16.mxu0 %v317
    %1787 = vmatpush1.bf16.msra.mxu0 %v316
    %1788 = vmatprep.subr.bf16.mxu0 %v321
    %1789 = vmatpush1.bf16.msra.mxu0 %v320
    %1790 = vmatprep.subr.bf16.mxu0 %v325
    %1791 = vmatpush1.bf16.msra.mxu0 %v324
    %1792 = vmatprep.subr.bf16.mxu0 %v329
    %1793 = vmatpush1.bf16.msra.mxu0 %v328
    %1794 = vmatprep.subr.bf16.mxu0 0
    %1795 = vmatpush1.bf16.msra.mxu0 0
    %1796 = vmatprep.subr.bf16.mxu0 0
    %1797 = vmatpush1.bf16.msra.mxu0 0
    %1798 = vmatprep.subr.bf16.mxu0 0
    %1799 = vmatpush1.bf16.msra.mxu0 0
    %1800 = vmatprep.subr.bf16.mxu0 0
    %1801 = vmatpush1.bf16.msra.mxu0 0
    %1802 = vmatprep.subr.bf16.mxu0 0
    %1803 = vmatpush1.bf16.msra.mxu0 0
    %1804 = vmatprep.subr.bf16.mxu0 0
    %1805 = vmatpush1.bf16.msra.mxu0 0
    %1806 = vmatprep.subr.bf16.mxu0 0
    %1807 = vmatpush1.bf16.msra.mxu0 0
    %1808 = vmatprep.subr.bf16.mxu0 0
    %1809 = vmatpush1.bf16.msra.mxu0 0
    %1810 = vmatprep.mubr.bf16.mxu0 0
    %1811 = vmatmul.mubr.bf16.gmra.mrb[0].mxu0 %v1630
    %v1812 = vpop.f32.mrb[0].mxu0
    %v1813 = vadd.f32 0.0, %v1812
    %v1814 = vpop.f32.mrb[0].mxu0
    %v1815 = vadd.f32 0.0, %v1814
    %v1816 = vpop.f32.mrb[0].mxu0
    %v1817 = vpop.f32.mrb[0].mxu0
    %1818 = vdwg.mxu0
    %v1819 = vadd.f32 %v1733, %v1772
    %v1820 = vadd.f32 %v1734, %v1774
    %v1821 = vadd.f32 %v1735, %v1813
    %v1822 = vadd.f32 %v1736, %v1815
    %v1823 = vmul.f32 %v1819, 0.5
    %v1824 = vtanh.pop %v1823
    %v1825 = vmul.f32 %v1824, 0.5
    %v1826 = vadd.f32 %v1825, 0.5
    %v1827 = vmul.f32 %v1820, 0.5
    %v1828 = vtanh.pop %v1827
    %v1829 = vmul.f32 %v1828, 0.5
    %v1830 = vadd.f32 %v1829, 0.5
    %v1831 = vtanh.pop %v1821
    %v1832 = vmul.f32 %v1822, 0.5
    %v1833 = vtanh.pop %v1832
    %v1834 = vmul.f32 %v1833, 0.5
    %v1835 = vadd.f32 %v1834, 0.5
    %v1836 = vmul.f32 %v1830, %v1627
    %v1837 = vmul.f32 %v1826, %v1831
    %v1838 = vadd.f32 %v1836, %v1837
    %v1839 = vtanh.pop %v1838
    %v1840 = vmul.f32 %v1835, %v1839
    %v1841 = vpack.c.bf16 %v1840, %v1840
    %v1842 = vpack.c.bf16 %v1731, %v1731
    %1843 = vmatprep.subr.bf16.mxu0 %v661
    %1844 = vmatpush1.bf16.msra.mxu0 %v660
    %1845 = vmatprep.subr.bf16.mxu0 %v665
    %1846 = vmatpush1.bf16.msra.mxu0 %v664
    %1847 = vmatprep.subr.bf16.mxu0 %v669
    %1848 = vmatpush1.bf16.msra.mxu0 %v668
    %1849 = vmatprep.subr.bf16.mxu0 %v673
    %1850 = vmatpush1.bf16.msra.mxu0 %v672
    %1851 = vmatprep.subr.bf16.mxu0 %v677
    %1852 = vmatpush1.bf16.msra.mxu0 %v676
    %1853 = vmatprep.subr.bf16.mxu0 %v681
    %1854 = vmatpush1.bf16.msra.mxu0 %v680
    %1855 = vmatprep.subr.bf16.mxu0 %v685
    %1856 = vmatpush1.bf16.msra.mxu0 %v684
    %1857 = vmatprep.subr.bf16.mxu0 %v689
    %1858 = vmatpush1.bf16.msra.mxu0 %v688
    %1859 = vmatprep.subr.bf16.mxu0 %v693
    %1860 = vmatpush1.bf16.msra.mxu0 %v692
    %1861 = vmatprep.subr.bf16.mxu0 %v697
    %1862 = vmatpush1.bf16.msra.mxu0 %v696
    %1863 = vmatprep.subr.bf16.mxu0 %v701
    %1864 = vmatpush1.bf16.msra.mxu0 %v700
    %1865 = vmatprep.subr.bf16.mxu0 %v705
    %1866 = vmatpush1.bf16.msra.mxu0 %v704
    %1867 = vmatprep.subr.bf16.mxu0 %v709
    %1868 = vmatpush1.bf16.msra.mxu0 %v708
    %1869 = vmatprep.subr.bf16.mxu0 %v713
    %1870 = vmatpush1.bf16.msra.mxu0 %v712
    %1871 = vmatprep.subr.bf16.mxu0 %v717
    %1872 = vmatpush1.bf16.msra.mxu0 %v716
    %1873 = vmatprep.subr.bf16.mxu0 %v721
    %1874 = vmatpush1.bf16.msra.mxu0 %v720
    %1875 = vmatprep.mubr.bf16.mxu0 %v1842
    %1876 = vmatmul.mubr.bf16.gmra.mrb[0].mxu0 %v1841
    %v1877 = vpop.f32.mrb[0].mxu0
    %v1878 = vadd.f32 %v181, %v1877
    %v1879 = vpop.f32.mrb[0].mxu0
    %v1880 = vadd.f32 %v185, %v1879
    %v1881 = vpop.f32.mrb[0].mxu0
    %v1882 = vpop.f32.mrb[0].mxu0
    %1883 = vdwg.mxu0
    %1884 = vmatprep.subr.bf16.mxu0 %v663
    %1885 = vmatpush1.bf16.msra.mxu0 %v662
    %1886 = vmatprep.subr.bf16.mxu0 %v667
    %1887 = vmatpush1.bf16.msra.mxu0 %v666
    %1888 = vmatprep.subr.bf16.mxu0 %v671
    %1889 = vmatpush1.bf16.msra.mxu0 %v670
    %1890 = vmatprep.subr.bf16.mxu0 %v675
    %1891 = vmatpush1.bf16.msra.mxu0 %v674
    %1892 = vmatprep.subr.bf16.mxu0 %v679
    %1893 = vmatpush1.bf16.msra.mxu0 %v678
    %1894 = vmatprep.subr.bf16.mxu0 %v683
    %1895 = vmatpush1.bf16.msra.mxu0 %v682
    %1896 = vmatprep.subr.bf16.mxu0 %v687
    %1897 = vmatpush1.bf16.msra.mxu0 %v686
    %1898 = vmatprep.subr.bf16.mxu0 %v691
    %1899 = vmatpush1.bf16.msra.mxu0 %v690
    %1900 = vmatprep.subr.bf16.mxu0 %v695
    %1901 = vmatpush1.bf16.msra.mxu0 %v694
    %1902 = vmatprep.subr.bf16.mxu0 %v699
    %1903 = vmatpush1.bf16.msra.mxu0 %v698
    %1904 = vmatprep.subr.bf16.mxu0 %v703
    %1905 = vmatpush1.bf16.msra.mxu0 %v702
    %1906 = vmatprep.subr.bf16.mxu0 %v707
    %1907 = vmatpush1.bf16.msra.mxu0 %v706
    %1908 = vmatprep.subr.bf16.mxu0 %v711
    %1909 = vmatpush1.bf16.msra.mxu0 %v710
    %1910 = vmatprep.subr.bf16.mxu0 %v715
    %1911 = vmatpush1.bf16.msra.mxu0 %v714
    %1912 = vmatprep.subr.bf16.mxu0 %v719
    %1913 = vmatpush1.bf16.msra.mxu0 %v718
    %1914 = vmatprep.subr.bf16.mxu0 %v723
    %1915 = vmatpush1.bf16.msra.mxu0 %v722
    %1916 = vmatprep.mubr.bf16.mxu0 %v1842
    %1917 = vmatmul.mubr.bf16.gmra.mrb[0].mxu0 %v1841
    %v1918 = vpop.f32.mrb[0].mxu0
    %v1919 = vadd.f32 %v189, %v1918
    %v1920 = vpop.f32.mrb[0].mxu0
    %v1921 = vadd.f32 %v193, %v1920
    %v1922 = vpop.f32.mrb[0].mxu0
    %v1923 = vpop.f32.mrb[0].mxu0
    %1924 = vdwg.mxu0
    %v1925 = vmul.f32 %v1878, 0.5
    %v1926 = vtanh.pop %v1925
    %v1927 = vmul.f32 %v1926, 0.5
    %v1928 = vadd.f32 %v1927, 0.5
    %v1929 = vmul.f32 %v1880, 0.5
    %v1930 = vtanh.pop %v1929
    %v1931 = vmul.f32 %v1930, 0.5
    %v1932 = vadd.f32 %v1931, 0.5
    %v1933 = vtanh.pop %v1919
    %v1934 = vmul.f32 %v1921, 0.5
    %v1935 = vtanh.pop %v1934
    %v1936 = vmul.f32 %v1935, 0.5
    %v1937 = vadd.f32 %v1936, 0.5
    %v1938 = vmul.f32 %v1932, %v1729
    %v1939 = vmul.f32 %v1928, %v1933
    %v1940 = vadd.f32 %v1938, %v1939
    %v1941 = vtanh.pop %v1940
    %v1942 = vmul.f32 %v1937, %v1941
    %s1943 = scalar_lea.vmem [#allocation2], 192
    %v1944 = vld [vmem:[%s1943] sm:$0xff]
    %v1945 = vld [vmem:[%s1943 + $0x8] sm:$0xff]
    %v1946 = vld [vmem:[%s1943 + $0x10] sm:$0xff]
    %v1947 = vld [vmem:[%s1943 + $0x18] sm:$0xff]
    %1948 = vmatprep.subr.bf16.mxu0 %v299
    %1949 = vmatpush1.bf16.msra.mxu0 %v298
    %1950 = vmatprep.subr.bf16.mxu0 %v303
    %1951 = vmatpush1.bf16.msra.mxu0 %v302
    %1952 = vmatprep.subr.bf16.mxu0 %v307
    %1953 = vmatpush1.bf16.msra.mxu0 %v306
    %1954 = vmatprep.subr.bf16.mxu0 %v311
    %1955 = vmatpush1.bf16.msra.mxu0 %v310
    %1956 = vmatprep.subr.bf16.mxu0 %v315
    %1957 = vmatpush1.bf16.msra.mxu0 %v314
    %1958 = vmatprep.subr.bf16.mxu0 %v319
    %1959 = vmatpush1.bf16.msra.mxu0 %v318
    %1960 = vmatprep.subr.bf16.mxu0 %v323
    %1961 = vmatpush1.bf16.msra.mxu0 %v322
    %1962 = vmatprep.subr.bf16.mxu0 %v327
    %1963 = vmatpush1.bf16.msra.mxu0 %v326
    %1964 = vmatprep.subr.bf16.mxu0 0
    %1965 = vmatpush1.bf16.msra.mxu0 0
    %1966 = vmatprep.subr.bf16.mxu0 0
    %1967 = vmatpush1.bf16.msra.mxu0 0
    %1968 = vmatprep.subr.bf16.mxu0 0
    %1969 = vmatpush1.bf16.msra.mxu0 0
    %1970 = vmatprep.subr.bf16.mxu0 0
    %1971 = vmatpush1.bf16.msra.mxu0 0
    %1972 = vmatprep.subr.bf16.mxu0 0
    %1973 = vmatpush1.bf16.msra.mxu0 0
    %1974 = vmatprep.subr.bf16.mxu0 0
    %1975 = vmatpush1.bf16.msra.mxu0 0
    %1976 = vmatprep.subr.bf16.mxu0 0
    %1977 = vmatpush1.bf16.msra.mxu0 0
    %1978 = vmatprep.subr.bf16.mxu0 0
    %1979 = vmatpush1.bf16.msra.mxu0 0
    %1980 = vmatprep.mubr.bf16.mxu0 0
    %1981 = vmatmul.mubr.bf16.gmra.mrb[0].mxu0 %v1841
    %v1982 = vpop.f32.mrb[0].mxu0
    %v1983 = vadd.f32 0.0, %v1982
    %v1984 = vpop.f32.mrb[0].mxu0
    %v1985 = vadd.f32 0.0, %v1984
    %v1986 = vpop.f32.mrb[0].mxu0
    %v1987 = vpop.f32.mrb[0].mxu0
    %1988 = vdwg.mxu0
    %1989 = vmatprep.subr.bf16.mxu0 %v301
    %1990 = vmatpush1.bf16.msra.mxu0 %v300
    %1991 = vmatprep.subr.bf16.mxu0 %v305
    %1992 = vmatpush1.bf16.msra.mxu0 %v304
    %1993 = vmatprep.subr.bf16.mxu0 %v309
    %1994 = vmatpush1.bf16.msra.mxu0 %v308
    %1995 = vmatprep.subr.bf16.mxu0 %v313
    %1996 = vmatpush1.bf16.msra.mxu0 %v312
    %1997 = vmatprep.subr.bf16.mxu0 %v317
    %1998 = vmatpush1.bf16.msra.mxu0 %v316
    %1999 = vmatprep.subr.bf16.mxu0 %v321
    %2000 = vmatpush1.bf16.msra.mxu0 %v320
    %2001 = vmatprep.subr.bf16.mxu0 %v325
    %2002 = vmatpush1.bf16.msra.mxu0 %v324
    %2003 = vmatprep.subr.bf16.mxu0 %v329
    %2004 = vmatpush1.bf16.msra.mxu0 %v328
    %2005 = vmatprep.subr.bf16.mxu0 0
    %2006 = vmatpush1.bf16.msra.mxu0 0
    %2007 = vmatprep.subr.bf16.mxu0 0
    %2008 = vmatpush1.bf16.msra.mxu0 0
    %2009 = vmatprep.subr.bf16.mxu0 0
    %2010 = vmatpush1.bf16.msra.mxu0 0
    %2011 = vmatprep.subr.bf16.mxu0 0
    %2012 = vmatpush1.bf16.msra.mxu0 0
    %2013 = vmatprep.subr.bf16.mxu0 0
    %2014 = vmatpush1.bf16.msra.mxu0 0
    %2015 = vmatprep.subr.bf16.mxu0 0
    %2016 = vmatpush1.bf16.msra.mxu0 0
    %2017 = vmatprep.subr.bf16.mxu0 0
    %2018 = vmatpush1.bf16.msra.mxu0 0
    %2019 = vmatprep.subr.bf16.mxu0 0
    %2020 = vmatpush1.bf16.msra.mxu0 0
    %2021 = vmatprep.mubr.bf16.mxu0 0
    %2022 = vmatmul.mubr.bf16.gmra.mrb[0].mxu0 %v1841
    %v2023 = vpop.f32.mrb[0].mxu0
    %v2024 = vadd.f32 0.0, %v2023
    %v2025 = vpop.f32.mrb[0].mxu0
    %v2026 = vadd.f32 0.0, %v2025
    %v2027 = vpop.f32.mrb[0].mxu0
    %v2028 = vpop.f32.mrb[0].mxu0
    %2029 = vdwg.mxu0
    %v2030 = vadd.f32 %v1944, %v1983
    %v2031 = vadd.f32 %v1945, %v1985
    %v2032 = vadd.f32 %v1946, %v2024
    %v2033 = vadd.f32 %v1947, %v2026
    %v2034 = vmul.f32 %v2030, 0.5
    %v2035 = vtanh.pop %v2034
    %v2036 = vmul.f32 %v2035, 0.5
    %v2037 = vadd.f32 %v2036, 0.5
    %v2038 = vmul.f32 %v2031, 0.5
    %v2039 = vtanh.pop %v2038
    %v2040 = vmul.f32 %v2039, 0.5
    %v2041 = vadd.f32 %v2040, 0.5
    %v2042 = vtanh.pop %v2032
    %v2043 = vmul.f32 %v2033, 0.5
    %v2044 = vtanh.pop %v2043
    %v2045 = vmul.f32 %v2044, 0.5
    %v2046 = vadd.f32 %v2045, 0.5
    %v2047 = vmul.f32 %v2041, %v1838
    %v2048 = vmul.f32 %v2037, %v2042
    %v2049 = vadd.f32 %v2047, %v2048
    %v2050 = vtanh.pop %v2049
    %v2051 = vmul.f32 %v2046, %v2050
    %v2052 = vpack.c.bf16 %v2051, %v2051
    %v2053 = vpack.c.bf16 %v1942, %v1942
    %2054 = vmatprep.subr.bf16.mxu0 %v661
    %2055 = vmatpush1.bf16.msra.mxu0 %v660
    %2056 = vmatprep.subr.bf16.mxu0 %v665
    %2057 = vmatpush1.bf16.msra.mxu0 %v664
    %2058 = vmatprep.subr.bf16.mxu0 %v669
    %2059 = vmatpush1.bf16.msra.mxu0 %v668
    %2060 = vmatprep.subr.bf16.mxu0 %v673
    %2061 = vmatpush1.bf16.msra.mxu0 %v672
    %2062 = vmatprep.subr.bf16.mxu0 %v677
    %2063 = vmatpush1.bf16.msra.mxu0 %v676
    %2064 = vmatprep.subr.bf16.mxu0 %v681
    %2065 = vmatpush1.bf16.msra.mxu0 %v680
    %2066 = vmatprep.subr.bf16.mxu0 %v685
    %2067 = vmatpush1.bf16.msra.mxu0 %v684
    %2068 = vmatprep.subr.bf16.mxu0 %v689
    %2069 = vmatpush1.bf16.msra.mxu0 %v688
    %2070 = vmatprep.subr.bf16.mxu0 %v693
    %2071 = vmatpush1.bf16.msra.mxu0 %v692
    %2072 = vmatprep.subr.bf16.mxu0 %v697
    %2073 = vmatpush1.bf16.msra.mxu0 %v696
    %2074 = vmatprep.subr.bf16.mxu0 %v701
    %2075 = vmatpush1.bf16.msra.mxu0 %v700
    %2076 = vmatprep.subr.bf16.mxu0 %v705
    %2077 = vmatpush1.bf16.msra.mxu0 %v704
    %2078 = vmatprep.subr.bf16.mxu0 %v709
    %2079 = vmatpush1.bf16.msra.mxu0 %v708
    %2080 = vmatprep.subr.bf16.mxu0 %v713
    %2081 = vmatpush1.bf16.msra.mxu0 %v712
    %2082 = vmatprep.subr.bf16.mxu0 %v717
    %2083 = vmatpush1.bf16.msra.mxu0 %v716
    %2084 = vmatprep.subr.bf16.mxu0 %v721
    %2085 = vmatpush1.bf16.msra.mxu0 %v720
    %2086 = vmatprep.mubr.bf16.mxu0 %v2053
    %2087 = vmatmul.mubr.bf16.gmra.mrb[0].mxu0 %v2052
    %v2088 = vpop.f32.mrb[0].mxu0
    %v2089 = vadd.f32 %v181, %v2088
    %v2090 = vpop.f32.mrb[0].mxu0
    %v2091 = vadd.f32 %v185, %v2090
    %v2092 = vpop.f32.mrb[0].mxu0
    %v2093 = vpop.f32.mrb[0].mxu0
    %2094 = vdwg.mxu0
    %2095 = vmatprep.subr.bf16.mxu0 %v663
    %2096 = vmatpush1.bf16.msra.mxu0 %v662
    %2097 = vmatprep.subr.bf16.mxu0 %v667
    %2098 = vmatpush1.bf16.msra.mxu0 %v666
    %2099 = vmatprep.subr.bf16.mxu0 %v671
    %2100 = vmatpush1.bf16.msra.mxu0 %v670
    %2101 = vmatprep.subr.bf16.mxu0 %v675
    %2102 = vmatpush1.bf16.msra.mxu0 %v674
    %2103 = vmatprep.subr.bf16.mxu0 %v679
    %2104 = vmatpush1.bf16.msra.mxu0 %v678
    %2105 = vmatprep.subr.bf16.mxu0 %v683
    %2106 = vmatpush1.bf16.msra.mxu0 %v682
    %2107 = vmatprep.subr.bf16.mxu0 %v687
    %2108 = vmatpush1.bf16.msra.mxu0 %v686
    %2109 = vmatprep.subr.bf16.mxu0 %v691
    %2110 = vmatpush1.bf16.msra.mxu0 %v690
    %2111 = vmatprep.subr.bf16.mxu0 %v695
    %2112 = vmatpush1.bf16.msra.mxu0 %v694
    %2113 = vmatprep.subr.bf16.mxu0 %v699
    %2114 = vmatpush1.bf16.msra.mxu0 %v698
    %2115 = vmatprep.subr.bf16.mxu0 %v703
    %2116 = vmatpush1.bf16.msra.mxu0 %v702
    %2117 = vmatprep.subr.bf16.mxu0 %v707
    %2118 = vmatpush1.bf16.msra.mxu0 %v706
    %2119 = vmatprep.subr.bf16.mxu0 %v711
    %2120 = vmatpush1.bf16.msra.mxu0 %v710
    %2121 = vmatprep.subr.bf16.mxu0 %v715
    %2122 = vmatpush1.bf16.msra.mxu0 %v714
    %2123 = vmatprep.subr.bf16.mxu0 %v719
    %2124 = vmatpush1.bf16.msra.mxu0 %v718
    %2125 = vmatprep.subr.bf16.mxu0 %v723
    %2126 = vmatpush1.bf16.msra.mxu0 %v722
    %2127 = vmatprep.mubr.bf16.mxu0 %v2053
    %2128 = vmatmul.mubr.bf16.gmra.mrb[0].mxu0 %v2052
    %v2129 = vpop.f32.mrb[0].mxu0
    %v2130 = vadd.f32 %v189, %v2129
    %v2131 = vpop.f32.mrb[0].mxu0
    %v2132 = vadd.f32 %v193, %v2131
    %v2133 = vpop.f32.mrb[0].mxu0
    %v2134 = vpop.f32.mrb[0].mxu0
    %2135 = vdwg.mxu0
    %v2136 = vmul.f32 %v2089, 0.5
    %v2137 = vtanh.pop %v2136
    %v2138 = vmul.f32 %v2137, 0.5
    %v2139 = vadd.f32 %v2138, 0.5
    %v2140 = vmul.f32 %v2091, 0.5
    %v2141 = vtanh.pop %v2140
    %v2142 = vmul.f32 %v2141, 0.5
    %v2143 = vadd.f32 %v2142, 0.5
    %v2144 = vtanh.pop %v2130
    %v2145 = vmul.f32 %v2132, 0.5
    %v2146 = vtanh.pop %v2145
    %v2147 = vmul.f32 %v2146, 0.5
    %v2148 = vadd.f32 %v2147, 0.5
    %v2149 = vmul.f32 %v2143, %v1940
    %v2150 = vmul.f32 %v2139, %v2144
    %v2151 = vadd.f32 %v2149, %v2150
    %v2152 = vtanh.pop %v2151
    %v2153 = vmul.f32 %v2148, %v2152
    %s2154 = scalar_lea.vmem [#allocation2], 224
    %v2155 = vld [vmem:[%s2154] sm:$0xff]
    %v2156 = vld [vmem:[%s2154 + $0x8] sm:$0xff]
    %v2157 = vld [vmem:[%s2154 + $0x10] sm:$0xff]
    %v2158 = vld [vmem:[%s2154 + $0x18] sm:$0xff]
    %2159 = vmatprep.subr.bf16.mxu0 %v299
    %2160 = vmatpush1.bf16.msra.mxu0 %v298
    %2161 = vmatprep.subr.bf16.mxu0 %v303
    %2162 = vmatpush1.bf16.msra.mxu0 %v302
    %2163 = vmatprep.subr.bf16.mxu0 %v307
    %2164 = vmatpush1.bf16.msra.mxu0 %v306
    %2165 = vmatprep.subr.bf16.mxu0 %v311
    %2166 = vmatpush1.bf16.msra.mxu0 %v310
    %2167 = vmatprep.subr.bf16.mxu0 %v315
    %2168 = vmatpush1.bf16.msra.mxu0 %v314
    %2169 = vmatprep.subr.bf16.mxu0 %v319
    %2170 = vmatpush1.bf16.msra.mxu0 %v318
    %2171 = vmatprep.subr.bf16.mxu0 %v323
    %2172 = vmatpush1.bf16.msra.mxu0 %v322
    %2173 = vmatprep.subr.bf16.mxu0 %v327
    %2174 = vmatpush1.bf16.msra.mxu0 %v326
    %2175 = vmatprep.subr.bf16.mxu0 0
    %2176 = vmatpush1.bf16.msra.mxu0 0
    %2177 = vmatprep.subr.bf16.mxu0 0
    %2178 = vmatpush1.bf16.msra.mxu0 0
    %2179 = vmatprep.subr.bf16.mxu0 0
    %2180 = vmatpush1.bf16.msra.mxu0 0
    %2181 = vmatprep.subr.bf16.mxu0 0
    %2182 = vmatpush1.bf16.msra.mxu0 0
    %2183 = vmatprep.subr.bf16.mxu0 0
    %2184 = vmatpush1.bf16.msra.mxu0 0
    %2185 = vmatprep.subr.bf16.mxu0 0
    %2186 = vmatpush1.bf16.msra.mxu0 0
    %2187 = vmatprep.subr.bf16.mxu0 0
    %2188 = vmatpush1.bf16.msra.mxu0 0
    %2189 = vmatprep.subr.bf16.mxu0 0
    %2190 = vmatpush1.bf16.msra.mxu0 0
    %2191 = vmatprep.mubr.bf16.mxu0 0
    %2192 = vmatmul.mubr.bf16.gmra.mrb[0].mxu0 %v2052
    %v2193 = vpop.f32.mrb[0].mxu0
    %v2194 = vadd.f32 0.0, %v2193
    %v2195 = vpop.f32.mrb[0].mxu0
    %v2196 = vadd.f32 0.0, %v2195
    %v2197 = vpop.f32.mrb[0].mxu0
    %v2198 = vpop.f32.mrb[0].mxu0
    %2199 = vdwg.mxu0
    %2200 = vmatprep.subr.bf16.mxu0 %v301
    %2201 = vmatpush1.bf16.msra.mxu0 %v300
    %2202 = vmatprep.subr.bf16.mxu0 %v305
    %2203 = vmatpush1.bf16.msra.mxu0 %v304
    %2204 = vmatprep.subr.bf16.mxu0 %v309
    %2205 = vmatpush1.bf16.msra.mxu0 %v308
    %2206 = vmatprep.subr.bf16.mxu0 %v313
    %2207 = vmatpush1.bf16.msra.mxu0 %v312
    %2208 = vmatprep.subr.bf16.mxu0 %v317
    %2209 = vmatpush1.bf16.msra.mxu0 %v316
    %2210 = vmatprep.subr.bf16.mxu0 %v321
    %2211 = vmatpush1.bf16.msra.mxu0 %v320
    %2212 = vmatprep.subr.bf16.mxu0 %v325
    %2213 = vmatpush1.bf16.msra.mxu0 %v324
    %2214 = vmatprep.subr.bf16.mxu0 %v329
    %2215 = vmatpush1.bf16.msra.mxu0 %v328
    %2216 = vmatprep.subr.bf16.mxu0 0
    %2217 = vmatpush1.bf16.msra.mxu0 0
    %2218 = vmatprep.subr.bf16.mxu0 0
    %2219 = vmatpush1.bf16.msra.mxu0 0
    %2220 = vmatprep.subr.bf16.mxu0 0
    %2221 = vmatpush1.bf16.msra.mxu0 0
    %2222 = vmatprep.subr.bf16.mxu0 0
    %2223 = vmatpush1.bf16.msra.mxu0 0
    %2224 = vmatprep.subr.bf16.mxu0 0
    %2225 = vmatpush1.bf16.msra.mxu0 0
    %2226 = vmatprep.subr.bf16.mxu0 0
    %2227 = vmatpush1.bf16.msra.mxu0 0
    %2228 = vmatprep.subr.bf16.mxu0 0
    %2229 = vmatpush1.bf16.msra.mxu0 0
    %2230 = vmatprep.subr.bf16.mxu0 0
    %2231 = vmatpush1.bf16.msra.mxu0 0
    %2232 = vmatprep.mubr.bf16.mxu0 0
    %2233 = vmatmul.mubr.bf16.gmra.mrb[0].mxu0 %v2052
    %v2234 = vpop.f32.mrb[0].mxu0
    %v2235 = vadd.f32 0.0, %v2234
    %v2236 = vpop.f32.mrb[0].mxu0
    %v2237 = vadd.f32 0.0, %v2236
    %v2238 = vpop.f32.mrb[0].mxu0
    %v2239 = vpop.f32.mrb[0].mxu0
    %2240 = vdwg.mxu0
    %v2241 = vadd.f32 %v2155, %v2194
    %v2242 = vadd.f32 %v2156, %v2196
    %v2243 = vadd.f32 %v2157, %v2235
    %v2244 = vadd.f32 %v2158, %v2237
    %v2245 = vmul.f32 %v2241, 0.5
    %v2246 = vtanh.pop %v2245
    %v2247 = vmul.f32 %v2246, 0.5
    %v2248 = vadd.f32 %v2247, 0.5
    %v2249 = vmul.f32 %v2242, 0.5
    %v2250 = vtanh.pop %v2249
    %v2251 = vmul.f32 %v2250, 0.5
    %v2252 = vadd.f32 %v2251, 0.5
    %v2253 = vtanh.pop %v2243
    %v2254 = vmul.f32 %v2244, 0.5
    %v2255 = vtanh.pop %v2254
    %v2256 = vmul.f32 %v2255, 0.5
    %v2257 = vadd.f32 %v2256, 0.5
    %v2258 = vmul.f32 %v2252, %v2049
    %v2259 = vmul.f32 %v2248, %v2253
    %v2260 = vadd.f32 %v2258, %v2259
    %v2261 = vtanh.pop %v2260
    %v2262 = vmul.f32 %v2257, %v2261
    %v2263 = vpack.c.bf16 %v2262, %v2262
    %v2264 = vpack.c.bf16 %v2153, %v2153
    %2265 = vmatprep.subr.bf16.mxu0 %v661
    %2266 = vmatpush1.bf16.msra.mxu0 %v660
    %2267 = vmatprep.subr.bf16.mxu0 %v665
    %2268 = vmatpush1.bf16.msra.mxu0 %v664
    %2269 = vmatprep.subr.bf16.mxu0 %v669
    %2270 = vmatpush1.bf16.msra.mxu0 %v668
    %2271 = vmatprep.subr.bf16.mxu0 %v673
    %2272 = vmatpush1.bf16.msra.mxu0 %v672
    %2273 = vmatprep.subr.bf16.mxu0 %v677
    %2274 = vmatpush1.bf16.msra.mxu0 %v676
    %2275 = vmatprep.subr.bf16.mxu0 %v681
    %2276 = vmatpush1.bf16.msra.mxu0 %v680
    %2277 = vmatprep.subr.bf16.mxu0 %v685
    %2278 = vmatpush1.bf16.msra.mxu0 %v684
    %2279 = vmatprep.subr.bf16.mxu0 %v689
    %2280 = vmatpush1.bf16.msra.mxu0 %v688
    %2281 = vmatprep.subr.bf16.mxu0 %v693
    %2282 = vmatpush1.bf16.msra.mxu0 %v692
    %2283 = vmatprep.subr.bf16.mxu0 %v697
    %2284 = vmatpush1.bf16.msra.mxu0 %v696
    %2285 = vmatprep.subr.bf16.mxu0 %v701
    %2286 = vmatpush1.bf16.msra.mxu0 %v700
    %2287 = vmatprep.subr.bf16.mxu0 %v705
    %2288 = vmatpush1.bf16.msra.mxu0 %v704
    %2289 = vmatprep.subr.bf16.mxu0 %v709
    %2290 = vmatpush1.bf16.msra.mxu0 %v708
    %2291 = vmatprep.subr.bf16.mxu0 %v713
    %2292 = vmatpush1.bf16.msra.mxu0 %v712
    %2293 = vmatprep.subr.bf16.mxu0 %v717
    %2294 = vmatpush1.bf16.msra.mxu0 %v716
    %2295 = vmatprep.subr.bf16.mxu0 %v721
    %2296 = vmatpush1.bf16.msra.mxu0 %v720
    %2297 = vmatprep.mubr.bf16.mxu0 %v2264
    %2298 = vmatmul.mubr.bf16.gmra.mrb[0].mxu0 %v2263
    %v2299 = vpop.f32.mrb[0].mxu0
    %v2300 = vadd.f32 %v181, %v2299
    %v2301 = vpop.f32.mrb[0].mxu0
    %v2302 = vadd.f32 %v185, %v2301
    %v2303 = vpop.f32.mrb[0].mxu0
    %v2304 = vpop.f32.mrb[0].mxu0
    %2305 = vdwg.mxu0
    %2306 = vmatprep.subr.bf16.mxu0 %v663
    %2307 = vmatpush1.bf16.msra.mxu0 %v662
    %2308 = vmatprep.subr.bf16.mxu0 %v667
    %2309 = vmatpush1.bf16.msra.mxu0 %v666
    %2310 = vmatprep.subr.bf16.mxu0 %v671
    %2311 = vmatpush1.bf16.msra.mxu0 %v670
    %2312 = vmatprep.subr.bf16.mxu0 %v675
    %2313 = vmatpush1.bf16.msra.mxu0 %v674
    %2314 = vmatprep.subr.bf16.mxu0 %v679
    %2315 = vmatpush1.bf16.msra.mxu0 %v678
    %2316 = vmatprep.subr.bf16.mxu0 %v683
    %2317 = vmatpush1.bf16.msra.mxu0 %v682
    %2318 = vmatprep.subr.bf16.mxu0 %v687
    %2319 = vmatpush1.bf16.msra.mxu0 %v686
    %2320 = vmatprep.subr.bf16.mxu0 %v691
    %2321 = vmatpush1.bf16.msra.mxu0 %v690
    %2322 = vmatprep.subr.bf16.mxu0 %v695
    %2323 = vmatpush1.bf16.msra.mxu0 %v694
    %2324 = vmatprep.subr.bf16.mxu0 %v699
    %2325 = vmatpush1.bf16.msra.mxu0 %v698
    %2326 = vmatprep.subr.bf16.mxu0 %v703
    %2327 = vmatpush1.bf16.msra.mxu0 %v702
    %2328 = vmatprep.subr.bf16.mxu0 %v707
    %2329 = vmatpush1.bf16.msra.mxu0 %v706
    %2330 = vmatprep.subr.bf16.mxu0 %v711
    %2331 = vmatpush1.bf16.msra.mxu0 %v710
    %2332 = vmatprep.subr.bf16.mxu0 %v715
    %2333 = vmatpush1.bf16.msra.mxu0 %v714
    %2334 = vmatprep.subr.bf16.mxu0 %v719
    %2335 = vmatpush1.bf16.msra.mxu0 %v718
    %2336 = vmatprep.subr.bf16.mxu0 %v723
    %2337 = vmatpush1.bf16.msra.mxu0 %v722
    %2338 = vmatprep.mubr.bf16.mxu0 %v2264
    %2339 = vmatmul.mubr.bf16.gmra.mrb[0].mxu0 %v2263
    %v2340 = vpop.f32.mrb[0].mxu0
    %v2341 = vadd.f32 %v189, %v2340
    %v2342 = vpop.f32.mrb[0].mxu0
    %v2343 = vadd.f32 %v193, %v2342
    %v2344 = vpop.f32.mrb[0].mxu0
    %v2345 = vpop.f32.mrb[0].mxu0
    %2346 = vdwg.mxu0
    %v2347 = vmul.f32 %v2300, 0.5
    %v2348 = vtanh.pop %v2347
    %v2349 = vmul.f32 %v2348, 0.5
    %v2350 = vadd.f32 %v2349, 0.5
    %v2351 = vmul.f32 %v2302, 0.5
    %v2352 = vtanh.pop %v2351
    %v2353 = vmul.f32 %v2352, 0.5
    %v2354 = vadd.f32 %v2353, 0.5
    %v2355 = vtanh.pop %v2341
    %v2356 = vmul.f32 %v2343, 0.5
    %v2357 = vtanh.pop %v2356
    %v2358 = vmul.f32 %v2357, 0.5
    %v2359 = vadd.f32 %v2358, 0.5
    %v2360 = vmul.f32 %v2354, %v2151
    %v2361 = vmul.f32 %v2350, %v2355
    %v2362 = vadd.f32 %v2360, %v2361
    %v2363 = vtanh.pop %v2362
    %v2364 = vmul.f32 %v2359, %v2363
    %s2365 = scalar_lea.vmem [#allocation2], 256
    %v2366 = vld [vmem:[%s2365] sm:$0xff]
    %v2367 = vld [vmem:[%s2365 + $0x8] sm:$0xff]
    %v2368 = vld [vmem:[%s2365 + $0x10] sm:$0xff]
    %v2369 = vld [vmem:[%s2365 + $0x18] sm:$0xff]
    %2370 = vmatprep.subr.bf16.mxu0 %v299
    %2371 = vmatpush1.bf16.msra.mxu0 %v298
    %2372 = vmatprep.subr.bf16.mxu0 %v303
    %2373 = vmatpush1.bf16.msra.mxu0 %v302
    %2374 = vmatprep.subr.bf16.mxu0 %v307
    %2375 = vmatpush1.bf16.msra.mxu0 %v306
    %2376 = vmatprep.subr.bf16.mxu0 %v311
    %2377 = vmatpush1.bf16.msra.mxu0 %v310
    %2378 = vmatprep.subr.bf16.mxu0 %v315
    %2379 = vmatpush1.bf16.msra.mxu0 %v314
    %2380 = vmatprep.subr.bf16.mxu0 %v319
    %2381 = vmatpush1.bf16.msra.mxu0 %v318
    %2382 = vmatprep.subr.bf16.mxu0 %v323
    %2383 = vmatpush1.bf16.msra.mxu0 %v322
    %2384 = vmatprep.subr.bf16.mxu0 %v327
    %2385 = vmatpush1.bf16.msra.mxu0 %v326
    %2386 = vmatprep.subr.bf16.mxu0 0
    %2387 = vmatpush1.bf16.msra.mxu0 0
    %2388 = vmatprep.subr.bf16.mxu0 0
    %2389 = vmatpush1.bf16.msra.mxu0 0
    %2390 = vmatprep.subr.bf16.mxu0 0
    %2391 = vmatpush1.bf16.msra.mxu0 0
    %2392 = vmatprep.subr.bf16.mxu0 0
    %2393 = vmatpush1.bf16.msra.mxu0 0
    %2394 = vmatprep.subr.bf16.mxu0 0
    %2395 = vmatpush1.bf16.msra.mxu0 0
    %2396 = vmatprep.subr.bf16.mxu0 0
    %2397 = vmatpush1.bf16.msra.mxu0 0
    %2398 = vmatprep.subr.bf16.mxu0 0
    %2399 = vmatpush1.bf16.msra.mxu0 0
    %2400 = vmatprep.subr.bf16.mxu0 0
    %2401 = vmatpush1.bf16.msra.mxu0 0
    %2402 = vmatprep.mubr.bf16.mxu0 0
    %2403 = vmatmul.mubr.bf16.gmra.mrb[0].mxu0 %v2263
    %v2404 = vpop.f32.mrb[0].mxu0
    %v2405 = vadd.f32 0.0, %v2404
    %v2406 = vpop.f32.mrb[0].mxu0
    %v2407 = vadd.f32 0.0, %v2406
    %v2408 = vpop.f32.mrb[0].mxu0
    %v2409 = vpop.f32.mrb[0].mxu0
    %2410 = vdwg.mxu0
    %2411 = vmatprep.subr.bf16.mxu0 %v301
    %2412 = vmatpush1.bf16.msra.mxu0 %v300
    %2413 = vmatprep.subr.bf16.mxu0 %v305
    %2414 = vmatpush1.bf16.msra.mxu0 %v304
    %2415 = vmatprep.subr.bf16.mxu0 %v309
    %2416 = vmatpush1.bf16.msra.mxu0 %v308
    %2417 = vmatprep.subr.bf16.mxu0 %v313
    %2418 = vmatpush1.bf16.msra.mxu0 %v312
    %2419 = vmatprep.subr.bf16.mxu0 %v317
    %2420 = vmatpush1.bf16.msra.mxu0 %v316
    %2421 = vmatprep.subr.bf16.mxu0 %v321
    %2422 = vmatpush1.bf16.msra.mxu0 %v320
    %2423 = vmatprep.subr.bf16.mxu0 %v325
    %2424 = vmatpush1.bf16.msra.mxu0 %v324
    %2425 = vmatprep.subr.bf16.mxu0 %v329
    %2426 = vmatpush1.bf16.msra.mxu0 %v328
    %2427 = vmatprep.subr.bf16.mxu0 0
    %2428 = vmatpush1.bf16.msra.mxu0 0
    %2429 = vmatprep.subr.bf16.mxu0 0
    %2430 = vmatpush1.bf16.msra.mxu0 0
    %2431 = vmatprep.subr.bf16.mxu0 0
    %2432 = vmatpush1.bf16.msra.mxu0 0
    %2433 = vmatprep.subr.bf16.mxu0 0
    %2434 = vmatpush1.bf16.msra.mxu0 0
    %2435 = vmatprep.subr.bf16.mxu0 0
    %2436 = vmatpush1.bf16.msra.mxu0 0
    %2437 = vmatprep.subr.bf16.mxu0 0
    %2438 = vmatpush1.bf16.msra.mxu0 0
    %2439 = vmatprep.subr.bf16.mxu0 0
    %2440 = vmatpush1.bf16.msra.mxu0 0
    %2441 = vmatprep.subr.bf16.mxu0 0
    %2442 = vmatpush1.bf16.msra.mxu0 0
    %2443 = vmatprep.mubr.bf16.mxu0 0
    %2444 = vmatmul.mubr.bf16.gmra.mrb[0].mxu0 %v2263
    %v2445 = vpop.f32.mrb[0].mxu0
    %v2446 = vadd.f32 0.0, %v2445
    %v2447 = vpop.f32.mrb[0].mxu0
    %v2448 = vadd.f32 0.0, %v2447
    %v2449 = vpop.f32.mrb[0].mxu0
    %v2450 = vpop.f32.mrb[0].mxu0
    %2451 = vdwg.mxu0
    %v2452 = vadd.f32 %v2366, %v2405
    %v2453 = vadd.f32 %v2367, %v2407
    %v2454 = vadd.f32 %v2368, %v2446
    %v2455 = vadd.f32 %v2369, %v2448
    %v2456 = vmul.f32 %v2452, 0.5
    %v2457 = vtanh.pop %v2456
    %v2458 = vmul.f32 %v2457, 0.5
    %v2459 = vadd.f32 %v2458, 0.5
    %v2460 = vmul.f32 %v2453, 0.5
    %v2461 = vtanh.pop %v2460
    %v2462 = vmul.f32 %v2461, 0.5
    %v2463 = vadd.f32 %v2462, 0.5
    %v2464 = vtanh.pop %v2454
    %v2465 = vmul.f32 %v2455, 0.5
    %v2466 = vtanh.pop %v2465
    %v2467 = vmul.f32 %v2466, 0.5
    %v2468 = vadd.f32 %v2467, 0.5
    %v2469 = vmul.f32 %v2463, %v2260
    %v2470 = vmul.f32 %v2459, %v2464
    %v2471 = vadd.f32 %v2469, %v2470
    %v2472 = vtanh.pop %v2471
    %v2473 = vmul.f32 %v2468, %v2472
    %v2474 = vpack.c.bf16 %v2473, %v2473
    %v2475 = vpack.c.bf16 %v2364, %v2364
    %2476 = vmatprep.subr.bf16.mxu0 %v661
    %2477 = vmatpush1.bf16.msra.mxu0 %v660
    %2478 = vmatprep.subr.bf16.mxu0 %v665
    %2479 = vmatpush1.bf16.msra.mxu0 %v664
    %2480 = vmatprep.subr.bf16.mxu0 %v669
    %2481 = vmatpush1.bf16.msra.mxu0 %v668
    %2482 = vmatprep.subr.bf16.mxu0 %v673
    %2483 = vmatpush1.bf16.msra.mxu0 %v672
    %2484 = vmatprep.subr.bf16.mxu0 %v677
    %2485 = vmatpush1.bf16.msra.mxu0 %v676
    %2486 = vmatprep.subr.bf16.mxu0 %v681
    %2487 = vmatpush1.bf16.msra.mxu0 %v680
    %2488 = vmatprep.subr.bf16.mxu0 %v685
    %2489 = vmatpush1.bf16.msra.mxu0 %v684
    %2490 = vmatprep.subr.bf16.mxu0 %v689
    %2491 = vmatpush1.bf16.msra.mxu0 %v688
    %2492 = vmatprep.subr.bf16.mxu0 %v693
    %2493 = vmatpush1.bf16.msra.mxu0 %v692
    %2494 = vmatprep.subr.bf16.mxu0 %v697
    %2495 = vmatpush1.bf16.msra.mxu0 %v696
    %2496 = vmatprep.subr.bf16.mxu0 %v701
    %2497 = vmatpush1.bf16.msra.mxu0 %v700
    %2498 = vmatprep.subr.bf16.mxu0 %v705
    %2499 = vmatpush1.bf16.msra.mxu0 %v704
    %2500 = vmatprep.subr.bf16.mxu0 %v709
    %2501 = vmatpush1.bf16.msra.mxu0 %v708
    %2502 = vmatprep.subr.bf16.mxu0 %v713
    %2503 = vmatpush1.bf16.msra.mxu0 %v712
    %2504 = vmatprep.subr.bf16.mxu0 %v717
    %2505 = vmatpush1.bf16.msra.mxu0 %v716
    %2506 = vmatprep.subr.bf16.mxu0 %v721
    %2507 = vmatpush1.bf16.msra.mxu0 %v720
    %2508 = vmatprep.mubr.bf16.mxu0 %v2475
    %2509 = vmatmul.mubr.bf16.gmra.mrb[0].mxu0 %v2474
    %v2510 = vpop.f32.mrb[0].mxu0
    %v2511 = vadd.f32 %v181, %v2510
    %v2512 = vpop.f32.mrb[0].mxu0
    %v2513 = vadd.f32 %v185, %v2512
    %v2514 = vpop.f32.mrb[0].mxu0
    %v2515 = vpop.f32.mrb[0].mxu0
    %2516 = vdwg.mxu0
    %2517 = vmatprep.subr.bf16.mxu0 %v663
    %2518 = vmatpush1.bf16.msra.mxu0 %v662
    %2519 = vmatprep.subr.bf16.mxu0 %v667
    %2520 = vmatpush1.bf16.msra.mxu0 %v666
    %2521 = vmatprep.subr.bf16.mxu0 %v671
    %2522 = vmatpush1.bf16.msra.mxu0 %v670
    %2523 = vmatprep.subr.bf16.mxu0 %v675
    %2524 = vmatpush1.bf16.msra.mxu0 %v674
    %2525 = vmatprep.subr.bf16.mxu0 %v679
    %2526 = vmatpush1.bf16.msra.mxu0 %v678
    %2527 = vmatprep.subr.bf16.mxu0 %v683
    %2528 = vmatpush1.bf16.msra.mxu0 %v682
    %2529 = vmatprep.subr.bf16.mxu0 %v687
    %2530 = vmatpush1.bf16.msra.mxu0 %v686
    %2531 = vmatprep.subr.bf16.mxu0 %v691
    %2532 = vmatpush1.bf16.msra.mxu0 %v690
    %2533 = vmatprep.subr.bf16.mxu0 %v695
    %2534 = vmatpush1.bf16.msra.mxu0 %v694
    %2535 = vmatprep.subr.bf16.mxu0 %v699
    %2536 = vmatpush1.bf16.msra.mxu0 %v698
    %2537 = vmatprep.subr.bf16.mxu0 %v703
    %2538 = vmatpush1.bf16.msra.mxu0 %v702
    %2539 = vmatprep.subr.bf16.mxu0 %v707
    %2540 = vmatpush1.bf16.msra.mxu0 %v706
    %2541 = vmatprep.subr.bf16.mxu0 %v711
    %2542 = vmatpush1.bf16.msra.mxu0 %v710
    %2543 = vmatprep.subr.bf16.mxu0 %v715
    %2544 = vmatpush1.bf16.msra.mxu0 %v714
    %2545 = vmatprep.subr.bf16.mxu0 %v719
    %2546 = vmatpush1.bf16.msra.mxu0 %v718
    %2547 = vmatprep.subr.bf16.mxu0 %v723
    %2548 = vmatpush1.bf16.msra.mxu0 %v722
    %2549 = vmatprep.mubr.bf16.mxu0 %v2475
    %2550 = vmatmul.mubr.bf16.gmra.mrb[0].mxu0 %v2474
    %v2551 = vpop.f32.mrb[0].mxu0
    %v2552 = vadd.f32 %v189, %v2551
    %v2553 = vpop.f32.mrb[0].mxu0
    %v2554 = vadd.f32 %v193, %v2553
    %v2555 = vpop.f32.mrb[0].mxu0
    %v2556 = vpop.f32.mrb[0].mxu0
    %2557 = vdwg.mxu0
    %v2558 = vmul.f32 %v2511, 0.5
    %v2559 = vtanh.pop %v2558
    %v2560 = vmul.f32 %v2559, 0.5
    %v2561 = vadd.f32 %v2560, 0.5
    %v2562 = vmul.f32 %v2513, 0.5
    %v2563 = vtanh.pop %v2562
    %v2564 = vmul.f32 %v2563, 0.5
    %v2565 = vadd.f32 %v2564, 0.5
    %v2566 = vtanh.pop %v2552
    %v2567 = vmul.f32 %v2554, 0.5
    %v2568 = vtanh.pop %v2567
    %v2569 = vmul.f32 %v2568, 0.5
    %v2570 = vadd.f32 %v2569, 0.5
    %v2571 = vmul.f32 %v2565, %v2362
    %v2572 = vmul.f32 %v2561, %v2566
    %v2573 = vadd.f32 %v2571, %v2572
    %v2574 = vtanh.pop %v2573
    %v2575 = vmul.f32 %v2570, %v2574
    %s2576 = scalar_lea.vmem [#allocation2], 288
    %v2577 = vld [vmem:[%s2576] sm:$0xff]
    %v2578 = vld [vmem:[%s2576 + $0x8] sm:$0xff]
    %v2579 = vld [vmem:[%s2576 + $0x10] sm:$0xff]
    %v2580 = vld [vmem:[%s2576 + $0x18] sm:$0xff]
    %2581 = vmatprep.subr.bf16.mxu0 %v299
    %2582 = vmatpush1.bf16.msra.mxu0 %v298
    %2583 = vmatprep.subr.bf16.mxu0 %v303
    %2584 = vmatpush1.bf16.msra.mxu0 %v302
    %2585 = vmatprep.subr.bf16.mxu0 %v307
    %2586 = vmatpush1.bf16.msra.mxu0 %v306
    %2587 = vmatprep.subr.bf16.mxu0 %v311
    %2588 = vmatpush1.bf16.msra.mxu0 %v310
    %2589 = vmatprep.subr.bf16.mxu0 %v315
    %2590 = vmatpush1.bf16.msra.mxu0 %v314
    %2591 = vmatprep.subr.bf16.mxu0 %v319
    %2592 = vmatpush1.bf16.msra.mxu0 %v318
    %2593 = vmatprep.subr.bf16.mxu0 %v323
    %2594 = vmatpush1.bf16.msra.mxu0 %v322
    %2595 = vmatprep.subr.bf16.mxu0 %v327
    %2596 = vmatpush1.bf16.msra.mxu0 %v326
    %2597 = vmatprep.subr.bf16.mxu0 0
    %2598 = vmatpush1.bf16.msra.mxu0 0
    %2599 = vmatprep.subr.bf16.mxu0 0
    %2600 = vmatpush1.bf16.msra.mxu0 0
    %2601 = vmatprep.subr.bf16.mxu0 0
    %2602 = vmatpush1.bf16.msra.mxu0 0
    %2603 = vmatprep.subr.bf16.mxu0 0
    %2604 = vmatpush1.bf16.msra.mxu0 0
    %2605 = vmatprep.subr.bf16.mxu0 0
    %2606 = vmatpush1.bf16.msra.mxu0 0
    %2607 = vmatprep.subr.bf16.mxu0 0
    %2608 = vmatpush1.bf16.msra.mxu0 0
    %2609 = vmatprep.subr.bf16.mxu0 0
    %2610 = vmatpush1.bf16.msra.mxu0 0
    %2611 = vmatprep.subr.bf16.mxu0 0
    %2612 = vmatpush1.bf16.msra.mxu0 0
    %2613 = vmatprep.mubr.bf16.mxu0 0
    %2614 = vmatmul.mubr.bf16.gmra.mrb[0].mxu0 %v2474
    %v2615 = vpop.f32.mrb[0].mxu0
    %v2616 = vadd.f32 0.0, %v2615
    %v2617 = vpop.f32.mrb[0].mxu0
    %v2618 = vadd.f32 0.0, %v2617
    %v2619 = vpop.f32.mrb[0].mxu0
    %v2620 = vpop.f32.mrb[0].mxu0
    %2621 = vdwg.mxu0
    %2622 = vmatprep.subr.bf16.mxu0 %v301
    %2623 = vmatpush1.bf16.msra.mxu0 %v300
    %2624 = vmatprep.subr.bf16.mxu0 %v305
    %2625 = vmatpush1.bf16.msra.mxu0 %v304
    %2626 = vmatprep.subr.bf16.mxu0 %v309
    %2627 = vmatpush1.bf16.msra.mxu0 %v308
    %2628 = vmatprep.subr.bf16.mxu0 %v313
    %2629 = vmatpush1.bf16.msra.mxu0 %v312
    %2630 = vmatprep.subr.bf16.mxu0 %v317
    %2631 = vmatpush1.bf16.msra.mxu0 %v316
    %2632 = vmatprep.subr.bf16.mxu0 %v321
    %2633 = vmatpush1.bf16.msra.mxu0 %v320
    %2634 = vmatprep.subr.bf16.mxu0 %v325
    %2635 = vmatpush1.bf16.msra.mxu0 %v324
    %2636 = vmatprep.subr.bf16.mxu0 %v329
    %2637 = vmatpush1.bf16.msra.mxu0 %v328
    %2638 = vmatprep.subr.bf16.mxu0 0
    %2639 = vmatpush1.bf16.msra.mxu0 0
    %2640 = vmatprep.subr.bf16.mxu0 0
    %2641 = vmatpush1.bf16.msra.mxu0 0
    %2642 = vmatprep.subr.bf16.mxu0 0
    %2643 = vmatpush1.bf16.msra.mxu0 0
    %2644 = vmatprep.subr.bf16.mxu0 0
    %2645 = vmatpush1.bf16.msra.mxu0 0
    %2646 = vmatprep.subr.bf16.mxu0 0
    %2647 = vmatpush1.bf16.msra.mxu0 0
    %2648 = vmatprep.subr.bf16.mxu0 0
    %2649 = vmatpush1.bf16.msra.mxu0 0
    %2650 = vmatprep.subr.bf16.mxu0 0
    %2651 = vmatpush1.bf16.msra.mxu0 0
    %2652 = vmatprep.subr.bf16.mxu0 0
    %2653 = vmatpush1.bf16.msra.mxu0 0
    %2654 = vmatprep.mubr.bf16.mxu0 0
    %2655 = vmatmul.mubr.bf16.gmra.mrb[0].mxu0 %v2474
    %v2656 = vpop.f32.mrb[0].mxu0
    %v2657 = vadd.f32 0.0, %v2656
    %v2658 = vpop.f32.mrb[0].mxu0
    %v2659 = vadd.f32 0.0, %v2658
    %v2660 = vpop.f32.mrb[0].mxu0
    %v2661 = vpop.f32.mrb[0].mxu0
    %2662 = vdwg.mxu0
    %v2663 = vadd.f32 %v2577, %v2616
    %v2664 = vadd.f32 %v2578, %v2618
    %v2665 = vadd.f32 %v2579, %v2657
    %v2666 = vadd.f32 %v2580, %v2659
    %v2667 = vmul.f32 %v2663, 0.5
    %v2668 = vtanh.pop %v2667
    %v2669 = vmul.f32 %v2668, 0.5
    %v2670 = vadd.f32 %v2669, 0.5
    %v2671 = vmul.f32 %v2664, 0.5
    %v2672 = vtanh.pop %v2671
    %v2673 = vmul.f32 %v2672, 0.5
    %v2674 = vadd.f32 %v2673, 0.5
    %v2675 = vtanh.pop %v2665
    %v2676 = vmul.f32 %v2666, 0.5
    %v2677 = vtanh.pop %v2676
    %v2678 = vmul.f32 %v2677, 0.5
    %v2679 = vadd.f32 %v2678, 0.5
    %v2680 = vmul.f32 %v2674, %v2471
    %v2681 = vmul.f32 %v2670, %v2675
    %v2682 = vadd.f32 %v2680, %v2681
    %v2683 = vtanh.pop %v2682
    %v2684 = vmul.f32 %v2679, %v2683
    %v2685 = vpack.c.bf16 %v2684, %v2684
    %v2686 = vpack.c.bf16 %v2575, %v2575
    %2687 = vmatprep.subr.bf16.mxu0 %v661
    %2688 = vmatpush1.bf16.msra.mxu0 %v660
    %2689 = vmatprep.subr.bf16.mxu0 %v665
    %2690 = vmatpush1.bf16.msra.mxu0 %v664
    %2691 = vmatprep.subr.bf16.mxu0 %v669
    %2692 = vmatpush1.bf16.msra.mxu0 %v668
    %2693 = vmatprep.subr.bf16.mxu0 %v673
    %2694 = vmatpush1.bf16.msra.mxu0 %v672
    %2695 = vmatprep.subr.bf16.mxu0 %v677
    %2696 = vmatpush1.bf16.msra.mxu0 %v676
    %2697 = vmatprep.subr.bf16.mxu0 %v681
    %2698 = vmatpush1.bf16.msra.mxu0 %v680
    %2699 = vmatprep.subr.bf16.mxu0 %v685
    %2700 = vmatpush1.bf16.msra.mxu0 %v684
    %2701 = vmatprep.subr.bf16.mxu0 %v689
    %2702 = vmatpush1.bf16.msra.mxu0 %v688
    %2703 = vmatprep.subr.bf16.mxu0 %v693
    %2704 = vmatpush1.bf16.msra.mxu0 %v692
    %2705 = vmatprep.subr.bf16.mxu0 %v697
    %2706 = vmatpush1.bf16.msra.mxu0 %v696
    %2707 = vmatprep.subr.bf16.mxu0 %v701
    %2708 = vmatpush1.bf16.msra.mxu0 %v700
    %2709 = vmatprep.subr.bf16.mxu0 %v705
    %2710 = vmatpush1.bf16.msra.mxu0 %v704
    %2711 = vmatprep.subr.bf16.mxu0 %v709
    %2712 = vmatpush1.bf16.msra.mxu0 %v708
    %2713 = vmatprep.subr.bf16.mxu0 %v713
    %2714 = vmatpush1.bf16.msra.mxu0 %v712
    %2715 = vmatprep.subr.bf16.mxu0 %v717
    %2716 = vmatpush1.bf16.msra.mxu0 %v716
    %2717 = vmatprep.subr.bf16.mxu0 %v721
    %2718 = vmatpush1.bf16.msra.mxu0 %v720
    %2719 = vmatprep.mubr.bf16.mxu0 %v2686
    %2720 = vmatmul.mubr.bf16.gmra.mrb[0].mxu0 %v2685
    %v2721 = vpop.f32.mrb[0].mxu0
    %v2722 = vadd.f32 %v181, %v2721
    %v2723 = vpop.f32.mrb[0].mxu0
    %v2724 = vadd.f32 %v185, %v2723
    %v2725 = vpop.f32.mrb[0].mxu0
    %v2726 = vpop.f32.mrb[0].mxu0
    %2727 = vdwg.mxu0
    %2728 = vmatprep.subr.bf16.mxu0 %v663
    %2729 = vmatpush1.bf16.msra.mxu0 %v662
    %2730 = vmatprep.subr.bf16.mxu0 %v667
    %2731 = vmatpush1.bf16.msra.mxu0 %v666
    %2732 = vmatprep.subr.bf16.mxu0 %v671
    %2733 = vmatpush1.bf16.msra.mxu0 %v670
    %2734 = vmatprep.subr.bf16.mxu0 %v675
    %2735 = vmatpush1.bf16.msra.mxu0 %v674
    %2736 = vmatprep.subr.bf16.mxu0 %v679
    %2737 = vmatpush1.bf16.msra.mxu0 %v678
    %2738 = vmatprep.subr.bf16.mxu0 %v683
    %2739 = vmatpush1.bf16.msra.mxu0 %v682
    %2740 = vmatprep.subr.bf16.mxu0 %v687
    %2741 = vmatpush1.bf16.msra.mxu0 %v686
    %2742 = vmatprep.subr.bf16.mxu0 %v691
    %2743 = vmatpush1.bf16.msra.mxu0 %v690
    %2744 = vmatprep.subr.bf16.mxu0 %v695
    %2745 = vmatpush1.bf16.msra.mxu0 %v694
    %2746 = vmatprep.subr.bf16.mxu0 %v699
    %2747 = vmatpush1.bf16.msra.mxu0 %v698
    %2748 = vmatprep.subr.bf16.mxu0 %v703
    %2749 = vmatpush1.bf16.msra.mxu0 %v702
    %2750 = vmatprep.subr.bf16.mxu0 %v707
    %2751 = vmatpush1.bf16.msra.mxu0 %v706
    %2752 = vmatprep.subr.bf16.mxu0 %v711
    %2753 = vmatpush1.bf16.msra.mxu0 %v710
    %2754 = vmatprep.subr.bf16.mxu0 %v715
    %2755 = vmatpush1.bf16.msra.mxu0 %v714
    %2756 = vmatprep.subr.bf16.mxu0 %v719
    %2757 = vmatpush1.bf16.msra.mxu0 %v718
    %2758 = vmatprep.subr.bf16.mxu0 %v723
    %2759 = vmatpush1.bf16.msra.mxu0 %v722
    %2760 = vmatprep.mubr.bf16.mxu0 %v2686
    %2761 = vmatmul.mubr.bf16.gmra.mrb[0].mxu0 %v2685
    %v2762 = vpop.f32.mrb[0].mxu0
    %v2763 = vadd.f32 %v189, %v2762
    %v2764 = vpop.f32.mrb[0].mxu0
    %v2765 = vadd.f32 %v193, %v2764
    %v2766 = vpop.f32.mrb[0].mxu0
    %v2767 = vpop.f32.mrb[0].mxu0
    %2768 = vdwg.mxu0
    %v2769 = vmul.f32 %v2722, 0.5
    %v2770 = vtanh.pop %v2769
    %v2771 = vmul.f32 %v2770, 0.5
    %v2772 = vadd.f32 %v2771, 0.5
    %v2773 = vmul.f32 %v2724, 0.5
    %v2774 = vtanh.pop %v2773
    %v2775 = vmul.f32 %v2774, 0.5
    %v2776 = vadd.f32 %v2775, 0.5
    %v2777 = vtanh.pop %v2763
    %v2778 = vmul.f32 %v2765, 0.5
    %v2779 = vtanh.pop %v2778
    %v2780 = vmul.f32 %v2779, 0.5
    %v2781 = vadd.f32 %v2780, 0.5
    %v2782 = vmul.f32 %v2776, %v2573
    %v2783 = vmul.f32 %v2772, %v2777
    %v2784 = vadd.f32 %v2782, %v2783
    %v2785 = vtanh.pop %v2784
    %v2786 = vmul.f32 %v2781, %v2785
    %s2787 = scalar_lea.vmem [#allocation2], 320
    %v2788 = vld [vmem:[%s2787] sm:$0xff]
    %v2789 = vld [vmem:[%s2787 + $0x8] sm:$0xff]
    %v2790 = vld [vmem:[%s2787 + $0x10] sm:$0xff]
    %v2791 = vld [vmem:[%s2787 + $0x18] sm:$0xff]
    %2792 = vmatprep.subr.bf16.mxu0 %v299
    %2793 = vmatpush1.bf16.msra.mxu0 %v298
    %2794 = vmatprep.subr.bf16.mxu0 %v303
    %2795 = vmatpush1.bf16.msra.mxu0 %v302
    %2796 = vmatprep.subr.bf16.mxu0 %v307
    %2797 = vmatpush1.bf16.msra.mxu0 %v306
    %2798 = vmatprep.subr.bf16.mxu0 %v311
    %2799 = vmatpush1.bf16.msra.mxu0 %v310
    %2800 = vmatprep.subr.bf16.mxu0 %v315
    %2801 = vmatpush1.bf16.msra.mxu0 %v314
    %2802 = vmatprep.subr.bf16.mxu0 %v319
    %2803 = vmatpush1.bf16.msra.mxu0 %v318
    %2804 = vmatprep.subr.bf16.mxu0 %v323
    %2805 = vmatpush1.bf16.msra.mxu0 %v322
    %2806 = vmatprep.subr.bf16.mxu0 %v327
    %2807 = vmatpush1.bf16.msra.mxu0 %v326
    %2808 = vmatprep.subr.bf16.mxu0 0
    %2809 = vmatpush1.bf16.msra.mxu0 0
    %2810 = vmatprep.subr.bf16.mxu0 0
    %2811 = vmatpush1.bf16.msra.mxu0 0
    %2812 = vmatprep.subr.bf16.mxu0 0
    %2813 = vmatpush1.bf16.msra.mxu0 0
    %2814 = vmatprep.subr.bf16.mxu0 0
    %2815 = vmatpush1.bf16.msra.mxu0 0
    %2816 = vmatprep.subr.bf16.mxu0 0
    %2817 = vmatpush1.bf16.msra.mxu0 0
    %2818 = vmatprep.subr.bf16.mxu0 0
    %2819 = vmatpush1.bf16.msra.mxu0 0
    %2820 = vmatprep.subr.bf16.mxu0 0
    %2821 = vmatpush1.bf16.msra.mxu0 0
    %2822 = vmatprep.subr.bf16.mxu0 0
    %2823 = vmatpush1.bf16.msra.mxu0 0
    %2824 = vmatprep.mubr.bf16.mxu0 0
    %2825 = vmatmul.mubr.bf16.gmra.mrb[0].mxu0 %v2685
    %v2826 = vpop.f32.mrb[0].mxu0
    %v2827 = vadd.f32 0.0, %v2826
    %v2828 = vpop.f32.mrb[0].mxu0
    %v2829 = vadd.f32 0.0, %v2828
    %v2830 = vpop.f32.mrb[0].mxu0
    %v2831 = vpop.f32.mrb[0].mxu0
    %2832 = vdwg.mxu0
    %2833 = vmatprep.subr.bf16.mxu0 %v301
    %2834 = vmatpush1.bf16.msra.mxu0 %v300
    %2835 = vmatprep.subr.bf16.mxu0 %v305
    %2836 = vmatpush1.bf16.msra.mxu0 %v304
    %2837 = vmatprep.subr.bf16.mxu0 %v309
    %2838 = vmatpush1.bf16.msra.mxu0 %v308
    %2839 = vmatprep.subr.bf16.mxu0 %v313
    %2840 = vmatpush1.bf16.msra.mxu0 %v312
    %2841 = vmatprep.subr.bf16.mxu0 %v317
    %2842 = vmatpush1.bf16.msra.mxu0 %v316
    %2843 = vmatprep.subr.bf16.mxu0 %v321
    %2844 = vmatpush1.bf16.msra.mxu0 %v320
    %2845 = vmatprep.subr.bf16.mxu0 %v325
    %2846 = vmatpush1.bf16.msra.mxu0 %v324
    %2847 = vmatprep.subr.bf16.mxu0 %v329
    %2848 = vmatpush1.bf16.msra.mxu0 %v328
    %2849 = vmatprep.subr.bf16.mxu0 0
    %2850 = vmatpush1.bf16.msra.mxu0 0
    %2851 = vmatprep.subr.bf16.mxu0 0
    %2852 = vmatpush1.bf16.msra.mxu0 0
    %2853 = vmatprep.subr.bf16.mxu0 0
    %2854 = vmatpush1.bf16.msra.mxu0 0
    %2855 = vmatprep.subr.bf16.mxu0 0
    %2856 = vmatpush1.bf16.msra.mxu0 0
    %2857 = vmatprep.subr.bf16.mxu0 0
    %2858 = vmatpush1.bf16.msra.mxu0 0
    %2859 = vmatprep.subr.bf16.mxu0 0
    %2860 = vmatpush1.bf16.msra.mxu0 0
    %2861 = vmatprep.subr.bf16.mxu0 0
    %2862 = vmatpush1.bf16.msra.mxu0 0
    %2863 = vmatprep.subr.bf16.mxu0 0
    %2864 = vmatpush1.bf16.msra.mxu0 0
    %2865 = vmatprep.mubr.bf16.mxu0 0
    %2866 = vmatmul.mubr.bf16.gmra.mrb[0].mxu0 %v2685
    %v2867 = vpop.f32.mrb[0].mxu0
    %v2868 = vadd.f32 0.0, %v2867
    %v2869 = vpop.f32.mrb[0].mxu0
    %v2870 = vadd.f32 0.0, %v2869
    %v2871 = vpop.f32.mrb[0].mxu0
    %v2872 = vpop.f32.mrb[0].mxu0
    %2873 = vdwg.mxu0
    %v2874 = vadd.f32 %v2788, %v2827
    %v2875 = vadd.f32 %v2789, %v2829
    %v2876 = vadd.f32 %v2790, %v2868
    %v2877 = vadd.f32 %v2791, %v2870
    %v2878 = vmul.f32 %v2874, 0.5
    %v2879 = vtanh.pop %v2878
    %v2880 = vmul.f32 %v2879, 0.5
    %v2881 = vadd.f32 %v2880, 0.5
    %v2882 = vmul.f32 %v2875, 0.5
    %v2883 = vtanh.pop %v2882
    %v2884 = vmul.f32 %v2883, 0.5
    %v2885 = vadd.f32 %v2884, 0.5
    %v2886 = vtanh.pop %v2876
    %v2887 = vmul.f32 %v2877, 0.5
    %v2888 = vtanh.pop %v2887
    %v2889 = vmul.f32 %v2888, 0.5
    %v2890 = vadd.f32 %v2889, 0.5
    %v2891 = vmul.f32 %v2885, %v2682
    %v2892 = vmul.f32 %v2881, %v2886
    %v2893 = vadd.f32 %v2891, %v2892
    %v2894 = vtanh.pop %v2893
    %v2895 = vmul.f32 %v2890, %v2894
    %v2896 = vpack.c.bf16 %v2895, %v2895
    %v2897 = vpack.c.bf16 %v2786, %v2786
    %2898 = vmatprep.subr.bf16.mxu0 %v661
    %2899 = vmatpush1.bf16.msra.mxu0 %v660
    %2900 = vmatprep.subr.bf16.mxu0 %v665
    %2901 = vmatpush1.bf16.msra.mxu0 %v664
    %2902 = vmatprep.subr.bf16.mxu0 %v669
    %2903 = vmatpush1.bf16.msra.mxu0 %v668
    %2904 = vmatprep.subr.bf16.mxu0 %v673
    %2905 = vmatpush1.bf16.msra.mxu0 %v672
    %2906 = vmatprep.subr.bf16.mxu0 %v677
    %2907 = vmatpush1.bf16.msra.mxu0 %v676
    %2908 = vmatprep.subr.bf16.mxu0 %v681
    %2909 = vmatpush1.bf16.msra.mxu0 %v680
    %2910 = vmatprep.subr.bf16.mxu0 %v685
    %2911 = vmatpush1.bf16.msra.mxu0 %v684
    %2912 = vmatprep.subr.bf16.mxu0 %v689
    %2913 = vmatpush1.bf16.msra.mxu0 %v688
    %2914 = vmatprep.subr.bf16.mxu0 %v693
    %2915 = vmatpush1.bf16.msra.mxu0 %v692
    %2916 = vmatprep.subr.bf16.mxu0 %v697
    %2917 = vmatpush1.bf16.msra.mxu0 %v696
    %2918 = vmatprep.subr.bf16.mxu0 %v701
    %2919 = vmatpush1.bf16.msra.mxu0 %v700
    %2920 = vmatprep.subr.bf16.mxu0 %v705
    %2921 = vmatpush1.bf16.msra.mxu0 %v704
    %2922 = vmatprep.subr.bf16.mxu0 %v709
    %2923 = vmatpush1.bf16.msra.mxu0 %v708
    %2924 = vmatprep.subr.bf16.mxu0 %v713
    %2925 = vmatpush1.bf16.msra.mxu0 %v712
    %2926 = vmatprep.subr.bf16.mxu0 %v717
    %2927 = vmatpush1.bf16.msra.mxu0 %v716
    %2928 = vmatprep.subr.bf16.mxu0 %v721
    %2929 = vmatpush1.bf16.msra.mxu0 %v720
    %2930 = vmatprep.mubr.bf16.mxu0 %v2897
    %2931 = vmatmul.mubr.bf16.gmra.mrb[0].mxu0 %v2896
    %v2932 = vpop.f32.mrb[0].mxu0
    %v2933 = vadd.f32 %v181, %v2932
    %v2934 = vpop.f32.mrb[0].mxu0
    %v2935 = vadd.f32 %v185, %v2934
    %v2936 = vpop.f32.mrb[0].mxu0
    %v2937 = vpop.f32.mrb[0].mxu0
    %2938 = vdwg.mxu0
    %2939 = vmatprep.subr.bf16.mxu0 %v663
    %2940 = vmatpush1.bf16.msra.mxu0 %v662
    %2941 = vmatprep.subr.bf16.mxu0 %v667
    %2942 = vmatpush1.bf16.msra.mxu0 %v666
    %2943 = vmatprep.subr.bf16.mxu0 %v671
    %2944 = vmatpush1.bf16.msra.mxu0 %v670
    %2945 = vmatprep.subr.bf16.mxu0 %v675
    %2946 = vmatpush1.bf16.msra.mxu0 %v674
    %2947 = vmatprep.subr.bf16.mxu0 %v679
    %2948 = vmatpush1.bf16.msra.mxu0 %v678
    %2949 = vmatprep.subr.bf16.mxu0 %v683
    %2950 = vmatpush1.bf16.msra.mxu0 %v682
    %2951 = vmatprep.subr.bf16.mxu0 %v687
    %2952 = vmatpush1.bf16.msra.mxu0 %v686
    %2953 = vmatprep.subr.bf16.mxu0 %v691
    %2954 = vmatpush1.bf16.msra.mxu0 %v690
    %2955 = vmatprep.subr.bf16.mxu0 %v695
    %2956 = vmatpush1.bf16.msra.mxu0 %v694
    %2957 = vmatprep.subr.bf16.mxu0 %v699
    %2958 = vmatpush1.bf16.msra.mxu0 %v698
    %2959 = vmatprep.subr.bf16.mxu0 %v703
    %2960 = vmatpush1.bf16.msra.mxu0 %v702
    %2961 = vmatprep.subr.bf16.mxu0 %v707
    %2962 = vmatpush1.bf16.msra.mxu0 %v706
    %2963 = vmatprep.subr.bf16.mxu0 %v711
    %2964 = vmatpush1.bf16.msra.mxu0 %v710
    %2965 = vmatprep.subr.bf16.mxu0 %v715
    %2966 = vmatpush1.bf16.msra.mxu0 %v714
    %2967 = vmatprep.subr.bf16.mxu0 %v719
    %2968 = vmatpush1.bf16.msra.mxu0 %v718
    %2969 = vmatprep.subr.bf16.mxu0 %v723
    %2970 = vmatpush1.bf16.msra.mxu0 %v722
    %2971 = vmatprep.mubr.bf16.mxu0 %v2897
    %2972 = vmatmul.mubr.bf16.gmra.mrb[0].mxu0 %v2896
    %v2973 = vpop.f32.mrb[0].mxu0
    %v2974 = vadd.f32 %v189, %v2973
    %v2975 = vpop.f32.mrb[0].mxu0
    %v2976 = vadd.f32 %v193, %v2975
    %v2977 = vpop.f32.mrb[0].mxu0
    %v2978 = vpop.f32.mrb[0].mxu0
    %2979 = vdwg.mxu0
    %v2980 = vmul.f32 %v2933, 0.5
    %v2981 = vtanh.pop %v2980
    %v2982 = vmul.f32 %v2981, 0.5
    %v2983 = vadd.f32 %v2982, 0.5
    %v2984 = vmul.f32 %v2935, 0.5
    %v2985 = vtanh.pop %v2984
    %v2986 = vmul.f32 %v2985, 0.5
    %v2987 = vadd.f32 %v2986, 0.5
    %v2988 = vtanh.pop %v2974
    %v2989 = vmul.f32 %v2976, 0.5
    %v2990 = vtanh.pop %v2989
    %v2991 = vmul.f32 %v2990, 0.5
    %v2992 = vadd.f32 %v2991, 0.5
    %v2993 = vmul.f32 %v2987, %v2784
    %v2994 = vmul.f32 %v2983, %v2988
    %v2995 = vadd.f32 %v2993, %v2994
    %v2996 = vtanh.pop %v2995
    %v2997 = vmul.f32 %v2992, %v2996
    %s2998 = scalar_lea.vmem [#allocation2], 352
    %v2999 = vld [vmem:[%s2998] sm:$0xff]
    %v3000 = vld [vmem:[%s2998 + $0x8] sm:$0xff]
    %v3001 = vld [vmem:[%s2998 + $0x10] sm:$0xff]
    %v3002 = vld [vmem:[%s2998 + $0x18] sm:$0xff]
    %3003 = vmatprep.subr.bf16.mxu0 %v299
    %3004 = vmatpush1.bf16.msra.mxu0 %v298
    %3005 = vmatprep.subr.bf16.mxu0 %v303
    %3006 = vmatpush1.bf16.msra.mxu0 %v302
    %3007 = vmatprep.subr.bf16.mxu0 %v307
    %3008 = vmatpush1.bf16.msra.mxu0 %v306
    %3009 = vmatprep.subr.bf16.mxu0 %v311
    %3010 = vmatpush1.bf16.msra.mxu0 %v310
    %3011 = vmatprep.subr.bf16.mxu0 %v315
    %3012 = vmatpush1.bf16.msra.mxu0 %v314
    %3013 = vmatprep.subr.bf16.mxu0 %v319
    %3014 = vmatpush1.bf16.msra.mxu0 %v318
    %3015 = vmatprep.subr.bf16.mxu0 %v323
    %3016 = vmatpush1.bf16.msra.mxu0 %v322
    %3017 = vmatprep.subr.bf16.mxu0 %v327
    %3018 = vmatpush1.bf16.msra.mxu0 %v326
    %3019 = vmatprep.subr.bf16.mxu0 0
    %3020 = vmatpush1.bf16.msra.mxu0 0
    %3021 = vmatprep.subr.bf16.mxu0 0
    %3022 = vmatpush1.bf16.msra.mxu0 0
    %3023 = vmatprep.subr.bf16.mxu0 0
    %3024 = vmatpush1.bf16.msra.mxu0 0
    %3025 = vmatprep.subr.bf16.mxu0 0
    %3026 = vmatpush1.bf16.msra.mxu0 0
    %3027 = vmatprep.subr.bf16.mxu0 0
    %3028 = vmatpush1.bf16.msra.mxu0 0
    %3029 = vmatprep.subr.bf16.mxu0 0
    %3030 = vmatpush1.bf16.msra.mxu0 0
    %3031 = vmatprep.subr.bf16.mxu0 0
    %3032 = vmatpush1.bf16.msra.mxu0 0
    %3033 = vmatprep.subr.bf16.mxu0 0
    %3034 = vmatpush1.bf16.msra.mxu0 0
    %3035 = vmatprep.mubr.bf16.mxu0 0
    %3036 = vmatmul.mubr.bf16.gmra.mrb[0].mxu0 %v2896
    %v3037 = vpop.f32.mrb[0].mxu0
    %v3038 = vadd.f32 0.0, %v3037
    %v3039 = vpop.f32.mrb[0].mxu0
    %v3040 = vadd.f32 0.0, %v3039
    %v3041 = vpop.f32.mrb[0].mxu0
    %v3042 = vpop.f32.mrb[0].mxu0
    %3043 = vdwg.mxu0
    %3044 = vmatprep.subr.bf16.mxu0 %v301
    %3045 = vmatpush1.bf16.msra.mxu0 %v300
    %3046 = vmatprep.subr.bf16.mxu0 %v305
    %3047 = vmatpush1.bf16.msra.mxu0 %v304
    %3048 = vmatprep.subr.bf16.mxu0 %v309
    %3049 = vmatpush1.bf16.msra.mxu0 %v308
    %3050 = vmatprep.subr.bf16.mxu0 %v313
    %3051 = vmatpush1.bf16.msra.mxu0 %v312
    %3052 = vmatprep.subr.bf16.mxu0 %v317
    %3053 = vmatpush1.bf16.msra.mxu0 %v316
    %3054 = vmatprep.subr.bf16.mxu0 %v321
    %3055 = vmatpush1.bf16.msra.mxu0 %v320
    %3056 = vmatprep.subr.bf16.mxu0 %v325
    %3057 = vmatpush1.bf16.msra.mxu0 %v324
    %3058 = vmatprep.subr.bf16.mxu0 %v329
    %3059 = vmatpush1.bf16.msra.mxu0 %v328
    %3060 = vmatprep.subr.bf16.mxu0 0
    %3061 = vmatpush1.bf16.msra.mxu0 0
    %3062 = vmatprep.subr.bf16.mxu0 0
    %3063 = vmatpush1.bf16.msra.mxu0 0
    %3064 = vmatprep.subr.bf16.mxu0 0
    %3065 = vmatpush1.bf16.msra.mxu0 0
    %3066 = vmatprep.subr.bf16.mxu0 0
    %3067 = vmatpush1.bf16.msra.mxu0 0
    %3068 = vmatprep.subr.bf16.mxu0 0
    %3069 = vmatpush1.bf16.msra.mxu0 0
    %3070 = vmatprep.subr.bf16.mxu0 0
    %3071 = vmatpush1.bf16.msra.mxu0 0
    %3072 = vmatprep.subr.bf16.mxu0 0
    %3073 = vmatpush1.bf16.msra.mxu0 0
    %3074 = vmatprep.subr.bf16.mxu0 0
    %3075 = vmatpush1.bf16.msra.mxu0 0
    %3076 = vmatprep.mubr.bf16.mxu0 0
    %3077 = vmatmul.mubr.bf16.gmra.mrb[0].mxu0 %v2896
    %v3078 = vpop.f32.mrb[0].mxu0
    %v3079 = vadd.f32 0.0, %v3078
    %v3080 = vpop.f32.mrb[0].mxu0
    %v3081 = vadd.f32 0.0, %v3080
    %v3082 = vpop.f32.mrb[0].mxu0
    %v3083 = vpop.f32.mrb[0].mxu0
    %3084 = vdwg.mxu0
    %v3085 = vadd.f32 %v2999, %v3038
    %v3086 = vadd.f32 %v3000, %v3040
    %v3087 = vadd.f32 %v3001, %v3079
    %v3088 = vadd.f32 %v3002, %v3081
    %v3089 = vmul.f32 %v3085, 0.5
    %v3090 = vtanh.pop %v3089
    %v3091 = vmul.f32 %v3090, 0.5
    %v3092 = vadd.f32 %v3091, 0.5
    %v3093 = vmul.f32 %v3086, 0.5
    %v3094 = vtanh.pop %v3093
    %v3095 = vmul.f32 %v3094, 0.5
    %v3096 = vadd.f32 %v3095, 0.5
    %v3097 = vtanh.pop %v3087
    %v3098 = vmul.f32 %v3088, 0.5
    %v3099 = vtanh.pop %v3098
    %v3100 = vmul.f32 %v3099, 0.5
    %v3101 = vadd.f32 %v3100, 0.5
    %v3102 = vmul.f32 %v3096, %v2893
    %v3103 = vmul.f32 %v3092, %v3097
    %v3104 = vadd.f32 %v3102, %v3103
    %v3105 = vtanh.pop %v3104
    %v3106 = vmul.f32 %v3101, %v3105
    %v3107 = vpack.c.bf16 %v3106, %v3106
    %v3108 = vpack.c.bf16 %v2997, %v2997
    %3109 = vmatprep.subr.bf16.mxu0 %v661
    %3110 = vmatpush1.bf16.msra.mxu0 %v660
    %3111 = vmatprep.subr.bf16.mxu0 %v665
    %3112 = vmatpush1.bf16.msra.mxu0 %v664
    %3113 = vmatprep.subr.bf16.mxu0 %v669
    %3114 = vmatpush1.bf16.msra.mxu0 %v668
    %3115 = vmatprep.subr.bf16.mxu0 %v673
    %3116 = vmatpush1.bf16.msra.mxu0 %v672
    %3117 = vmatprep.subr.bf16.mxu0 %v677
    %3118 = vmatpush1.bf16.msra.mxu0 %v676
    %3119 = vmatprep.subr.bf16.mxu0 %v681
    %3120 = vmatpush1.bf16.msra.mxu0 %v680
    %3121 = vmatprep.subr.bf16.mxu0 %v685
    %3122 = vmatpush1.bf16.msra.mxu0 %v684
    %3123 = vmatprep.subr.bf16.mxu0 %v689
    %3124 = vmatpush1.bf16.msra.mxu0 %v688
    %3125 = vmatprep.subr.bf16.mxu0 %v693
    %3126 = vmatpush1.bf16.msra.mxu0 %v692
    %3127 = vmatprep.subr.bf16.mxu0 %v697
    %3128 = vmatpush1.bf16.msra.mxu0 %v696
    %3129 = vmatprep.subr.bf16.mxu0 %v701
    %3130 = vmatpush1.bf16.msra.mxu0 %v700
    %3131 = vmatprep.subr.bf16.mxu0 %v705
    %3132 = vmatpush1.bf16.msra.mxu0 %v704
    %3133 = vmatprep.subr.bf16.mxu0 %v709
    %3134 = vmatpush1.bf16.msra.mxu0 %v708
    %3135 = vmatprep.subr.bf16.mxu0 %v713
    %3136 = vmatpush1.bf16.msra.mxu0 %v712
    %3137 = vmatprep.subr.bf16.mxu0 %v717
    %3138 = vmatpush1.bf16.msra.mxu0 %v716
    %3139 = vmatprep.subr.bf16.mxu0 %v721
    %3140 = vmatpush1.bf16.msra.mxu0 %v720
    %3141 = vmatprep.mubr.bf16.mxu0 %v3108
    %3142 = vmatmul.mubr.bf16.gmra.mrb[0].mxu0 %v3107
    %v3143 = vpop.f32.mrb[0].mxu0
    %v3144 = vadd.f32 %v181, %v3143
    %v3145 = vpop.f32.mrb[0].mxu0
    %v3146 = vadd.f32 %v185, %v3145
    %v3147 = vpop.f32.mrb[0].mxu0
    %v3148 = vpop.f32.mrb[0].mxu0
    %3149 = vdwg.mxu0
    %3150 = vmatprep.subr.bf16.mxu0 %v663
    %3151 = vmatpush1.bf16.msra.mxu0 %v662
    %3152 = vmatprep.subr.bf16.mxu0 %v667
    %3153 = vmatpush1.bf16.msra.mxu0 %v666
    %3154 = vmatprep.subr.bf16.mxu0 %v671
    %3155 = vmatpush1.bf16.msra.mxu0 %v670
    %3156 = vmatprep.subr.bf16.mxu0 %v675
    %3157 = vmatpush1.bf16.msra.mxu0 %v674
    %3158 = vmatprep.subr.bf16.mxu0 %v679
    %3159 = vmatpush1.bf16.msra.mxu0 %v678
    %3160 = vmatprep.subr.bf16.mxu0 %v683
    %3161 = vmatpush1.bf16.msra.mxu0 %v682
    %3162 = vmatprep.subr.bf16.mxu0 %v687
    %3163 = vmatpush1.bf16.msra.mxu0 %v686
    %3164 = vmatprep.subr.bf16.mxu0 %v691
    %3165 = vmatpush1.bf16.msra.mxu0 %v690
    %3166 = vmatprep.subr.bf16.mxu0 %v695
    %3167 = vmatpush1.bf16.msra.mxu0 %v694
    %3168 = vmatprep.subr.bf16.mxu0 %v699
    %3169 = vmatpush1.bf16.msra.mxu0 %v698
    %3170 = vmatprep.subr.bf16.mxu0 %v703
    %3171 = vmatpush1.bf16.msra.mxu0 %v702
    %3172 = vmatprep.subr.bf16.mxu0 %v707
    %3173 = vmatpush1.bf16.msra.mxu0 %v706
    %3174 = vmatprep.subr.bf16.mxu0 %v711
    %3175 = vmatpush1.bf16.msra.mxu0 %v710
    %3176 = vmatprep.subr.bf16.mxu0 %v715
    %3177 = vmatpush1.bf16.msra.mxu0 %v714
    %3178 = vmatprep.subr.bf16.mxu0 %v719
    %3179 = vmatpush1.bf16.msra.mxu0 %v718
    %3180 = vmatprep.subr.bf16.mxu0 %v723
    %3181 = vmatpush1.bf16.msra.mxu0 %v722
    %3182 = vmatprep.mubr.bf16.mxu0 %v3108
    %3183 = vmatmul.mubr.bf16.gmra.mrb[0].mxu0 %v3107
    %v3184 = vpop.f32.mrb[0].mxu0
    %v3185 = vadd.f32 %v189, %v3184
    %v3186 = vpop.f32.mrb[0].mxu0
    %v3187 = vadd.f32 %v193, %v3186
    %v3188 = vpop.f32.mrb[0].mxu0
    %v3189 = vpop.f32.mrb[0].mxu0
    %3190 = vdwg.mxu0
    %v3191 = vmul.f32 %v3144, 0.5
    %v3192 = vtanh.pop %v3191
    %v3193 = vmul.f32 %v3192, 0.5
    %v3194 = vadd.f32 %v3193, 0.5
    %v3195 = vmul.f32 %v3146, 0.5
    %v3196 = vtanh.pop %v3195
    %v3197 = vmul.f32 %v3196, 0.5
    %v3198 = vadd.f32 %v3197, 0.5
    %v3199 = vtanh.pop %v3185
    %v3200 = vmul.f32 %v3187, 0.5
    %v3201 = vtanh.pop %v3200
    %v3202 = vmul.f32 %v3201, 0.5
    %v3203 = vadd.f32 %v3202, 0.5
    %v3204 = vmul.f32 %v3198, %v2995
    %v3205 = vmul.f32 %v3194, %v3199
    %v3206 = vadd.f32 %v3204, %v3205
    %v3207 = vtanh.pop %v3206
    %v3208 = vmul.f32 %v3203, %v3207
    %s3209 = scalar_lea.vmem [#allocation2], 384
    %v3210 = vld [vmem:[%s3209] sm:$0xff]
    %v3211 = vld [vmem:[%s3209 + $0x8] sm:$0xff]
    %v3212 = vld [vmem:[%s3209 + $0x10] sm:$0xff]
    %v3213 = vld [vmem:[%s3209 + $0x18] sm:$0xff]
    %3214 = vmatprep.subr.bf16.mxu0 %v299
    %3215 = vmatpush1.bf16.msra.mxu0 %v298
    %3216 = vmatprep.subr.bf16.mxu0 %v303
    %3217 = vmatpush1.bf16.msra.mxu0 %v302
    %3218 = vmatprep.subr.bf16.mxu0 %v307
    %3219 = vmatpush1.bf16.msra.mxu0 %v306
    %3220 = vmatprep.subr.bf16.mxu0 %v311
    %3221 = vmatpush1.bf16.msra.mxu0 %v310
    %3222 = vmatprep.subr.bf16.mxu0 %v315
    %3223 = vmatpush1.bf16.msra.mxu0 %v314
    %3224 = vmatprep.subr.bf16.mxu0 %v319
    %3225 = vmatpush1.bf16.msra.mxu0 %v318
    %3226 = vmatprep.subr.bf16.mxu0 %v323
    %3227 = vmatpush1.bf16.msra.mxu0 %v322
    %3228 = vmatprep.subr.bf16.mxu0 %v327
    %3229 = vmatpush1.bf16.msra.mxu0 %v326
    %3230 = vmatprep.subr.bf16.mxu0 0
    %3231 = vmatpush1.bf16.msra.mxu0 0
    %3232 = vmatprep.subr.bf16.mxu0 0
    %3233 = vmatpush1.bf16.msra.mxu0 0
    %3234 = vmatprep.subr.bf16.mxu0 0
    %3235 = vmatpush1.bf16.msra.mxu0 0
    %3236 = vmatprep.subr.bf16.mxu0 0
    %3237 = vmatpush1.bf16.msra.mxu0 0
    %3238 = vmatprep.subr.bf16.mxu0 0
    %3239 = vmatpush1.bf16.msra.mxu0 0
    %3240 = vmatprep.subr.bf16.mxu0 0
    %3241 = vmatpush1.bf16.msra.mxu0 0
    %3242 = vmatprep.subr.bf16.mxu0 0
    %3243 = vmatpush1.bf16.msra.mxu0 0
    %3244 = vmatprep.subr.bf16.mxu0 0
    %3245 = vmatpush1.bf16.msra.mxu0 0
    %3246 = vmatprep.mubr.bf16.mxu0 0
    %3247 = vmatmul.mubr.bf16.gmra.mrb[0].mxu0 %v3107
    %v3248 = vpop.f32.mrb[0].mxu0
    %v3249 = vadd.f32 0.0, %v3248
    %v3250 = vpop.f32.mrb[0].mxu0
    %v3251 = vadd.f32 0.0, %v3250
    %v3252 = vpop.f32.mrb[0].mxu0
    %v3253 = vpop.f32.mrb[0].mxu0
    %3254 = vdwg.mxu0
    %3255 = vmatprep.subr.bf16.mxu0 %v301
    %3256 = vmatpush1.bf16.msra.mxu0 %v300
    %3257 = vmatprep.subr.bf16.mxu0 %v305
    %3258 = vmatpush1.bf16.msra.mxu0 %v304
    %3259 = vmatprep.subr.bf16.mxu0 %v309
    %3260 = vmatpush1.bf16.msra.mxu0 %v308
    %3261 = vmatprep.subr.bf16.mxu0 %v313
    %3262 = vmatpush1.bf16.msra.mxu0 %v312
    %3263 = vmatprep.subr.bf16.mxu0 %v317
    %3264 = vmatpush1.bf16.msra.mxu0 %v316
    %3265 = vmatprep.subr.bf16.mxu0 %v321
    %3266 = vmatpush1.bf16.msra.mxu0 %v320
    %3267 = vmatprep.subr.bf16.mxu0 %v325
    %3268 = vmatpush1.bf16.msra.mxu0 %v324
    %3269 = vmatprep.subr.bf16.mxu0 %v329
    %3270 = vmatpush1.bf16.msra.mxu0 %v328
    %3271 = vmatprep.subr.bf16.mxu0 0
    %3272 = vmatpush1.bf16.msra.mxu0 0
    %3273 = vmatprep.subr.bf16.mxu0 0
    %3274 = vmatpush1.bf16.msra.mxu0 0
    %3275 = vmatprep.subr.bf16.mxu0 0
    %3276 = vmatpush1.bf16.msra.mxu0 0
    %3277 = vmatprep.subr.bf16.mxu0 0
    %3278 = vmatpush1.bf16.msra.mxu0 0
    %3279 = vmatprep.subr.bf16.mxu0 0
    %3280 = vmatpush1.bf16.msra.mxu0 0
    %3281 = vmatprep.subr.bf16.mxu0 0
    %3282 = vmatpush1.bf16.msra.mxu0 0
    %3283 = vmatprep.subr.bf16.mxu0 0
    %3284 = vmatpush1.bf16.msra.mxu0 0
    %3285 = vmatprep.subr.bf16.mxu0 0
    %3286 = vmatpush1.bf16.msra.mxu0 0
    %3287 = vmatprep.mubr.bf16.mxu0 0
    %3288 = vmatmul.mubr.bf16.gmra.mrb[0].mxu0 %v3107
    %v3289 = vpop.f32.mrb[0].mxu0
    %v3290 = vadd.f32 0.0, %v3289
    %v3291 = vpop.f32.mrb[0].mxu0
    %v3292 = vadd.f32 0.0, %v3291
    %v3293 = vpop.f32.mrb[0].mxu0
    %v3294 = vpop.f32.mrb[0].mxu0
    %3295 = vdwg.mxu0
    %v3296 = vadd.f32 %v3210, %v3249
    %v3297 = vadd.f32 %v3211, %v3251
    %v3298 = vadd.f32 %v3212, %v3290
    %v3299 = vadd.f32 %v3213, %v3292
    %v3300 = vmul.f32 %v3296, 0.5
    %v3301 = vtanh.pop %v3300
    %v3302 = vmul.f32 %v3301, 0.5
    %v3303 = vadd.f32 %v3302, 0.5
    %v3304 = vmul.f32 %v3297, 0.5
    %v3305 = vtanh.pop %v3304
    %v3306 = vmul.f32 %v3305, 0.5
    %v3307 = vadd.f32 %v3306, 0.5
    %v3308 = vtanh.pop %v3298
    %v3309 = vmul.f32 %v3299, 0.5
    %v3310 = vtanh.pop %v3309
    %v3311 = vmul.f32 %v3310, 0.5
    %v3312 = vadd.f32 %v3311, 0.5
    %v3313 = vmul.f32 %v3307, %v3104
    %v3314 = vmul.f32 %v3303, %v3308
    %v3315 = vadd.f32 %v3313, %v3314
    %v3316 = vtanh.pop %v3315
    %v3317 = vmul.f32 %v3312, %v3316
    %v3318 = vpack.c.bf16 %v3317, %v3317
    %v3319 = vpack.c.bf16 %v3208, %v3208
    %3320 = vmatprep.subr.bf16.mxu0 %v661
    %3321 = vmatpush1.bf16.msra.mxu0 %v660
    %3322 = vmatprep.subr.bf16.mxu0 %v665
    %3323 = vmatpush1.bf16.msra.mxu0 %v664
    %3324 = vmatprep.subr.bf16.mxu0 %v669
    %3325 = vmatpush1.bf16.msra.mxu0 %v668
    %3326 = vmatprep.subr.bf16.mxu0 %v673
    %3327 = vmatpush1.bf16.msra.mxu0 %v672
    %3328 = vmatprep.subr.bf16.mxu0 %v677
    %3329 = vmatpush1.bf16.msra.mxu0 %v676
    %3330 = vmatprep.subr.bf16.mxu0 %v681
    %3331 = vmatpush1.bf16.msra.mxu0 %v680
    %3332 = vmatprep.subr.bf16.mxu0 %v685
    %3333 = vmatpush1.bf16.msra.mxu0 %v684
    %3334 = vmatprep.subr.bf16.mxu0 %v689
    %3335 = vmatpush1.bf16.msra.mxu0 %v688
    %3336 = vmatprep.subr.bf16.mxu0 %v693
    %3337 = vmatpush1.bf16.msra.mxu0 %v692
    %3338 = vmatprep.subr.bf16.mxu0 %v697
    %3339 = vmatpush1.bf16.msra.mxu0 %v696
    %3340 = vmatprep.subr.bf16.mxu0 %v701
    %3341 = vmatpush1.bf16.msra.mxu0 %v700
    %3342 = vmatprep.subr.bf16.mxu0 %v705
    %3343 = vmatpush1.bf16.msra.mxu0 %v704
    %3344 = vmatprep.subr.bf16.mxu0 %v709
    %3345 = vmatpush1.bf16.msra.mxu0 %v708
    %3346 = vmatprep.subr.bf16.mxu0 %v713
    %3347 = vmatpush1.bf16.msra.mxu0 %v712
    %3348 = vmatprep.subr.bf16.mxu0 %v717
    %3349 = vmatpush1.bf16.msra.mxu0 %v716
    %3350 = vmatprep.subr.bf16.mxu0 %v721
    %3351 = vmatpush1.bf16.msra.mxu0 %v720
    %3352 = vmatprep.mubr.bf16.mxu0 %v3319
    %3353 = vmatmul.mubr.bf16.gmra.mrb[0].mxu0 %v3318
    %v3354 = vpop.f32.mrb[0].mxu0
    %v3355 = vadd.f32 %v181, %v3354
    %v3356 = vpop.f32.mrb[0].mxu0
    %v3357 = vadd.f32 %v185, %v3356
    %v3358 = vpop.f32.mrb[0].mxu0
    %v3359 = vpop.f32.mrb[0].mxu0
    %3360 = vdwg.mxu0
    %3361 = vmatprep.subr.bf16.mxu0 %v663
    %3362 = vmatpush1.bf16.msra.mxu0 %v662
    %3363 = vmatprep.subr.bf16.mxu0 %v667
    %3364 = vmatpush1.bf16.msra.mxu0 %v666
    %3365 = vmatprep.subr.bf16.mxu0 %v671
    %3366 = vmatpush1.bf16.msra.mxu0 %v670
    %3367 = vmatprep.subr.bf16.mxu0 %v675
    %3368 = vmatpush1.bf16.msra.mxu0 %v674
    %3369 = vmatprep.subr.bf16.mxu0 %v679
    %3370 = vmatpush1.bf16.msra.mxu0 %v678
    %3371 = vmatprep.subr.bf16.mxu0 %v683
    %3372 = vmatpush1.bf16.msra.mxu0 %v682
    %3373 = vmatprep.subr.bf16.mxu0 %v687
    %3374 = vmatpush1.bf16.msra.mxu0 %v686
    %3375 = vmatprep.subr.bf16.mxu0 %v691
    %3376 = vmatpush1.bf16.msra.mxu0 %v690
    %3377 = vmatprep.subr.bf16.mxu0 %v695
    %3378 = vmatpush1.bf16.msra.mxu0 %v694
    %3379 = vmatprep.subr.bf16.mxu0 %v699
    %3380 = vmatpush1.bf16.msra.mxu0 %v698
    %3381 = vmatprep.subr.bf16.mxu0 %v703
    %3382 = vmatpush1.bf16.msra.mxu0 %v702
    %3383 = vmatprep.subr.bf16.mxu0 %v707
    %3384 = vmatpush1.bf16.msra.mxu0 %v706
    %3385 = vmatprep.subr.bf16.mxu0 %v711
    %3386 = vmatpush1.bf16.msra.mxu0 %v710
    %3387 = vmatprep.subr.bf16.mxu0 %v715
    %3388 = vmatpush1.bf16.msra.mxu0 %v714
    %3389 = vmatprep.subr.bf16.mxu0 %v719
    %3390 = vmatpush1.bf16.msra.mxu0 %v718
    %3391 = vmatprep.subr.bf16.mxu0 %v723
    %3392 = vmatpush1.bf16.msra.mxu0 %v722
    %3393 = vmatprep.mubr.bf16.mxu0 %v3319
    %3394 = vmatmul.mubr.bf16.gmra.mrb[0].mxu0 %v3318
    %v3395 = vpop.f32.mrb[0].mxu0
    %v3396 = vadd.f32 %v189, %v3395
    %v3397 = vpop.f32.mrb[0].mxu0
    %v3398 = vadd.f32 %v193, %v3397
    %v3399 = vpop.f32.mrb[0].mxu0
    %v3400 = vpop.f32.mrb[0].mxu0
    %3401 = vdwg.mxu0
    %v3402 = vmul.f32 %v3355, 0.5
    %v3403 = vtanh.pop %v3402
    %v3404 = vmul.f32 %v3403, 0.5
    %v3405 = vadd.f32 %v3404, 0.5
    %v3406 = vmul.f32 %v3357, 0.5
    %v3407 = vtanh.pop %v3406
    %v3408 = vmul.f32 %v3407, 0.5
    %v3409 = vadd.f32 %v3408, 0.5
    %v3410 = vtanh.pop %v3396
    %v3411 = vmul.f32 %v3398, 0.5
    %v3412 = vtanh.pop %v3411
    %v3413 = vmul.f32 %v3412, 0.5
    %v3414 = vadd.f32 %v3413, 0.5
    %v3415 = vmul.f32 %v3409, %v3206
    %v3416 = vmul.f32 %v3405, %v3410
    %v3417 = vadd.f32 %v3415, %v3416
    %v3418 = vtanh.pop %v3417
    %v3419 = vmul.f32 %v3414, %v3418
    %s3420 = scalar_lea.vmem [#allocation2], 416
    %v3421 = vld [vmem:[%s3420] sm:$0xff]
    %v3422 = vld [vmem:[%s3420 + $0x8] sm:$0xff]
    %v3423 = vld [vmem:[%s3420 + $0x10] sm:$0xff]
    %v3424 = vld [vmem:[%s3420 + $0x18] sm:$0xff]
    %3425 = vmatprep.subr.bf16.mxu0 %v299
    %3426 = vmatpush1.bf16.msra.mxu0 %v298
    %3427 = vmatprep.subr.bf16.mxu0 %v303
    %3428 = vmatpush1.bf16.msra.mxu0 %v302
    %3429 = vmatprep.subr.bf16.mxu0 %v307
    %3430 = vmatpush1.bf16.msra.mxu0 %v306
    %3431 = vmatprep.subr.bf16.mxu0 %v311
    %3432 = vmatpush1.bf16.msra.mxu0 %v310
    %3433 = vmatprep.subr.bf16.mxu0 %v315
    %3434 = vmatpush1.bf16.msra.mxu0 %v314
    %3435 = vmatprep.subr.bf16.mxu0 %v319
    %3436 = vmatpush1.bf16.msra.mxu0 %v318
    %3437 = vmatprep.subr.bf16.mxu0 %v323
    %3438 = vmatpush1.bf16.msra.mxu0 %v322
    %3439 = vmatprep.subr.bf16.mxu0 %v327
    %3440 = vmatpush1.bf16.msra.mxu0 %v326
    %3441 = vmatprep.subr.bf16.mxu0 0
    %3442 = vmatpush1.bf16.msra.mxu0 0
    %3443 = vmatprep.subr.bf16.mxu0 0
    %3444 = vmatpush1.bf16.msra.mxu0 0
    %3445 = vmatprep.subr.bf16.mxu0 0
    %3446 = vmatpush1.bf16.msra.mxu0 0
    %3447 = vmatprep.subr.bf16.mxu0 0
    %3448 = vmatpush1.bf16.msra.mxu0 0
    %3449 = vmatprep.subr.bf16.mxu0 0
    %3450 = vmatpush1.bf16.msra.mxu0 0
    %3451 = vmatprep.subr.bf16.mxu0 0
    %3452 = vmatpush1.bf16.msra.mxu0 0
    %3453 = vmatprep.subr.bf16.mxu0 0
    %3454 = vmatpush1.bf16.msra.mxu0 0
    %3455 = vmatprep.subr.bf16.mxu0 0
    %3456 = vmatpush1.bf16.msra.mxu0 0
    %3457 = vmatprep.mubr.bf16.mxu0 0
    %3458 = vmatmul.mubr.bf16.gmra.mrb[0].mxu0 %v3318
    %v3459 = vpop.f32.mrb[0].mxu0
    %v3460 = vadd.f32 0.0, %v3459
    %v3461 = vpop.f32.mrb[0].mxu0
    %v3462 = vadd.f32 0.0, %v3461
    %v3463 = vpop.f32.mrb[0].mxu0
    %v3464 = vpop.f32.mrb[0].mxu0
    %3465 = vdwg.mxu0
    %3466 = vmatprep.subr.bf16.mxu0 %v301
    %3467 = vmatpush1.bf16.msra.mxu0 %v300
    %3468 = vmatprep.subr.bf16.mxu0 %v305
    %3469 = vmatpush1.bf16.msra.mxu0 %v304
    %3470 = vmatprep.subr.bf16.mxu0 %v309
    %3471 = vmatpush1.bf16.msra.mxu0 %v308
    %3472 = vmatprep.subr.bf16.mxu0 %v313
    %3473 = vmatpush1.bf16.msra.mxu0 %v312
    %3474 = vmatprep.subr.bf16.mxu0 %v317
    %3475 = vmatpush1.bf16.msra.mxu0 %v316
    %3476 = vmatprep.subr.bf16.mxu0 %v321
    %3477 = vmatpush1.bf16.msra.mxu0 %v320
    %3478 = vmatprep.subr.bf16.mxu0 %v325
    %3479 = vmatpush1.bf16.msra.mxu0 %v324
    %3480 = vmatprep.subr.bf16.mxu0 %v329
    %3481 = vmatpush1.bf16.msra.mxu0 %v328
    %3482 = vmatprep.subr.bf16.mxu0 0
    %3483 = vmatpush1.bf16.msra.mxu0 0
    %3484 = vmatprep.subr.bf16.mxu0 0
    %3485 = vmatpush1.bf16.msra.mxu0 0
    %3486 = vmatprep.subr.bf16.mxu0 0
    %3487 = vmatpush1.bf16.msra.mxu0 0
    %3488 = vmatprep.subr.bf16.mxu0 0
    %3489 = vmatpush1.bf16.msra.mxu0 0
    %3490 = vmatprep.subr.bf16.mxu0 0
    %3491 = vmatpush1.bf16.msra.mxu0 0
    %3492 = vmatprep.subr.bf16.mxu0 0
    %3493 = vmatpush1.bf16.msra.mxu0 0
    %3494 = vmatprep.subr.bf16.mxu0 0
    %3495 = vmatpush1.bf16.msra.mxu0 0
    %3496 = vmatprep.subr.bf16.mxu0 0
    %3497 = vmatpush1.bf16.msra.mxu0 0
    %3498 = vmatprep.mubr.bf16.mxu0 0
    %3499 = vmatmul.mubr.bf16.gmra.mrb[0].mxu0 %v3318
    %v3500 = vpop.f32.mrb[0].mxu0
    %v3501 = vadd.f32 0.0, %v3500
    %v3502 = vpop.f32.mrb[0].mxu0
    %v3503 = vadd.f32 0.0, %v3502
    %v3504 = vpop.f32.mrb[0].mxu0
    %v3505 = vpop.f32.mrb[0].mxu0
    %3506 = vdwg.mxu0
    %v3507 = vadd.f32 %v3421, %v3460
    %v3508 = vadd.f32 %v3422, %v3462
    %v3509 = vadd.f32 %v3423, %v3501
    %v3510 = vadd.f32 %v3424, %v3503
    %v3511 = vmul.f32 %v3507, 0.5
    %v3512 = vtanh.pop %v3511
    %v3513 = vmul.f32 %v3512, 0.5
    %v3514 = vadd.f32 %v3513, 0.5
    %v3515 = vmul.f32 %v3508, 0.5
    %v3516 = vtanh.pop %v3515
    %v3517 = vmul.f32 %v3516, 0.5
    %v3518 = vadd.f32 %v3517, 0.5
    %v3519 = vtanh.pop %v3509
    %v3520 = vmul.f32 %v3510, 0.5
    %v3521 = vtanh.pop %v3520
    %v3522 = vmul.f32 %v3521, 0.5
    %v3523 = vadd.f32 %v3522, 0.5
    %v3524 = vmul.f32 %v3518, %v3315
    %v3525 = vmul.f32 %v3514, %v3519
    %v3526 = vadd.f32 %v3524, %v3525
    %v3527 = vtanh.pop %v3526
    %v3528 = vmul.f32 %v3523, %v3527
    %v3529 = vpack.c.bf16 %v3528, %v3528
    %v3530 = vpack.c.bf16 %v3419, %v3419
    %3531 = vmatprep.subr.bf16.mxu0 %v661
    %3532 = vmatpush1.bf16.msra.mxu0 %v660
    %3533 = vmatprep.subr.bf16.mxu0 %v665
    %3534 = vmatpush1.bf16.msra.mxu0 %v664
    %3535 = vmatprep.subr.bf16.mxu0 %v669
    %3536 = vmatpush1.bf16.msra.mxu0 %v668
    %3537 = vmatprep.subr.bf16.mxu0 %v673
    %3538 = vmatpush1.bf16.msra.mxu0 %v672
    %3539 = vmatprep.subr.bf16.mxu0 %v677
    %3540 = vmatpush1.bf16.msra.mxu0 %v676
    %3541 = vmatprep.subr.bf16.mxu0 %v681
    %3542 = vmatpush1.bf16.msra.mxu0 %v680
    %3543 = vmatprep.subr.bf16.mxu0 %v685
    %3544 = vmatpush1.bf16.msra.mxu0 %v684
    %3545 = vmatprep.subr.bf16.mxu0 %v689
    %3546 = vmatpush1.bf16.msra.mxu0 %v688
    %3547 = vmatprep.subr.bf16.mxu0 %v693
    %3548 = vmatpush1.bf16.msra.mxu0 %v692
    %3549 = vmatprep.subr.bf16.mxu0 %v697
    %3550 = vmatpush1.bf16.msra.mxu0 %v696
    %3551 = vmatprep.subr.bf16.mxu0 %v701
    %3552 = vmatpush1.bf16.msra.mxu0 %v700
    %3553 = vmatprep.subr.bf16.mxu0 %v705
    %3554 = vmatpush1.bf16.msra.mxu0 %v704
    %3555 = vmatprep.subr.bf16.mxu0 %v709
    %3556 = vmatpush1.bf16.msra.mxu0 %v708
    %3557 = vmatprep.subr.bf16.mxu0 %v713
    %3558 = vmatpush1.bf16.msra.mxu0 %v712
    %3559 = vmatprep.subr.bf16.mxu0 %v717
    %3560 = vmatpush1.bf16.msra.mxu0 %v716
    %3561 = vmatprep.subr.bf16.mxu0 %v721
    %3562 = vmatpush1.bf16.msra.mxu0 %v720
    %3563 = vmatprep.mubr.bf16.mxu0 %v3530
    %3564 = vmatmul.mubr.bf16.gmra.mrb[0].mxu0 %v3529
    %v3565 = vpop.f32.mrb[0].mxu0
    %v3566 = vadd.f32 %v181, %v3565
    %v3567 = vpop.f32.mrb[0].mxu0
    %v3568 = vadd.f32 %v185, %v3567
    %v3569 = vpop.f32.mrb[0].mxu0
    %v3570 = vpop.f32.mrb[0].mxu0
    %3571 = vdwg.mxu0
    %3572 = vmatprep.subr.bf16.mxu0 %v663
    %3573 = vmatpush1.bf16.msra.mxu0 %v662
    %3574 = vmatprep.subr.bf16.mxu0 %v667
    %3575 = vmatpush1.bf16.msra.mxu0 %v666
    %3576 = vmatprep.subr.bf16.mxu0 %v671
    %3577 = vmatpush1.bf16.msra.mxu0 %v670
    %3578 = vmatprep.subr.bf16.mxu0 %v675
    %3579 = vmatpush1.bf16.msra.mxu0 %v674
    %3580 = vmatprep.subr.bf16.mxu0 %v679
    %3581 = vmatpush1.bf16.msra.mxu0 %v678
    %3582 = vmatprep.subr.bf16.mxu0 %v683
    %3583 = vmatpush1.bf16.msra.mxu0 %v682
    %3584 = vmatprep.subr.bf16.mxu0 %v687
    %3585 = vmatpush1.bf16.msra.mxu0 %v686
    %3586 = vmatprep.subr.bf16.mxu0 %v691
    %3587 = vmatpush1.bf16.msra.mxu0 %v690
    %3588 = vmatprep.subr.bf16.mxu0 %v695
    %3589 = vmatpush1.bf16.msra.mxu0 %v694
    %3590 = vmatprep.subr.bf16.mxu0 %v699
    %3591 = vmatpush1.bf16.msra.mxu0 %v698
    %3592 = vmatprep.subr.bf16.mxu0 %v703
    %3593 = vmatpush1.bf16.msra.mxu0 %v702
    %3594 = vmatprep.subr.bf16.mxu0 %v707
    %3595 = vmatpush1.bf16.msra.mxu0 %v706
    %3596 = vmatprep.subr.bf16.mxu0 %v711
    %3597 = vmatpush1.bf16.msra.mxu0 %v710
    %3598 = vmatprep.subr.bf16.mxu0 %v715
    %3599 = vmatpush1.bf16.msra.mxu0 %v714
    %3600 = vmatprep.subr.bf16.mxu0 %v719
    %3601 = vmatpush1.bf16.msra.mxu0 %v718
    %3602 = vmatprep.subr.bf16.mxu0 %v723
    %3603 = vmatpush1.bf16.msra.mxu0 %v722
    %3604 = vmatprep.mubr.bf16.mxu0 %v3530
    %3605 = vmatmul.mubr.bf16.gmra.mrb[0].mxu0 %v3529
    %v3606 = vpop.f32.mrb[0].mxu0
    %v3607 = vadd.f32 %v189, %v3606
    %v3608 = vpop.f32.mrb[0].mxu0
    %v3609 = vadd.f32 %v193, %v3608
    %v3610 = vpop.f32.mrb[0].mxu0
    %v3611 = vpop.f32.mrb[0].mxu0
    %3612 = vdwg.mxu0
    %v3613 = vmul.f32 %v3566, 0.5
    %v3614 = vtanh.pop %v3613
    %v3615 = vmul.f32 %v3614, 0.5
    %v3616 = vadd.f32 %v3615, 0.5
    %v3617 = vmul.f32 %v3568, 0.5
    %v3618 = vtanh.pop %v3617
    %v3619 = vmul.f32 %v3618, 0.5
    %v3620 = vadd.f32 %v3619, 0.5
    %v3621 = vtanh.pop %v3607
    %v3622 = vmul.f32 %v3609, 0.5
    %v3623 = vtanh.pop %v3622
    %v3624 = vmul.f32 %v3623, 0.5
    %v3625 = vadd.f32 %v3624, 0.5
    %v3626 = vmul.f32 %v3620, %v3417
    %v3627 = vmul.f32 %v3616, %v3621
    %v3628 = vadd.f32 %v3626, %v3627
    %v3629 = vtanh.pop %v3628
    %v3630 = vmul.f32 %v3625, %v3629
    %s3631 = scalar_lea.vmem [#allocation2], 448
    %v3632 = vld [vmem:[%s3631] sm:$0xff]
    %v3633 = vld [vmem:[%s3631 + $0x8] sm:$0xff]
    %v3634 = vld [vmem:[%s3631 + $0x10] sm:$0xff]
    %v3635 = vld [vmem:[%s3631 + $0x18] sm:$0xff]
    %3636 = vmatprep.subr.bf16.mxu0 %v299
    %3637 = vmatpush1.bf16.msra.mxu0 %v298
    %3638 = vmatprep.subr.bf16.mxu0 %v303
    %3639 = vmatpush1.bf16.msra.mxu0 %v302
    %3640 = vmatprep.subr.bf16.mxu0 %v307
    %3641 = vmatpush1.bf16.msra.mxu0 %v306
    %3642 = vmatprep.subr.bf16.mxu0 %v311
    %3643 = vmatpush1.bf16.msra.mxu0 %v310
    %3644 = vmatprep.subr.bf16.mxu0 %v315
    %3645 = vmatpush1.bf16.msra.mxu0 %v314
    %3646 = vmatprep.subr.bf16.mxu0 %v319
    %3647 = vmatpush1.bf16.msra.mxu0 %v318
    %3648 = vmatprep.subr.bf16.mxu0 %v323
    %3649 = vmatpush1.bf16.msra.mxu0 %v322
    %3650 = vmatprep.subr.bf16.mxu0 %v327
    %3651 = vmatpush1.bf16.msra.mxu0 %v326
    %3652 = vmatprep.subr.bf16.mxu0 0
    %3653 = vmatpush1.bf16.msra.mxu0 0
    %3654 = vmatprep.subr.bf16.mxu0 0
    %3655 = vmatpush1.bf16.msra.mxu0 0
    %3656 = vmatprep.subr.bf16.mxu0 0
    %3657 = vmatpush1.bf16.msra.mxu0 0
    %3658 = vmatprep.subr.bf16.mxu0 0
    %3659 = vmatpush1.bf16.msra.mxu0 0
    %3660 = vmatprep.subr.bf16.mxu0 0
    %3661 = vmatpush1.bf16.msra.mxu0 0
    %3662 = vmatprep.subr.bf16.mxu0 0
    %3663 = vmatpush1.bf16.msra.mxu0 0
    %3664 = vmatprep.subr.bf16.mxu0 0
    %3665 = vmatpush1.bf16.msra.mxu0 0
    %3666 = vmatprep.subr.bf16.mxu0 0
    %3667 = vmatpush1.bf16.msra.mxu0 0
    %3668 = vmatprep.mubr.bf16.mxu0 0
    %3669 = vmatmul.mubr.bf16.gmra.mrb[0].mxu0 %v3529
    %v3670 = vpop.f32.mrb[0].mxu0
    %v3671 = vadd.f32 0.0, %v3670
    %v3672 = vpop.f32.mrb[0].mxu0
    %v3673 = vadd.f32 0.0, %v3672
    %v3674 = vpop.f32.mrb[0].mxu0
    %v3675 = vpop.f32.mrb[0].mxu0
    %3676 = vdwg.mxu0
    %3677 = vmatprep.subr.bf16.mxu0 %v301
    %3678 = vmatpush1.bf16.msra.mxu0 %v300
    %3679 = vmatprep.subr.bf16.mxu0 %v305
    %3680 = vmatpush1.bf16.msra.mxu0 %v304
    %3681 = vmatprep.subr.bf16.mxu0 %v309
    %3682 = vmatpush1.bf16.msra.mxu0 %v308
    %3683 = vmatprep.subr.bf16.mxu0 %v313
    %3684 = vmatpush1.bf16.msra.mxu0 %v312
    %3685 = vmatprep.subr.bf16.mxu0 %v317
    %3686 = vmatpush1.bf16.msra.mxu0 %v316
    %3687 = vmatprep.subr.bf16.mxu0 %v321
    %3688 = vmatpush1.bf16.msra.mxu0 %v320
    %3689 = vmatprep.subr.bf16.mxu0 %v325
    %3690 = vmatpush1.bf16.msra.mxu0 %v324
    %3691 = vmatprep.subr.bf16.mxu0 %v329
    %3692 = vmatpush1.bf16.msra.mxu0 %v328
    %3693 = vmatprep.subr.bf16.mxu0 0
    %3694 = vmatpush1.bf16.msra.mxu0 0
    %3695 = vmatprep.subr.bf16.mxu0 0
    %3696 = vmatpush1.bf16.msra.mxu0 0
    %3697 = vmatprep.subr.bf16.mxu0 0
    %3698 = vmatpush1.bf16.msra.mxu0 0
    %3699 = vmatprep.subr.bf16.mxu0 0
    %3700 = vmatpush1.bf16.msra.mxu0 0
    %3701 = vmatprep.subr.bf16.mxu0 0
    %3702 = vmatpush1.bf16.msra.mxu0 0
    %3703 = vmatprep.subr.bf16.mxu0 0
    %3704 = vmatpush1.bf16.msra.mxu0 0
    %3705 = vmatprep.subr.bf16.mxu0 0
    %3706 = vmatpush1.bf16.msra.mxu0 0
    %3707 = vmatprep.subr.bf16.mxu0 0
    %3708 = vmatpush1.bf16.msra.mxu0 0
    %3709 = vmatprep.mubr.bf16.mxu0 0
    %3710 = vmatmul.mubr.bf16.gmra.mrb[0].mxu0 %v3529
    %v3711 = vpop.f32.mrb[0].mxu0
    %v3712 = vadd.f32 0.0, %v3711
    %v3713 = vpop.f32.mrb[0].mxu0
    %v3714 = vadd.f32 0.0, %v3713
    %v3715 = vpop.f32.mrb[0].mxu0
    %v3716 = vpop.f32.mrb[0].mxu0
    %3717 = vdwg.mxu0
    %v3718 = vadd.f32 %v3632, %v3671
    %v3719 = vadd.f32 %v3633, %v3673
    %v3720 = vadd.f32 %v3634, %v3712
    %v3721 = vadd.f32 %v3635, %v3714
    %v3722 = vmul.f32 %v3718, 0.5
    %v3723 = vtanh.pop %v3722
    %v3724 = vmul.f32 %v3723, 0.5
    %v3725 = vadd.f32 %v3724, 0.5
    %v3726 = vmul.f32 %v3719, 0.5
    %v3727 = vtanh.pop %v3726
    %v3728 = vmul.f32 %v3727, 0.5
    %v3729 = vadd.f32 %v3728, 0.5
    %v3730 = vtanh.pop %v3720
    %v3731 = vmul.f32 %v3721, 0.5
    %v3732 = vtanh.pop %v3731
    %v3733 = vmul.f32 %v3732, 0.5
    %v3734 = vadd.f32 %v3733, 0.5
    %v3735 = vmul.f32 %v3729, %v3526
    %v3736 = vmul.f32 %v3725, %v3730
    %v3737 = vadd.f32 %v3735, %v3736
    %v3738 = vtanh.pop %v3737
    %v3739 = vmul.f32 %v3734, %v3738
    %v3740 = vpack.c.bf16 %v3739, %v3739
    %v3741 = vpack.c.bf16 %v3630, %v3630
    %3742 = vmatprep.subr.bf16.mxu0 %v661
    %3743 = vmatpush1.bf16.msra.mxu0 %v660
    %3744 = vmatprep.subr.bf16.mxu0 %v665
    %3745 = vmatpush1.bf16.msra.mxu0 %v664
    %3746 = vmatprep.subr.bf16.mxu0 %v669
    %3747 = vmatpush1.bf16.msra.mxu0 %v668
    %3748 = vmatprep.subr.bf16.mxu0 %v673
    %3749 = vmatpush1.bf16.msra.mxu0 %v672
    %3750 = vmatprep.subr.bf16.mxu0 %v677
    %3751 = vmatpush1.bf16.msra.mxu0 %v676
    %3752 = vmatprep.subr.bf16.mxu0 %v681
    %3753 = vmatpush1.bf16.msra.mxu0 %v680
    %3754 = vmatprep.subr.bf16.mxu0 %v685
    %3755 = vmatpush1.bf16.msra.mxu0 %v684
    %3756 = vmatprep.subr.bf16.mxu0 %v689
    %3757 = vmatpush1.bf16.msra.mxu0 %v688
    %3758 = vmatprep.subr.bf16.mxu0 %v693
    %3759 = vmatpush1.bf16.msra.mxu0 %v692
    %3760 = vmatprep.subr.bf16.mxu0 %v697
    %3761 = vmatpush1.bf16.msra.mxu0 %v696
    %3762 = vmatprep.subr.bf16.mxu0 %v701
    %3763 = vmatpush1.bf16.msra.mxu0 %v700
    %3764 = vmatprep.subr.bf16.mxu0 %v705
    %3765 = vmatpush1.bf16.msra.mxu0 %v704
    %3766 = vmatprep.subr.bf16.mxu0 %v709
    %3767 = vmatpush1.bf16.msra.mxu0 %v708
    %3768 = vmatprep.subr.bf16.mxu0 %v713
    %3769 = vmatpush1.bf16.msra.mxu0 %v712
    %3770 = vmatprep.subr.bf16.mxu0 %v717
    %3771 = vmatpush1.bf16.msra.mxu0 %v716
    %3772 = vmatprep.subr.bf16.mxu0 %v721
    %3773 = vmatpush1.bf16.msra.mxu0 %v720
    %3774 = vmatprep.mubr.bf16.mxu0 %v3741
    %3775 = vmatmul.mubr.bf16.gmra.mrb[0].mxu0 %v3740
    %v3776 = vpop.f32.mrb[0].mxu0
    %v3777 = vadd.f32 %v181, %v3776
    %v3778 = vpop.f32.mrb[0].mxu0
    %v3779 = vadd.f32 %v185, %v3778
    %v3780 = vpop.f32.mrb[0].mxu0
    %v3781 = vpop.f32.mrb[0].mxu0
    %3782 = vdwg.mxu0
    %3783 = vmatprep.subr.bf16.mxu0 %v663
    %3784 = vmatpush1.bf16.msra.mxu0 %v662
    %3785 = vmatprep.subr.bf16.mxu0 %v667
    %3786 = vmatpush1.bf16.msra.mxu0 %v666
    %3787 = vmatprep.subr.bf16.mxu0 %v671
    %3788 = vmatpush1.bf16.msra.mxu0 %v670
    %3789 = vmatprep.subr.bf16.mxu0 %v675
    %3790 = vmatpush1.bf16.msra.mxu0 %v674
    %3791 = vmatprep.subr.bf16.mxu0 %v679
    %3792 = vmatpush1.bf16.msra.mxu0 %v678
    %3793 = vmatprep.subr.bf16.mxu0 %v683
    %3794 = vmatpush1.bf16.msra.mxu0 %v682
    %3795 = vmatprep.subr.bf16.mxu0 %v687
    %3796 = vmatpush1.bf16.msra.mxu0 %v686
    %3797 = vmatprep.subr.bf16.mxu0 %v691
    %3798 = vmatpush1.bf16.msra.mxu0 %v690
    %3799 = vmatprep.subr.bf16.mxu0 %v695
    %3800 = vmatpush1.bf16.msra.mxu0 %v694
    %3801 = vmatprep.subr.bf16.mxu0 %v699
    %3802 = vmatpush1.bf16.msra.mxu0 %v698
    %3803 = vmatprep.subr.bf16.mxu0 %v703
    %3804 = vmatpush1.bf16.msra.mxu0 %v702
    %3805 = vmatprep.subr.bf16.mxu0 %v707
    %3806 = vmatpush1.bf16.msra.mxu0 %v706
    %3807 = vmatprep.subr.bf16.mxu0 %v711
    %3808 = vmatpush1.bf16.msra.mxu0 %v710
    %3809 = vmatprep.subr.bf16.mxu0 %v715
    %3810 = vmatpush1.bf16.msra.mxu0 %v714
    %3811 = vmatprep.subr.bf16.mxu0 %v719
    %3812 = vmatpush1.bf16.msra.mxu0 %v718
    %3813 = vmatprep.subr.bf16.mxu0 %v723
    %3814 = vmatpush1.bf16.msra.mxu0 %v722
    %3815 = vmatprep.mubr.bf16.mxu0 %v3741
    %3816 = vmatmul.mubr.bf16.gmra.mrb[0].mxu0 %v3740
    %v3817 = vpop.f32.mrb[0].mxu0
    %v3818 = vadd.f32 %v189, %v3817
    %v3819 = vpop.f32.mrb[0].mxu0
    %v3820 = vadd.f32 %v193, %v3819
    %v3821 = vpop.f32.mrb[0].mxu0
    %v3822 = vpop.f32.mrb[0].mxu0
    %3823 = vdwg.mxu0
    %v3824 = vmul.f32 %v3777, 0.5
    %v3825 = vtanh.pop %v3824
    %v3826 = vmul.f32 %v3825, 0.5
    %v3827 = vadd.f32 %v3826, 0.5
    %v3828 = vmul.f32 %v3779, 0.5
    %v3829 = vtanh.pop %v3828
    %v3830 = vmul.f32 %v3829, 0.5
    %v3831 = vadd.f32 %v3830, 0.5
    %v3832 = vtanh.pop %v3818
    %v3833 = vmul.f32 %v3820, 0.5
    %v3834 = vtanh.pop %v3833
    %v3835 = vmul.f32 %v3834, 0.5
    %v3836 = vadd.f32 %v3835, 0.5
    %v3837 = vmul.f32 %v3831, %v3628
    %v3838 = vmul.f32 %v3827, %v3832
    %v3839 = vadd.f32 %v3837, %v3838
    %v3840 = vtanh.pop %v3839
    %v3841 = vmul.f32 %v3836, %v3840
    %s3842 = scalar_lea.vmem [#allocation2], 480
    %v3843 = vld [vmem:[%s3842] sm:$0xff]
    %v3844 = vld [vmem:[%s3842 + $0x8] sm:$0xff]
    %v3845 = vld [vmem:[%s3842 + $0x10] sm:$0xff]
    %v3846 = vld [vmem:[%s3842 + $0x18] sm:$0xff]
    %3847 = vmatprep.subr.bf16.mxu0 %v299
    %3848 = vmatpush1.bf16.msra.mxu0 %v298
    %3849 = vmatprep.subr.bf16.mxu0 %v303
    %3850 = vmatpush1.bf16.msra.mxu0 %v302
    %3851 = vmatprep.subr.bf16.mxu0 %v307
    %3852 = vmatpush1.bf16.msra.mxu0 %v306
    %3853 = vmatprep.subr.bf16.mxu0 %v311
    %3854 = vmatpush1.bf16.msra.mxu0 %v310
    %3855 = vmatprep.subr.bf16.mxu0 %v315
    %3856 = vmatpush1.bf16.msra.mxu0 %v314
    %3857 = vmatprep.subr.bf16.mxu0 %v319
    %3858 = vmatpush1.bf16.msra.mxu0 %v318
    %3859 = vmatprep.subr.bf16.mxu0 %v323
    %3860 = vmatpush1.bf16.msra.mxu0 %v322
    %3861 = vmatprep.subr.bf16.mxu0 %v327
    %3862 = vmatpush1.bf16.msra.mxu0 %v326
    %3863 = vmatprep.subr.bf16.mxu0 0
    %3864 = vmatpush1.bf16.msra.mxu0 0
    %3865 = vmatprep.subr.bf16.mxu0 0
    %3866 = vmatpush1.bf16.msra.mxu0 0
    %3867 = vmatprep.subr.bf16.mxu0 0
    %3868 = vmatpush1.bf16.msra.mxu0 0
    %3869 = vmatprep.subr.bf16.mxu0 0
    %3870 = vmatpush1.bf16.msra.mxu0 0
    %3871 = vmatprep.subr.bf16.mxu0 0
    %3872 = vmatpush1.bf16.msra.mxu0 0
    %3873 = vmatprep.subr.bf16.mxu0 0
    %3874 = vmatpush1.bf16.msra.mxu0 0
    %3875 = vmatprep.subr.bf16.mxu0 0
    %3876 = vmatpush1.bf16.msra.mxu0 0
    %3877 = vmatprep.subr.bf16.mxu0 0
    %3878 = vmatpush1.bf16.msra.mxu0 0
    %3879 = vmatprep.mubr.bf16.mxu0 0
    %3880 = vmatmul.mubr.bf16.gmra.mrb[0].mxu0 %v3740
    %v3881 = vpop.f32.mrb[0].mxu0
    %v3882 = vadd.f32 0.0, %v3881
    %v3883 = vpop.f32.mrb[0].mxu0
    %v3884 = vadd.f32 0.0, %v3883
    %v3885 = vpop.f32.mrb[0].mxu0
    %v3886 = vpop.f32.mrb[0].mxu0
    %3887 = vdwg.mxu0
    %3888 = vmatprep.subr.bf16.mxu0 %v301
    %3889 = vmatpush1.bf16.msra.mxu0 %v300
    %3890 = vmatprep.subr.bf16.mxu0 %v305
    %3891 = vmatpush1.bf16.msra.mxu0 %v304
    %3892 = vmatprep.subr.bf16.mxu0 %v309
    %3893 = vmatpush1.bf16.msra.mxu0 %v308
    %3894 = vmatprep.subr.bf16.mxu0 %v313
    %3895 = vmatpush1.bf16.msra.mxu0 %v312
    %3896 = vmatprep.subr.bf16.mxu0 %v317
    %3897 = vmatpush1.bf16.msra.mxu0 %v316
    %3898 = vmatprep.subr.bf16.mxu0 %v321
    %3899 = vmatpush1.bf16.msra.mxu0 %v320
    %3900 = vmatprep.subr.bf16.mxu0 %v325
    %3901 = vmatpush1.bf16.msra.mxu0 %v324
    %3902 = vmatprep.subr.bf16.mxu0 %v329
    %3903 = vmatpush1.bf16.msra.mxu0 %v328
    %3904 = vmatprep.subr.bf16.mxu0 0
    %3905 = vmatpush1.bf16.msra.mxu0 0
    %3906 = vmatprep.subr.bf16.mxu0 0
    %3907 = vmatpush1.bf16.msra.mxu0 0
    %3908 = vmatprep.subr.bf16.mxu0 0
    %3909 = vmatpush1.bf16.msra.mxu0 0
    %3910 = vmatprep.subr.bf16.mxu0 0
    %3911 = vmatpush1.bf16.msra.mxu0 0
    %3912 = vmatprep.subr.bf16.mxu0 0
    %3913 = vmatpush1.bf16.msra.mxu0 0
    %3914 = vmatprep.subr.bf16.mxu0 0
    %3915 = vmatpush1.bf16.msra.mxu0 0
    %3916 = vmatprep.subr.bf16.mxu0 0
    %3917 = vmatpush1.bf16.msra.mxu0 0
    %3918 = vmatprep.subr.bf16.mxu0 0
    %3919 = vmatpush1.bf16.msra.mxu0 0
    %3920 = vmatprep.mubr.bf16.mxu0 0
    %3921 = vmatmul.mubr.bf16.gmra.mrb[0].mxu0 %v3740
    %v3922 = vpop.f32.mrb[0].mxu0
    %v3923 = vadd.f32 0.0, %v3922
    %v3924 = vpop.f32.mrb[0].mxu0
    %v3925 = vadd.f32 0.0, %v3924
    %v3926 = vpop.f32.mrb[0].mxu0
    %v3927 = vpop.f32.mrb[0].mxu0
    %3928 = vdwg.mxu0
    %v3929 = vadd.f32 %v3843, %v3882
    %v3930 = vadd.f32 %v3844, %v3884
    %v3931 = vadd.f32 %v3845, %v3923
    %v3932 = vadd.f32 %v3846, %v3925
    %v3933 = vmul.f32 %v3929, 0.5
    %v3934 = vtanh.pop %v3933
    %v3935 = vmul.f32 %v3934, 0.5
    %v3936 = vadd.f32 %v3935, 0.5
    %v3937 = vmul.f32 %v3930, 0.5
    %v3938 = vtanh.pop %v3937
    %v3939 = vmul.f32 %v3938, 0.5
    %v3940 = vadd.f32 %v3939, 0.5
    %v3941 = vtanh.pop %v3931
    %v3942 = vmul.f32 %v3932, 0.5
    %v3943 = vtanh.pop %v3942
    %v3944 = vmul.f32 %v3943, 0.5
    %v3945 = vadd.f32 %v3944, 0.5
    %v3946 = vmul.f32 %v3940, %v3737
    %v3947 = vmul.f32 %v3936, %v3941
    %v3948 = vadd.f32 %v3946, %v3947
    %v3949 = vtanh.pop %v3948
    %v3950 = vmul.f32 %v3945, %v3949
    %v3951 = vpack.c.bf16 %v3950, %v3950
    %v3952 = vpack.c.bf16 %v3841, %v3841
    %3953 = vmatprep.subr.bf16.mxu0 %v661
    %3954 = vmatpush1.bf16.msra.mxu0 %v660
    %3955 = vmatprep.subr.bf16.mxu0 %v665
    %3956 = vmatpush1.bf16.msra.mxu0 %v664
    %3957 = vmatprep.subr.bf16.mxu0 %v669
    %3958 = vmatpush1.bf16.msra.mxu0 %v668
    %3959 = vmatprep.subr.bf16.mxu0 %v673
    %3960 = vmatpush1.bf16.msra.mxu0 %v672
    %3961 = vmatprep.subr.bf16.mxu0 %v677
    %3962 = vmatpush1.bf16.msra.mxu0 %v676
    %3963 = vmatprep.subr.bf16.mxu0 %v681
    %3964 = vmatpush1.bf16.msra.mxu0 %v680
    %3965 = vmatprep.subr.bf16.mxu0 %v685
    %3966 = vmatpush1.bf16.msra.mxu0 %v684
    %3967 = vmatprep.subr.bf16.mxu0 %v689
    %3968 = vmatpush1.bf16.msra.mxu0 %v688
    %3969 = vmatprep.subr.bf16.mxu0 %v693
    %3970 = vmatpush1.bf16.msra.mxu0 %v692
    %3971 = vmatprep.subr.bf16.mxu0 %v697
    %3972 = vmatpush1.bf16.msra.mxu0 %v696
    %3973 = vmatprep.subr.bf16.mxu0 %v701
    %3974 = vmatpush1.bf16.msra.mxu0 %v700
    %3975 = vmatprep.subr.bf16.mxu0 %v705
    %3976 = vmatpush1.bf16.msra.mxu0 %v704
    %3977 = vmatprep.subr.bf16.mxu0 %v709
    %3978 = vmatpush1.bf16.msra.mxu0 %v708
    %3979 = vmatprep.subr.bf16.mxu0 %v713
    %3980 = vmatpush1.bf16.msra.mxu0 %v712
    %3981 = vmatprep.subr.bf16.mxu0 %v717
    %3982 = vmatpush1.bf16.msra.mxu0 %v716
    %3983 = vmatprep.subr.bf16.mxu0 %v721
    %3984 = vmatpush1.bf16.msra.mxu0 %v720
    %3985 = vmatprep.mubr.bf16.mxu0 %v3952
    %3986 = vmatmul.mubr.bf16.gmra.mrb[0].mxu0 %v3951
    %v3987 = vpop.f32.mrb[0].mxu0
    %v3988 = vadd.f32 %v181, %v3987
    %v3989 = vpop.f32.mrb[0].mxu0
    %v3990 = vadd.f32 %v185, %v3989
    %v3991 = vpop.f32.mrb[0].mxu0
    %v3992 = vpop.f32.mrb[0].mxu0
    %3993 = vdwg.mxu0
    %3994 = vmatprep.subr.bf16.mxu0 %v663
    %3995 = vmatpush1.bf16.msra.mxu0 %v662
    %3996 = vmatprep.subr.bf16.mxu0 %v667
    %3997 = vmatpush1.bf16.msra.mxu0 %v666
    %3998 = vmatprep.subr.bf16.mxu0 %v671
    %3999 = vmatpush1.bf16.msra.mxu0 %v670
    %4000 = vmatprep.subr.bf16.mxu0 %v675
    %4001 = vmatpush1.bf16.msra.mxu0 %v674
    %4002 = vmatprep.subr.bf16.mxu0 %v679
    %4003 = vmatpush1.bf16.msra.mxu0 %v678
    %4004 = vmatprep.subr.bf16.mxu0 %v683
    %4005 = vmatpush1.bf16.msra.mxu0 %v682
    %4006 = vmatprep.subr.bf16.mxu0 %v687
    %4007 = vmatpush1.bf16.msra.mxu0 %v686
    %4008 = vmatprep.subr.bf16.mxu0 %v691
    %4009 = vmatpush1.bf16.msra.mxu0 %v690
    %4010 = vmatprep.subr.bf16.mxu0 %v695
    %4011 = vmatpush1.bf16.msra.mxu0 %v694
    %4012 = vmatprep.subr.bf16.mxu0 %v699
    %4013 = vmatpush1.bf16.msra.mxu0 %v698
    %4014 = vmatprep.subr.bf16.mxu0 %v703
    %4015 = vmatpush1.bf16.msra.mxu0 %v702
    %4016 = vmatprep.subr.bf16.mxu0 %v707
    %4017 = vmatpush1.bf16.msra.mxu0 %v706
    %4018 = vmatprep.subr.bf16.mxu0 %v711
    %4019 = vmatpush1.bf16.msra.mxu0 %v710
    %4020 = vmatprep.subr.bf16.mxu0 %v715
    %4021 = vmatpush1.bf16.msra.mxu0 %v714
    %4022 = vmatprep.subr.bf16.mxu0 %v719
    %4023 = vmatpush1.bf16.msra.mxu0 %v718
    %4024 = vmatprep.subr.bf16.mxu0 %v723
    %4025 = vmatpush1.bf16.msra.mxu0 %v722
    %4026 = vmatprep.mubr.bf16.mxu0 %v3952
    %4027 = vmatmul.mubr.bf16.gmra.mrb[0].mxu0 %v3951
    %v4028 = vpop.f32.mrb[0].mxu0
    %v4029 = vadd.f32 %v189, %v4028
    %v4030 = vpop.f32.mrb[0].mxu0
    %v4031 = vadd.f32 %v193, %v4030
    %v4032 = vpop.f32.mrb[0].mxu0
    %v4033 = vpop.f32.mrb[0].mxu0
    %4034 = vdwg.mxu0
    %v4035 = vmul.f32 %v3988, 0.5
    %v4036 = vtanh.pop %v4035
    %v4037 = vmul.f32 %v4036, 0.5
    %v4038 = vadd.f32 %v4037, 0.5
    %v4039 = vmul.f32 %v3990, 0.5
    %v4040 = vtanh.pop %v4039
    %v4041 = vmul.f32 %v4040, 0.5
    %v4042 = vadd.f32 %v4041, 0.5
    %v4043 = vtanh.pop %v4029
    %v4044 = vmul.f32 %v4031, 0.5
    %v4045 = vtanh.pop %v4044
    %v4046 = vmul.f32 %v4045, 0.5
    %v4047 = vadd.f32 %v4046, 0.5
    %v4048 = vmul.f32 %v4042, %v3839
    %v4049 = vmul.f32 %v4038, %v4043
    %v4050 = vadd.f32 %v4048, %v4049
    %v4051 = vtanh.pop %v4050
    %v4052 = vmul.f32 %v4047, %v4051
    %s4053 = scalar_lea.vmem [#allocation2], 512
    %v4054 = vld [vmem:[%s4053] sm:$0xff]
    %v4055 = vld [vmem:[%s4053 + $0x8] sm:$0xff]
    %v4056 = vld [vmem:[%s4053 + $0x10] sm:$0xff]
    %v4057 = vld [vmem:[%s4053 + $0x18] sm:$0xff]
    %4058 = vmatprep.subr.bf16.mxu0 %v299
    %4059 = vmatpush1.bf16.msra.mxu0 %v298
    %4060 = vmatprep.subr.bf16.mxu0 %v303
    %4061 = vmatpush1.bf16.msra.mxu0 %v302
    %4062 = vmatprep.subr.bf16.mxu0 %v307
    %4063 = vmatpush1.bf16.msra.mxu0 %v306
    %4064 = vmatprep.subr.bf16.mxu0 %v311
    %4065 = vmatpush1.bf16.msra.mxu0 %v310
    %4066 = vmatprep.subr.bf16.mxu0 %v315
    %4067 = vmatpush1.bf16.msra.mxu0 %v314
    %4068 = vmatprep.subr.bf16.mxu0 %v319
    %4069 = vmatpush1.bf16.msra.mxu0 %v318
    %4070 = vmatprep.subr.bf16.mxu0 %v323
    %4071 = vmatpush1.bf16.msra.mxu0 %v322
    %4072 = vmatprep.subr.bf16.mxu0 %v327
    %4073 = vmatpush1.bf16.msra.mxu0 %v326
    %4074 = vmatprep.subr.bf16.mxu0 0
    %4075 = vmatpush1.bf16.msra.mxu0 0
    %4076 = vmatprep.subr.bf16.mxu0 0
    %4077 = vmatpush1.bf16.msra.mxu0 0
    %4078 = vmatprep.subr.bf16.mxu0 0
    %4079 = vmatpush1.bf16.msra.mxu0 0
    %4080 = vmatprep.subr.bf16.mxu0 0
    %4081 = vmatpush1.bf16.msra.mxu0 0
    %4082 = vmatprep.subr.bf16.mxu0 0
    %4083 = vmatpush1.bf16.msra.mxu0 0
    %4084 = vmatprep.subr.bf16.mxu0 0
    %4085 = vmatpush1.bf16.msra.mxu0 0
    %4086 = vmatprep.subr.bf16.mxu0 0
    %4087 = vmatpush1.bf16.msra.mxu0 0
    %4088 = vmatprep.subr.bf16.mxu0 0
    %4089 = vmatpush1.bf16.msra.mxu0 0
    %4090 = vmatprep.mubr.bf16.mxu0 0
    %4091 = vmatmul.mubr.bf16.gmra.mrb[0].mxu0 %v3951
    %v4092 = vpop.f32.mrb[0].mxu0
    %v4093 = vadd.f32 0.0, %v4092
    %v4094 = vpop.f32.mrb[0].mxu0
    %v4095 = vadd.f32 0.0, %v4094
    %v4096 = vpop.f32.mrb[0].mxu0
    %v4097 = vpop.f32.mrb[0].mxu0
    %4098 = vdwg.mxu0
    %4099 = vmatprep.subr.bf16.mxu0 %v301
    %4100 = vmatpush1.bf16.msra.mxu0 %v300
    %4101 = vmatprep.subr.bf16.mxu0 %v305
    %4102 = vmatpush1.bf16.msra.mxu0 %v304
    %4103 = vmatprep.subr.bf16.mxu0 %v309
    %4104 = vmatpush1.bf16.msra.mxu0 %v308
    %4105 = vmatprep.subr.bf16.mxu0 %v313
    %4106 = vmatpush1.bf16.msra.mxu0 %v312
    %4107 = vmatprep.subr.bf16.mxu0 %v317
    %4108 = vmatpush1.bf16.msra.mxu0 %v316
    %4109 = vmatprep.subr.bf16.mxu0 %v321
    %4110 = vmatpush1.bf16.msra.mxu0 %v320
    %4111 = vmatprep.subr.bf16.mxu0 %v325
    %4112 = vmatpush1.bf16.msra.mxu0 %v324
    %4113 = vmatprep.subr.bf16.mxu0 %v329
    %4114 = vmatpush1.bf16.msra.mxu0 %v328
    %4115 = vmatprep.subr.bf16.mxu0 0
    %4116 = vmatpush1.bf16.msra.mxu0 0
    %4117 = vmatprep.subr.bf16.mxu0 0
    %4118 = vmatpush1.bf16.msra.mxu0 0
    %4119 = vmatprep.subr.bf16.mxu0 0
    %4120 = vmatpush1.bf16.msra.mxu0 0
    %4121 = vmatprep.subr.bf16.mxu0 0
    %4122 = vmatpush1.bf16.msra.mxu0 0
    %4123 = vmatprep.subr.bf16.mxu0 0
    %4124 = vmatpush1.bf16.msra.mxu0 0
    %4125 = vmatprep.subr.bf16.mxu0 0
    %4126 = vmatpush1.bf16.msra.mxu0 0
    %4127 = vmatprep.subr.bf16.mxu0 0
    %4128 = vmatpush1.bf16.msra.mxu0 0
    %4129 = vmatprep.subr.bf16.mxu0 0
    %4130 = vmatpush1.bf16.msra.mxu0 0
    %4131 = vmatprep.mubr.bf16.mxu0 0
    %4132 = vmatmul.mubr.bf16.gmra.mrb[0].mxu0 %v3951
    %v4133 = vpop.f32.mrb[0].mxu0
    %v4134 = vadd.f32 0.0, %v4133
    %v4135 = vpop.f32.mrb[0].mxu0
    %v4136 = vadd.f32 0.0, %v4135
    %v4137 = vpop.f32.mrb[0].mxu0
    %v4138 = vpop.f32.mrb[0].mxu0
    %4139 = vdwg.mxu0
    %v4140 = vadd.f32 %v4054, %v4093
    %v4141 = vadd.f32 %v4055, %v4095
    %v4142 = vadd.f32 %v4056, %v4134
    %v4143 = vadd.f32 %v4057, %v4136
    %v4144 = vmul.f32 %v4140, 0.5
    %v4145 = vtanh.pop %v4144
    %v4146 = vmul.f32 %v4145, 0.5
    %v4147 = vadd.f32 %v4146, 0.5
    %v4148 = vmul.f32 %v4141, 0.5
    %v4149 = vtanh.pop %v4148
    %v4150 = vmul.f32 %v4149, 0.5
    %v4151 = vadd.f32 %v4150, 0.5
    %v4152 = vtanh.pop %v4142
    %v4153 = vmul.f32 %v4143, 0.5
    %v4154 = vtanh.pop %v4153
    %v4155 = vmul.f32 %v4154, 0.5
    %v4156 = vadd.f32 %v4155, 0.5
    %v4157 = vmul.f32 %v4151, %v3948
    %v4158 = vmul.f32 %v4147, %v4152
    %v4159 = vadd.f32 %v4157, %v4158
    %v4160 = vtanh.pop %v4159
    %v4161 = vmul.f32 %v4156, %v4160
    %v4162 = vpack.c.bf16 %v4161, %v4161
    %v4163 = vpack.c.bf16 %v4052, %v4052
    %4164 = vmatprep.subr.bf16.mxu0 %v661
    %4165 = vmatpush1.bf16.msra.mxu0 %v660
    %4166 = vmatprep.subr.bf16.mxu0 %v665
    %4167 = vmatpush1.bf16.msra.mxu0 %v664
    %4168 = vmatprep.subr.bf16.mxu0 %v669
    %4169 = vmatpush1.bf16.msra.mxu0 %v668
    %4170 = vmatprep.subr.bf16.mxu0 %v673
    %4171 = vmatpush1.bf16.msra.mxu0 %v672
    %4172 = vmatprep.subr.bf16.mxu0 %v677
    %4173 = vmatpush1.bf16.msra.mxu0 %v676
    %4174 = vmatprep.subr.bf16.mxu0 %v681
    %4175 = vmatpush1.bf16.msra.mxu0 %v680
    %4176 = vmatprep.subr.bf16.mxu0 %v685
    %4177 = vmatpush1.bf16.msra.mxu0 %v684
    %4178 = vmatprep.subr.bf16.mxu0 %v689
    %4179 = vmatpush1.bf16.msra.mxu0 %v688
    %4180 = vmatprep.subr.bf16.mxu0 %v693
    %4181 = vmatpush1.bf16.msra.mxu0 %v692
    %4182 = vmatprep.subr.bf16.mxu0 %v697
    %4183 = vmatpush1.bf16.msra.mxu0 %v696
    %4184 = vmatprep.subr.bf16.mxu0 %v701
    %4185 = vmatpush1.bf16.msra.mxu0 %v700
    %4186 = vmatprep.subr.bf16.mxu0 %v705
    %4187 = vmatpush1.bf16.msra.mxu0 %v704
    %4188 = vmatprep.subr.bf16.mxu0 %v709
    %4189 = vmatpush1.bf16.msra.mxu0 %v708
    %4190 = vmatprep.subr.bf16.mxu0 %v713
    %4191 = vmatpush1.bf16.msra.mxu0 %v712
    %4192 = vmatprep.subr.bf16.mxu0 %v717
    %4193 = vmatpush1.bf16.msra.mxu0 %v716
    %4194 = vmatprep.subr.bf16.mxu0 %v721
    %4195 = vmatpush1.bf16.msra.mxu0 %v720
    %4196 = vmatprep.mubr.bf16.mxu0 %v4163
    %4197 = vmatmul.mubr.bf16.gmra.mrb[0].mxu0 %v4162
    %v4198 = vpop.f32.mrb[0].mxu0
    %v4199 = vadd.f32 %v181, %v4198
    %v4200 = vpop.f32.mrb[0].mxu0
    %v4201 = vadd.f32 %v185, %v4200
    %v4202 = vpop.f32.mrb[0].mxu0
    %v4203 = vpop.f32.mrb[0].mxu0
    %4204 = vdwg.mxu0
    %4205 = vmatprep.subr.bf16.mxu0 %v663
    %4206 = vmatpush1.bf16.msra.mxu0 %v662
    %4207 = vmatprep.subr.bf16.mxu0 %v667
    %4208 = vmatpush1.bf16.msra.mxu0 %v666
    %4209 = vmatprep.subr.bf16.mxu0 %v671
    %4210 = vmatpush1.bf16.msra.mxu0 %v670
    %4211 = vmatprep.subr.bf16.mxu0 %v675
    %4212 = vmatpush1.bf16.msra.mxu0 %v674
    %4213 = vmatprep.subr.bf16.mxu0 %v679
    %4214 = vmatpush1.bf16.msra.mxu0 %v678
    %4215 = vmatprep.subr.bf16.mxu0 %v683
    %4216 = vmatpush1.bf16.msra.mxu0 %v682
    %4217 = vmatprep.subr.bf16.mxu0 %v687
    %4218 = vmatpush1.bf16.msra.mxu0 %v686
    %4219 = vmatprep.subr.bf16.mxu0 %v691
    %4220 = vmatpush1.bf16.msra.mxu0 %v690
    %4221 = vmatprep.subr.bf16.mxu0 %v695
    %4222 = vmatpush1.bf16.msra.mxu0 %v694
    %4223 = vmatprep.subr.bf16.mxu0 %v699
    %4224 = vmatpush1.bf16.msra.mxu0 %v698
    %4225 = vmatprep.subr.bf16.mxu0 %v703
    %4226 = vmatpush1.bf16.msra.mxu0 %v702
    %4227 = vmatprep.subr.bf16.mxu0 %v707
    %4228 = vmatpush1.bf16.msra.mxu0 %v706
    %4229 = vmatprep.subr.bf16.mxu0 %v711
    %4230 = vmatpush1.bf16.msra.mxu0 %v710
    %4231 = vmatprep.subr.bf16.mxu0 %v715
    %4232 = vmatpush1.bf16.msra.mxu0 %v714
    %4233 = vmatprep.subr.bf16.mxu0 %v719
    %4234 = vmatpush1.bf16.msra.mxu0 %v718
    %4235 = vmatprep.subr.bf16.mxu0 %v723
    %4236 = vmatpush1.bf16.msra.mxu0 %v722
    %4237 = vmatprep.mubr.bf16.mxu0 %v4163
    %4238 = vmatmul.mubr.bf16.gmra.mrb[0].mxu0 %v4162
    %v4239 = vpop.f32.mrb[0].mxu0
    %v4240 = vadd.f32 %v189, %v4239
    %v4241 = vpop.f32.mrb[0].mxu0
    %v4242 = vadd.f32 %v193, %v4241
    %v4243 = vpop.f32.mrb[0].mxu0
    %v4244 = vpop.f32.mrb[0].mxu0
    %4245 = vdwg.mxu0
    %v4246 = vmul.f32 %v4199, 0.5
    %v4247 = vtanh.pop %v4246
    %v4248 = vmul.f32 %v4247, 0.5
    %v4249 = vadd.f32 %v4248, 0.5
    %v4250 = vmul.f32 %v4201, 0.5
    %v4251 = vtanh.pop %v4250
    %v4252 = vmul.f32 %v4251, 0.5
    %v4253 = vadd.f32 %v4252, 0.5
    %v4254 = vtanh.pop %v4240
    %v4255 = vmul.f32 %v4242, 0.5
    %v4256 = vtanh.pop %v4255
    %v4257 = vmul.f32 %v4256, 0.5
    %v4258 = vadd.f32 %v4257, 0.5
    %v4259 = vmul.f32 %v4253, %v4050
    %v4260 = vmul.f32 %v4249, %v4254
    %v4261 = vadd.f32 %v4259, %v4260
    %v4262 = vtanh.pop %v4261
    %v4263 = vmul.f32 %v4258, %v4262
    %s4264 = scalar_lea.vmem [#allocation2], 544
    %v4265 = vld [vmem:[%s4264] sm:$0xff]
    %v4266 = vld [vmem:[%s4264 + $0x8] sm:$0xff]
    %v4267 = vld [vmem:[%s4264 + $0x10] sm:$0xff]
    %v4268 = vld [vmem:[%s4264 + $0x18] sm:$0xff]
    %4269 = vmatprep.subr.bf16.mxu0 %v299
    %4270 = vmatpush1.bf16.msra.mxu0 %v298
    %4271 = vmatprep.subr.bf16.mxu0 %v303
    %4272 = vmatpush1.bf16.msra.mxu0 %v302
    %4273 = vmatprep.subr.bf16.mxu0 %v307
    %4274 = vmatpush1.bf16.msra.mxu0 %v306
    %4275 = vmatprep.subr.bf16.mxu0 %v311
    %4276 = vmatpush1.bf16.msra.mxu0 %v310
    %4277 = vmatprep.subr.bf16.mxu0 %v315
    %4278 = vmatpush1.bf16.msra.mxu0 %v314
    %4279 = vmatprep.subr.bf16.mxu0 %v319
    %4280 = vmatpush1.bf16.msra.mxu0 %v318
    %4281 = vmatprep.subr.bf16.mxu0 %v323
    %4282 = vmatpush1.bf16.msra.mxu0 %v322
    %4283 = vmatprep.subr.bf16.mxu0 %v327
    %4284 = vmatpush1.bf16.msra.mxu0 %v326
    %4285 = vmatprep.subr.bf16.mxu0 0
    %4286 = vmatpush1.bf16.msra.mxu0 0
    %4287 = vmatprep.subr.bf16.mxu0 0
    %4288 = vmatpush1.bf16.msra.mxu0 0
    %4289 = vmatprep.subr.bf16.mxu0 0
    %4290 = vmatpush1.bf16.msra.mxu0 0
    %4291 = vmatprep.subr.bf16.mxu0 0
    %4292 = vmatpush1.bf16.msra.mxu0 0
    %4293 = vmatprep.subr.bf16.mxu0 0
    %4294 = vmatpush1.bf16.msra.mxu0 0
    %4295 = vmatprep.subr.bf16.mxu0 0
    %4296 = vmatpush1.bf16.msra.mxu0 0
    %4297 = vmatprep.subr.bf16.mxu0 0
    %4298 = vmatpush1.bf16.msra.mxu0 0
    %4299 = vmatprep.subr.bf16.mxu0 0
    %4300 = vmatpush1.bf16.msra.mxu0 0
    %4301 = vmatprep.mubr.bf16.mxu0 0
    %4302 = vmatmul.mubr.bf16.gmra.mrb[0].mxu0 %v4162
    %v4303 = vpop.f32.mrb[0].mxu0
    %v4304 = vadd.f32 0.0, %v4303
    %v4305 = vpop.f32.mrb[0].mxu0
    %v4306 = vadd.f32 0.0, %v4305
    %v4307 = vpop.f32.mrb[0].mxu0
    %v4308 = vpop.f32.mrb[0].mxu0
    %4309 = vdwg.mxu0
    %4310 = vmatprep.subr.bf16.mxu0 %v301
    %4311 = vmatpush1.bf16.msra.mxu0 %v300
    %4312 = vmatprep.subr.bf16.mxu0 %v305
    %4313 = vmatpush1.bf16.msra.mxu0 %v304
    %4314 = vmatprep.subr.bf16.mxu0 %v309
    %4315 = vmatpush1.bf16.msra.mxu0 %v308
    %4316 = vmatprep.subr.bf16.mxu0 %v313
    %4317 = vmatpush1.bf16.msra.mxu0 %v312
    %4318 = vmatprep.subr.bf16.mxu0 %v317
    %4319 = vmatpush1.bf16.msra.mxu0 %v316
    %4320 = vmatprep.subr.bf16.mxu0 %v321
    %4321 = vmatpush1.bf16.msra.mxu0 %v320
    %4322 = vmatprep.subr.bf16.mxu0 %v325
    %4323 = vmatpush1.bf16.msra.mxu0 %v324
    %4324 = vmatprep.subr.bf16.mxu0 %v329
    %4325 = vmatpush1.bf16.msra.mxu0 %v328
    %4326 = vmatprep.subr.bf16.mxu0 0
    %4327 = vmatpush1.bf16.msra.mxu0 0
    %4328 = vmatprep.subr.bf16.mxu0 0
    %4329 = vmatpush1.bf16.msra.mxu0 0
    %4330 = vmatprep.subr.bf16.mxu0 0
    %4331 = vmatpush1.bf16.msra.mxu0 0
    %4332 = vmatprep.subr.bf16.mxu0 0
    %4333 = vmatpush1.bf16.msra.mxu0 0
    %4334 = vmatprep.subr.bf16.mxu0 0
    %4335 = vmatpush1.bf16.msra.mxu0 0
    %4336 = vmatprep.subr.bf16.mxu0 0
    %4337 = vmatpush1.bf16.msra.mxu0 0
    %4338 = vmatprep.subr.bf16.mxu0 0
    %4339 = vmatpush1.bf16.msra.mxu0 0
    %4340 = vmatprep.subr.bf16.mxu0 0
    %4341 = vmatpush1.bf16.msra.mxu0 0
    %4342 = vmatprep.mubr.bf16.mxu0 0
    %4343 = vmatmul.mubr.bf16.gmra.mrb[0].mxu0 %v4162
    %v4344 = vpop.f32.mrb[0].mxu0
    %v4345 = vadd.f32 0.0, %v4344
    %v4346 = vpop.f32.mrb[0].mxu0
    %v4347 = vadd.f32 0.0, %v4346
    %v4348 = vpop.f32.mrb[0].mxu0
    %v4349 = vpop.f32.mrb[0].mxu0
    %4350 = vdwg.mxu0
    %v4351 = vadd.f32 %v4265, %v4304
    %v4352 = vadd.f32 %v4266, %v4306
    %v4353 = vadd.f32 %v4267, %v4345
    %v4354 = vadd.f32 %v4268, %v4347
    %v4355 = vmul.f32 %v4351, 0.5
    %v4356 = vtanh.pop %v4355
    %v4357 = vmul.f32 %v4356, 0.5
    %v4358 = vadd.f32 %v4357, 0.5
    %v4359 = vmul.f32 %v4352, 0.5
    %v4360 = vtanh.pop %v4359
    %v4361 = vmul.f32 %v4360, 0.5
    %v4362 = vadd.f32 %v4361, 0.5
    %v4363 = vtanh.pop %v4353
    %v4364 = vmul.f32 %v4354, 0.5
    %v4365 = vtanh.pop %v4364
    %v4366 = vmul.f32 %v4365, 0.5
    %v4367 = vadd.f32 %v4366, 0.5
    %v4368 = vmul.f32 %v4362, %v4159
    %v4369 = vmul.f32 %v4358, %v4363
    %v4370 = vadd.f32 %v4368, %v4369
    %v4371 = vtanh.pop %v4370
    %v4372 = vmul.f32 %v4367, %v4371
    %v4373 = vpack.c.bf16 %v4372, %v4372
    %v4374 = vpack.c.bf16 %v4263, %v4263
    %4375 = vmatprep.subr.bf16.mxu0 %v661
    %4376 = vmatpush1.bf16.msra.mxu0 %v660
    %4377 = vmatprep.subr.bf16.mxu0 %v665
    %4378 = vmatpush1.bf16.msra.mxu0 %v664
    %4379 = vmatprep.subr.bf16.mxu0 %v669
    %4380 = vmatpush1.bf16.msra.mxu0 %v668
    %4381 = vmatprep.subr.bf16.mxu0 %v673
    %4382 = vmatpush1.bf16.msra.mxu0 %v672
    %4383 = vmatprep.subr.bf16.mxu0 %v677
    %4384 = vmatpush1.bf16.msra.mxu0 %v676
    %4385 = vmatprep.subr.bf16.mxu0 %v681
    %4386 = vmatpush1.bf16.msra.mxu0 %v680
    %4387 = vmatprep.subr.bf16.mxu0 %v685
    %4388 = vmatpush1.bf16.msra.mxu0 %v684
    %4389 = vmatprep.subr.bf16.mxu0 %v689
    %4390 = vmatpush1.bf16.msra.mxu0 %v688
    %4391 = vmatprep.subr.bf16.mxu0 %v693
    %4392 = vmatpush1.bf16.msra.mxu0 %v692
    %4393 = vmatprep.subr.bf16.mxu0 %v697
    %4394 = vmatpush1.bf16.msra.mxu0 %v696
    %4395 = vmatprep.subr.bf16.mxu0 %v701
    %4396 = vmatpush1.bf16.msra.mxu0 %v700
    %4397 = vmatprep.subr.bf16.mxu0 %v705
    %4398 = vmatpush1.bf16.msra.mxu0 %v704
    %4399 = vmatprep.subr.bf16.mxu0 %v709
    %4400 = vmatpush1.bf16.msra.mxu0 %v708
    %4401 = vmatprep.subr.bf16.mxu0 %v713
    %4402 = vmatpush1.bf16.msra.mxu0 %v712
    %4403 = vmatprep.subr.bf16.mxu0 %v717
    %4404 = vmatpush1.bf16.msra.mxu0 %v716
    %4405 = vmatprep.subr.bf16.mxu0 %v721
    %4406 = vmatpush1.bf16.msra.mxu0 %v720
    %4407 = vmatprep.mubr.bf16.mxu0 %v4374
    %4408 = vmatmul.mubr.bf16.gmra.mrb[0].mxu0 %v4373
    %v4409 = vpop.f32.mrb[0].mxu0
    %v4410 = vadd.f32 %v181, %v4409
    %v4411 = vpop.f32.mrb[0].mxu0
    %v4412 = vadd.f32 %v185, %v4411
    %v4413 = vpop.f32.mrb[0].mxu0
    %v4414 = vpop.f32.mrb[0].mxu0
    %4415 = vdwg.mxu0
    %4416 = vmatprep.subr.bf16.mxu0 %v663
    %4417 = vmatpush1.bf16.msra.mxu0 %v662
    %4418 = vmatprep.subr.bf16.mxu0 %v667
    %4419 = vmatpush1.bf16.msra.mxu0 %v666
    %4420 = vmatprep.subr.bf16.mxu0 %v671
    %4421 = vmatpush1.bf16.msra.mxu0 %v670
    %4422 = vmatprep.subr.bf16.mxu0 %v675
    %4423 = vmatpush1.bf16.msra.mxu0 %v674
    %4424 = vmatprep.subr.bf16.mxu0 %v679
    %4425 = vmatpush1.bf16.msra.mxu0 %v678
    %4426 = vmatprep.subr.bf16.mxu0 %v683
    %4427 = vmatpush1.bf16.msra.mxu0 %v682
    %4428 = vmatprep.subr.bf16.mxu0 %v687
    %4429 = vmatpush1.bf16.msra.mxu0 %v686
    %4430 = vmatprep.subr.bf16.mxu0 %v691
    %4431 = vmatpush1.bf16.msra.mxu0 %v690
    %4432 = vmatprep.subr.bf16.mxu0 %v695
    %4433 = vmatpush1.bf16.msra.mxu0 %v694
    %4434 = vmatprep.subr.bf16.mxu0 %v699
    %4435 = vmatpush1.bf16.msra.mxu0 %v698
    %4436 = vmatprep.subr.bf16.mxu0 %v703
    %4437 = vmatpush1.bf16.msra.mxu0 %v702
    %4438 = vmatprep.subr.bf16.mxu0 %v707
    %4439 = vmatpush1.bf16.msra.mxu0 %v706
    %4440 = vmatprep.subr.bf16.mxu0 %v711
    %4441 = vmatpush1.bf16.msra.mxu0 %v710
    %4442 = vmatprep.subr.bf16.mxu0 %v715
    %4443 = vmatpush1.bf16.msra.mxu0 %v714
    %4444 = vmatprep.subr.bf16.mxu0 %v719
    %4445 = vmatpush1.bf16.msra.mxu0 %v718
    %4446 = vmatprep.subr.bf16.mxu0 %v723
    %4447 = vmatpush1.bf16.msra.mxu0 %v722
    %4448 = vmatprep.mubr.bf16.mxu0 %v4374
    %4449 = vmatmul.mubr.bf16.gmra.mrb[0].mxu0 %v4373
    %v4450 = vpop.f32.mrb[0].mxu0
    %v4451 = vadd.f32 %v189, %v4450
    %v4452 = vpop.f32.mrb[0].mxu0
    %v4453 = vadd.f32 %v193, %v4452
    %v4454 = vpop.f32.mrb[0].mxu0
    %v4455 = vpop.f32.mrb[0].mxu0
    %4456 = vdwg.mxu0
    %v4457 = vmul.f32 %v4410, 0.5
    %v4458 = vtanh.pop %v4457
    %v4459 = vmul.f32 %v4458, 0.5
    %v4460 = vadd.f32 %v4459, 0.5
    %v4461 = vmul.f32 %v4412, 0.5
    %v4462 = vtanh.pop %v4461
    %v4463 = vmul.f32 %v4462, 0.5
    %v4464 = vadd.f32 %v4463, 0.5
    %v4465 = vtanh.pop %v4451
    %v4466 = vmul.f32 %v4453, 0.5
    %v4467 = vtanh.pop %v4466
    %v4468 = vmul.f32 %v4467, 0.5
    %v4469 = vadd.f32 %v4468, 0.5
    %v4470 = vmul.f32 %v4464, %v4261
    %v4471 = vmul.f32 %v4460, %v4465
    %v4472 = vadd.f32 %v4470, %v4471
    %v4473 = vtanh.pop %v4472
    %v4474 = vmul.f32 %v4469, %v4473
    %s4475 = scalar_lea.vmem [#allocation2], 576
    %v4476 = vld [vmem:[%s4475] sm:$0xff]
    %v4477 = vld [vmem:[%s4475 + $0x8] sm:$0xff]
    %v4478 = vld [vmem:[%s4475 + $0x10] sm:$0xff]
    %v4479 = vld [vmem:[%s4475 + $0x18] sm:$0xff]
    %4480 = vmatprep.subr.bf16.mxu0 %v299
    %4481 = vmatpush1.bf16.msra.mxu0 %v298
    %4482 = vmatprep.subr.bf16.mxu0 %v303
    %4483 = vmatpush1.bf16.msra.mxu0 %v302
    %4484 = vmatprep.subr.bf16.mxu0 %v307
    %4485 = vmatpush1.bf16.msra.mxu0 %v306
    %4486 = vmatprep.subr.bf16.mxu0 %v311
    %4487 = vmatpush1.bf16.msra.mxu0 %v310
    %4488 = vmatprep.subr.bf16.mxu0 %v315
    %4489 = vmatpush1.bf16.msra.mxu0 %v314
    %4490 = vmatprep.subr.bf16.mxu0 %v319
    %4491 = vmatpush1.bf16.msra.mxu0 %v318
    %4492 = vmatprep.subr.bf16.mxu0 %v323
    %4493 = vmatpush1.bf16.msra.mxu0 %v322
    %4494 = vmatprep.subr.bf16.mxu0 %v327
    %4495 = vmatpush1.bf16.msra.mxu0 %v326
    %4496 = vmatprep.subr.bf16.mxu0 0
    %4497 = vmatpush1.bf16.msra.mxu0 0
    %4498 = vmatprep.subr.bf16.mxu0 0
    %4499 = vmatpush1.bf16.msra.mxu0 0
    %4500 = vmatprep.subr.bf16.mxu0 0
    %4501 = vmatpush1.bf16.msra.mxu0 0
    %4502 = vmatprep.subr.bf16.mxu0 0
    %4503 = vmatpush1.bf16.msra.mxu0 0
    %4504 = vmatprep.subr.bf16.mxu0 0
    %4505 = vmatpush1.bf16.msra.mxu0 0
    %4506 = vmatprep.subr.bf16.mxu0 0
    %4507 = vmatpush1.bf16.msra.mxu0 0
    %4508 = vmatprep.subr.bf16.mxu0 0
    %4509 = vmatpush1.bf16.msra.mxu0 0
    %4510 = vmatprep.subr.bf16.mxu0 0
    %4511 = vmatpush1.bf16.msra.mxu0 0
    %4512 = vmatprep.mubr.bf16.mxu0 0
    %4513 = vmatmul.mubr.bf16.gmra.mrb[0].mxu0 %v4373
    %v4514 = vpop.f32.mrb[0].mxu0
    %v4515 = vadd.f32 0.0, %v4514
    %v4516 = vpop.f32.mrb[0].mxu0
    %v4517 = vadd.f32 0.0, %v4516
    %v4518 = vpop.f32.mrb[0].mxu0
    %v4519 = vpop.f32.mrb[0].mxu0
    %4520 = vdwg.mxu0
    %4521 = vmatprep.subr.bf16.mxu0 %v301
    %4522 = vmatpush1.bf16.msra.mxu0 %v300
    %4523 = vmatprep.subr.bf16.mxu0 %v305
    %4524 = vmatpush1.bf16.msra.mxu0 %v304
    %4525 = vmatprep.subr.bf16.mxu0 %v309
    %4526 = vmatpush1.bf16.msra.mxu0 %v308
    %4527 = vmatprep.subr.bf16.mxu0 %v313
    %4528 = vmatpush1.bf16.msra.mxu0 %v312
    %4529 = vmatprep.subr.bf16.mxu0 %v317
    %4530 = vmatpush1.bf16.msra.mxu0 %v316
    %4531 = vmatprep.subr.bf16.mxu0 %v321
    %4532 = vmatpush1.bf16.msra.mxu0 %v320
    %4533 = vmatprep.subr.bf16.mxu0 %v325
    %4534 = vmatpush1.bf16.msra.mxu0 %v324
    %4535 = vmatprep.subr.bf16.mxu0 %v329
    %4536 = vmatpush1.bf16.msra.mxu0 %v328
    %4537 = vmatprep.subr.bf16.mxu0 0
    %4538 = vmatpush1.bf16.msra.mxu0 0
    %4539 = vmatprep.subr.bf16.mxu0 0
    %4540 = vmatpush1.bf16.msra.mxu0 0
    %4541 = vmatprep.subr.bf16.mxu0 0
    %4542 = vmatpush1.bf16.msra.mxu0 0
    %4543 = vmatprep.subr.bf16.mxu0 0
    %4544 = vmatpush1.bf16.msra.mxu0 0
    %4545 = vmatprep.subr.bf16.mxu0 0
    %4546 = vmatpush1.bf16.msra.mxu0 0
    %4547 = vmatprep.subr.bf16.mxu0 0
    %4548 = vmatpush1.bf16.msra.mxu0 0
    %4549 = vmatprep.subr.bf16.mxu0 0
    %4550 = vmatpush1.bf16.msra.mxu0 0
    %4551 = vmatprep.subr.bf16.mxu0 0
    %4552 = vmatpush1.bf16.msra.mxu0 0
    %4553 = vmatprep.mubr.bf16.mxu0 0
    %4554 = vmatmul.mubr.bf16.gmra.mrb[0].mxu0 %v4373
    %v4555 = vpop.f32.mrb[0].mxu0
    %v4556 = vadd.f32 0.0, %v4555
    %v4557 = vpop.f32.mrb[0].mxu0
    %v4558 = vadd.f32 0.0, %v4557
    %v4559 = vpop.f32.mrb[0].mxu0
    %v4560 = vpop.f32.mrb[0].mxu0
    %4561 = vdwg.mxu0
    %v4562 = vadd.f32 %v4476, %v4515
    %v4563 = vadd.f32 %v4477, %v4517
    %v4564 = vadd.f32 %v4478, %v4556
    %v4565 = vadd.f32 %v4479, %v4558
    %v4566 = vmul.f32 %v4562, 0.5
    %v4567 = vtanh.pop %v4566
    %v4568 = vmul.f32 %v4567, 0.5
    %v4569 = vadd.f32 %v4568, 0.5
    %v4570 = vmul.f32 %v4563, 0.5
    %v4571 = vtanh.pop %v4570
    %v4572 = vmul.f32 %v4571, 0.5
    %v4573 = vadd.f32 %v4572, 0.5
    %v4574 = vtanh.pop %v4564
    %v4575 = vmul.f32 %v4565, 0.5
    %v4576 = vtanh.pop %v4575
    %v4577 = vmul.f32 %v4576, 0.5
    %v4578 = vadd.f32 %v4577, 0.5
    %v4579 = vmul.f32 %v4573, %v4370
    %v4580 = vmul.f32 %v4569, %v4574
    %v4581 = vadd.f32 %v4579, %v4580
    %v4582 = vtanh.pop %v4581
    %v4583 = vmul.f32 %v4578, %v4582
    %v4584 = vpack.c.bf16 %v4583, %v4583
    %v4585 = vpack.c.bf16 %v4474, %v4474
    %4586 = vmatprep.subr.bf16.mxu0 %v661
    %4587 = vmatpush1.bf16.msra.mxu0 %v660
    %4588 = vmatprep.subr.bf16.mxu0 %v665
    %4589 = vmatpush1.bf16.msra.mxu0 %v664
    %4590 = vmatprep.subr.bf16.mxu0 %v669
    %4591 = vmatpush1.bf16.msra.mxu0 %v668
    %4592 = vmatprep.subr.bf16.mxu0 %v673
    %4593 = vmatpush1.bf16.msra.mxu0 %v672
    %4594 = vmatprep.subr.bf16.mxu0 %v677
    %4595 = vmatpush1.bf16.msra.mxu0 %v676
    %4596 = vmatprep.subr.bf16.mxu0 %v681
    %4597 = vmatpush1.bf16.msra.mxu0 %v680
    %4598 = vmatprep.subr.bf16.mxu0 %v685
    %4599 = vmatpush1.bf16.msra.mxu0 %v684
    %4600 = vmatprep.subr.bf16.mxu0 %v689
    %4601 = vmatpush1.bf16.msra.mxu0 %v688
    %4602 = vmatprep.subr.bf16.mxu0 %v693
    %4603 = vmatpush1.bf16.msra.mxu0 %v692
    %4604 = vmatprep.subr.bf16.mxu0 %v697
    %4605 = vmatpush1.bf16.msra.mxu0 %v696
    %4606 = vmatprep.subr.bf16.mxu0 %v701
    %4607 = vmatpush1.bf16.msra.mxu0 %v700
    %4608 = vmatprep.subr.bf16.mxu0 %v705
    %4609 = vmatpush1.bf16.msra.mxu0 %v704
    %4610 = vmatprep.subr.bf16.mxu0 %v709
    %4611 = vmatpush1.bf16.msra.mxu0 %v708
    %4612 = vmatprep.subr.bf16.mxu0 %v713
    %4613 = vmatpush1.bf16.msra.mxu0 %v712
    %4614 = vmatprep.subr.bf16.mxu0 %v717
    %4615 = vmatpush1.bf16.msra.mxu0 %v716
    %4616 = vmatprep.subr.bf16.mxu0 %v721
    %4617 = vmatpush1.bf16.msra.mxu0 %v720
    %4618 = vmatprep.mubr.bf16.mxu0 %v4585
    %4619 = vmatmul.mubr.bf16.gmra.mrb[0].mxu0 %v4584
    %v4620 = vpop.f32.mrb[0].mxu0
    %v4621 = vadd.f32 %v181, %v4620
    %v4622 = vpop.f32.mrb[0].mxu0
    %v4623 = vadd.f32 %v185, %v4622
    %v4624 = vpop.f32.mrb[0].mxu0
    %v4625 = vpop.f32.mrb[0].mxu0
    %4626 = vdwg.mxu0
    %4627 = vmatprep.subr.bf16.mxu0 %v663
    %4628 = vmatpush1.bf16.msra.mxu0 %v662
    %4629 = vmatprep.subr.bf16.mxu0 %v667
    %4630 = vmatpush1.bf16.msra.mxu0 %v666
    %4631 = vmatprep.subr.bf16.mxu0 %v671
    %4632 = vmatpush1.bf16.msra.mxu0 %v670
    %4633 = vmatprep.subr.bf16.mxu0 %v675
    %4634 = vmatpush1.bf16.msra.mxu0 %v674
    %4635 = vmatprep.subr.bf16.mxu0 %v679
    %4636 = vmatpush1.bf16.msra.mxu0 %v678
    %4637 = vmatprep.subr.bf16.mxu0 %v683
    %4638 = vmatpush1.bf16.msra.mxu0 %v682
    %4639 = vmatprep.subr.bf16.mxu0 %v687
    %4640 = vmatpush1.bf16.msra.mxu0 %v686
    %4641 = vmatprep.subr.bf16.mxu0 %v691
    %4642 = vmatpush1.bf16.msra.mxu0 %v690
    %4643 = vmatprep.subr.bf16.mxu0 %v695
    %4644 = vmatpush1.bf16.msra.mxu0 %v694
    %4645 = vmatprep.subr.bf16.mxu0 %v699
    %4646 = vmatpush1.bf16.msra.mxu0 %v698
    %4647 = vmatprep.subr.bf16.mxu0 %v703
    %4648 = vmatpush1.bf16.msra.mxu0 %v702
    %4649 = vmatprep.subr.bf16.mxu0 %v707
    %4650 = vmatpush1.bf16.msra.mxu0 %v706
    %4651 = vmatprep.subr.bf16.mxu0 %v711
    %4652 = vmatpush1.bf16.msra.mxu0 %v710
    %4653 = vmatprep.subr.bf16.mxu0 %v715
    %4654 = vmatpush1.bf16.msra.mxu0 %v714
    %4655 = vmatprep.subr.bf16.mxu0 %v719
    %4656 = vmatpush1.bf16.msra.mxu0 %v718
    %4657 = vmatprep.subr.bf16.mxu0 %v723
    %4658 = vmatpush1.bf16.msra.mxu0 %v722
    %4659 = vmatprep.mubr.bf16.mxu0 %v4585
    %4660 = vmatmul.mubr.bf16.gmra.mrb[0].mxu0 %v4584
    %v4661 = vpop.f32.mrb[0].mxu0
    %v4662 = vadd.f32 %v189, %v4661
    %v4663 = vpop.f32.mrb[0].mxu0
    %v4664 = vadd.f32 %v193, %v4663
    %v4665 = vpop.f32.mrb[0].mxu0
    %v4666 = vpop.f32.mrb[0].mxu0
    %4667 = vdwg.mxu0
    %v4668 = vmul.f32 %v4621, 0.5
    %v4669 = vtanh.pop %v4668
    %v4670 = vmul.f32 %v4669, 0.5
    %v4671 = vadd.f32 %v4670, 0.5
    %v4672 = vmul.f32 %v4623, 0.5
    %v4673 = vtanh.pop %v4672
    %v4674 = vmul.f32 %v4673, 0.5
    %v4675 = vadd.f32 %v4674, 0.5
    %v4676 = vtanh.pop %v4662
    %v4677 = vmul.f32 %v4664, 0.5
    %v4678 = vtanh.pop %v4677
    %v4679 = vmul.f32 %v4678, 0.5
    %v4680 = vadd.f32 %v4679, 0.5
    %v4681 = vmul.f32 %v4675, %v4472
    %v4682 = vmul.f32 %v4671, %v4676
    %v4683 = vadd.f32 %v4681, %v4682
    %v4684 = vtanh.pop %v4683
    %v4685 = vmul.f32 %v4680, %v4684
    %s4686 = scalar_lea.vmem [#allocation2], 608
    %v4687 = vld [vmem:[%s4686] sm:$0xff]
    %v4688 = vld [vmem:[%s4686 + $0x8] sm:$0xff]
    %v4689 = vld [vmem:[%s4686 + $0x10] sm:$0xff]
    %v4690 = vld [vmem:[%s4686 + $0x18] sm:$0xff]
    %4691 = vmatprep.subr.bf16.mxu0 %v299
    %4692 = vmatpush1.bf16.msra.mxu0 %v298
    %4693 = vmatprep.subr.bf16.mxu0 %v303
    %4694 = vmatpush1.bf16.msra.mxu0 %v302
    %4695 = vmatprep.subr.bf16.mxu0 %v307
    %4696 = vmatpush1.bf16.msra.mxu0 %v306
    %4697 = vmatprep.subr.bf16.mxu0 %v311
    %4698 = vmatpush1.bf16.msra.mxu0 %v310
    %4699 = vmatprep.subr.bf16.mxu0 %v315
    %4700 = vmatpush1.bf16.msra.mxu0 %v314
    %4701 = vmatprep.subr.bf16.mxu0 %v319
    %4702 = vmatpush1.bf16.msra.mxu0 %v318
    %4703 = vmatprep.subr.bf16.mxu0 %v323
    %4704 = vmatpush1.bf16.msra.mxu0 %v322
    %4705 = vmatprep.subr.bf16.mxu0 %v327
    %4706 = vmatpush1.bf16.msra.mxu0 %v326
    %4707 = vmatprep.subr.bf16.mxu0 0
    %4708 = vmatpush1.bf16.msra.mxu0 0
    %4709 = vmatprep.subr.bf16.mxu0 0
    %4710 = vmatpush1.bf16.msra.mxu0 0
    %4711 = vmatprep.subr.bf16.mxu0 0
    %4712 = vmatpush1.bf16.msra.mxu0 0
    %4713 = vmatprep.subr.bf16.mxu0 0
    %4714 = vmatpush1.bf16.msra.mxu0 0
    %4715 = vmatprep.subr.bf16.mxu0 0
    %4716 = vmatpush1.bf16.msra.mxu0 0
    %4717 = vmatprep.subr.bf16.mxu0 0
    %4718 = vmatpush1.bf16.msra.mxu0 0
    %4719 = vmatprep.subr.bf16.mxu0 0
    %4720 = vmatpush1.bf16.msra.mxu0 0
    %4721 = vmatprep.subr.bf16.mxu0 0
    %4722 = vmatpush1.bf16.msra.mxu0 0
    %4723 = vmatprep.mubr.bf16.mxu0 0
    %4724 = vmatmul.mubr.bf16.gmra.mrb[0].mxu0 %v4584
    %v4725 = vpop.f32.mrb[0].mxu0
    %v4726 = vadd.f32 0.0, %v4725
    %v4727 = vpop.f32.mrb[0].mxu0
    %v4728 = vadd.f32 0.0, %v4727
    %v4729 = vpop.f32.mrb[0].mxu0
    %v4730 = vpop.f32.mrb[0].mxu0
    %4731 = vdwg.mxu0
    %4732 = vmatprep.subr.bf16.mxu0 %v301
    %4733 = vmatpush1.bf16.msra.mxu0 %v300
    %4734 = vmatprep.subr.bf16.mxu0 %v305
    %4735 = vmatpush1.bf16.msra.mxu0 %v304
    %4736 = vmatprep.subr.bf16.mxu0 %v309
    %4737 = vmatpush1.bf16.msra.mxu0 %v308
    %4738 = vmatprep.subr.bf16.mxu0 %v313
    %4739 = vmatpush1.bf16.msra.mxu0 %v312
    %4740 = vmatprep.subr.bf16.mxu0 %v317
    %4741 = vmatpush1.bf16.msra.mxu0 %v316
    %4742 = vmatprep.subr.bf16.mxu0 %v321
    %4743 = vmatpush1.bf16.msra.mxu0 %v320
    %4744 = vmatprep.subr.bf16.mxu0 %v325
    %4745 = vmatpush1.bf16.msra.mxu0 %v324
    %4746 = vmatprep.subr.bf16.mxu0 %v329
    %4747 = vmatpush1.bf16.msra.mxu0 %v328
    %4748 = vmatprep.subr.bf16.mxu0 0
    %4749 = vmatpush1.bf16.msra.mxu0 0
    %4750 = vmatprep.subr.bf16.mxu0 0
    %4751 = vmatpush1.bf16.msra.mxu0 0
    %4752 = vmatprep.subr.bf16.mxu0 0
    %4753 = vmatpush1.bf16.msra.mxu0 0
    %4754 = vmatprep.subr.bf16.mxu0 0
    %4755 = vmatpush1.bf16.msra.mxu0 0
    %4756 = vmatprep.subr.bf16.mxu0 0
    %4757 = vmatpush1.bf16.msra.mxu0 0
    %4758 = vmatprep.subr.bf16.mxu0 0
    %4759 = vmatpush1.bf16.msra.mxu0 0
    %4760 = vmatprep.subr.bf16.mxu0 0
    %4761 = vmatpush1.bf16.msra.mxu0 0
    %4762 = vmatprep.subr.bf16.mxu0 0
    %4763 = vmatpush1.bf16.msra.mxu0 0
    %4764 = vmatprep.mubr.bf16.mxu0 0
    %4765 = vmatmul.mubr.bf16.gmra.mrb[0].mxu0 %v4584
    %v4766 = vpop.f32.mrb[0].mxu0
    %v4767 = vadd.f32 0.0, %v4766
    %v4768 = vpop.f32.mrb[0].mxu0
    %v4769 = vadd.f32 0.0, %v4768
    %v4770 = vpop.f32.mrb[0].mxu0
    %v4771 = vpop.f32.mrb[0].mxu0
    %4772 = vdwg.mxu0
    %v4773 = vadd.f32 %v4687, %v4726
    %v4774 = vadd.f32 %v4688, %v4728
    %v4775 = vadd.f32 %v4689, %v4767
    %v4776 = vadd.f32 %v4690, %v4769
    %v4777 = vmul.f32 %v4773, 0.5
    %v4778 = vtanh.pop %v4777
    %v4779 = vmul.f32 %v4778, 0.5
    %v4780 = vadd.f32 %v4779, 0.5
    %v4781 = vmul.f32 %v4774, 0.5
    %v4782 = vtanh.pop %v4781
    %v4783 = vmul.f32 %v4782, 0.5
    %v4784 = vadd.f32 %v4783, 0.5
    %v4785 = vtanh.pop %v4775
    %v4786 = vmul.f32 %v4776, 0.5
    %v4787 = vtanh.pop %v4786
    %v4788 = vmul.f32 %v4787, 0.5
    %v4789 = vadd.f32 %v4788, 0.5
    %v4790 = vmul.f32 %v4784, %v4581
    %v4791 = vmul.f32 %v4780, %v4785
    %v4792 = vadd.f32 %v4790, %v4791
    %v4793 = vtanh.pop %v4792
    %v4794 = vmul.f32 %v4789, %v4793
    %v4795 = vpack.c.bf16 %v4794, %v4794
    %v4796 = vpack.c.bf16 %v4685, %v4685
    %4797 = vmatprep.subr.bf16.mxu0 %v661
    %4798 = vmatpush1.bf16.msra.mxu0 %v660
    %4799 = vmatprep.subr.bf16.mxu0 %v665
    %4800 = vmatpush1.bf16.msra.mxu0 %v664
    %4801 = vmatprep.subr.bf16.mxu0 %v669
    %4802 = vmatpush1.bf16.msra.mxu0 %v668
    %4803 = vmatprep.subr.bf16.mxu0 %v673
    %4804 = vmatpush1.bf16.msra.mxu0 %v672
    %4805 = vmatprep.subr.bf16.mxu0 %v677
    %4806 = vmatpush1.bf16.msra.mxu0 %v676
    %4807 = vmatprep.subr.bf16.mxu0 %v681
    %4808 = vmatpush1.bf16.msra.mxu0 %v680
    %4809 = vmatprep.subr.bf16.mxu0 %v685
    %4810 = vmatpush1.bf16.msra.mxu0 %v684
    %4811 = vmatprep.subr.bf16.mxu0 %v689
    %4812 = vmatpush1.bf16.msra.mxu0 %v688
    %4813 = vmatprep.subr.bf16.mxu0 %v693
    %4814 = vmatpush1.bf16.msra.mxu0 %v692
    %4815 = vmatprep.subr.bf16.mxu0 %v697
    %4816 = vmatpush1.bf16.msra.mxu0 %v696
    %4817 = vmatprep.subr.bf16.mxu0 %v701
    %4818 = vmatpush1.bf16.msra.mxu0 %v700
    %4819 = vmatprep.subr.bf16.mxu0 %v705
    %4820 = vmatpush1.bf16.msra.mxu0 %v704
    %4821 = vmatprep.subr.bf16.mxu0 %v709
    %4822 = vmatpush1.bf16.msra.mxu0 %v708
    %4823 = vmatprep.subr.bf16.mxu0 %v713
    %4824 = vmatpush1.bf16.msra.mxu0 %v712
    %4825 = vmatprep.subr.bf16.mxu0 %v717
    %4826 = vmatpush1.bf16.msra.mxu0 %v716
    %4827 = vmatprep.subr.bf16.mxu0 %v721
    %4828 = vmatpush1.bf16.msra.mxu0 %v720
    %4829 = vmatprep.mubr.bf16.mxu0 %v4796
    %4830 = vmatmul.mubr.bf16.gmra.mrb[0].mxu0 %v4795
    %v4831 = vpop.f32.mrb[0].mxu0
    %v4832 = vadd.f32 %v181, %v4831
    %v4833 = vpop.f32.mrb[0].mxu0
    %v4834 = vadd.f32 %v185, %v4833
    %v4835 = vpop.f32.mrb[0].mxu0
    %v4836 = vpop.f32.mrb[0].mxu0
    %4837 = vdwg.mxu0
    %4838 = vmatprep.subr.bf16.mxu0 %v663
    %4839 = vmatpush1.bf16.msra.mxu0 %v662
    %4840 = vmatprep.subr.bf16.mxu0 %v667
    %4841 = vmatpush1.bf16.msra.mxu0 %v666
    %4842 = vmatprep.subr.bf16.mxu0 %v671
    %4843 = vmatpush1.bf16.msra.mxu0 %v670
    %4844 = vmatprep.subr.bf16.mxu0 %v675
    %4845 = vmatpush1.bf16.msra.mxu0 %v674
    %4846 = vmatprep.subr.bf16.mxu0 %v679
    %4847 = vmatpush1.bf16.msra.mxu0 %v678
    %4848 = vmatprep.subr.bf16.mxu0 %v683
    %4849 = vmatpush1.bf16.msra.mxu0 %v682
    %4850 = vmatprep.subr.bf16.mxu0 %v687
    %4851 = vmatpush1.bf16.msra.mxu0 %v686
    %4852 = vmatprep.subr.bf16.mxu0 %v691
    %4853 = vmatpush1.bf16.msra.mxu0 %v690
    %4854 = vmatprep.subr.bf16.mxu0 %v695
    %4855 = vmatpush1.bf16.msra.mxu0 %v694
    %4856 = vmatprep.subr.bf16.mxu0 %v699
    %4857 = vmatpush1.bf16.msra.mxu0 %v698
    %4858 = vmatprep.subr.bf16.mxu0 %v703
    %4859 = vmatpush1.bf16.msra.mxu0 %v702
    %4860 = vmatprep.subr.bf16.mxu0 %v707
    %4861 = vmatpush1.bf16.msra.mxu0 %v706
    %4862 = vmatprep.subr.bf16.mxu0 %v711
    %4863 = vmatpush1.bf16.msra.mxu0 %v710
    %4864 = vmatprep.subr.bf16.mxu0 %v715
    %4865 = vmatpush1.bf16.msra.mxu0 %v714
    %4866 = vmatprep.subr.bf16.mxu0 %v719
    %4867 = vmatpush1.bf16.msra.mxu0 %v718
    %4868 = vmatprep.subr.bf16.mxu0 %v723
    %4869 = vmatpush1.bf16.msra.mxu0 %v722
    %4870 = vmatprep.mubr.bf16.mxu0 %v4796
    %4871 = vmatmul.mubr.bf16.gmra.mrb[0].mxu0 %v4795
    %v4872 = vpop.f32.mrb[0].mxu0
    %v4873 = vadd.f32 %v189, %v4872
    %v4874 = vpop.f32.mrb[0].mxu0
    %v4875 = vadd.f32 %v193, %v4874
    %v4876 = vpop.f32.mrb[0].mxu0
    %v4877 = vpop.f32.mrb[0].mxu0
    %4878 = vdwg.mxu0
    %v4879 = vmul.f32 %v4832, 0.5
    %v4880 = vtanh.pop %v4879
    %v4881 = vmul.f32 %v4880, 0.5
    %v4882 = vadd.f32 %v4881, 0.5
    %v4883 = vmul.f32 %v4834, 0.5
    %v4884 = vtanh.pop %v4883
    %v4885 = vmul.f32 %v4884, 0.5
    %v4886 = vadd.f32 %v4885, 0.5
    %v4887 = vtanh.pop %v4873
    %v4888 = vmul.f32 %v4875, 0.5
    %v4889 = vtanh.pop %v4888
    %v4890 = vmul.f32 %v4889, 0.5
    %v4891 = vadd.f32 %v4890, 0.5
    %v4892 = vmul.f32 %v4886, %v4683
    %v4893 = vmul.f32 %v4882, %v4887
    %v4894 = vadd.f32 %v4892, %v4893
    %v4895 = vtanh.pop %v4894
    %v4896 = vmul.f32 %v4891, %v4895
    %s4897 = scalar_lea.vmem [#allocation2], 640
    %v4898 = vld [vmem:[%s4897] sm:$0xff]
    %v4899 = vld [vmem:[%s4897 + $0x8] sm:$0xff]
    %v4900 = vld [vmem:[%s4897 + $0x10] sm:$0xff]
    %v4901 = vld [vmem:[%s4897 + $0x18] sm:$0xff]
    %4902 = vmatprep.subr.bf16.mxu0 %v299
    %4903 = vmatpush1.bf16.msra.mxu0 %v298
    %4904 = vmatprep.subr.bf16.mxu0 %v303
    %4905 = vmatpush1.bf16.msra.mxu0 %v302
    %4906 = vmatprep.subr.bf16.mxu0 %v307
    %4907 = vmatpush1.bf16.msra.mxu0 %v306
    %4908 = vmatprep.subr.bf16.mxu0 %v311
    %4909 = vmatpush1.bf16.msra.mxu0 %v310
    %4910 = vmatprep.subr.bf16.mxu0 %v315
    %4911 = vmatpush1.bf16.msra.mxu0 %v314
    %4912 = vmatprep.subr.bf16.mxu0 %v319
    %4913 = vmatpush1.bf16.msra.mxu0 %v318
    %4914 = vmatprep.subr.bf16.mxu0 %v323
    %4915 = vmatpush1.bf16.msra.mxu0 %v322
    %4916 = vmatprep.subr.bf16.mxu0 %v327
    %4917 = vmatpush1.bf16.msra.mxu0 %v326
    %4918 = vmatprep.subr.bf16.mxu0 0
    %4919 = vmatpush1.bf16.msra.mxu0 0
    %4920 = vmatprep.subr.bf16.mxu0 0
    %4921 = vmatpush1.bf16.msra.mxu0 0
    %4922 = vmatprep.subr.bf16.mxu0 0
    %4923 = vmatpush1.bf16.msra.mxu0 0
    %4924 = vmatprep.subr.bf16.mxu0 0
    %4925 = vmatpush1.bf16.msra.mxu0 0
    %4926 = vmatprep.subr.bf16.mxu0 0
    %4927 = vmatpush1.bf16.msra.mxu0 0
    %4928 = vmatprep.subr.bf16.mxu0 0
    %4929 = vmatpush1.bf16.msra.mxu0 0
    %4930 = vmatprep.subr.bf16.mxu0 0
    %4931 = vmatpush1.bf16.msra.mxu0 0
    %4932 = vmatprep.subr.bf16.mxu0 0
    %4933 = vmatpush1.bf16.msra.mxu0 0
    %4934 = vmatprep.mubr.bf16.mxu0 0
    %4935 = vmatmul.mubr.bf16.gmra.mrb[0].mxu0 %v4795
    %v4936 = vpop.f32.mrb[0].mxu0
    %v4937 = vadd.f32 0.0, %v4936
    %v4938 = vpop.f32.mrb[0].mxu0
    %v4939 = vadd.f32 0.0, %v4938
    %v4940 = vpop.f32.mrb[0].mxu0
    %v4941 = vpop.f32.mrb[0].mxu0
    %4942 = vdwg.mxu0
    %4943 = vmatprep.subr.bf16.mxu0 %v301
    %4944 = vmatpush1.bf16.msra.mxu0 %v300
    %4945 = vmatprep.subr.bf16.mxu0 %v305
    %4946 = vmatpush1.bf16.msra.mxu0 %v304
    %4947 = vmatprep.subr.bf16.mxu0 %v309
    %4948 = vmatpush1.bf16.msra.mxu0 %v308
    %4949 = vmatprep.subr.bf16.mxu0 %v313
    %4950 = vmatpush1.bf16.msra.mxu0 %v312
    %4951 = vmatprep.subr.bf16.mxu0 %v317
    %4952 = vmatpush1.bf16.msra.mxu0 %v316
    %4953 = vmatprep.subr.bf16.mxu0 %v321
    %4954 = vmatpush1.bf16.msra.mxu0 %v320
    %4955 = vmatprep.subr.bf16.mxu0 %v325
    %4956 = vmatpush1.bf16.msra.mxu0 %v324
    %4957 = vmatprep.subr.bf16.mxu0 %v329
    %4958 = vmatpush1.bf16.msra.mxu0 %v328
    %4959 = vmatprep.subr.bf16.mxu0 0
    %4960 = vmatpush1.bf16.msra.mxu0 0
    %4961 = vmatprep.subr.bf16.mxu0 0
    %4962 = vmatpush1.bf16.msra.mxu0 0
    %4963 = vmatprep.subr.bf16.mxu0 0
    %4964 = vmatpush1.bf16.msra.mxu0 0
    %4965 = vmatprep.subr.bf16.mxu0 0
    %4966 = vmatpush1.bf16.msra.mxu0 0
    %4967 = vmatprep.subr.bf16.mxu0 0
    %4968 = vmatpush1.bf16.msra.mxu0 0
    %4969 = vmatprep.subr.bf16.mxu0 0
    %4970 = vmatpush1.bf16.msra.mxu0 0
    %4971 = vmatprep.subr.bf16.mxu0 0
    %4972 = vmatpush1.bf16.msra.mxu0 0
    %4973 = vmatprep.subr.bf16.mxu0 0
    %4974 = vmatpush1.bf16.msra.mxu0 0
    %4975 = vmatprep.mubr.bf16.mxu0 0
    %4976 = vmatmul.mubr.bf16.gmra.mrb[0].mxu0 %v4795
    %v4977 = vpop.f32.mrb[0].mxu0
    %v4978 = vadd.f32 0.0, %v4977
    %v4979 = vpop.f32.mrb[0].mxu0
    %v4980 = vadd.f32 0.0, %v4979
    %v4981 = vpop.f32.mrb[0].mxu0
    %v4982 = vpop.f32.mrb[0].mxu0
    %4983 = vdwg.mxu0
    %v4984 = vadd.f32 %v4898, %v4937
    %v4985 = vadd.f32 %v4899, %v4939
    %v4986 = vadd.f32 %v4900, %v4978
    %v4987 = vadd.f32 %v4901, %v4980
    %v4988 = vmul.f32 %v4984, 0.5
    %v4989 = vtanh.pop %v4988
    %v4990 = vmul.f32 %v4989, 0.5
    %v4991 = vadd.f32 %v4990, 0.5
    %v4992 = vmul.f32 %v4985, 0.5
    %v4993 = vtanh.pop %v4992
    %v4994 = vmul.f32 %v4993, 0.5
    %v4995 = vadd.f32 %v4994, 0.5
    %v4996 = vtanh.pop %v4986
    %v4997 = vmul.f32 %v4987, 0.5
    %v4998 = vtanh.pop %v4997
    %v4999 = vmul.f32 %v4998, 0.5
    %v5000 = vadd.f32 %v4999, 0.5
    %v5001 = vmul.f32 %v4995, %v4792
    %v5002 = vmul.f32 %v4991, %v4996
    %v5003 = vadd.f32 %v5001, %v5002
    %v5004 = vtanh.pop %v5003
    %v5005 = vmul.f32 %v5000, %v5004
    %v5006 = vpack.c.bf16 %v5005, %v5005
    %v5007 = vpack.c.bf16 %v4896, %v4896
    %5008 = vmatprep.subr.bf16.mxu0 %v661
    %5009 = vmatpush1.bf16.msra.mxu0 %v660
    %5010 = vmatprep.subr.bf16.mxu0 %v665
    %5011 = vmatpush1.bf16.msra.mxu0 %v664
    %5012 = vmatprep.subr.bf16.mxu0 %v669
    %5013 = vmatpush1.bf16.msra.mxu0 %v668
    %5014 = vmatprep.subr.bf16.mxu0 %v673
    %5015 = vmatpush1.bf16.msra.mxu0 %v672
    %5016 = vmatprep.subr.bf16.mxu0 %v677
    %5017 = vmatpush1.bf16.msra.mxu0 %v676
    %5018 = vmatprep.subr.bf16.mxu0 %v681
    %5019 = vmatpush1.bf16.msra.mxu0 %v680
    %5020 = vmatprep.subr.bf16.mxu0 %v685
    %5021 = vmatpush1.bf16.msra.mxu0 %v684
    %5022 = vmatprep.subr.bf16.mxu0 %v689
    %5023 = vmatpush1.bf16.msra.mxu0 %v688
    %5024 = vmatprep.subr.bf16.mxu0 %v693
    %5025 = vmatpush1.bf16.msra.mxu0 %v692
    %5026 = vmatprep.subr.bf16.mxu0 %v697
    %5027 = vmatpush1.bf16.msra.mxu0 %v696
    %5028 = vmatprep.subr.bf16.mxu0 %v701
    %5029 = vmatpush1.bf16.msra.mxu0 %v700
    %5030 = vmatprep.subr.bf16.mxu0 %v705
    %5031 = vmatpush1.bf16.msra.mxu0 %v704
    %5032 = vmatprep.subr.bf16.mxu0 %v709
    %5033 = vmatpush1.bf16.msra.mxu0 %v708
    %5034 = vmatprep.subr.bf16.mxu0 %v713
    %5035 = vmatpush1.bf16.msra.mxu0 %v712
    %5036 = vmatprep.subr.bf16.mxu0 %v717
    %5037 = vmatpush1.bf16.msra.mxu0 %v716
    %5038 = vmatprep.subr.bf16.mxu0 %v721
    %5039 = vmatpush1.bf16.msra.mxu0 %v720
    %5040 = vmatprep.mubr.bf16.mxu0 %v5007
    %5041 = vmatmul.mubr.bf16.gmra.mrb[0].mxu0 %v5006
    %v5042 = vpop.f32.mrb[0].mxu0
    %v5043 = vadd.f32 %v181, %v5042
    %v5044 = vpop.f32.mrb[0].mxu0
    %v5045 = vadd.f32 %v185, %v5044
    %v5046 = vpop.f32.mrb[0].mxu0
    %v5047 = vpop.f32.mrb[0].mxu0
    %5048 = vdwg.mxu0
    %5049 = vmatprep.subr.bf16.mxu0 %v663
    %5050 = vmatpush1.bf16.msra.mxu0 %v662
    %5051 = vmatprep.subr.bf16.mxu0 %v667
    %5052 = vmatpush1.bf16.msra.mxu0 %v666
    %5053 = vmatprep.subr.bf16.mxu0 %v671
    %5054 = vmatpush1.bf16.msra.mxu0 %v670
    %5055 = vmatprep.subr.bf16.mxu0 %v675
    %5056 = vmatpush1.bf16.msra.mxu0 %v674
    %5057 = vmatprep.subr.bf16.mxu0 %v679
    %5058 = vmatpush1.bf16.msra.mxu0 %v678
    %5059 = vmatprep.subr.bf16.mxu0 %v683
    %5060 = vmatpush1.bf16.msra.mxu0 %v682
    %5061 = vmatprep.subr.bf16.mxu0 %v687
    %5062 = vmatpush1.bf16.msra.mxu0 %v686
    %5063 = vmatprep.subr.bf16.mxu0 %v691
    %5064 = vmatpush1.bf16.msra.mxu0 %v690
    %5065 = vmatprep.subr.bf16.mxu0 %v695
    %5066 = vmatpush1.bf16.msra.mxu0 %v694
    %5067 = vmatprep.subr.bf16.mxu0 %v699
    %5068 = vmatpush1.bf16.msra.mxu0 %v698
    %5069 = vmatprep.subr.bf16.mxu0 %v703
    %5070 = vmatpush1.bf16.msra.mxu0 %v702
    %5071 = vmatprep.subr.bf16.mxu0 %v707
    %5072 = vmatpush1.bf16.msra.mxu0 %v706
    %5073 = vmatprep.subr.bf16.mxu0 %v711
    %5074 = vmatpush1.bf16.msra.mxu0 %v710
    %5075 = vmatprep.subr.bf16.mxu0 %v715
    %5076 = vmatpush1.bf16.msra.mxu0 %v714
    %5077 = vmatprep.subr.bf16.mxu0 %v719
    %5078 = vmatpush1.bf16.msra.mxu0 %v718
    %5079 = vmatprep.subr.bf16.mxu0 %v723
    %5080 = vmatpush1.bf16.msra.mxu0 %v722
    %5081 = vmatprep.mubr.bf16.mxu0 %v5007
    %5082 = vmatmul.mubr.bf16.gmra.mrb[0].mxu0 %v5006
    %v5083 = vpop.f32.mrb[0].mxu0
    %v5084 = vadd.f32 %v189, %v5083
    %v5085 = vpop.f32.mrb[0].mxu0
    %v5086 = vadd.f32 %v193, %v5085
    %v5087 = vpop.f32.mrb[0].mxu0
    %v5088 = vpop.f32.mrb[0].mxu0
    %5089 = vdwg.mxu0
    %v5090 = vmul.f32 %v5043, 0.5
    %v5091 = vtanh.pop %v5090
    %v5092 = vmul.f32 %v5091, 0.5
    %v5093 = vadd.f32 %v5092, 0.5
    %v5094 = vmul.f32 %v5045, 0.5
    %v5095 = vtanh.pop %v5094
    %v5096 = vmul.f32 %v5095, 0.5
    %v5097 = vadd.f32 %v5096, 0.5
    %v5098 = vtanh.pop %v5084
    %v5099 = vmul.f32 %v5086, 0.5
    %v5100 = vtanh.pop %v5099
    %v5101 = vmul.f32 %v5100, 0.5
    %v5102 = vadd.f32 %v5101, 0.5
    %v5103 = vmul.f32 %v5097, %v4894
    %v5104 = vmul.f32 %v5093, %v5098
    %v5105 = vadd.f32 %v5103, %v5104
    %v5106 = vtanh.pop %v5105
    %v5107 = vmul.f32 %v5102, %v5106
    %s5108 = scalar_lea.vmem [#allocation2], 672
    %v5109 = vld [vmem:[%s5108] sm:$0xff]
    %v5110 = vld [vmem:[%s5108 + $0x8] sm:$0xff]
    %v5111 = vld [vmem:[%s5108 + $0x10] sm:$0xff]
    %v5112 = vld [vmem:[%s5108 + $0x18] sm:$0xff]
    %5113 = vmatprep.subr.bf16.mxu0 %v299
    %5114 = vmatpush1.bf16.msra.mxu0 %v298
    %5115 = vmatprep.subr.bf16.mxu0 %v303
    %5116 = vmatpush1.bf16.msra.mxu0 %v302
    %5117 = vmatprep.subr.bf16.mxu0 %v307
    %5118 = vmatpush1.bf16.msra.mxu0 %v306
    %5119 = vmatprep.subr.bf16.mxu0 %v311
    %5120 = vmatpush1.bf16.msra.mxu0 %v310
    %5121 = vmatprep.subr.bf16.mxu0 %v315
    %5122 = vmatpush1.bf16.msra.mxu0 %v314
    %5123 = vmatprep.subr.bf16.mxu0 %v319
    %5124 = vmatpush1.bf16.msra.mxu0 %v318
    %5125 = vmatprep.subr.bf16.mxu0 %v323
    %5126 = vmatpush1.bf16.msra.mxu0 %v322
    %5127 = vmatprep.subr.bf16.mxu0 %v327
    %5128 = vmatpush1.bf16.msra.mxu0 %v326
    %5129 = vmatprep.subr.bf16.mxu0 0
    %5130 = vmatpush1.bf16.msra.mxu0 0
    %5131 = vmatprep.subr.bf16.mxu0 0
    %5132 = vmatpush1.bf16.msra.mxu0 0
    %5133 = vmatprep.subr.bf16.mxu0 0
    %5134 = vmatpush1.bf16.msra.mxu0 0
    %5135 = vmatprep.subr.bf16.mxu0 0
    %5136 = vmatpush1.bf16.msra.mxu0 0
    %5137 = vmatprep.subr.bf16.mxu0 0
    %5138 = vmatpush1.bf16.msra.mxu0 0
    %5139 = vmatprep.subr.bf16.mxu0 0
    %5140 = vmatpush1.bf16.msra.mxu0 0
    %5141 = vmatprep.subr.bf16.mxu0 0
    %5142 = vmatpush1.bf16.msra.mxu0 0
    %5143 = vmatprep.subr.bf16.mxu0 0
    %5144 = vmatpush1.bf16.msra.mxu0 0
    %5145 = vmatprep.mubr.bf16.mxu0 0
    %5146 = vmatmul.mubr.bf16.gmra.mrb[0].mxu0 %v5006
    %v5147 = vpop.f32.mrb[0].mxu0
    %v5148 = vadd.f32 0.0, %v5147
    %v5149 = vpop.f32.mrb[0].mxu0
    %v5150 = vadd.f32 0.0, %v5149
    %v5151 = vpop.f32.mrb[0].mxu0
    %v5152 = vpop.f32.mrb[0].mxu0
    %5153 = vdwg.mxu0
    %5154 = vmatprep.subr.bf16.mxu0 %v301
    %5155 = vmatpush1.bf16.msra.mxu0 %v300
    %5156 = vmatprep.subr.bf16.mxu0 %v305
    %5157 = vmatpush1.bf16.msra.mxu0 %v304
    %5158 = vmatprep.subr.bf16.mxu0 %v309
    %5159 = vmatpush1.bf16.msra.mxu0 %v308
    %5160 = vmatprep.subr.bf16.mxu0 %v313
    %5161 = vmatpush1.bf16.msra.mxu0 %v312
    %5162 = vmatprep.subr.bf16.mxu0 %v317
    %5163 = vmatpush1.bf16.msra.mxu0 %v316
    %5164 = vmatprep.subr.bf16.mxu0 %v321
    %5165 = vmatpush1.bf16.msra.mxu0 %v320
    %5166 = vmatprep.subr.bf16.mxu0 %v325
    %5167 = vmatpush1.bf16.msra.mxu0 %v324
    %5168 = vmatprep.subr.bf16.mxu0 %v329
    %5169 = vmatpush1.bf16.msra.mxu0 %v328
    %5170 = vmatprep.subr.bf16.mxu0 0
    %5171 = vmatpush1.bf16.msra.mxu0 0
    %5172 = vmatprep.subr.bf16.mxu0 0
    %5173 = vmatpush1.bf16.msra.mxu0 0
    %5174 = vmatprep.subr.bf16.mxu0 0
    %5175 = vmatpush1.bf16.msra.mxu0 0
    %5176 = vmatprep.subr.bf16.mxu0 0
    %5177 = vmatpush1.bf16.msra.mxu0 0
    %5178 = vmatprep.subr.bf16.mxu0 0
    %5179 = vmatpush1.bf16.msra.mxu0 0
    %5180 = vmatprep.subr.bf16.mxu0 0
    %5181 = vmatpush1.bf16.msra.mxu0 0
    %5182 = vmatprep.subr.bf16.mxu0 0
    %5183 = vmatpush1.bf16.msra.mxu0 0
    %5184 = vmatprep.subr.bf16.mxu0 0
    %5185 = vmatpush1.bf16.msra.mxu0 0
    %5186 = vmatprep.mubr.bf16.mxu0 0
    %5187 = vmatmul.mubr.bf16.gmra.mrb[0].mxu0 %v5006
    %v5188 = vpop.f32.mrb[0].mxu0
    %v5189 = vadd.f32 0.0, %v5188
    %v5190 = vpop.f32.mrb[0].mxu0
    %v5191 = vadd.f32 0.0, %v5190
    %v5192 = vpop.f32.mrb[0].mxu0
    %v5193 = vpop.f32.mrb[0].mxu0
    %5194 = vdwg.mxu0
    %v5195 = vadd.f32 %v5109, %v5148
    %v5196 = vadd.f32 %v5110, %v5150
    %v5197 = vadd.f32 %v5111, %v5189
    %v5198 = vadd.f32 %v5112, %v5191
    %v5199 = vmul.f32 %v5195, 0.5
    %v5200 = vtanh.pop %v5199
    %v5201 = vmul.f32 %v5200, 0.5
    %v5202 = vadd.f32 %v5201, 0.5
    %v5203 = vmul.f32 %v5196, 0.5
    %v5204 = vtanh.pop %v5203
    %v5205 = vmul.f32 %v5204, 0.5
    %v5206 = vadd.f32 %v5205, 0.5
    %v5207 = vtanh.pop %v5197
    %v5208 = vmul.f32 %v5198, 0.5
    %v5209 = vtanh.pop %v5208
    %v5210 = vmul.f32 %v5209, 0.5
    %v5211 = vadd.f32 %v5210, 0.5
    %v5212 = vmul.f32 %v5206, %v5003
    %v5213 = vmul.f32 %v5202, %v5207
    %v5214 = vadd.f32 %v5212, %v5213
    %v5215 = vtanh.pop %v5214
    %v5216 = vmul.f32 %v5211, %v5215
    %v5217 = vpack.c.bf16 %v5216, %v5216
    %v5218 = vpack.c.bf16 %v5107, %v5107
    %5219 = vmatprep.subr.bf16.mxu0 %v661
    %5220 = vmatpush1.bf16.msra.mxu0 %v660
    %5221 = vmatprep.subr.bf16.mxu0 %v665
    %5222 = vmatpush1.bf16.msra.mxu0 %v664
    %5223 = vmatprep.subr.bf16.mxu0 %v669
    %5224 = vmatpush1.bf16.msra.mxu0 %v668
    %5225 = vmatprep.subr.bf16.mxu0 %v673
    %5226 = vmatpush1.bf16.msra.mxu0 %v672
    %5227 = vmatprep.subr.bf16.mxu0 %v677
    %5228 = vmatpush1.bf16.msra.mxu0 %v676
    %5229 = vmatprep.subr.bf16.mxu0 %v681
    %5230 = vmatpush1.bf16.msra.mxu0 %v680
    %5231 = vmatprep.subr.bf16.mxu0 %v685
    %5232 = vmatpush1.bf16.msra.mxu0 %v684
    %5233 = vmatprep.subr.bf16.mxu0 %v689
    %5234 = vmatpush1.bf16.msra.mxu0 %v688
    %5235 = vmatprep.subr.bf16.mxu0 %v693
    %5236 = vmatpush1.bf16.msra.mxu0 %v692
    %5237 = vmatprep.subr.bf16.mxu0 %v697
    %5238 = vmatpush1.bf16.msra.mxu0 %v696
    %5239 = vmatprep.subr.bf16.mxu0 %v701
    %5240 = vmatpush1.bf16.msra.mxu0 %v700
    %5241 = vmatprep.subr.bf16.mxu0 %v705
    %5242 = vmatpush1.bf16.msra.mxu0 %v704
    %5243 = vmatprep.subr.bf16.mxu0 %v709
    %5244 = vmatpush1.bf16.msra.mxu0 %v708
    %5245 = vmatprep.subr.bf16.mxu0 %v713
    %5246 = vmatpush1.bf16.msra.mxu0 %v712
    %5247 = vmatprep.subr.bf16.mxu0 %v717
    %5248 = vmatpush1.bf16.msra.mxu0 %v716
    %5249 = vmatprep.subr.bf16.mxu0 %v721
    %5250 = vmatpush1.bf16.msra.mxu0 %v720
    %5251 = vmatprep.mubr.bf16.mxu0 %v5218
    %5252 = vmatmul.mubr.bf16.gmra.mrb[0].mxu0 %v5217
    %v5253 = vpop.f32.mrb[0].mxu0
    %v5254 = vadd.f32 %v181, %v5253
    %v5255 = vpop.f32.mrb[0].mxu0
    %v5256 = vadd.f32 %v185, %v5255
    %v5257 = vpop.f32.mrb[0].mxu0
    %v5258 = vpop.f32.mrb[0].mxu0
    %5259 = vdwg.mxu0
    %5260 = vmatprep.subr.bf16.mxu0 %v663
    %5261 = vmatpush1.bf16.msra.mxu0 %v662
    %5262 = vmatprep.subr.bf16.mxu0 %v667
    %5263 = vmatpush1.bf16.msra.mxu0 %v666
    %5264 = vmatprep.subr.bf16.mxu0 %v671
    %5265 = vmatpush1.bf16.msra.mxu0 %v670
    %5266 = vmatprep.subr.bf16.mxu0 %v675
    %5267 = vmatpush1.bf16.msra.mxu0 %v674
    %5268 = vmatprep.subr.bf16.mxu0 %v679
    %5269 = vmatpush1.bf16.msra.mxu0 %v678
    %5270 = vmatprep.subr.bf16.mxu0 %v683
    %5271 = vmatpush1.bf16.msra.mxu0 %v682
    %5272 = vmatprep.subr.bf16.mxu0 %v687
    %5273 = vmatpush1.bf16.msra.mxu0 %v686
    %5274 = vmatprep.subr.bf16.mxu0 %v691
    %5275 = vmatpush1.bf16.msra.mxu0 %v690
    %5276 = vmatprep.subr.bf16.mxu0 %v695
    %5277 = vmatpush1.bf16.msra.mxu0 %v694
    %5278 = vmatprep.subr.bf16.mxu0 %v699
    %5279 = vmatpush1.bf16.msra.mxu0 %v698
    %5280 = vmatprep.subr.bf16.mxu0 %v703
    %5281 = vmatpush1.bf16.msra.mxu0 %v702
    %5282 = vmatprep.subr.bf16.mxu0 %v707
    %5283 = vmatpush1.bf16.msra.mxu0 %v706
    %5284 = vmatprep.subr.bf16.mxu0 %v711
    %5285 = vmatpush1.bf16.msra.mxu0 %v710
    %5286 = vmatprep.subr.bf16.mxu0 %v715
    %5287 = vmatpush1.bf16.msra.mxu0 %v714
    %5288 = vmatprep.subr.bf16.mxu0 %v719
    %5289 = vmatpush1.bf16.msra.mxu0 %v718
    %5290 = vmatprep.subr.bf16.mxu0 %v723
    %5291 = vmatpush1.bf16.msra.mxu0 %v722
    %5292 = vmatprep.mubr.bf16.mxu0 %v5218
    %5293 = vmatmul.mubr.bf16.gmra.mrb[0].mxu0 %v5217
    %v5294 = vpop.f32.mrb[0].mxu0
    %v5295 = vadd.f32 %v189, %v5294
    %v5296 = vpop.f32.mrb[0].mxu0
    %v5297 = vadd.f32 %v193, %v5296
    %v5298 = vpop.f32.mrb[0].mxu0
    %v5299 = vpop.f32.mrb[0].mxu0
    %5300 = vdwg.mxu0
    %v5301 = vmul.f32 %v5254, 0.5
    %v5302 = vtanh.pop %v5301
    %v5303 = vmul.f32 %v5302, 0.5
    %v5304 = vadd.f32 %v5303, 0.5
    %v5305 = vmul.f32 %v5256, 0.5
    %v5306 = vtanh.pop %v5305
    %v5307 = vmul.f32 %v5306, 0.5
    %v5308 = vadd.f32 %v5307, 0.5
    %v5309 = vtanh.pop %v5295
    %v5310 = vmul.f32 %v5297, 0.5
    %v5311 = vtanh.pop %v5310
    %v5312 = vmul.f32 %v5311, 0.5
    %v5313 = vadd.f32 %v5312, 0.5
    %v5314 = vmul.f32 %v5308, %v5105
    %v5315 = vmul.f32 %v5304, %v5309
    %v5316 = vadd.f32 %v5314, %v5315
    %v5317 = vtanh.pop %v5316
    %v5318 = vmul.f32 %v5313, %v5317
    %s5319 = scalar_lea.vmem [#allocation2], 704
    %v5320 = vld [vmem:[%s5319] sm:$0xff]
    %v5321 = vld [vmem:[%s5319 + $0x8] sm:$0xff]
    %v5322 = vld [vmem:[%s5319 + $0x10] sm:$0xff]
    %v5323 = vld [vmem:[%s5319 + $0x18] sm:$0xff]
    %5324 = vmatprep.subr.bf16.mxu0 %v299
    %5325 = vmatpush1.bf16.msra.mxu0 %v298
    %5326 = vmatprep.subr.bf16.mxu0 %v303
    %5327 = vmatpush1.bf16.msra.mxu0 %v302
    %5328 = vmatprep.subr.bf16.mxu0 %v307
    %5329 = vmatpush1.bf16.msra.mxu0 %v306
    %5330 = vmatprep.subr.bf16.mxu0 %v311
    %5331 = vmatpush1.bf16.msra.mxu0 %v310
    %5332 = vmatprep.subr.bf16.mxu0 %v315
    %5333 = vmatpush1.bf16.msra.mxu0 %v314
    %5334 = vmatprep.subr.bf16.mxu0 %v319
    %5335 = vmatpush1.bf16.msra.mxu0 %v318
    %5336 = vmatprep.subr.bf16.mxu0 %v323
    %5337 = vmatpush1.bf16.msra.mxu0 %v322
    %5338 = vmatprep.subr.bf16.mxu0 %v327
    %5339 = vmatpush1.bf16.msra.mxu0 %v326
    %5340 = vmatprep.subr.bf16.mxu0 0
    %5341 = vmatpush1.bf16.msra.mxu0 0
    %5342 = vmatprep.subr.bf16.mxu0 0
    %5343 = vmatpush1.bf16.msra.mxu0 0
    %5344 = vmatprep.subr.bf16.mxu0 0
    %5345 = vmatpush1.bf16.msra.mxu0 0
    %5346 = vmatprep.subr.bf16.mxu0 0
    %5347 = vmatpush1.bf16.msra.mxu0 0
    %5348 = vmatprep.subr.bf16.mxu0 0
    %5349 = vmatpush1.bf16.msra.mxu0 0
    %5350 = vmatprep.subr.bf16.mxu0 0
    %5351 = vmatpush1.bf16.msra.mxu0 0
    %5352 = vmatprep.subr.bf16.mxu0 0
    %5353 = vmatpush1.bf16.msra.mxu0 0
    %5354 = vmatprep.subr.bf16.mxu0 0
    %5355 = vmatpush1.bf16.msra.mxu0 0
    %5356 = vmatprep.mubr.bf16.mxu0 0
    %5357 = vmatmul.mubr.bf16.gmra.mrb[0].mxu0 %v5217
    %v5358 = vpop.f32.mrb[0].mxu0
    %v5359 = vadd.f32 0.0, %v5358
    %v5360 = vpop.f32.mrb[0].mxu0
    %v5361 = vadd.f32 0.0, %v5360
    %v5362 = vpop.f32.mrb[0].mxu0
    %v5363 = vpop.f32.mrb[0].mxu0
    %5364 = vdwg.mxu0
    %5365 = vmatprep.subr.bf16.mxu0 %v301
    %5366 = vmatpush1.bf16.msra.mxu0 %v300
    %5367 = vmatprep.subr.bf16.mxu0 %v305
    %5368 = vmatpush1.bf16.msra.mxu0 %v304
    %5369 = vmatprep.subr.bf16.mxu0 %v309
    %5370 = vmatpush1.bf16.msra.mxu0 %v308
    %5371 = vmatprep.subr.bf16.mxu0 %v313
    %5372 = vmatpush1.bf16.msra.mxu0 %v312
    %5373 = vmatprep.subr.bf16.mxu0 %v317
    %5374 = vmatpush1.bf16.msra.mxu0 %v316
    %5375 = vmatprep.subr.bf16.mxu0 %v321
    %5376 = vmatpush1.bf16.msra.mxu0 %v320
    %5377 = vmatprep.subr.bf16.mxu0 %v325
    %5378 = vmatpush1.bf16.msra.mxu0 %v324
    %5379 = vmatprep.subr.bf16.mxu0 %v329
    %5380 = vmatpush1.bf16.msra.mxu0 %v328
    %5381 = vmatprep.subr.bf16.mxu0 0
    %5382 = vmatpush1.bf16.msra.mxu0 0
    %5383 = vmatprep.subr.bf16.mxu0 0
    %5384 = vmatpush1.bf16.msra.mxu0 0
    %5385 = vmatprep.subr.bf16.mxu0 0
    %5386 = vmatpush1.bf16.msra.mxu0 0
    %5387 = vmatprep.subr.bf16.mxu0 0
    %5388 = vmatpush1.bf16.msra.mxu0 0
    %5389 = vmatprep.subr.bf16.mxu0 0
    %5390 = vmatpush1.bf16.msra.mxu0 0
    %5391 = vmatprep.subr.bf16.mxu0 0
    %5392 = vmatpush1.bf16.msra.mxu0 0
    %5393 = vmatprep.subr.bf16.mxu0 0
    %5394 = vmatpush1.bf16.msra.mxu0 0
    %5395 = vmatprep.subr.bf16.mxu0 0
    %5396 = vmatpush1.bf16.msra.mxu0 0
    %5397 = vmatprep.mubr.bf16.mxu0 0
    %5398 = vmatmul.mubr.bf16.gmra.mrb[0].mxu0 %v5217
    %v5399 = vpop.f32.mrb[0].mxu0
    %v5400 = vadd.f32 0.0, %v5399
    %v5401 = vpop.f32.mrb[0].mxu0
    %v5402 = vadd.f32 0.0, %v5401
    %v5403 = vpop.f32.mrb[0].mxu0
    %v5404 = vpop.f32.mrb[0].mxu0
    %5405 = vdwg.mxu0
    %v5406 = vadd.f32 %v5320, %v5359
    %v5407 = vadd.f32 %v5321, %v5361
    %v5408 = vadd.f32 %v5322, %v5400
    %v5409 = vadd.f32 %v5323, %v5402
    %v5410 = vmul.f32 %v5406, 0.5
    %v5411 = vtanh.pop %v5410
    %v5412 = vmul.f32 %v5411, 0.5
    %v5413 = vadd.f32 %v5412, 0.5
    %v5414 = vmul.f32 %v5407, 0.5
    %v5415 = vtanh.pop %v5414
    %v5416 = vmul.f32 %v5415, 0.5
    %v5417 = vadd.f32 %v5416, 0.5
    %v5418 = vtanh.pop %v5408
    %v5419 = vmul.f32 %v5409, 0.5
    %v5420 = vtanh.pop %v5419
    %v5421 = vmul.f32 %v5420, 0.5
    %v5422 = vadd.f32 %v5421, 0.5
    %v5423 = vmul.f32 %v5417, %v5214
    %v5424 = vmul.f32 %v5413, %v5418
    %v5425 = vadd.f32 %v5423, %v5424
    %v5426 = vtanh.pop %v5425
    %v5427 = vmul.f32 %v5422, %v5426
    %v5428 = vpack.c.bf16 %v5427, %v5427
    %v5429 = vpack.c.bf16 %v5318, %v5318
    %5430 = vmatprep.subr.bf16.mxu0 %v661
    %5431 = vmatpush1.bf16.msra.mxu0 %v660
    %5432 = vmatprep.subr.bf16.mxu0 %v665
    %5433 = vmatpush1.bf16.msra.mxu0 %v664
    %5434 = vmatprep.subr.bf16.mxu0 %v669
    %5435 = vmatpush1.bf16.msra.mxu0 %v668
    %5436 = vmatprep.subr.bf16.mxu0 %v673
    %5437 = vmatpush1.bf16.msra.mxu0 %v672
    %5438 = vmatprep.subr.bf16.mxu0 %v677
    %5439 = vmatpush1.bf16.msra.mxu0 %v676
    %5440 = vmatprep.subr.bf16.mxu0 %v681
    %5441 = vmatpush1.bf16.msra.mxu0 %v680
    %5442 = vmatprep.subr.bf16.mxu0 %v685
    %5443 = vmatpush1.bf16.msra.mxu0 %v684
    %5444 = vmatprep.subr.bf16.mxu0 %v689
    %5445 = vmatpush1.bf16.msra.mxu0 %v688
    %5446 = vmatprep.subr.bf16.mxu0 %v693
    %5447 = vmatpush1.bf16.msra.mxu0 %v692
    %5448 = vmatprep.subr.bf16.mxu0 %v697
    %5449 = vmatpush1.bf16.msra.mxu0 %v696
    %5450 = vmatprep.subr.bf16.mxu0 %v701
    %5451 = vmatpush1.bf16.msra.mxu0 %v700
    %5452 = vmatprep.subr.bf16.mxu0 %v705
    %5453 = vmatpush1.bf16.msra.mxu0 %v704
    %5454 = vmatprep.subr.bf16.mxu0 %v709
    %5455 = vmatpush1.bf16.msra.mxu0 %v708
    %5456 = vmatprep.subr.bf16.mxu0 %v713
    %5457 = vmatpush1.bf16.msra.mxu0 %v712
    %5458 = vmatprep.subr.bf16.mxu0 %v717
    %5459 = vmatpush1.bf16.msra.mxu0 %v716
    %5460 = vmatprep.subr.bf16.mxu0 %v721
    %5461 = vmatpush1.bf16.msra.mxu0 %v720
    %5462 = vmatprep.mubr.bf16.mxu0 %v5429
    %5463 = vmatmul.mubr.bf16.gmra.mrb[0].mxu0 %v5428
    %v5464 = vpop.f32.mrb[0].mxu0
    %v5465 = vadd.f32 %v181, %v5464
    %v5466 = vpop.f32.mrb[0].mxu0
    %v5467 = vadd.f32 %v185, %v5466
    %v5468 = vpop.f32.mrb[0].mxu0
    %v5469 = vpop.f32.mrb[0].mxu0
    %5470 = vdwg.mxu0
    %5471 = vmatprep.subr.bf16.mxu0 %v663
    %5472 = vmatpush1.bf16.msra.mxu0 %v662
    %5473 = vmatprep.subr.bf16.mxu0 %v667
    %5474 = vmatpush1.bf16.msra.mxu0 %v666
    %5475 = vmatprep.subr.bf16.mxu0 %v671
    %5476 = vmatpush1.bf16.msra.mxu0 %v670
    %5477 = vmatprep.subr.bf16.mxu0 %v675
    %5478 = vmatpush1.bf16.msra.mxu0 %v674
    %5479 = vmatprep.subr.bf16.mxu0 %v679
    %5480 = vmatpush1.bf16.msra.mxu0 %v678
    %5481 = vmatprep.subr.bf16.mxu0 %v683
    %5482 = vmatpush1.bf16.msra.mxu0 %v682
    %5483 = vmatprep.subr.bf16.mxu0 %v687
    %5484 = vmatpush1.bf16.msra.mxu0 %v686
    %5485 = vmatprep.subr.bf16.mxu0 %v691
    %5486 = vmatpush1.bf16.msra.mxu0 %v690
    %5487 = vmatprep.subr.bf16.mxu0 %v695
    %5488 = vmatpush1.bf16.msra.mxu0 %v694
    %5489 = vmatprep.subr.bf16.mxu0 %v699
    %5490 = vmatpush1.bf16.msra.mxu0 %v698
    %5491 = vmatprep.subr.bf16.mxu0 %v703
    %5492 = vmatpush1.bf16.msra.mxu0 %v702
    %5493 = vmatprep.subr.bf16.mxu0 %v707
    %5494 = vmatpush1.bf16.msra.mxu0 %v706
    %5495 = vmatprep.subr.bf16.mxu0 %v711
    %5496 = vmatpush1.bf16.msra.mxu0 %v710
    %5497 = vmatprep.subr.bf16.mxu0 %v715
    %5498 = vmatpush1.bf16.msra.mxu0 %v714
    %5499 = vmatprep.subr.bf16.mxu0 %v719
    %5500 = vmatpush1.bf16.msra.mxu0 %v718
    %5501 = vmatprep.subr.bf16.mxu0 %v723
    %5502 = vmatpush1.bf16.msra.mxu0 %v722
    %5503 = vmatprep.mubr.bf16.mxu0 %v5429
    %5504 = vmatmul.mubr.bf16.gmra.mrb[0].mxu0 %v5428
    %v5505 = vpop.f32.mrb[0].mxu0
    %v5506 = vadd.f32 %v189, %v5505
    %v5507 = vpop.f32.mrb[0].mxu0
    %v5508 = vadd.f32 %v193, %v5507
    %v5509 = vpop.f32.mrb[0].mxu0
    %v5510 = vpop.f32.mrb[0].mxu0
    %5511 = vdwg.mxu0
    %v5512 = vmul.f32 %v5465, 0.5
    %v5513 = vtanh.pop %v5512
    %v5514 = vmul.f32 %v5513, 0.5
    %v5515 = vadd.f32 %v5514, 0.5
    %v5516 = vmul.f32 %v5467, 0.5
    %v5517 = vtanh.pop %v5516
    %v5518 = vmul.f32 %v5517, 0.5
    %v5519 = vadd.f32 %v5518, 0.5
    %v5520 = vtanh.pop %v5506
    %v5521 = vmul.f32 %v5508, 0.5
    %v5522 = vtanh.pop %v5521
    %v5523 = vmul.f32 %v5522, 0.5
    %v5524 = vadd.f32 %v5523, 0.5
    %v5525 = vmul.f32 %v5519, %v5316
    %v5526 = vmul.f32 %v5515, %v5520
    %v5527 = vadd.f32 %v5525, %v5526
    %v5528 = vtanh.pop %v5527
    %v5529 = vmul.f32 %v5524, %v5528
    %s5530 = scalar_lea.vmem [#allocation2], 736
    %v5531 = vld [vmem:[%s5530] sm:$0xff]
    %v5532 = vld [vmem:[%s5530 + $0x8] sm:$0xff]
    %v5533 = vld [vmem:[%s5530 + $0x10] sm:$0xff]
    %v5534 = vld [vmem:[%s5530 + $0x18] sm:$0xff]
    %5535 = vmatprep.subr.bf16.mxu0 %v299
    %5536 = vmatpush1.bf16.msra.mxu0 %v298
    %5537 = vmatprep.subr.bf16.mxu0 %v303
    %5538 = vmatpush1.bf16.msra.mxu0 %v302
    %5539 = vmatprep.subr.bf16.mxu0 %v307
    %5540 = vmatpush1.bf16.msra.mxu0 %v306
    %5541 = vmatprep.subr.bf16.mxu0 %v311
    %5542 = vmatpush1.bf16.msra.mxu0 %v310
    %5543 = vmatprep.subr.bf16.mxu0 %v315
    %5544 = vmatpush1.bf16.msra.mxu0 %v314
    %5545 = vmatprep.subr.bf16.mxu0 %v319
    %5546 = vmatpush1.bf16.msra.mxu0 %v318
    %5547 = vmatprep.subr.bf16.mxu0 %v323
    %5548 = vmatpush1.bf16.msra.mxu0 %v322
    %5549 = vmatprep.subr.bf16.mxu0 %v327
    %5550 = vmatpush1.bf16.msra.mxu0 %v326
    %5551 = vmatprep.subr.bf16.mxu0 0
    %5552 = vmatpush1.bf16.msra.mxu0 0
    %5553 = vmatprep.subr.bf16.mxu0 0
    %5554 = vmatpush1.bf16.msra.mxu0 0
    %5555 = vmatprep.subr.bf16.mxu0 0
    %5556 = vmatpush1.bf16.msra.mxu0 0
    %5557 = vmatprep.subr.bf16.mxu0 0
    %5558 = vmatpush1.bf16.msra.mxu0 0
    %5559 = vmatprep.subr.bf16.mxu0 0
    %5560 = vmatpush1.bf16.msra.mxu0 0
    %5561 = vmatprep.subr.bf16.mxu0 0
    %5562 = vmatpush1.bf16.msra.mxu0 0
    %5563 = vmatprep.subr.bf16.mxu0 0
    %5564 = vmatpush1.bf16.msra.mxu0 0
    %5565 = vmatprep.subr.bf16.mxu0 0
    %5566 = vmatpush1.bf16.msra.mxu0 0
    %5567 = vmatprep.mubr.bf16.mxu0 0
    %5568 = vmatmul.mubr.bf16.gmra.mrb[0].mxu0 %v5428
    %v5569 = vpop.f32.mrb[0].mxu0
    %v5570 = vadd.f32 0.0, %v5569
    %v5571 = vpop.f32.mrb[0].mxu0
    %v5572 = vadd.f32 0.0, %v5571
    %v5573 = vpop.f32.mrb[0].mxu0
    %v5574 = vpop.f32.mrb[0].mxu0
    %5575 = vdwg.mxu0
    %5576 = vmatprep.subr.bf16.mxu0 %v301
    %5577 = vmatpush1.bf16.msra.mxu0 %v300
    %5578 = vmatprep.subr.bf16.mxu0 %v305
    %5579 = vmatpush1.bf16.msra.mxu0 %v304
    %5580 = vmatprep.subr.bf16.mxu0 %v309
    %5581 = vmatpush1.bf16.msra.mxu0 %v308
    %5582 = vmatprep.subr.bf16.mxu0 %v313
    %5583 = vmatpush1.bf16.msra.mxu0 %v312
    %5584 = vmatprep.subr.bf16.mxu0 %v317
    %5585 = vmatpush1.bf16.msra.mxu0 %v316
    %5586 = vmatprep.subr.bf16.mxu0 %v321
    %5587 = vmatpush1.bf16.msra.mxu0 %v320
    %5588 = vmatprep.subr.bf16.mxu0 %v325
    %5589 = vmatpush1.bf16.msra.mxu0 %v324
    %5590 = vmatprep.subr.bf16.mxu0 %v329
    %5591 = vmatpush1.bf16.msra.mxu0 %v328
    %5592 = vmatprep.subr.bf16.mxu0 0
    %5593 = vmatpush1.bf16.msra.mxu0 0
    %5594 = vmatprep.subr.bf16.mxu0 0
    %5595 = vmatpush1.bf16.msra.mxu0 0
    %5596 = vmatprep.subr.bf16.mxu0 0
    %5597 = vmatpush1.bf16.msra.mxu0 0
    %5598 = vmatprep.subr.bf16.mxu0 0
    %5599 = vmatpush1.bf16.msra.mxu0 0
    %5600 = vmatprep.subr.bf16.mxu0 0
    %5601 = vmatpush1.bf16.msra.mxu0 0
    %5602 = vmatprep.subr.bf16.mxu0 0
    %5603 = vmatpush1.bf16.msra.mxu0 0
    %5604 = vmatprep.subr.bf16.mxu0 0
    %5605 = vmatpush1.bf16.msra.mxu0 0
    %5606 = vmatprep.subr.bf16.mxu0 0
    %5607 = vmatpush1.bf16.msra.mxu0 0
    %5608 = vmatprep.mubr.bf16.mxu0 0
    %5609 = vmatmul.mubr.bf16.gmra.mrb[0].mxu0 %v5428
    %v5610 = vpop.f32.mrb[0].mxu0
    %v5611 = vadd.f32 0.0, %v5610
    %v5612 = vpop.f32.mrb[0].mxu0
    %v5613 = vadd.f32 0.0, %v5612
    %v5614 = vpop.f32.mrb[0].mxu0
    %v5615 = vpop.f32.mrb[0].mxu0
    %5616 = vdwg.mxu0
    %v5617 = vadd.f32 %v5531, %v5570
    %v5618 = vadd.f32 %v5532, %v5572
    %v5619 = vadd.f32 %v5533, %v5611
    %v5620 = vadd.f32 %v5534, %v5613
    %v5621 = vmul.f32 %v5617, 0.5
    %v5622 = vtanh.pop %v5621
    %v5623 = vmul.f32 %v5622, 0.5
    %v5624 = vadd.f32 %v5623, 0.5
    %v5625 = vmul.f32 %v5618, 0.5
    %v5626 = vtanh.pop %v5625
    %v5627 = vmul.f32 %v5626, 0.5
    %v5628 = vadd.f32 %v5627, 0.5
    %v5629 = vtanh.pop %v5619
    %v5630 = vmul.f32 %v5620, 0.5
    %v5631 = vtanh.pop %v5630
    %v5632 = vmul.f32 %v5631, 0.5
    %v5633 = vadd.f32 %v5632, 0.5
    %v5634 = vmul.f32 %v5628, %v5425
    %v5635 = vmul.f32 %v5624, %v5629
    %v5636 = vadd.f32 %v5634, %v5635
    %v5637 = vtanh.pop %v5636
    %v5638 = vmul.f32 %v5633, %v5637
    %v5639 = vpack.c.bf16 %v5638, %v5638
    %v5640 = vpack.c.bf16 %v5529, %v5529
    %5641 = vmatprep.subr.bf16.mxu0 %v661
    %5642 = vmatpush1.bf16.msra.mxu0 %v660
    %5643 = vmatprep.subr.bf16.mxu0 %v665
    %5644 = vmatpush1.bf16.msra.mxu0 %v664
    %5645 = vmatprep.subr.bf16.mxu0 %v669
    %5646 = vmatpush1.bf16.msra.mxu0 %v668
    %5647 = vmatprep.subr.bf16.mxu0 %v673
    %5648 = vmatpush1.bf16.msra.mxu0 %v672
    %5649 = vmatprep.subr.bf16.mxu0 %v677
    %5650 = vmatpush1.bf16.msra.mxu0 %v676
    %5651 = vmatprep.subr.bf16.mxu0 %v681
    %5652 = vmatpush1.bf16.msra.mxu0 %v680
    %5653 = vmatprep.subr.bf16.mxu0 %v685
    %5654 = vmatpush1.bf16.msra.mxu0 %v684
    %5655 = vmatprep.subr.bf16.mxu0 %v689
    %5656 = vmatpush1.bf16.msra.mxu0 %v688
    %5657 = vmatprep.subr.bf16.mxu0 %v693
    %5658 = vmatpush1.bf16.msra.mxu0 %v692
    %5659 = vmatprep.subr.bf16.mxu0 %v697
    %5660 = vmatpush1.bf16.msra.mxu0 %v696
    %5661 = vmatprep.subr.bf16.mxu0 %v701
    %5662 = vmatpush1.bf16.msra.mxu0 %v700
    %5663 = vmatprep.subr.bf16.mxu0 %v705
    %5664 = vmatpush1.bf16.msra.mxu0 %v704
    %5665 = vmatprep.subr.bf16.mxu0 %v709
    %5666 = vmatpush1.bf16.msra.mxu0 %v708
    %5667 = vmatprep.subr.bf16.mxu0 %v713
    %5668 = vmatpush1.bf16.msra.mxu0 %v712
    %5669 = vmatprep.subr.bf16.mxu0 %v717
    %5670 = vmatpush1.bf16.msra.mxu0 %v716
    %5671 = vmatprep.subr.bf16.mxu0 %v721
    %5672 = vmatpush1.bf16.msra.mxu0 %v720
    %5673 = vmatprep.mubr.bf16.mxu0 %v5640
    %5674 = vmatmul.mubr.bf16.gmra.mrb[0].mxu0 %v5639
    %v5675 = vpop.f32.mrb[0].mxu0
    %v5676 = vadd.f32 %v181, %v5675
    %v5677 = vpop.f32.mrb[0].mxu0
    %v5678 = vadd.f32 %v185, %v5677
    %v5679 = vpop.f32.mrb[0].mxu0
    %v5680 = vpop.f32.mrb[0].mxu0
    %5681 = vdwg.mxu0
    %5682 = vmatprep.subr.bf16.mxu0 %v663
    %5683 = vmatpush1.bf16.msra.mxu0 %v662
    %5684 = vmatprep.subr.bf16.mxu0 %v667
    %5685 = vmatpush1.bf16.msra.mxu0 %v666
    %5686 = vmatprep.subr.bf16.mxu0 %v671
    %5687 = vmatpush1.bf16.msra.mxu0 %v670
    %5688 = vmatprep.subr.bf16.mxu0 %v675
    %5689 = vmatpush1.bf16.msra.mxu0 %v674
    %5690 = vmatprep.subr.bf16.mxu0 %v679
    %5691 = vmatpush1.bf16.msra.mxu0 %v678
    %5692 = vmatprep.subr.bf16.mxu0 %v683
    %5693 = vmatpush1.bf16.msra.mxu0 %v682
    %5694 = vmatprep.subr.bf16.mxu0 %v687
    %5695 = vmatpush1.bf16.msra.mxu0 %v686
    %5696 = vmatprep.subr.bf16.mxu0 %v691
    %5697 = vmatpush1.bf16.msra.mxu0 %v690
    %5698 = vmatprep.subr.bf16.mxu0 %v695
    %5699 = vmatpush1.bf16.msra.mxu0 %v694
    %5700 = vmatprep.subr.bf16.mxu0 %v699
    %5701 = vmatpush1.bf16.msra.mxu0 %v698
    %5702 = vmatprep.subr.bf16.mxu0 %v703
    %5703 = vmatpush1.bf16.msra.mxu0 %v702
    %5704 = vmatprep.subr.bf16.mxu0 %v707
    %5705 = vmatpush1.bf16.msra.mxu0 %v706
    %5706 = vmatprep.subr.bf16.mxu0 %v711
    %5707 = vmatpush1.bf16.msra.mxu0 %v710
    %5708 = vmatprep.subr.bf16.mxu0 %v715
    %5709 = vmatpush1.bf16.msra.mxu0 %v714
    %5710 = vmatprep.subr.bf16.mxu0 %v719
    %5711 = vmatpush1.bf16.msra.mxu0 %v718
    %5712 = vmatprep.subr.bf16.mxu0 %v723
    %5713 = vmatpush1.bf16.msra.mxu0 %v722
    %5714 = vmatprep.mubr.bf16.mxu0 %v5640
    %5715 = vmatmul.mubr.bf16.gmra.mrb[0].mxu0 %v5639
    %v5716 = vpop.f32.mrb[0].mxu0
    %v5717 = vadd.f32 %v189, %v5716
    %v5718 = vpop.f32.mrb[0].mxu0
    %v5719 = vadd.f32 %v193, %v5718
    %v5720 = vpop.f32.mrb[0].mxu0
    %v5721 = vpop.f32.mrb[0].mxu0
    %5722 = vdwg.mxu0
    %v5723 = vmul.f32 %v5676, 0.5
    %v5724 = vtanh.pop %v5723
    %v5725 = vmul.f32 %v5724, 0.5
    %v5726 = vadd.f32 %v5725, 0.5
    %v5727 = vmul.f32 %v5678, 0.5
    %v5728 = vtanh.pop %v5727
    %v5729 = vmul.f32 %v5728, 0.5
    %v5730 = vadd.f32 %v5729, 0.5
    %v5731 = vtanh.pop %v5717
    %v5732 = vmul.f32 %v5719, 0.5
    %v5733 = vtanh.pop %v5732
    %v5734 = vmul.f32 %v5733, 0.5
    %v5735 = vadd.f32 %v5734, 0.5
    %v5736 = vmul.f32 %v5730, %v5527
    %v5737 = vmul.f32 %v5726, %v5731
    %v5738 = vadd.f32 %v5736, %v5737
    %v5739 = vtanh.pop %v5738
    %v5740 = vmul.f32 %v5735, %v5739
    %s5741 = scalar_lea.vmem [#allocation2], 768
    %v5742 = vld [vmem:[%s5741] sm:$0xff]
    %v5743 = vld [vmem:[%s5741 + $0x8] sm:$0xff]
    %v5744 = vld [vmem:[%s5741 + $0x10] sm:$0xff]
    %v5745 = vld [vmem:[%s5741 + $0x18] sm:$0xff]
    %5746 = vmatprep.subr.bf16.mxu0 %v299
    %5747 = vmatpush1.bf16.msra.mxu0 %v298
    %5748 = vmatprep.subr.bf16.mxu0 %v303
    %5749 = vmatpush1.bf16.msra.mxu0 %v302
    %5750 = vmatprep.subr.bf16.mxu0 %v307
    %5751 = vmatpush1.bf16.msra.mxu0 %v306
    %5752 = vmatprep.subr.bf16.mxu0 %v311
    %5753 = vmatpush1.bf16.msra.mxu0 %v310
    %5754 = vmatprep.subr.bf16.mxu0 %v315
    %5755 = vmatpush1.bf16.msra.mxu0 %v314
    %5756 = vmatprep.subr.bf16.mxu0 %v319
    %5757 = vmatpush1.bf16.msra.mxu0 %v318
    %5758 = vmatprep.subr.bf16.mxu0 %v323
    %5759 = vmatpush1.bf16.msra.mxu0 %v322
    %5760 = vmatprep.subr.bf16.mxu0 %v327
    %5761 = vmatpush1.bf16.msra.mxu0 %v326
    %5762 = vmatprep.subr.bf16.mxu0 0
    %5763 = vmatpush1.bf16.msra.mxu0 0
    %5764 = vmatprep.subr.bf16.mxu0 0
    %5765 = vmatpush1.bf16.msra.mxu0 0
    %5766 = vmatprep.subr.bf16.mxu0 0
    %5767 = vmatpush1.bf16.msra.mxu0 0
    %5768 = vmatprep.subr.bf16.mxu0 0
    %5769 = vmatpush1.bf16.msra.mxu0 0
    %5770 = vmatprep.subr.bf16.mxu0 0
    %5771 = vmatpush1.bf16.msra.mxu0 0
    %5772 = vmatprep.subr.bf16.mxu0 0
    %5773 = vmatpush1.bf16.msra.mxu0 0
    %5774 = vmatprep.subr.bf16.mxu0 0
    %5775 = vmatpush1.bf16.msra.mxu0 0
    %5776 = vmatprep.subr.bf16.mxu0 0
    %5777 = vmatpush1.bf16.msra.mxu0 0
    %5778 = vmatprep.mubr.bf16.mxu0 0
    %5779 = vmatmul.mubr.bf16.gmra.mrb[0].mxu0 %v5639
    %v5780 = vpop.f32.mrb[0].mxu0
    %v5781 = vadd.f32 0.0, %v5780
    %v5782 = vpop.f32.mrb[0].mxu0
    %v5783 = vadd.f32 0.0, %v5782
    %v5784 = vpop.f32.mrb[0].mxu0
    %v5785 = vpop.f32.mrb[0].mxu0
    %5786 = vdwg.mxu0
    %5787 = vmatprep.subr.bf16.mxu0 %v301
    %5788 = vmatpush1.bf16.msra.mxu0 %v300
    %5789 = vmatprep.subr.bf16.mxu0 %v305
    %5790 = vmatpush1.bf16.msra.mxu0 %v304
    %5791 = vmatprep.subr.bf16.mxu0 %v309
    %5792 = vmatpush1.bf16.msra.mxu0 %v308
    %5793 = vmatprep.subr.bf16.mxu0 %v313
    %5794 = vmatpush1.bf16.msra.mxu0 %v312
    %5795 = vmatprep.subr.bf16.mxu0 %v317
    %5796 = vmatpush1.bf16.msra.mxu0 %v316
    %5797 = vmatprep.subr.bf16.mxu0 %v321
    %5798 = vmatpush1.bf16.msra.mxu0 %v320
    %5799 = vmatprep.subr.bf16.mxu0 %v325
    %5800 = vmatpush1.bf16.msra.mxu0 %v324
    %5801 = vmatprep.subr.bf16.mxu0 %v329
    %5802 = vmatpush1.bf16.msra.mxu0 %v328
    %5803 = vmatprep.subr.bf16.mxu0 0
    %5804 = vmatpush1.bf16.msra.mxu0 0
    %5805 = vmatprep.subr.bf16.mxu0 0
    %5806 = vmatpush1.bf16.msra.mxu0 0
    %5807 = vmatprep.subr.bf16.mxu0 0
    %5808 = vmatpush1.bf16.msra.mxu0 0
    %5809 = vmatprep.subr.bf16.mxu0 0
    %5810 = vmatpush1.bf16.msra.mxu0 0
    %5811 = vmatprep.subr.bf16.mxu0 0
    %5812 = vmatpush1.bf16.msra.mxu0 0
    %5813 = vmatprep.subr.bf16.mxu0 0
    %5814 = vmatpush1.bf16.msra.mxu0 0
    %5815 = vmatprep.subr.bf16.mxu0 0
    %5816 = vmatpush1.bf16.msra.mxu0 0
    %5817 = vmatprep.subr.bf16.mxu0 0
    %5818 = vmatpush1.bf16.msra.mxu0 0
    %5819 = vmatprep.mubr.bf16.mxu0 0
    %5820 = vmatmul.mubr.bf16.gmra.mrb[0].mxu0 %v5639
    %v5821 = vpop.f32.mrb[0].mxu0
    %v5822 = vadd.f32 0.0, %v5821
    %v5823 = vpop.f32.mrb[0].mxu0
    %v5824 = vadd.f32 0.0, %v5823
    %v5825 = vpop.f32.mrb[0].mxu0
    %v5826 = vpop.f32.mrb[0].mxu0
    %5827 = vdwg.mxu0
    %v5828 = vadd.f32 %v5742, %v5781
    %v5829 = vadd.f32 %v5743, %v5783
    %v5830 = vadd.f32 %v5744, %v5822
    %v5831 = vadd.f32 %v5745, %v5824
    %v5832 = vmul.f32 %v5828, 0.5
    %v5833 = vtanh.pop %v5832
    %v5834 = vmul.f32 %v5833, 0.5
    %v5835 = vadd.f32 %v5834, 0.5
    %v5836 = vmul.f32 %v5829, 0.5
    %v5837 = vtanh.pop %v5836
    %v5838 = vmul.f32 %v5837, 0.5
    %v5839 = vadd.f32 %v5838, 0.5
    %v5840 = vtanh.pop %v5830
    %v5841 = vmul.f32 %v5831, 0.5
    %v5842 = vtanh.pop %v5841
    %v5843 = vmul.f32 %v5842, 0.5
    %v5844 = vadd.f32 %v5843, 0.5
    %v5845 = vmul.f32 %v5839, %v5636
    %v5846 = vmul.f32 %v5835, %v5840
    %v5847 = vadd.f32 %v5845, %v5846
    %v5848 = vtanh.pop %v5847
    %v5849 = vmul.f32 %v5844, %v5848
    %v5850 = vpack.c.bf16 %v5849, %v5849
    %v5851 = vpack.c.bf16 %v5740, %v5740
    %5852 = vmatprep.subr.bf16.mxu0 %v661
    %5853 = vmatpush1.bf16.msra.mxu0 %v660
    %5854 = vmatprep.subr.bf16.mxu0 %v665
    %5855 = vmatpush1.bf16.msra.mxu0 %v664
    %5856 = vmatprep.subr.bf16.mxu0 %v669
    %5857 = vmatpush1.bf16.msra.mxu0 %v668
    %5858 = vmatprep.subr.bf16.mxu0 %v673
    %5859 = vmatpush1.bf16.msra.mxu0 %v672
    %5860 = vmatprep.subr.bf16.mxu0 %v677
    %5861 = vmatpush1.bf16.msra.mxu0 %v676
    %5862 = vmatprep.subr.bf16.mxu0 %v681
    %5863 = vmatpush1.bf16.msra.mxu0 %v680
    %5864 = vmatprep.subr.bf16.mxu0 %v685
    %5865 = vmatpush1.bf16.msra.mxu0 %v684
    %5866 = vmatprep.subr.bf16.mxu0 %v689
    %5867 = vmatpush1.bf16.msra.mxu0 %v688
    %5868 = vmatprep.subr.bf16.mxu0 %v693
    %5869 = vmatpush1.bf16.msra.mxu0 %v692
    %5870 = vmatprep.subr.bf16.mxu0 %v697
    %5871 = vmatpush1.bf16.msra.mxu0 %v696
    %5872 = vmatprep.subr.bf16.mxu0 %v701
    %5873 = vmatpush1.bf16.msra.mxu0 %v700
    %5874 = vmatprep.subr.bf16.mxu0 %v705
    %5875 = vmatpush1.bf16.msra.mxu0 %v704
    %5876 = vmatprep.subr.bf16.mxu0 %v709
    %5877 = vmatpush1.bf16.msra.mxu0 %v708
    %5878 = vmatprep.subr.bf16.mxu0 %v713
    %5879 = vmatpush1.bf16.msra.mxu0 %v712
    %5880 = vmatprep.subr.bf16.mxu0 %v717
    %5881 = vmatpush1.bf16.msra.mxu0 %v716
    %5882 = vmatprep.subr.bf16.mxu0 %v721
    %5883 = vmatpush1.bf16.msra.mxu0 %v720
    %5884 = vmatprep.mubr.bf16.mxu0 %v5851
    %5885 = vmatmul.mubr.bf16.gmra.mrb[0].mxu0 %v5850
    %v5886 = vpop.f32.mrb[0].mxu0
    %v5887 = vadd.f32 %v181, %v5886
    %v5888 = vpop.f32.mrb[0].mxu0
    %v5889 = vadd.f32 %v185, %v5888
    %v5890 = vpop.f32.mrb[0].mxu0
    %v5891 = vpop.f32.mrb[0].mxu0
    %5892 = vdwg.mxu0
    %5893 = vmatprep.subr.bf16.mxu0 %v663
    %5894 = vmatpush1.bf16.msra.mxu0 %v662
    %5895 = vmatprep.subr.bf16.mxu0 %v667
    %5896 = vmatpush1.bf16.msra.mxu0 %v666
    %5897 = vmatprep.subr.bf16.mxu0 %v671
    %5898 = vmatpush1.bf16.msra.mxu0 %v670
    %5899 = vmatprep.subr.bf16.mxu0 %v675
    %5900 = vmatpush1.bf16.msra.mxu0 %v674
    %5901 = vmatprep.subr.bf16.mxu0 %v679
    %5902 = vmatpush1.bf16.msra.mxu0 %v678
    %5903 = vmatprep.subr.bf16.mxu0 %v683
    %5904 = vmatpush1.bf16.msra.mxu0 %v682
    %5905 = vmatprep.subr.bf16.mxu0 %v687
    %5906 = vmatpush1.bf16.msra.mxu0 %v686
    %5907 = vmatprep.subr.bf16.mxu0 %v691
    %5908 = vmatpush1.bf16.msra.mxu0 %v690
    %5909 = vmatprep.subr.bf16.mxu0 %v695
    %5910 = vmatpush1.bf16.msra.mxu0 %v694
    %5911 = vmatprep.subr.bf16.mxu0 %v699
    %5912 = vmatpush1.bf16.msra.mxu0 %v698
    %5913 = vmatprep.subr.bf16.mxu0 %v703
    %5914 = vmatpush1.bf16.msra.mxu0 %v702
    %5915 = vmatprep.subr.bf16.mxu0 %v707
    %5916 = vmatpush1.bf16.msra.mxu0 %v706
    %5917 = vmatprep.subr.bf16.mxu0 %v711
    %5918 = vmatpush1.bf16.msra.mxu0 %v710
    %5919 = vmatprep.subr.bf16.mxu0 %v715
    %5920 = vmatpush1.bf16.msra.mxu0 %v714
    %5921 = vmatprep.subr.bf16.mxu0 %v719
    %5922 = vmatpush1.bf16.msra.mxu0 %v718
    %5923 = vmatprep.subr.bf16.mxu0 %v723
    %5924 = vmatpush1.bf16.msra.mxu0 %v722
    %5925 = vmatprep.mubr.bf16.mxu0 %v5851
    %5926 = vmatmul.mubr.bf16.gmra.mrb[0].mxu0 %v5850
    %v5927 = vpop.f32.mrb[0].mxu0
    %v5928 = vadd.f32 %v189, %v5927
    %v5929 = vpop.f32.mrb[0].mxu0
    %v5930 = vadd.f32 %v193, %v5929
    %v5931 = vpop.f32.mrb[0].mxu0
    %v5932 = vpop.f32.mrb[0].mxu0
    %5933 = vdwg.mxu0
    %v5934 = vmul.f32 %v5887, 0.5
    %v5935 = vtanh.pop %v5934
    %v5936 = vmul.f32 %v5935, 0.5
    %v5937 = vadd.f32 %v5936, 0.5
    %v5938 = vmul.f32 %v5889, 0.5
    %v5939 = vtanh.pop %v5938
    %v5940 = vmul.f32 %v5939, 0.5
    %v5941 = vadd.f32 %v5940, 0.5
    %v5942 = vtanh.pop %v5928
    %v5943 = vmul.f32 %v5930, 0.5
    %v5944 = vtanh.pop %v5943
    %v5945 = vmul.f32 %v5944, 0.5
    %v5946 = vadd.f32 %v5945, 0.5
    %v5947 = vmul.f32 %v5941, %v5738
    %v5948 = vmul.f32 %v5937, %v5942
    %v5949 = vadd.f32 %v5947, %v5948
    %v5950 = vtanh.pop %v5949
    %v5951 = vmul.f32 %v5946, %v5950
    %s5952 = scalar_lea.vmem [#allocation2], 800
    %v5953 = vld [vmem:[%s5952] sm:$0xff]
    %v5954 = vld [vmem:[%s5952 + $0x8] sm:$0xff]
    %v5955 = vld [vmem:[%s5952 + $0x10] sm:$0xff]
    %v5956 = vld [vmem:[%s5952 + $0x18] sm:$0xff]
    %5957 = vmatprep.subr.bf16.mxu0 %v299
    %5958 = vmatpush1.bf16.msra.mxu0 %v298
    %5959 = vmatprep.subr.bf16.mxu0 %v303
    %5960 = vmatpush1.bf16.msra.mxu0 %v302
    %5961 = vmatprep.subr.bf16.mxu0 %v307
    %5962 = vmatpush1.bf16.msra.mxu0 %v306
    %5963 = vmatprep.subr.bf16.mxu0 %v311
    %5964 = vmatpush1.bf16.msra.mxu0 %v310
    %5965 = vmatprep.subr.bf16.mxu0 %v315
    %5966 = vmatpush1.bf16.msra.mxu0 %v314
    %5967 = vmatprep.subr.bf16.mxu0 %v319
    %5968 = vmatpush1.bf16.msra.mxu0 %v318
    %5969 = vmatprep.subr.bf16.mxu0 %v323
    %5970 = vmatpush1.bf16.msra.mxu0 %v322
    %5971 = vmatprep.subr.bf16.mxu0 %v327
    %5972 = vmatpush1.bf16.msra.mxu0 %v326
    %5973 = vmatprep.subr.bf16.mxu0 0
    %5974 = vmatpush1.bf16.msra.mxu0 0
    %5975 = vmatprep.subr.bf16.mxu0 0
    %5976 = vmatpush1.bf16.msra.mxu0 0
    %5977 = vmatprep.subr.bf16.mxu0 0
    %5978 = vmatpush1.bf16.msra.mxu0 0
    %5979 = vmatprep.subr.bf16.mxu0 0
    %5980 = vmatpush1.bf16.msra.mxu0 0
    %5981 = vmatprep.subr.bf16.mxu0 0
    %5982 = vmatpush1.bf16.msra.mxu0 0
    %5983 = vmatprep.subr.bf16.mxu0 0
    %5984 = vmatpush1.bf16.msra.mxu0 0
    %5985 = vmatprep.subr.bf16.mxu0 0
    %5986 = vmatpush1.bf16.msra.mxu0 0
    %5987 = vmatprep.subr.bf16.mxu0 0
    %5988 = vmatpush1.bf16.msra.mxu0 0
    %5989 = vmatprep.mubr.bf16.mxu0 0
    %5990 = vmatmul.mubr.bf16.gmra.mrb[0].mxu0 %v5850
    %v5991 = vpop.f32.mrb[0].mxu0
    %v5992 = vadd.f32 0.0, %v5991
    %v5993 = vpop.f32.mrb[0].mxu0
    %v5994 = vadd.f32 0.0, %v5993
    %v5995 = vpop.f32.mrb[0].mxu0
    %v5996 = vpop.f32.mrb[0].mxu0
    %5997 = vdwg.mxu0
    %5998 = vmatprep.subr.bf16.mxu0 %v301
    %5999 = vmatpush1.bf16.msra.mxu0 %v300
    %6000 = vmatprep.subr.bf16.mxu0 %v305
    %6001 = vmatpush1.bf16.msra.mxu0 %v304
    %6002 = vmatprep.subr.bf16.mxu0 %v309
    %6003 = vmatpush1.bf16.msra.mxu0 %v308
    %6004 = vmatprep.subr.bf16.mxu0 %v313
    %6005 = vmatpush1.bf16.msra.mxu0 %v312
    %6006 = vmatprep.subr.bf16.mxu0 %v317
    %6007 = vmatpush1.bf16.msra.mxu0 %v316
    %6008 = vmatprep.subr.bf16.mxu0 %v321
    %6009 = vmatpush1.bf16.msra.mxu0 %v320
    %6010 = vmatprep.subr.bf16.mxu0 %v325
    %6011 = vmatpush1.bf16.msra.mxu0 %v324
    %6012 = vmatprep.subr.bf16.mxu0 %v329
    %6013 = vmatpush1.bf16.msra.mxu0 %v328
    %6014 = vmatprep.subr.bf16.mxu0 0
    %6015 = vmatpush1.bf16.msra.mxu0 0
    %6016 = vmatprep.subr.bf16.mxu0 0
    %6017 = vmatpush1.bf16.msra.mxu0 0
    %6018 = vmatprep.subr.bf16.mxu0 0
    %6019 = vmatpush1.bf16.msra.mxu0 0
    %6020 = vmatprep.subr.bf16.mxu0 0
    %6021 = vmatpush1.bf16.msra.mxu0 0
    %6022 = vmatprep.subr.bf16.mxu0 0
    %6023 = vmatpush1.bf16.msra.mxu0 0
    %6024 = vmatprep.subr.bf16.mxu0 0
    %6025 = vmatpush1.bf16.msra.mxu0 0
    %6026 = vmatprep.subr.bf16.mxu0 0
    %6027 = vmatpush1.bf16.msra.mxu0 0
    %6028 = vmatprep.subr.bf16.mxu0 0
    %6029 = vmatpush1.bf16.msra.mxu0 0
    %6030 = vmatprep.mubr.bf16.mxu0 0
    %6031 = vmatmul.mubr.bf16.gmra.mrb[0].mxu0 %v5850
    %v6032 = vpop.f32.mrb[0].mxu0
    %v6033 = vadd.f32 0.0, %v6032
    %v6034 = vpop.f32.mrb[0].mxu0
    %v6035 = vadd.f32 0.0, %v6034
    %v6036 = vpop.f32.mrb[0].mxu0
    %v6037 = vpop.f32.mrb[0].mxu0
    %6038 = vdwg.mxu0
    %v6039 = vadd.f32 %v5953, %v5992
    %v6040 = vadd.f32 %v5954, %v5994
    %v6041 = vadd.f32 %v5955, %v6033
    %v6042 = vadd.f32 %v5956, %v6035
    %v6043 = vmul.f32 %v6039, 0.5
    %v6044 = vtanh.pop %v6043
    %v6045 = vmul.f32 %v6044, 0.5
    %v6046 = vadd.f32 %v6045, 0.5
    %v6047 = vmul.f32 %v6040, 0.5
    %v6048 = vtanh.pop %v6047
    %v6049 = vmul.f32 %v6048, 0.5
    %v6050 = vadd.f32 %v6049, 0.5
    %v6051 = vtanh.pop %v6041
    %v6052 = vmul.f32 %v6042, 0.5
    %v6053 = vtanh.pop %v6052
    %v6054 = vmul.f32 %v6053, 0.5
    %v6055 = vadd.f32 %v6054, 0.5
    %v6056 = vmul.f32 %v6050, %v5847
    %v6057 = vmul.f32 %v6046, %v6051
    %v6058 = vadd.f32 %v6056, %v6057
    %v6059 = vtanh.pop %v6058
    %v6060 = vmul.f32 %v6055, %v6059
    %v6061 = vpack.c.bf16 %v6060, %v6060
    %v6062 = vpack.c.bf16 %v5951, %v5951
    %6063 = vmatprep.subr.bf16.mxu0 %v661
    %6064 = vmatpush1.bf16.msra.mxu0 %v660
    %6065 = vmatprep.subr.bf16.mxu0 %v665
    %6066 = vmatpush1.bf16.msra.mxu0 %v664
    %6067 = vmatprep.subr.bf16.mxu0 %v669
    %6068 = vmatpush1.bf16.msra.mxu0 %v668
    %6069 = vmatprep.subr.bf16.mxu0 %v673
    %6070 = vmatpush1.bf16.msra.mxu0 %v672
    %6071 = vmatprep.subr.bf16.mxu0 %v677
    %6072 = vmatpush1.bf16.msra.mxu0 %v676
    %6073 = vmatprep.subr.bf16.mxu0 %v681
    %6074 = vmatpush1.bf16.msra.mxu0 %v680
    %6075 = vmatprep.subr.bf16.mxu0 %v685
    %6076 = vmatpush1.bf16.msra.mxu0 %v684
    %6077 = vmatprep.subr.bf16.mxu0 %v689
    %6078 = vmatpush1.bf16.msra.mxu0 %v688
    %6079 = vmatprep.subr.bf16.mxu0 %v693
    %6080 = vmatpush1.bf16.msra.mxu0 %v692
    %6081 = vmatprep.subr.bf16.mxu0 %v697
    %6082 = vmatpush1.bf16.msra.mxu0 %v696
    %6083 = vmatprep.subr.bf16.mxu0 %v701
    %6084 = vmatpush1.bf16.msra.mxu0 %v700
    %6085 = vmatprep.subr.bf16.mxu0 %v705
    %6086 = vmatpush1.bf16.msra.mxu0 %v704
    %6087 = vmatprep.subr.bf16.mxu0 %v709
    %6088 = vmatpush1.bf16.msra.mxu0 %v708
    %6089 = vmatprep.subr.bf16.mxu0 %v713
    %6090 = vmatpush1.bf16.msra.mxu0 %v712
    %6091 = vmatprep.subr.bf16.mxu0 %v717
    %6092 = vmatpush1.bf16.msra.mxu0 %v716
    %6093 = vmatprep.subr.bf16.mxu0 %v721
    %6094 = vmatpush1.bf16.msra.mxu0 %v720
    %6095 = vmatprep.mubr.bf16.mxu0 %v6062
    %6096 = vmatmul.mubr.bf16.gmra.mrb[0].mxu0 %v6061
    %v6097 = vpop.f32.mrb[0].mxu0
    %v6098 = vadd.f32 %v181, %v6097
    %v6099 = vpop.f32.mrb[0].mxu0
    %v6100 = vadd.f32 %v185, %v6099
    %v6101 = vpop.f32.mrb[0].mxu0
    %v6102 = vpop.f32.mrb[0].mxu0
    %6103 = vdwg.mxu0
    %6104 = vmatprep.subr.bf16.mxu0 %v663
    %6105 = vmatpush1.bf16.msra.mxu0 %v662
    %6106 = vmatprep.subr.bf16.mxu0 %v667
    %6107 = vmatpush1.bf16.msra.mxu0 %v666
    %6108 = vmatprep.subr.bf16.mxu0 %v671
    %6109 = vmatpush1.bf16.msra.mxu0 %v670
    %6110 = vmatprep.subr.bf16.mxu0 %v675
    %6111 = vmatpush1.bf16.msra.mxu0 %v674
    %6112 = vmatprep.subr.bf16.mxu0 %v679
    %6113 = vmatpush1.bf16.msra.mxu0 %v678
    %6114 = vmatprep.subr.bf16.mxu0 %v683
    %6115 = vmatpush1.bf16.msra.mxu0 %v682
    %6116 = vmatprep.subr.bf16.mxu0 %v687
    %6117 = vmatpush1.bf16.msra.mxu0 %v686
    %6118 = vmatprep.subr.bf16.mxu0 %v691
    %6119 = vmatpush1.bf16.msra.mxu0 %v690
    %6120 = vmatprep.subr.bf16.mxu0 %v695
    %6121 = vmatpush1.bf16.msra.mxu0 %v694
    %6122 = vmatprep.subr.bf16.mxu0 %v699
    %6123 = vmatpush1.bf16.msra.mxu0 %v698
    %6124 = vmatprep.subr.bf16.mxu0 %v703
    %6125 = vmatpush1.bf16.msra.mxu0 %v702
    %6126 = vmatprep.subr.bf16.mxu0 %v707
    %6127 = vmatpush1.bf16.msra.mxu0 %v706
    %6128 = vmatprep.subr.bf16.mxu0 %v711
    %6129 = vmatpush1.bf16.msra.mxu0 %v710
    %6130 = vmatprep.subr.bf16.mxu0 %v715
    %6131 = vmatpush1.bf16.msra.mxu0 %v714
    %6132 = vmatprep.subr.bf16.mxu0 %v719
    %6133 = vmatpush1.bf16.msra.mxu0 %v718
    %6134 = vmatprep.subr.bf16.mxu0 %v723
    %6135 = vmatpush1.bf16.msra.mxu0 %v722
    %6136 = vmatprep.mubr.bf16.mxu0 %v6062
    %6137 = vmatmul.mubr.bf16.gmra.mrb[0].mxu0 %v6061
    %v6138 = vpop.f32.mrb[0].mxu0
    %v6139 = vadd.f32 %v189, %v6138
    %v6140 = vpop.f32.mrb[0].mxu0
    %v6141 = vadd.f32 %v193, %v6140
    %v6142 = vpop.f32.mrb[0].mxu0
    %v6143 = vpop.f32.mrb[0].mxu0
    %6144 = vdwg.mxu0
    %v6145 = vmul.f32 %v6098, 0.5
    %v6146 = vtanh.pop %v6145
    %v6147 = vmul.f32 %v6146, 0.5
    %v6148 = vadd.f32 %v6147, 0.5
    %v6149 = vmul.f32 %v6100, 0.5
    %v6150 = vtanh.pop %v6149
    %v6151 = vmul.f32 %v6150, 0.5
    %v6152 = vadd.f32 %v6151, 0.5
    %v6153 = vtanh.pop %v6139
    %v6154 = vmul.f32 %v6141, 0.5
    %v6155 = vtanh.pop %v6154
    %v6156 = vmul.f32 %v6155, 0.5
    %v6157 = vadd.f32 %v6156, 0.5
    %v6158 = vmul.f32 %v6152, %v5949
    %v6159 = vmul.f32 %v6148, %v6153
    %v6160 = vadd.f32 %v6158, %v6159
    %v6161 = vtanh.pop %v6160
    %v6162 = vmul.f32 %v6157, %v6161
    %s6163 = scalar_lea.vmem [#allocation2], 832
    %v6164 = vld [vmem:[%s6163] sm:$0xff]
    %v6165 = vld [vmem:[%s6163 + $0x8] sm:$0xff]
    %v6166 = vld [vmem:[%s6163 + $0x10] sm:$0xff]
    %v6167 = vld [vmem:[%s6163 + $0x18] sm:$0xff]
    %6168 = vmatprep.subr.bf16.mxu0 %v299
    %6169 = vmatpush1.bf16.msra.mxu0 %v298
    %6170 = vmatprep.subr.bf16.mxu0 %v303
    %6171 = vmatpush1.bf16.msra.mxu0 %v302
    %6172 = vmatprep.subr.bf16.mxu0 %v307
    %6173 = vmatpush1.bf16.msra.mxu0 %v306
    %6174 = vmatprep.subr.bf16.mxu0 %v311
    %6175 = vmatpush1.bf16.msra.mxu0 %v310
    %6176 = vmatprep.subr.bf16.mxu0 %v315
    %6177 = vmatpush1.bf16.msra.mxu0 %v314
    %6178 = vmatprep.subr.bf16.mxu0 %v319
    %6179 = vmatpush1.bf16.msra.mxu0 %v318
    %6180 = vmatprep.subr.bf16.mxu0 %v323
    %6181 = vmatpush1.bf16.msra.mxu0 %v322
    %6182 = vmatprep.subr.bf16.mxu0 %v327
    %6183 = vmatpush1.bf16.msra.mxu0 %v326
    %6184 = vmatprep.subr.bf16.mxu0 0
    %6185 = vmatpush1.bf16.msra.mxu0 0
    %6186 = vmatprep.subr.bf16.mxu0 0
    %6187 = vmatpush1.bf16.msra.mxu0 0
    %6188 = vmatprep.subr.bf16.mxu0 0
    %6189 = vmatpush1.bf16.msra.mxu0 0
    %6190 = vmatprep.subr.bf16.mxu0 0
    %6191 = vmatpush1.bf16.msra.mxu0 0
    %6192 = vmatprep.subr.bf16.mxu0 0
    %6193 = vmatpush1.bf16.msra.mxu0 0
    %6194 = vmatprep.subr.bf16.mxu0 0
    %6195 = vmatpush1.bf16.msra.mxu0 0
    %6196 = vmatprep.subr.bf16.mxu0 0
    %6197 = vmatpush1.bf16.msra.mxu0 0
    %6198 = vmatprep.subr.bf16.mxu0 0
    %6199 = vmatpush1.bf16.msra.mxu0 0
    %6200 = vmatprep.mubr.bf16.mxu0 0
    %6201 = vmatmul.mubr.bf16.gmra.mrb[0].mxu0 %v6061
    %v6202 = vpop.f32.mrb[0].mxu0
    %v6203 = vadd.f32 0.0, %v6202
    %v6204 = vpop.f32.mrb[0].mxu0
    %v6205 = vadd.f32 0.0, %v6204
    %v6206 = vpop.f32.mrb[0].mxu0
    %v6207 = vpop.f32.mrb[0].mxu0
    %6208 = vdwg.mxu0
    %6209 = vmatprep.subr.bf16.mxu0 %v301
    %6210 = vmatpush1.bf16.msra.mxu0 %v300
    %6211 = vmatprep.subr.bf16.mxu0 %v305
    %6212 = vmatpush1.bf16.msra.mxu0 %v304
    %6213 = vmatprep.subr.bf16.mxu0 %v309
    %6214 = vmatpush1.bf16.msra.mxu0 %v308
    %6215 = vmatprep.subr.bf16.mxu0 %v313
    %6216 = vmatpush1.bf16.msra.mxu0 %v312
    %6217 = vmatprep.subr.bf16.mxu0 %v317
    %6218 = vmatpush1.bf16.msra.mxu0 %v316
    %6219 = vmatprep.subr.bf16.mxu0 %v321
    %6220 = vmatpush1.bf16.msra.mxu0 %v320
    %6221 = vmatprep.subr.bf16.mxu0 %v325
    %6222 = vmatpush1.bf16.msra.mxu0 %v324
    %6223 = vmatprep.subr.bf16.mxu0 %v329
    %6224 = vmatpush1.bf16.msra.mxu0 %v328
    %6225 = vmatprep.subr.bf16.mxu0 0
    %6226 = vmatpush1.bf16.msra.mxu0 0
    %6227 = vmatprep.subr.bf16.mxu0 0
    %6228 = vmatpush1.bf16.msra.mxu0 0
    %6229 = vmatprep.subr.bf16.mxu0 0
    %6230 = vmatpush1.bf16.msra.mxu0 0
    %6231 = vmatprep.subr.bf16.mxu0 0
    %6232 = vmatpush1.bf16.msra.mxu0 0
    %6233 = vmatprep.subr.bf16.mxu0 0
    %6234 = vmatpush1.bf16.msra.mxu0 0
    %6235 = vmatprep.subr.bf16.mxu0 0
    %6236 = vmatpush1.bf16.msra.mxu0 0
    %6237 = vmatprep.subr.bf16.mxu0 0
    %6238 = vmatpush1.bf16.msra.mxu0 0
    %6239 = vmatprep.subr.bf16.mxu0 0
    %6240 = vmatpush1.bf16.msra.mxu0 0
    %6241 = vmatprep.mubr.bf16.mxu0 0
    %6242 = vmatmul.mubr.bf16.gmra.mrb[0].mxu0 %v6061
    %v6243 = vpop.f32.mrb[0].mxu0
    %v6244 = vadd.f32 0.0, %v6243
    %v6245 = vpop.f32.mrb[0].mxu0
    %v6246 = vadd.f32 0.0, %v6245
    %v6247 = vpop.f32.mrb[0].mxu0
    %v6248 = vpop.f32.mrb[0].mxu0
    %6249 = vdwg.mxu0
    %v6250 = vadd.f32 %v6164, %v6203
    %v6251 = vadd.f32 %v6165, %v6205
    %v6252 = vadd.f32 %v6166, %v6244
    %v6253 = vadd.f32 %v6167, %v6246
    %v6254 = vmul.f32 %v6250, 0.5
    %v6255 = vtanh.pop %v6254
    %v6256 = vmul.f32 %v6255, 0.5
    %v6257 = vadd.f32 %v6256, 0.5
    %v6258 = vmul.f32 %v6251, 0.5
    %v6259 = vtanh.pop %v6258
    %v6260 = vmul.f32 %v6259, 0.5
    %v6261 = vadd.f32 %v6260, 0.5
    %v6262 = vtanh.pop %v6252
    %v6263 = vmul.f32 %v6253, 0.5
    %v6264 = vtanh.pop %v6263
    %v6265 = vmul.f32 %v6264, 0.5
    %v6266 = vadd.f32 %v6265, 0.5
    %v6267 = vmul.f32 %v6261, %v6058
    %v6268 = vmul.f32 %v6257, %v6262
    %v6269 = vadd.f32 %v6267, %v6268
    %v6270 = vtanh.pop %v6269
    %v6271 = vmul.f32 %v6266, %v6270
    %v6272 = vpack.c.bf16 %v6271, %v6271
    %v6273 = vpack.c.bf16 %v6162, %v6162
    %6274 = vmatprep.subr.bf16.mxu0 %v661
    %6275 = vmatpush1.bf16.msra.mxu0 %v660
    %6276 = vmatprep.subr.bf16.mxu0 %v665
    %6277 = vmatpush1.bf16.msra.mxu0 %v664
    %6278 = vmatprep.subr.bf16.mxu0 %v669
    %6279 = vmatpush1.bf16.msra.mxu0 %v668
    %6280 = vmatprep.subr.bf16.mxu0 %v673
    %6281 = vmatpush1.bf16.msra.mxu0 %v672
    %6282 = vmatprep.subr.bf16.mxu0 %v677
    %6283 = vmatpush1.bf16.msra.mxu0 %v676
    %6284 = vmatprep.subr.bf16.mxu0 %v681
    %6285 = vmatpush1.bf16.msra.mxu0 %v680
    %6286 = vmatprep.subr.bf16.mxu0 %v685
    %6287 = vmatpush1.bf16.msra.mxu0 %v684
    %6288 = vmatprep.subr.bf16.mxu0 %v689
    %6289 = vmatpush1.bf16.msra.mxu0 %v688
    %6290 = vmatprep.subr.bf16.mxu0 %v693
    %6291 = vmatpush1.bf16.msra.mxu0 %v692
    %6292 = vmatprep.subr.bf16.mxu0 %v697
    %6293 = vmatpush1.bf16.msra.mxu0 %v696
    %6294 = vmatprep.subr.bf16.mxu0 %v701
    %6295 = vmatpush1.bf16.msra.mxu0 %v700
    %6296 = vmatprep.subr.bf16.mxu0 %v705
    %6297 = vmatpush1.bf16.msra.mxu0 %v704
    %6298 = vmatprep.subr.bf16.mxu0 %v709
    %6299 = vmatpush1.bf16.msra.mxu0 %v708
    %6300 = vmatprep.subr.bf16.mxu0 %v713
    %6301 = vmatpush1.bf16.msra.mxu0 %v712
    %6302 = vmatprep.subr.bf16.mxu0 %v717
    %6303 = vmatpush1.bf16.msra.mxu0 %v716
    %6304 = vmatprep.subr.bf16.mxu0 %v721
    %6305 = vmatpush1.bf16.msra.mxu0 %v720
    %6306 = vmatprep.mubr.bf16.mxu0 %v6273
    %6307 = vmatmul.mubr.bf16.gmra.mrb[0].mxu0 %v6272
    %v6308 = vpop.f32.mrb[0].mxu0
    %v6309 = vadd.f32 %v181, %v6308
    %v6310 = vpop.f32.mrb[0].mxu0
    %v6311 = vadd.f32 %v185, %v6310
    %v6312 = vpop.f32.mrb[0].mxu0
    %v6313 = vpop.f32.mrb[0].mxu0
    %6314 = vdwg.mxu0
    %6315 = vmatprep.subr.bf16.mxu0 %v663
    %6316 = vmatpush1.bf16.msra.mxu0 %v662
    %6317 = vmatprep.subr.bf16.mxu0 %v667
    %6318 = vmatpush1.bf16.msra.mxu0 %v666
    %6319 = vmatprep.subr.bf16.mxu0 %v671
    %6320 = vmatpush1.bf16.msra.mxu0 %v670
    %6321 = vmatprep.subr.bf16.mxu0 %v675
    %6322 = vmatpush1.bf16.msra.mxu0 %v674
    %6323 = vmatprep.subr.bf16.mxu0 %v679
    %6324 = vmatpush1.bf16.msra.mxu0 %v678
    %6325 = vmatprep.subr.bf16.mxu0 %v683
    %6326 = vmatpush1.bf16.msra.mxu0 %v682
    %6327 = vmatprep.subr.bf16.mxu0 %v687
    %6328 = vmatpush1.bf16.msra.mxu0 %v686
    %6329 = vmatprep.subr.bf16.mxu0 %v691
    %6330 = vmatpush1.bf16.msra.mxu0 %v690
    %6331 = vmatprep.subr.bf16.mxu0 %v695
    %6332 = vmatpush1.bf16.msra.mxu0 %v694
    %6333 = vmatprep.subr.bf16.mxu0 %v699
    %6334 = vmatpush1.bf16.msra.mxu0 %v698
    %6335 = vmatprep.subr.bf16.mxu0 %v703
    %6336 = vmatpush1.bf16.msra.mxu0 %v702
    %6337 = vmatprep.subr.bf16.mxu0 %v707
    %6338 = vmatpush1.bf16.msra.mxu0 %v706
    %6339 = vmatprep.subr.bf16.mxu0 %v711
    %6340 = vmatpush1.bf16.msra.mxu0 %v710
    %6341 = vmatprep.subr.bf16.mxu0 %v715
    %6342 = vmatpush1.bf16.msra.mxu0 %v714
    %6343 = vmatprep.subr.bf16.mxu0 %v719
    %6344 = vmatpush1.bf16.msra.mxu0 %v718
    %6345 = vmatprep.subr.bf16.mxu0 %v723
    %6346 = vmatpush1.bf16.msra.mxu0 %v722
    %6347 = vmatprep.mubr.bf16.mxu0 %v6273
    %6348 = vmatmul.mubr.bf16.gmra.mrb[0].mxu0 %v6272
    %v6349 = vpop.f32.mrb[0].mxu0
    %v6350 = vadd.f32 %v189, %v6349
    %v6351 = vpop.f32.mrb[0].mxu0
    %v6352 = vadd.f32 %v193, %v6351
    %v6353 = vpop.f32.mrb[0].mxu0
    %v6354 = vpop.f32.mrb[0].mxu0
    %6355 = vdwg.mxu0
    %v6356 = vmul.f32 %v6309, 0.5
    %v6357 = vtanh.pop %v6356
    %v6358 = vmul.f32 %v6357, 0.5
    %v6359 = vadd.f32 %v6358, 0.5
    %v6360 = vmul.f32 %v6311, 0.5
    %v6361 = vtanh.pop %v6360
    %v6362 = vmul.f32 %v6361, 0.5
    %v6363 = vadd.f32 %v6362, 0.5
    %v6364 = vtanh.pop %v6350
    %v6365 = vmul.f32 %v6352, 0.5
    %v6366 = vtanh.pop %v6365
    %v6367 = vmul.f32 %v6366, 0.5
    %v6368 = vadd.f32 %v6367, 0.5
    %v6369 = vmul.f32 %v6363, %v6160
    %v6370 = vmul.f32 %v6359, %v6364
    %v6371 = vadd.f32 %v6369, %v6370
    %v6372 = vtanh.pop %v6371
    %v6373 = vmul.f32 %v6368, %v6372
    %s6374 = scalar_lea.vmem [#allocation2], 864
    %v6375 = vld [vmem:[%s6374] sm:$0xff]
    %v6376 = vld [vmem:[%s6374 + $0x8] sm:$0xff]
    %v6377 = vld [vmem:[%s6374 + $0x10] sm:$0xff]
    %v6378 = vld [vmem:[%s6374 + $0x18] sm:$0xff]
    %6379 = vmatprep.subr.bf16.mxu0 %v299
    %6380 = vmatpush1.bf16.msra.mxu0 %v298
    %6381 = vmatprep.subr.bf16.mxu0 %v303
    %6382 = vmatpush1.bf16.msra.mxu0 %v302
    %6383 = vmatprep.subr.bf16.mxu0 %v307
    %6384 = vmatpush1.bf16.msra.mxu0 %v306
    %6385 = vmatprep.subr.bf16.mxu0 %v311
    %6386 = vmatpush1.bf16.msra.mxu0 %v310
    %6387 = vmatprep.subr.bf16.mxu0 %v315
    %6388 = vmatpush1.bf16.msra.mxu0 %v314
    %6389 = vmatprep.subr.bf16.mxu0 %v319
    %6390 = vmatpush1.bf16.msra.mxu0 %v318
    %6391 = vmatprep.subr.bf16.mxu0 %v323
    %6392 = vmatpush1.bf16.msra.mxu0 %v322
    %6393 = vmatprep.subr.bf16.mxu0 %v327
    %6394 = vmatpush1.bf16.msra.mxu0 %v326
    %6395 = vmatprep.subr.bf16.mxu0 0
    %6396 = vmatpush1.bf16.msra.mxu0 0
    %6397 = vmatprep.subr.bf16.mxu0 0
    %6398 = vmatpush1.bf16.msra.mxu0 0
    %6399 = vmatprep.subr.bf16.mxu0 0
    %6400 = vmatpush1.bf16.msra.mxu0 0
    %6401 = vmatprep.subr.bf16.mxu0 0
    %6402 = vmatpush1.bf16.msra.mxu0 0
    %6403 = vmatprep.subr.bf16.mxu0 0
    %6404 = vmatpush1.bf16.msra.mxu0 0
    %6405 = vmatprep.subr.bf16.mxu0 0
    %6406 = vmatpush1.bf16.msra.mxu0 0
    %6407 = vmatprep.subr.bf16.mxu0 0
    %6408 = vmatpush1.bf16.msra.mxu0 0
    %6409 = vmatprep.subr.bf16.mxu0 0
    %6410 = vmatpush1.bf16.msra.mxu0 0
    %6411 = vmatprep.mubr.bf16.mxu0 0
    %6412 = vmatmul.mubr.bf16.gmra.mrb[0].mxu0 %v6272
    %v6413 = vpop.f32.mrb[0].mxu0
    %v6414 = vadd.f32 0.0, %v6413
    %v6415 = vpop.f32.mrb[0].mxu0
    %v6416 = vadd.f32 0.0, %v6415
    %v6417 = vpop.f32.mrb[0].mxu0
    %v6418 = vpop.f32.mrb[0].mxu0
    %6419 = vdwg.mxu0
    %6420 = vmatprep.subr.bf16.mxu0 %v301
    %6421 = vmatpush1.bf16.msra.mxu0 %v300
    %6422 = vmatprep.subr.bf16.mxu0 %v305
    %6423 = vmatpush1.bf16.msra.mxu0 %v304
    %6424 = vmatprep.subr.bf16.mxu0 %v309
    %6425 = vmatpush1.bf16.msra.mxu0 %v308
    %6426 = vmatprep.subr.bf16.mxu0 %v313
    %6427 = vmatpush1.bf16.msra.mxu0 %v312
    %6428 = vmatprep.subr.bf16.mxu0 %v317
    %6429 = vmatpush1.bf16.msra.mxu0 %v316
    %6430 = vmatprep.subr.bf16.mxu0 %v321
    %6431 = vmatpush1.bf16.msra.mxu0 %v320
    %6432 = vmatprep.subr.bf16.mxu0 %v325
    %6433 = vmatpush1.bf16.msra.mxu0 %v324
    %6434 = vmatprep.subr.bf16.mxu0 %v329
    %6435 = vmatpush1.bf16.msra.mxu0 %v328
    %6436 = vmatprep.subr.bf16.mxu0 0
    %6437 = vmatpush1.bf16.msra.mxu0 0
    %6438 = vmatprep.subr.bf16.mxu0 0
    %6439 = vmatpush1.bf16.msra.mxu0 0
    %6440 = vmatprep.subr.bf16.mxu0 0
    %6441 = vmatpush1.bf16.msra.mxu0 0
    %6442 = vmatprep.subr.bf16.mxu0 0
    %6443 = vmatpush1.bf16.msra.mxu0 0
    %6444 = vmatprep.subr.bf16.mxu0 0
    %6445 = vmatpush1.bf16.msra.mxu0 0
    %6446 = vmatprep.subr.bf16.mxu0 0
    %6447 = vmatpush1.bf16.msra.mxu0 0
    %6448 = vmatprep.subr.bf16.mxu0 0
    %6449 = vmatpush1.bf16.msra.mxu0 0
    %6450 = vmatprep.subr.bf16.mxu0 0
    %6451 = vmatpush1.bf16.msra.mxu0 0
    %6452 = vmatprep.mubr.bf16.mxu0 0
    %6453 = vmatmul.mubr.bf16.gmra.mrb[0].mxu0 %v6272
    %v6454 = vpop.f32.mrb[0].mxu0
    %v6455 = vadd.f32 0.0, %v6454
    %v6456 = vpop.f32.mrb[0].mxu0
    %v6457 = vadd.f32 0.0, %v6456
    %v6458 = vpop.f32.mrb[0].mxu0
    %v6459 = vpop.f32.mrb[0].mxu0
    %6460 = vdwg.mxu0
    %v6461 = vadd.f32 %v6375, %v6414
    %v6462 = vadd.f32 %v6376, %v6416
    %v6463 = vadd.f32 %v6377, %v6455
    %v6464 = vadd.f32 %v6378, %v6457
    %v6465 = vmul.f32 %v6461, 0.5
    %v6466 = vtanh.pop %v6465
    %v6467 = vmul.f32 %v6466, 0.5
    %v6468 = vadd.f32 %v6467, 0.5
    %v6469 = vmul.f32 %v6462, 0.5
    %v6470 = vtanh.pop %v6469
    %v6471 = vmul.f32 %v6470, 0.5
    %v6472 = vadd.f32 %v6471, 0.5
    %v6473 = vtanh.pop %v6463
    %v6474 = vmul.f32 %v6464, 0.5
    %v6475 = vtanh.pop %v6474
    %v6476 = vmul.f32 %v6475, 0.5
    %v6477 = vadd.f32 %v6476, 0.5
    %v6478 = vmul.f32 %v6472, %v6269
    %v6479 = vmul.f32 %v6468, %v6473
    %v6480 = vadd.f32 %v6478, %v6479
    %v6481 = vtanh.pop %v6480
    %v6482 = vmul.f32 %v6477, %v6481
    %v6483 = vpack.c.bf16 %v6482, %v6482
    %v6484 = vpack.c.bf16 %v6373, %v6373
    %6485 = vmatprep.subr.bf16.mxu0 %v661
    %6486 = vmatpush1.bf16.msra.mxu0 %v660
    %6487 = vmatprep.subr.bf16.mxu0 %v665
    %6488 = vmatpush1.bf16.msra.mxu0 %v664
    %6489 = vmatprep.subr.bf16.mxu0 %v669
    %6490 = vmatpush1.bf16.msra.mxu0 %v668
    %6491 = vmatprep.subr.bf16.mxu0 %v673
    %6492 = vmatpush1.bf16.msra.mxu0 %v672
    %6493 = vmatprep.subr.bf16.mxu0 %v677
    %6494 = vmatpush1.bf16.msra.mxu0 %v676
    %6495 = vmatprep.subr.bf16.mxu0 %v681
    %6496 = vmatpush1.bf16.msra.mxu0 %v680
    %6497 = vmatprep.subr.bf16.mxu0 %v685
    %6498 = vmatpush1.bf16.msra.mxu0 %v684
    %6499 = vmatprep.subr.bf16.mxu0 %v689
    %6500 = vmatpush1.bf16.msra.mxu0 %v688
    %6501 = vmatprep.subr.bf16.mxu0 %v693
    %6502 = vmatpush1.bf16.msra.mxu0 %v692
    %6503 = vmatprep.subr.bf16.mxu0 %v697
    %6504 = vmatpush1.bf16.msra.mxu0 %v696
    %6505 = vmatprep.subr.bf16.mxu0 %v701
    %6506 = vmatpush1.bf16.msra.mxu0 %v700
    %6507 = vmatprep.subr.bf16.mxu0 %v705
    %6508 = vmatpush1.bf16.msra.mxu0 %v704
    %6509 = vmatprep.subr.bf16.mxu0 %v709
    %6510 = vmatpush1.bf16.msra.mxu0 %v708
    %6511 = vmatprep.subr.bf16.mxu0 %v713
    %6512 = vmatpush1.bf16.msra.mxu0 %v712
    %6513 = vmatprep.subr.bf16.mxu0 %v717
    %6514 = vmatpush1.bf16.msra.mxu0 %v716
    %6515 = vmatprep.subr.bf16.mxu0 %v721
    %6516 = vmatpush1.bf16.msra.mxu0 %v720
    %6517 = vmatprep.mubr.bf16.mxu0 %v6484
    %6518 = vmatmul.mubr.bf16.gmra.mrb[0].mxu0 %v6483
    %v6519 = vpop.f32.mrb[0].mxu0
    %v6520 = vadd.f32 %v181, %v6519
    %v6521 = vpop.f32.mrb[0].mxu0
    %v6522 = vadd.f32 %v185, %v6521
    %v6523 = vpop.f32.mrb[0].mxu0
    %v6524 = vpop.f32.mrb[0].mxu0
    %6525 = vdwg.mxu0
    %6526 = vmatprep.subr.bf16.mxu0 %v663
    %6527 = vmatpush1.bf16.msra.mxu0 %v662
    %6528 = vmatprep.subr.bf16.mxu0 %v667
    %6529 = vmatpush1.bf16.msra.mxu0 %v666
    %6530 = vmatprep.subr.bf16.mxu0 %v671
    %6531 = vmatpush1.bf16.msra.mxu0 %v670
    %6532 = vmatprep.subr.bf16.mxu0 %v675
    %6533 = vmatpush1.bf16.msra.mxu0 %v674
    %6534 = vmatprep.subr.bf16.mxu0 %v679
    %6535 = vmatpush1.bf16.msra.mxu0 %v678
    %6536 = vmatprep.subr.bf16.mxu0 %v683
    %6537 = vmatpush1.bf16.msra.mxu0 %v682
    %6538 = vmatprep.subr.bf16.mxu0 %v687
    %6539 = vmatpush1.bf16.msra.mxu0 %v686
    %6540 = vmatprep.subr.bf16.mxu0 %v691
    %6541 = vmatpush1.bf16.msra.mxu0 %v690
    %6542 = vmatprep.subr.bf16.mxu0 %v695
    %6543 = vmatpush1.bf16.msra.mxu0 %v694
    %6544 = vmatprep.subr.bf16.mxu0 %v699
    %6545 = vmatpush1.bf16.msra.mxu0 %v698
    %6546 = vmatprep.subr.bf16.mxu0 %v703
    %6547 = vmatpush1.bf16.msra.mxu0 %v702
    %6548 = vmatprep.subr.bf16.mxu0 %v707
    %6549 = vmatpush1.bf16.msra.mxu0 %v706
    %6550 = vmatprep.subr.bf16.mxu0 %v711
    %6551 = vmatpush1.bf16.msra.mxu0 %v710
    %6552 = vmatprep.subr.bf16.mxu0 %v715
    %6553 = vmatpush1.bf16.msra.mxu0 %v714
    %6554 = vmatprep.subr.bf16.mxu0 %v719
    %6555 = vmatpush1.bf16.msra.mxu0 %v718
    %6556 = vmatprep.subr.bf16.mxu0 %v723
    %6557 = vmatpush1.bf16.msra.mxu0 %v722
    %6558 = vmatprep.mubr.bf16.mxu0 %v6484
    %6559 = vmatmul.mubr.bf16.gmra.mrb[0].mxu0 %v6483
    %v6560 = vpop.f32.mrb[0].mxu0
    %v6561 = vadd.f32 %v189, %v6560
    %v6562 = vpop.f32.mrb[0].mxu0
    %v6563 = vadd.f32 %v193, %v6562
    %v6564 = vpop.f32.mrb[0].mxu0
    %v6565 = vpop.f32.mrb[0].mxu0
    %6566 = vdwg.mxu0
    %v6567 = vmul.f32 %v6520, 0.5
    %v6568 = vtanh.pop %v6567
    %v6569 = vmul.f32 %v6568, 0.5
    %v6570 = vadd.f32 %v6569, 0.5
    %v6571 = vmul.f32 %v6522, 0.5
    %v6572 = vtanh.pop %v6571
    %v6573 = vmul.f32 %v6572, 0.5
    %v6574 = vadd.f32 %v6573, 0.5
    %v6575 = vtanh.pop %v6561
    %v6576 = vmul.f32 %v6563, 0.5
    %v6577 = vtanh.pop %v6576
    %v6578 = vmul.f32 %v6577, 0.5
    %v6579 = vadd.f32 %v6578, 0.5
    %v6580 = vmul.f32 %v6574, %v6371
    %v6581 = vmul.f32 %v6570, %v6575
    %v6582 = vadd.f32 %v6580, %v6581
    %v6583 = vtanh.pop %v6582
    %v6584 = vmul.f32 %v6579, %v6583
    %v6585 = vpack.c.bf16 %v6584, %v6584
    %v6586 = vld [vmem:[#allocation8] sm:$0xf]
    %v6587 = vld [vmem:[#allocation8 + $0x4] sm:$0xf]
    %v6588 = vld [vmem:[#allocation8 + $0x8] sm:$0xf]
    %v6589 = vld [vmem:[#allocation8 + $0xc] sm:$0xf]
    %v6590 = vld [vmem:[#allocation8 + $0x10] sm:$0xf]
    %v6591 = vld [vmem:[#allocation8 + $0x14] sm:$0xf]
    %v6592 = vld [vmem:[#allocation8 + $0x18] sm:$0xf]
    %v6593 = vld [vmem:[#allocation8 + $0x1c] sm:$0xf]
    %v6594 = vld [vmem:[#allocation8 + $0x20] sm:$0xf]
    %v6595 = vld [vmem:[#allocation8 + $0x24] sm:$0xf]
    %v6596 = vld [vmem:[#allocation8 + $0x28] sm:$0xf]
    %v6597 = vld [vmem:[#allocation8 + $0x2c] sm:$0xf]
    %v6598 = vld [vmem:[#allocation8 + $0x30] sm:$0xf]
    %v6599 = vld [vmem:[#allocation8 + $0x34] sm:$0xf]
    %v6600 = vld [vmem:[#allocation8 + $0x38] sm:$0xf]
    %v6601 = vld [vmem:[#allocation8 + $0x3c] sm:$0xf]
    %v6602 = vld [vmem:[%s5] sm:$0x1]
    %v6604 = vlaneseq
    %v6605 = vshrl.u32 %v6604, 7
    %v6606 = vsub.s32 0, %v6605
    %v6607 = vrot.slane %v6602, %v6606
    %v6625 = vunpack.c.l.b16 %v6586
    %v6626 = vunpack.c.l.b16 %v6587
    %v6627 = vunpack.c.l.b16 %v6588
    %v6628 = vunpack.c.l.b16 %v6589
    %v6629 = vunpack.c.l.b16 %v6590
    %v6630 = vunpack.c.l.b16 %v6591
    %v6631 = vunpack.c.l.b16 %v6592
    %v6632 = vunpack.c.l.b16 %v6593
    %v6633 = vunpack.c.l.b16 %v6594
    %v6634 = vunpack.c.l.b16 %v6595
    %v6635 = vunpack.c.l.b16 %v6596
    %v6636 = vunpack.c.l.b16 %v6597
    %v6637 = vunpack.c.l.b16 %v6598
    %v6638 = vunpack.c.l.b16 %v6599
    %v6639 = vunpack.c.l.b16 %v6600
    %v6640 = vunpack.c.l.b16 %v6601
    %v6641 = vpack.c.b16 %v6626, %v6625
    %v6642 = vpack.c.b16 %v6628, %v6627
    %v6643 = vpack.c.b16 %v6630, %v6629
    %v6644 = vpack.c.b16 %v6632, %v6631
    %v6645 = vpack.c.b16 %v6634, %v6633
    %v6646 = vpack.c.b16 %v6636, %v6635
    %v6647 = vpack.c.b16 %v6638, %v6637
    %v6648 = vpack.c.b16 %v6640, %v6639
    %6657 = vmatprep.subr.bf16.mxu0 0
    %6658 = vmatpush1.bf16.msra.mxu0 %v6641
    %6659 = vmatprep.subr.bf16.mxu0 0
    %6660 = vmatpush1.bf16.msra.mxu0 %v6642
    %6661 = vmatprep.subr.bf16.mxu0 0
    %6662 = vmatpush1.bf16.msra.mxu0 %v6643
    %6663 = vmatprep.subr.bf16.mxu0 0
    %6664 = vmatpush1.bf16.msra.mxu0 %v6644
    %6665 = vmatprep.subr.bf16.mxu0 0
    %6666 = vmatpush1.bf16.msra.mxu0 %v6645
    %6667 = vmatprep.subr.bf16.mxu0 0
    %6668 = vmatpush1.bf16.msra.mxu0 %v6646
    %6669 = vmatprep.subr.bf16.mxu0 0
    %6670 = vmatpush1.bf16.msra.mxu0 %v6647
    %6671 = vmatprep.subr.bf16.mxu0 0
    %6672 = vmatpush1.bf16.msra.mxu0 %v6648
    %6673 = vmatprep.subr.bf16.mxu0 0
    %6674 = vmatpush1.bf16.msra.mxu0 0
    %6675 = vmatprep.subr.bf16.mxu0 0
    %6676 = vmatpush1.bf16.msra.mxu0 0
    %6677 = vmatprep.subr.bf16.mxu0 0
    %6678 = vmatpush1.bf16.msra.mxu0 0
    %6679 = vmatprep.subr.bf16.mxu0 0
    %6680 = vmatpush1.bf16.msra.mxu0 0
    %6681 = vmatprep.subr.bf16.mxu0 0
    %6682 = vmatpush1.bf16.msra.mxu0 0
    %6683 = vmatprep.subr.bf16.mxu0 0
    %6684 = vmatpush1.bf16.msra.mxu0 0
    %6685 = vmatprep.subr.bf16.mxu0 0
    %6686 = vmatpush1.bf16.msra.mxu0 0
    %6687 = vmatprep.subr.bf16.mxu0 0
    %6688 = vmatpush1.bf16.msra.mxu0 0
    %6689 = vmatprep.mubr.bf16.mxu0 0
    %6690 = vmatmul.mubr.bf16.gmra.mrb[0].mxu0 %v6585
    %v6691 = vpop.f32.mrb[0].mxu0
    %v6692 = vadd.f32 %v6607, %v6691
    %v6693 = vpop.f32.mrb[0].mxu0
    %v6694 = vpop.f32.mrb[0].mxu0
    %v6695 = vpop.f32.mrb[0].mxu0
    %6696 = vdwg.mxu0
    %6697 = vst [vmem:[#allocation10] sm:$0xff] %v6692
    // Predicated region
    $region42: #{tpu_custom_call.1} parent=1 // pred_check
      _
    $region43: #{tpu_custom_call.1} parent=1 // pred_check_branch
      %6699 = sbr.rel (0) target = $region45
    $region44: #{tpu_custom_call.1} parent=1 // pred_region
      %s6701 = ssub.s32 128, 128
      %6702 = vsyncadd [#allocation4], %s6701
      %s6704 = sshll.u32 [#allocation10], 4
      %s6705 = int_to_ptr.vmem [resolvable:$true] %s6704
      %6707 = dma.vmem_to_hbm [thread:$0]  %s6705, 128, %s6, [#allocation4]
    $region45: #{tpu_custom_call.1} parent=1 // pred_fallthru
      _
    // Predicated region
    $region46: #{tpu_custom_call.1} parent=1 // pred_check
      _
    $region47: #{tpu_custom_call.1} parent=1 // pred_check_branch
      %6709 = sbr.rel (0) target = $region49
    $region48: #{tpu_custom_call.1} parent=1 // pred_region
      %6710 = dma.done [#allocation4], 128
    $region49: #{tpu_custom_call.1} parent=1 // pred_fallthru
      _
    %6711 = vsyncpa [#allocation3], 1
    %6712 = vsyncpa [#allocation6], 1
    %6713 = vsyncpa [#allocation9], 1
    %6714 = vsyncpa [#allocation4], 1

</llo_original>
